<compile_context>
chip_gen: v5e
topology: v5e:2x2
jax: 0.10.0
libtpu: 0.0.40
codegen_flags: <defaults>
</compile_context>

<pallas_src>
import jax
import jax.numpy as jnp
from jax.experimental import pallas as pl
from jax.experimental.pallas import tpu as pltpu

VOCAB_SIZE = 10000
EMBED_DIM = 64
HIDDEN_DIM = 128
NUM_CLASSES = 2
CLASS_PAD = 128          # lane-dense padded class dim (output minor dim)


def simple_nn_kernel(ids_ref,                          # SMEM (Bp, L) int32 (prefetch)
                     emb_ref,                          # HBM  (V, D)  f32   (pl.ANY)
                     w1_ref, b1_ref, w2_ref, b2_ref,   # VMEM-resident weights
                     o_ref,                            # VMEM (TB, 128) f32 out tile
                     x_vmem,                           # VMEM (TB*L, D) f32 scratch
                     sem):                             # DMA semaphore
    i = pl.program_id(0)
    tb = o_ref.shape[0]
    L = ids_ref.shape[1]
    D = x_vmem.shape[1]

    # ---- fused embedding gather: one row DMA per (batch row, token) --------
    copies = []
    for r in range(tb):
        for l in range(L):
            tok = ids_ref[i * tb + r, l]
            cp = pltpu.make_async_copy(
                emb_ref.at[pl.ds(tok, 1)],           # (1, D) table row in HBM
                x_vmem.at[pl.ds(r * L + l, 1)],      # (1, D) VMEM slot
                sem)
            cp.start()
            copies.append(cp)
    for cp in copies:                                # all copies same shape/sem
        cp.wait()

    # ---- mean pool over the sequence (1/L is folded into w1 by the wrapper)
    x = x_vmem[...]                                  # (TB*L, D) f32
    pooled = jnp.sum(x.reshape(tb, L, D), axis=1)    # (TB, D)   f32

    # ---- fc1 + ReLU: bf16 MXU operands, f32 accumulate / element-wise ------
    h = jnp.dot(pooled.astype(jnp.bfloat16), w1_ref[...],
                preferred_element_type=jnp.float32)
    h = jnp.maximum(h + b1_ref[...], 0.0)            # (TB, H) f32

    # ---- fc2: class dim padded to 128 lanes (pad cols: w = 0, bias = -1e9) -
    logits = jnp.dot(h.astype(jnp.bfloat16), w2_ref[...],
                     preferred_element_type=jnp.float32)
    logits = logits + b2_ref[...]                    # (TB, 128) f32

    # ---- numerically-stable log_softmax over the (padded) class axis -------
    m = jnp.max(logits, axis=1, keepdims=True)
    shifted = logits - m
    lse = jnp.log(jnp.sum(jnp.exp(shifted), axis=1, keepdims=True))
    o_ref[...] = shifted - lse                       # full-lane (128) store


def simple_nn_forward(token_ids, params, *, tb=8):
    """token_ids: (B, L) int32. params: f32, Linear weights as (in, out)."""
    emb, w1, b1, w2, b2 = params
    B, L = token_ids.shape

    # Pad batch to a multiple of the tile; padded rows use token id 0 and are
    # sliced off at the end.
    num_tiles = pl.cdiv(B, tb)
    Bp = num_tiles * tb
    ids = token_ids.astype(jnp.int32)
    if Bp != B:
        ids = jnp.pad(ids, ((0, Bp - B), (0, 0)))

    # Kernel-side parameter layouts (cheap prep, fused by XLA):
    #   * 1/L mean scale folded into w1; matmul weights stored in bf16
    #   * class dim padded to 128 lanes; padded bias = -1e9 so exp() -> 0
    w1k = (w1 * (1.0 / L)).astype(jnp.bfloat16)                     # (D, H)
    b1k = b1.astype(jnp.float32)                                    # (1, H)
    w2k = jnp.zeros((HIDDEN_DIM, CLASS_PAD), jnp.bfloat16)
    w2k = w2k.at[:, :NUM_CLASSES].set(w2.astype(jnp.bfloat16))      # (H, 128)
    b2k = jnp.full((1, CLASS_PAD), -1e9, jnp.float32)
    b2k = b2k.at[:, :NUM_CLASSES].set(b2.astype(jnp.float32))       # (1, 128)

    grid_spec = pltpu.PrefetchScalarGridSpec(
        num_scalar_prefetch=1,                       # token ids -> SMEM
        grid=(num_tiles,),
        in_specs=[
            pl.BlockSpec(memory_space=pl.ANY),                             # emb
            pl.BlockSpec((EMBED_DIM, HIDDEN_DIM), lambda i, ids: (0, 0)),  # w1
            pl.BlockSpec((1, HIDDEN_DIM), lambda i, ids: (0, 0)),          # b1
            pl.BlockSpec((HIDDEN_DIM, CLASS_PAD), lambda i, ids: (0, 0)),  # w2
            pl.BlockSpec((1, CLASS_PAD), lambda i, ids: (0, 0)),           # b2
        ],
        out_specs=pl.BlockSpec((tb, CLASS_PAD), lambda i, ids: (i, 0)),
        scratch_shapes=[
            pltpu.VMEM((tb * L, EMBED_DIM), jnp.float32),   # gathered rows
            pltpu.SemaphoreType.DMA(()),                    # gather DMA sem
        ],
    )

    out_padded = pl.pallas_call(
        simple_nn_kernel,
        out_shape=jax.ShapeDtypeStruct((Bp, CLASS_PAD), jnp.float32),
        grid_spec=grid_spec,
        compiler_params=pltpu.CompilerParams(
            dimension_semantics=("parallel",),      # shard batch tiles (v7x 2 TCs)
            vmem_limit_bytes=32 * 1024 * 1024),
    )(ids, emb.astype(jnp.float32), w1k, b1k, w2k, b2k)

    return out_padded[:B, :NUM_CLASSES]


def init_params(key):
    k_emb, k_w1, k_b1, k_w2, k_b2 = jax.random.split(key, 5)
    # nn.Embedding default init: N(0, 1)
    emb = jax.random.normal(k_emb, (VOCAB_SIZE, EMBED_DIM), jnp.float32)
    # nn.Linear default init: U(-1/sqrt(fan_in), 1/sqrt(fan_in))
    lim1 = 1.0 / (EMBED_DIM ** 0.5)
    w1 = jax.random.uniform(k_w1, (EMBED_DIM, HIDDEN_DIM), jnp.float32, -lim1, lim1)
    b1 = jax.random.uniform(k_b1, (1, HIDDEN_DIM), jnp.float32, -lim1, lim1)
    lim2 = 1.0 / (HIDDEN_DIM ** 0.5)
    w2 = jax.random.uniform(k_w2, (HIDDEN_DIM, NUM_CLASSES), jnp.float32, -lim2, lim2)
    b2 = jax.random.uniform(k_b2, (1, NUM_CLASSES), jnp.float32, -lim2, lim2)
    return emb, w1, b1, w2, b2


def reference_forward(token_ids, params):
    # Pure f32 reference matching the PyTorch module.
    emb, w1, b1, w2, b2 = params
    x = emb[token_ids].mean(axis=1)
    x = jnp.maximum(x @ w1 + b1, 0.0)
    logits = x @ w2 + b2
    return jax.nn.log_softmax(logits, axis=1)


if __name__ == "__main__":
    key = jax.random.PRNGKey(0)
    k_params, k_ids = jax.random.split(key)
    params = init_params(k_params)

    B, L = 2, 8  # small batch=2, seq=8
    token_ids = jax.random.randint(k_ids, (B, L), 0, VOCAB_SIZE, dtype=jnp.int32)

    out = jax.block_until_ready(simple_nn_forward(token_ids, params))
    ref = jax.block_until_ready(reference_forward(token_ids, params))

    assert out.shape == (B, NUM_CLASSES), out.shape
    # bf16 matmul operands (f32 accumulate) vs the pure-f32 reference.
    assert jnp.allclose(out, ref, atol=2e-2, rtol=2e-2), (
        f"max abs diff {jnp.max(jnp.abs(out - ref))}")
    print("KERNEL_OK")
</pallas_src>

<mosaic_0001>
module attributes {stable_mosaic.version = 11 : i64} {
  func.func @simple_nn_kernel(%arg0: i32, %arg1: memref<8x8xi32, #tpu.memory_space<smem>>, %arg2: memref<10000x64xf32, #tpu.memory_space<any>>, %arg3: memref<64x128xbf16, #tpu.memory_space<vmem>>, %arg4: memref<1x128xf32, #tpu.memory_space<vmem>>, %arg5: memref<128x128xbf16, #tpu.memory_space<vmem>>, %arg6: memref<1x128xf32, #tpu.memory_space<vmem>>, %arg7: memref<8x128xf32, #tpu.memory_space<vmem>>, %arg8: memref<64x64xf32, #tpu.memory_space<vmem>>, %arg9: memref<!tpu.dma_semaphore, #tpu.memory_space<semaphore_mem>>) attributes {dimension_semantics = [#tpu.dimension_semantics<parallel>], iteration_bounds = array<i64: 1>, scalar_prefetch = 1 : i64, scratch_operands = 2 : i64, tpu.core_type = #tpu.core_type<tc>, window_params = [{}, {pipeline_mode = #tpu.pipeline_mode<synchronous>, transform_indices = @transform_1, window_bounds = array<i64: 64, 128>}, {pipeline_mode = #tpu.pipeline_mode<synchronous>, transform_indices = @transform_2, window_bounds = array<i64: 1, 128>}, {pipeline_mode = #tpu.pipeline_mode<synchronous>, transform_indices = @transform_3, window_bounds = array<i64: 128, 128>}, {pipeline_mode = #tpu.pipeline_mode<synchronous>, transform_indices = @transform_4, window_bounds = array<i64: 1, 128>}, {transform_indices = @transform_5, window_bounds = array<i64: 8, 128>}]} {
    %c8_i32 = arith.constant 8 : i32
    %0 = arith.muli %arg0, %c8_i32 : i32
    %c0_i32 = arith.constant 0 : i32
    %1 = arith.addi %0, %c0_i32 : i32
    %2 = arith.index_cast %1 : i32 to index
    %c0 = arith.constant 0 : index
    %3 = memref.load %arg1[%2, %c0] : memref<8x8xi32, #tpu.memory_space<smem>>
    %c0_i32_0 = arith.constant 0 : i32
    %4 = tpu.memref_slice %arg2[%3, %c0_i32_0] : memref<10000x64xf32, #tpu.memory_space<any>> -> memref<1x64xf32, #tpu.memory_space<any>>
    %c0_i32_1 = arith.constant 0 : i32
    %c0_i32_2 = arith.constant 0 : i32
    %5 = tpu.memref_slice %arg8[%c0_i32_1, %c0_i32_2] : memref<64x64xf32, #tpu.memory_space<vmem>> -> memref<1x64xf32, #tpu.memory_space<vmem>>
    tpu.enqueue_dma source(%4 : memref<1x64xf32, #tpu.memory_space<any>>) target(%5 : memref<1x64xf32, #tpu.memory_space<vmem>>) target_semaphore(%arg9 : memref<!tpu.dma_semaphore, #tpu.memory_space<semaphore_mem>>)
    %c8_i32_3 = arith.constant 8 : i32
    %6 = arith.muli %arg0, %c8_i32_3 : i32
    %c0_i32_4 = arith.constant 0 : i32
    %7 = arith.addi %6, %c0_i32_4 : i32
    %8 = arith.index_cast %7 : i32 to index
    %c1 = arith.constant 1 : index
    %9 = memref.load %arg1[%8, %c1] : memref<8x8xi32, #tpu.memory_space<smem>>
    %c0_i32_5 = arith.constant 0 : i32
    %10 = tpu.memref_slice %arg2[%9, %c0_i32_5] : memref<10000x64xf32, #tpu.memory_space<any>> -> memref<1x64xf32, #tpu.memory_space<any>>
    %c1_i32 = arith.constant 1 : i32
    %c0_i32_6 = arith.constant 0 : i32
    %11 = tpu.memref_slice %arg8[%c1_i32, %c0_i32_6] : memref<64x64xf32, #tpu.memory_space<vmem>> -> memref<1x64xf32, #tpu.memory_space<vmem>>
    tpu.enqueue_dma source(%10 : memref<1x64xf32, #tpu.memory_space<any>>) target(%11 : memref<1x64xf32, #tpu.memory_space<vmem>>) target_semaphore(%arg9 : memref<!tpu.dma_semaphore, #tpu.memory_space<semaphore_mem>>)
    %c8_i32_7 = arith.constant 8 : i32
    %12 = arith.muli %arg0, %c8_i32_7 : i32
    %c0_i32_8 = arith.constant 0 : i32
    %13 = arith.addi %12, %c0_i32_8 : i32
    %14 = arith.index_cast %13 : i32 to index
    %c2 = arith.constant 2 : index
    %15 = memref.load %arg1[%14, %c2] : memref<8x8xi32, #tpu.memory_space<smem>>
    %c0_i32_9 = arith.constant 0 : i32
    %16 = tpu.memref_slice %arg2[%15, %c0_i32_9] : memref<10000x64xf32, #tpu.memory_space<any>> -> memref<1x64xf32, #tpu.memory_space<any>>
    %c2_i32 = arith.constant 2 : i32
    %c0_i32_10 = arith.constant 0 : i32
    %17 = tpu.memref_slice %arg8[%c2_i32, %c0_i32_10] : memref<64x64xf32, #tpu.memory_space<vmem>> -> memref<1x64xf32, #tpu.memory_space<vmem>>
    tpu.enqueue_dma source(%16 : memref<1x64xf32, #tpu.memory_space<any>>) target(%17 : memref<1x64xf32, #tpu.memory_space<vmem>>) target_semaphore(%arg9 : memref<!tpu.dma_semaphore, #tpu.memory_space<semaphore_mem>>)
    %c8_i32_11 = arith.constant 8 : i32
    %18 = arith.muli %arg0, %c8_i32_11 : i32
    %c0_i32_12 = arith.constant 0 : i32
    %19 = arith.addi %18, %c0_i32_12 : i32
    %20 = arith.index_cast %19 : i32 to index
    %c3 = arith.constant 3 : index
    %21 = memref.load %arg1[%20, %c3] : memref<8x8xi32, #tpu.memory_space<smem>>
    %c0_i32_13 = arith.constant 0 : i32
    %22 = tpu.memref_slice %arg2[%21, %c0_i32_13] : memref<10000x64xf32, #tpu.memory_space<any>> -> memref<1x64xf32, #tpu.memory_space<any>>
    %c3_i32 = arith.constant 3 : i32
    %c0_i32_14 = arith.constant 0 : i32
    %23 = tpu.memref_slice %arg8[%c3_i32, %c0_i32_14] : memref<64x64xf32, #tpu.memory_space<vmem>> -> memref<1x64xf32, #tpu.memory_space<vmem>>
    tpu.enqueue_dma source(%22 : memref<1x64xf32, #tpu.memory_space<any>>) target(%23 : memref<1x64xf32, #tpu.memory_space<vmem>>) target_semaphore(%arg9 : memref<!tpu.dma_semaphore, #tpu.memory_space<semaphore_mem>>)
    %c8_i32_15 = arith.constant 8 : i32
    %24 = arith.muli %arg0, %c8_i32_15 : i32
    %c0_i32_16 = arith.constant 0 : i32
    %25 = arith.addi %24, %c0_i32_16 : i32
    %26 = arith.index_cast %25 : i32 to index
    %c4 = arith.constant 4 : index
    %27 = memref.load %arg1[%26, %c4] : memref<8x8xi32, #tpu.memory_space<smem>>
    %c0_i32_17 = arith.constant 0 : i32
    %28 = tpu.memref_slice %arg2[%27, %c0_i32_17] : memref<10000x64xf32, #tpu.memory_space<any>> -> memref<1x64xf32, #tpu.memory_space<any>>
    %c4_i32 = arith.constant 4 : i32
    %c0_i32_18 = arith.constant 0 : i32
    %29 = tpu.memref_slice %arg8[%c4_i32, %c0_i32_18] : memref<64x64xf32, #tpu.memory_space<vmem>> -> memref<1x64xf32, #tpu.memory_space<vmem>>
    tpu.enqueue_dma source(%28 : memref<1x64xf32, #tpu.memory_space<any>>) target(%29 : memref<1x64xf32, #tpu.memory_space<vmem>>) target_semaphore(%arg9 : memref<!tpu.dma_semaphore, #tpu.memory_space<semaphore_mem>>)
    %c8_i32_19 = arith.constant 8 : i32
    %30 = arith.muli %arg0, %c8_i32_19 : i32
    %c0_i32_20 = arith.constant 0 : i32
    %31 = arith.addi %30, %c0_i32_20 : i32
    %32 = arith.index_cast %31 : i32 to index
    %c5 = arith.constant 5 : index
    %33 = memref.load %arg1[%32, %c5] : memref<8x8xi32, #tpu.memory_space<smem>>
    %c0_i32_21 = arith.constant 0 : i32
    %34 = tpu.memref_slice %arg2[%33, %c0_i32_21] : memref<10000x64xf32, #tpu.memory_space<any>> -> memref<1x64xf32, #tpu.memory_space<any>>
    %c5_i32 = arith.constant 5 : i32
    %c0_i32_22 = arith.constant 0 : i32
    %35 = tpu.memref_slice %arg8[%c5_i32, %c0_i32_22] : memref<64x64xf32, #tpu.memory_space<vmem>> -> memref<1x64xf32, #tpu.memory_space<vmem>>
    tpu.enqueue_dma source(%34 : memref<1x64xf32, #tpu.memory_space<any>>) target(%35 : memref<1x64xf32, #tpu.memory_space<vmem>>) target_semaphore(%arg9 : memref<!tpu.dma_semaphore, #tpu.memory_space<semaphore_mem>>)
    %c8_i32_23 = arith.constant 8 : i32
    %36 = arith.muli %arg0, %c8_i32_23 : i32
    %c0_i32_24 = arith.constant 0 : i32
    %37 = arith.addi %36, %c0_i32_24 : i32
    %38 = arith.index_cast %37 : i32 to index
    %c6 = arith.constant 6 : index
    %39 = memref.load %arg1[%38, %c6] : memref<8x8xi32, #tpu.memory_space<smem>>
    %c0_i32_25 = arith.constant 0 : i32
    %40 = tpu.memref_slice %arg2[%39, %c0_i32_25] : memref<10000x64xf32, #tpu.memory_space<any>> -> memref<1x64xf32, #tpu.memory_space<any>>
    %c6_i32 = arith.constant 6 : i32
    %c0_i32_26 = arith.constant 0 : i32
    %41 = tpu.memref_slice %arg8[%c6_i32, %c0_i32_26] : memref<64x64xf32, #tpu.memory_space<vmem>> -> memref<1x64xf32, #tpu.memory_space<vmem>>
    tpu.enqueue_dma source(%40 : memref<1x64xf32, #tpu.memory_space<any>>) target(%41 : memref<1x64xf32, #tpu.memory_space<vmem>>) target_semaphore(%arg9 : memref<!tpu.dma_semaphore, #tpu.memory_space<semaphore_mem>>)
    %c8_i32_27 = arith.constant 8 : i32
    %42 = arith.muli %arg0, %c8_i32_27 : i32
    %c0_i32_28 = arith.constant 0 : i32
    %43 = arith.addi %42, %c0_i32_28 : i32
    %44 = arith.index_cast %43 : i32 to index
    %c7 = arith.constant 7 : index
    %45 = memref.load %arg1[%44, %c7] : memref<8x8xi32, #tpu.memory_space<smem>>
    %c0_i32_29 = arith.constant 0 : i32
    %46 = tpu.memref_slice %arg2[%45, %c0_i32_29] : memref<10000x64xf32, #tpu.memory_space<any>> -> memref<1x64xf32, #tpu.memory_space<any>>
    %c7_i32 = arith.constant 7 : i32
    %c0_i32_30 = arith.constant 0 : i32
    %47 = tpu.memref_slice %arg8[%c7_i32, %c0_i32_30] : memref<64x64xf32, #tpu.memory_space<vmem>> -> memref<1x64xf32, #tpu.memory_space<vmem>>
    tpu.enqueue_dma source(%46 : memref<1x64xf32, #tpu.memory_space<any>>) target(%47 : memref<1x64xf32, #tpu.memory_space<vmem>>) target_semaphore(%arg9 : memref<!tpu.dma_semaphore, #tpu.memory_space<semaphore_mem>>)
    %c8_i32_31 = arith.constant 8 : i32
    %48 = arith.muli %arg0, %c8_i32_31 : i32
    %c1_i32_32 = arith.constant 1 : i32
    %49 = arith.addi %48, %c1_i32_32 : i32
    %50 = arith.index_cast %49 : i32 to index
    %c0_33 = arith.constant 0 : index
    %51 = memref.load %arg1[%50, %c0_33] : memref<8x8xi32, #tpu.memory_space<smem>>
    %c0_i32_34 = arith.constant 0 : i32
    %52 = tpu.memref_slice %arg2[%51, %c0_i32_34] : memref<10000x64xf32, #tpu.memory_space<any>> -> memref<1x64xf32, #tpu.memory_space<any>>
    %c8_i32_35 = arith.constant 8 : i32
    %c0_i32_36 = arith.constant 0 : i32
    %53 = tpu.memref_slice %arg8[%c8_i32_35, %c0_i32_36] : memref<64x64xf32, #tpu.memory_space<vmem>> -> memref<1x64xf32, #tpu.memory_space<vmem>>
    tpu.enqueue_dma source(%52 : memref<1x64xf32, #tpu.memory_space<any>>) target(%53 : memref<1x64xf32, #tpu.memory_space<vmem>>) target_semaphore(%arg9 : memref<!tpu.dma_semaphore, #tpu.memory_space<semaphore_mem>>)
    %c8_i32_37 = arith.constant 8 : i32
    %54 = arith.muli %arg0, %c8_i32_37 : i32
    %c1_i32_38 = arith.constant 1 : i32
    %55 = arith.addi %54, %c1_i32_38 : i32
    %56 = arith.index_cast %55 : i32 to index
    %c1_39 = arith.constant 1 : index
    %57 = memref.load %arg1[%56, %c1_39] : memref<8x8xi32, #tpu.memory_space<smem>>
    %c0_i32_40 = arith.constant 0 : i32
    %58 = tpu.memref_slice %arg2[%57, %c0_i32_40] : memref<10000x64xf32, #tpu.memory_space<any>> -> memref<1x64xf32, #tpu.memory_space<any>>
    %c9_i32 = arith.constant 9 : i32
    %c0_i32_41 = arith.constant 0 : i32
    %59 = tpu.memref_slice %arg8[%c9_i32, %c0_i32_41] : memref<64x64xf32, #tpu.memory_space<vmem>> -> memref<1x64xf32, #tpu.memory_space<vmem>>
    tpu.enqueue_dma source(%58 : memref<1x64xf32, #tpu.memory_space<any>>) target(%59 : memref<1x64xf32, #tpu.memory_space<vmem>>) target_semaphore(%arg9 : memref<!tpu.dma_semaphore, #tpu.memory_space<semaphore_mem>>)
    %c8_i32_42 = arith.constant 8 : i32
    %60 = arith.muli %arg0, %c8_i32_42 : i32
    %c1_i32_43 = arith.constant 1 : i32
    %61 = arith.addi %60, %c1_i32_43 : i32
    %62 = arith.index_cast %61 : i32 to index
    %c2_44 = arith.constant 2 : index
    %63 = memref.load %arg1[%62, %c2_44] : memref<8x8xi32, #tpu.memory_space<smem>>
    %c0_i32_45 = arith.constant 0 : i32
    %64 = tpu.memref_slice %arg2[%63, %c0_i32_45] : memref<10000x64xf32, #tpu.memory_space<any>> -> memref<1x64xf32, #tpu.memory_space<any>>
    %c10_i32 = arith.constant 10 : i32
    %c0_i32_46 = arith.constant 0 : i32
    %65 = tpu.memref_slice %arg8[%c10_i32, %c0_i32_46] : memref<64x64xf32, #tpu.memory_space<vmem>> -> memref<1x64xf32, #tpu.memory_space<vmem>>
    tpu.enqueue_dma source(%64 : memref<1x64xf32, #tpu.memory_space<any>>) target(%65 : memref<1x64xf32, #tpu.memory_space<vmem>>) target_semaphore(%arg9 : memref<!tpu.dma_semaphore, #tpu.memory_space<semaphore_mem>>)
    %c8_i32_47 = arith.constant 8 : i32
    %66 = arith.muli %arg0, %c8_i32_47 : i32
    %c1_i32_48 = arith.constant 1 : i32
    %67 = arith.addi %66, %c1_i32_48 : i32
    %68 = arith.index_cast %67 : i32 to index
    %c3_49 = arith.constant 3 : index
    %69 = memref.load %arg1[%68, %c3_49] : memref<8x8xi32, #tpu.memory_space<smem>>
    %c0_i32_50 = arith.constant 0 : i32
    %70 = tpu.memref_slice %arg2[%69, %c0_i32_50] : memref<10000x64xf32, #tpu.memory_space<any>> -> memref<1x64xf32, #tpu.memory_space<any>>
    %c11_i32 = arith.constant 11 : i32
    %c0_i32_51 = arith.constant 0 : i32
    %71 = tpu.memref_slice %arg8[%c11_i32, %c0_i32_51] : memref<64x64xf32, #tpu.memory_space<vmem>> -> memref<1x64xf32, #tpu.memory_space<vmem>>
    tpu.enqueue_dma source(%70 : memref<1x64xf32, #tpu.memory_space<any>>) target(%71 : memref<1x64xf32, #tpu.memory_space<vmem>>) target_semaphore(%arg9 : memref<!tpu.dma_semaphore, #tpu.memory_space<semaphore_mem>>)
    %c8_i32_52 = arith.constant 8 : i32
    %72 = arith.muli %arg0, %c8_i32_52 : i32
    %c1_i32_53 = arith.constant 1 : i32
    %73 = arith.addi %72, %c1_i32_53 : i32
    %74 = arith.index_cast %73 : i32 to index
    %c4_54 = arith.constant 4 : index
    %75 = memref.load %arg1[%74, %c4_54] : memref<8x8xi32, #tpu.memory_space<smem>>
    %c0_i32_55 = arith.constant 0 : i32
    %76 = tpu.memref_slice %arg2[%75, %c0_i32_55] : memref<10000x64xf32, #tpu.memory_space<any>> -> memref<1x64xf32, #tpu.memory_space<any>>
    %c12_i32 = arith.constant 12 : i32
    %c0_i32_56 = arith.constant 0 : i32
    %77 = tpu.memref_slice %arg8[%c12_i32, %c0_i32_56] : memref<64x64xf32, #tpu.memory_space<vmem>> -> memref<1x64xf32, #tpu.memory_space<vmem>>
    tpu.enqueue_dma source(%76 : memref<1x64xf32, #tpu.memory_space<any>>) target(%77 : memref<1x64xf32, #tpu.memory_space<vmem>>) target_semaphore(%arg9 : memref<!tpu.dma_semaphore, #tpu.memory_space<semaphore_mem>>)
    %c8_i32_57 = arith.constant 8 : i32
    %78 = arith.muli %arg0, %c8_i32_57 : i32
    %c1_i32_58 = arith.constant 1 : i32
    %79 = arith.addi %78, %c1_i32_58 : i32
    %80 = arith.index_cast %79 : i32 to index
    %c5_59 = arith.constant 5 : index
    %81 = memref.load %arg1[%80, %c5_59] : memref<8x8xi32, #tpu.memory_space<smem>>
    %c0_i32_60 = arith.constant 0 : i32
    %82 = tpu.memref_slice %arg2[%81, %c0_i32_60] : memref<10000x64xf32, #tpu.memory_space<any>> -> memref<1x64xf32, #tpu.memory_space<any>>
    %c13_i32 = arith.constant 13 : i32
    %c0_i32_61 = arith.constant 0 : i32
    %83 = tpu.memref_slice %arg8[%c13_i32, %c0_i32_61] : memref<64x64xf32, #tpu.memory_space<vmem>> -> memref<1x64xf32, #tpu.memory_space<vmem>>
    tpu.enqueue_dma source(%82 : memref<1x64xf32, #tpu.memory_space<any>>) target(%83 : memref<1x64xf32, #tpu.memory_space<vmem>>) target_semaphore(%arg9 : memref<!tpu.dma_semaphore, #tpu.memory_space<semaphore_mem>>)
    %c8_i32_62 = arith.constant 8 : i32
    %84 = arith.muli %arg0, %c8_i32_62 : i32
    %c1_i32_63 = arith.constant 1 : i32
    %85 = arith.addi %84, %c1_i32_63 : i32
    %86 = arith.index_cast %85 : i32 to index
    %c6_64 = arith.constant 6 : index
    %87 = memref.load %arg1[%86, %c6_64] : memref<8x8xi32, #tpu.memory_space<smem>>
    %c0_i32_65 = arith.constant 0 : i32
    %88 = tpu.memref_slice %arg2[%87, %c0_i32_65] : memref<10000x64xf32, #tpu.memory_space<any>> -> memref<1x64xf32, #tpu.memory_space<any>>
    %c14_i32 = arith.constant 14 : i32
    %c0_i32_66 = arith.constant 0 : i32
    %89 = tpu.memref_slice %arg8[%c14_i32, %c0_i32_66] : memref<64x64xf32, #tpu.memory_space<vmem>> -> memref<1x64xf32, #tpu.memory_space<vmem>>
    tpu.enqueue_dma source(%88 : memref<1x64xf32, #tpu.memory_space<any>>) target(%89 : memref<1x64xf32, #tpu.memory_space<vmem>>) target_semaphore(%arg9 : memref<!tpu.dma_semaphore, #tpu.memory_space<semaphore_mem>>)
    %c8_i32_67 = arith.constant 8 : i32
    %90 = arith.muli %arg0, %c8_i32_67 : i32
    %c1_i32_68 = arith.constant 1 : i32
    %91 = arith.addi %90, %c1_i32_68 : i32
    %92 = arith.index_cast %91 : i32 to index
    %c7_69 = arith.constant 7 : index
    %93 = memref.load %arg1[%92, %c7_69] : memref<8x8xi32, #tpu.memory_space<smem>>
    %c0_i32_70 = arith.constant 0 : i32
    %94 = tpu.memref_slice %arg2[%93, %c0_i32_70] : memref<10000x64xf32, #tpu.memory_space<any>> -> memref<1x64xf32, #tpu.memory_space<any>>
    %c15_i32 = arith.constant 15 : i32
    %c0_i32_71 = arith.constant 0 : i32
    %95 = tpu.memref_slice %arg8[%c15_i32, %c0_i32_71] : memref<64x64xf32, #tpu.memory_space<vmem>> -> memref<1x64xf32, #tpu.memory_space<vmem>>
    tpu.enqueue_dma source(%94 : memref<1x64xf32, #tpu.memory_space<any>>) target(%95 : memref<1x64xf32, #tpu.memory_space<vmem>>) target_semaphore(%arg9 : memref<!tpu.dma_semaphore, #tpu.memory_space<semaphore_mem>>)
    %c8_i32_72 = arith.constant 8 : i32
    %96 = arith.muli %arg0, %c8_i32_72 : i32
    %c2_i32_73 = arith.constant 2 : i32
    %97 = arith.addi %96, %c2_i32_73 : i32
    %98 = arith.index_cast %97 : i32 to index
    %c0_74 = arith.constant 0 : index
    %99 = memref.load %arg1[%98, %c0_74] : memref<8x8xi32, #tpu.memory_space<smem>>
    %c0_i32_75 = arith.constant 0 : i32
    %100 = tpu.memref_slice %arg2[%99, %c0_i32_75] : memref<10000x64xf32, #tpu.memory_space<any>> -> memref<1x64xf32, #tpu.memory_space<any>>
    %c16_i32 = arith.constant 16 : i32
    %c0_i32_76 = arith.constant 0 : i32
    %101 = tpu.memref_slice %arg8[%c16_i32, %c0_i32_76] : memref<64x64xf32, #tpu.memory_space<vmem>> -> memref<1x64xf32, #tpu.memory_space<vmem>>
    tpu.enqueue_dma source(%100 : memref<1x64xf32, #tpu.memory_space<any>>) target(%101 : memref<1x64xf32, #tpu.memory_space<vmem>>) target_semaphore(%arg9 : memref<!tpu.dma_semaphore, #tpu.memory_space<semaphore_mem>>)
    %c8_i32_77 = arith.constant 8 : i32
    %102 = arith.muli %arg0, %c8_i32_77 : i32
    %c2_i32_78 = arith.constant 2 : i32
    %103 = arith.addi %102, %c2_i32_78 : i32
    %104 = arith.index_cast %103 : i32 to index
    %c1_79 = arith.constant 1 : index
    %105 = memref.load %arg1[%104, %c1_79] : memref<8x8xi32, #tpu.memory_space<smem>>
    %c0_i32_80 = arith.constant 0 : i32
    %106 = tpu.memref_slice %arg2[%105, %c0_i32_80] : memref<10000x64xf32, #tpu.memory_space<any>> -> memref<1x64xf32, #tpu.memory_space<any>>
    %c17_i32 = arith.constant 17 : i32
    %c0_i32_81 = arith.constant 0 : i32
    %107 = tpu.memref_slice %arg8[%c17_i32, %c0_i32_81] : memref<64x64xf32, #tpu.memory_space<vmem>> -> memref<1x64xf32, #tpu.memory_space<vmem>>
    tpu.enqueue_dma source(%106 : memref<1x64xf32, #tpu.memory_space<any>>) target(%107 : memref<1x64xf32, #tpu.memory_space<vmem>>) target_semaphore(%arg9 : memref<!tpu.dma_semaphore, #tpu.memory_space<semaphore_mem>>)
    %c8_i32_82 = arith.constant 8 : i32
    %108 = arith.muli %arg0, %c8_i32_82 : i32
    %c2_i32_83 = arith.constant 2 : i32
    %109 = arith.addi %108, %c2_i32_83 : i32
    %110 = arith.index_cast %109 : i32 to index
    %c2_84 = arith.constant 2 : index
    %111 = memref.load %arg1[%110, %c2_84] : memref<8x8xi32, #tpu.memory_space<smem>>
    %c0_i32_85 = arith.constant 0 : i32
    %112 = tpu.memref_slice %arg2[%111, %c0_i32_85] : memref<10000x64xf32, #tpu.memory_space<any>> -> memref<1x64xf32, #tpu.memory_space<any>>
    %c18_i32 = arith.constant 18 : i32
    %c0_i32_86 = arith.constant 0 : i32
    %113 = tpu.memref_slice %arg8[%c18_i32, %c0_i32_86] : memref<64x64xf32, #tpu.memory_space<vmem>> -> memref<1x64xf32, #tpu.memory_space<vmem>>
    tpu.enqueue_dma source(%112 : memref<1x64xf32, #tpu.memory_space<any>>) target(%113 : memref<1x64xf32, #tpu.memory_space<vmem>>) target_semaphore(%arg9 : memref<!tpu.dma_semaphore, #tpu.memory_space<semaphore_mem>>)
    %c8_i32_87 = arith.constant 8 : i32
    %114 = arith.muli %arg0, %c8_i32_87 : i32
    %c2_i32_88 = arith.constant 2 : i32
    %115 = arith.addi %114, %c2_i32_88 : i32
    %116 = arith.index_cast %115 : i32 to index
    %c3_89 = arith.constant 3 : index
    %117 = memref.load %arg1[%116, %c3_89] : memref<8x8xi32, #tpu.memory_space<smem>>
    %c0_i32_90 = arith.constant 0 : i32
    %118 = tpu.memref_slice %arg2[%117, %c0_i32_90] : memref<10000x64xf32, #tpu.memory_space<any>> -> memref<1x64xf32, #tpu.memory_space<any>>
    %c19_i32 = arith.constant 19 : i32
    %c0_i32_91 = arith.constant 0 : i32
    %119 = tpu.memref_slice %arg8[%c19_i32, %c0_i32_91] : memref<64x64xf32, #tpu.memory_space<vmem>> -> memref<1x64xf32, #tpu.memory_space<vmem>>
    tpu.enqueue_dma source(%118 : memref<1x64xf32, #tpu.memory_space<any>>) target(%119 : memref<1x64xf32, #tpu.memory_space<vmem>>) target_semaphore(%arg9 : memref<!tpu.dma_semaphore, #tpu.memory_space<semaphore_mem>>)
    %c8_i32_92 = arith.constant 8 : i32
    %120 = arith.muli %arg0, %c8_i32_92 : i32
    %c2_i32_93 = arith.constant 2 : i32
    %121 = arith.addi %120, %c2_i32_93 : i32
    %122 = arith.index_cast %121 : i32 to index
    %c4_94 = arith.constant 4 : index
    %123 = memref.load %arg1[%122, %c4_94] : memref<8x8xi32, #tpu.memory_space<smem>>
    %c0_i32_95 = arith.constant 0 : i32
    %124 = tpu.memref_slice %arg2[%123, %c0_i32_95] : memref<10000x64xf32, #tpu.memory_space<any>> -> memref<1x64xf32, #tpu.memory_space<any>>
    %c20_i32 = arith.constant 20 : i32
    %c0_i32_96 = arith.constant 0 : i32
    %125 = tpu.memref_slice %arg8[%c20_i32, %c0_i32_96] : memref<64x64xf32, #tpu.memory_space<vmem>> -> memref<1x64xf32, #tpu.memory_space<vmem>>
    tpu.enqueue_dma source(%124 : memref<1x64xf32, #tpu.memory_space<any>>) target(%125 : memref<1x64xf32, #tpu.memory_space<vmem>>) target_semaphore(%arg9 : memref<!tpu.dma_semaphore, #tpu.memory_space<semaphore_mem>>)
    %c8_i32_97 = arith.constant 8 : i32
    %126 = arith.muli %arg0, %c8_i32_97 : i32
    %c2_i32_98 = arith.constant 2 : i32
    %127 = arith.addi %126, %c2_i32_98 : i32
    %128 = arith.index_cast %127 : i32 to index
    %c5_99 = arith.constant 5 : index
    %129 = memref.load %arg1[%128, %c5_99] : memref<8x8xi32, #tpu.memory_space<smem>>
    %c0_i32_100 = arith.constant 0 : i32
    %130 = tpu.memref_slice %arg2[%129, %c0_i32_100] : memref<10000x64xf32, #tpu.memory_space<any>> -> memref<1x64xf32, #tpu.memory_space<any>>
    %c21_i32 = arith.constant 21 : i32
    %c0_i32_101 = arith.constant 0 : i32
    %131 = tpu.memref_slice %arg8[%c21_i32, %c0_i32_101] : memref<64x64xf32, #tpu.memory_space<vmem>> -> memref<1x64xf32, #tpu.memory_space<vmem>>
    tpu.enqueue_dma source(%130 : memref<1x64xf32, #tpu.memory_space<any>>) target(%131 : memref<1x64xf32, #tpu.memory_space<vmem>>) target_semaphore(%arg9 : memref<!tpu.dma_semaphore, #tpu.memory_space<semaphore_mem>>)
    %c8_i32_102 = arith.constant 8 : i32
    %132 = arith.muli %arg0, %c8_i32_102 : i32
    %c2_i32_103 = arith.constant 2 : i32
    %133 = arith.addi %132, %c2_i32_103 : i32
    %134 = arith.index_cast %133 : i32 to index
    %c6_104 = arith.constant 6 : index
    %135 = memref.load %arg1[%134, %c6_104] : memref<8x8xi32, #tpu.memory_space<smem>>
    %c0_i32_105 = arith.constant 0 : i32
    %136 = tpu.memref_slice %arg2[%135, %c0_i32_105] : memref<10000x64xf32, #tpu.memory_space<any>> -> memref<1x64xf32, #tpu.memory_space<any>>
    %c22_i32 = arith.constant 22 : i32
    %c0_i32_106 = arith.constant 0 : i32
    %137 = tpu.memref_slice %arg8[%c22_i32, %c0_i32_106] : memref<64x64xf32, #tpu.memory_space<vmem>> -> memref<1x64xf32, #tpu.memory_space<vmem>>
    tpu.enqueue_dma source(%136 : memref<1x64xf32, #tpu.memory_space<any>>) target(%137 : memref<1x64xf32, #tpu.memory_space<vmem>>) target_semaphore(%arg9 : memref<!tpu.dma_semaphore, #tpu.memory_space<semaphore_mem>>)
    %c8_i32_107 = arith.constant 8 : i32
    %138 = arith.muli %arg0, %c8_i32_107 : i32
    %c2_i32_108 = arith.constant 2 : i32
    %139 = arith.addi %138, %c2_i32_108 : i32
    %140 = arith.index_cast %139 : i32 to index
    %c7_109 = arith.constant 7 : index
    %141 = memref.load %arg1[%140, %c7_109] : memref<8x8xi32, #tpu.memory_space<smem>>
    %c0_i32_110 = arith.constant 0 : i32
    %142 = tpu.memref_slice %arg2[%141, %c0_i32_110] : memref<10000x64xf32, #tpu.memory_space<any>> -> memref<1x64xf32, #tpu.memory_space<any>>
    %c23_i32 = arith.constant 23 : i32
    %c0_i32_111 = arith.constant 0 : i32
    %143 = tpu.memref_slice %arg8[%c23_i32, %c0_i32_111] : memref<64x64xf32, #tpu.memory_space<vmem>> -> memref<1x64xf32, #tpu.memory_space<vmem>>
    tpu.enqueue_dma source(%142 : memref<1x64xf32, #tpu.memory_space<any>>) target(%143 : memref<1x64xf32, #tpu.memory_space<vmem>>) target_semaphore(%arg9 : memref<!tpu.dma_semaphore, #tpu.memory_space<semaphore_mem>>)
    %c8_i32_112 = arith.constant 8 : i32
    %144 = arith.muli %arg0, %c8_i32_112 : i32
    %c3_i32_113 = arith.constant 3 : i32
    %145 = arith.addi %144, %c3_i32_113 : i32
    %146 = arith.index_cast %145 : i32 to index
    %c0_114 = arith.constant 0 : index
    %147 = memref.load %arg1[%146, %c0_114] : memref<8x8xi32, #tpu.memory_space<smem>>
    %c0_i32_115 = arith.constant 0 : i32
    %148 = tpu.memref_slice %arg2[%147, %c0_i32_115] : memref<10000x64xf32, #tpu.memory_space<any>> -> memref<1x64xf32, #tpu.memory_space<any>>
    %c24_i32 = arith.constant 24 : i32
    %c0_i32_116 = arith.constant 0 : i32
    %149 = tpu.memref_slice %arg8[%c24_i32, %c0_i32_116] : memref<64x64xf32, #tpu.memory_space<vmem>> -> memref<1x64xf32, #tpu.memory_space<vmem>>
    tpu.enqueue_dma source(%148 : memref<1x64xf32, #tpu.memory_space<any>>) target(%149 : memref<1x64xf32, #tpu.memory_space<vmem>>) target_semaphore(%arg9 : memref<!tpu.dma_semaphore, #tpu.memory_space<semaphore_mem>>)
    %c8_i32_117 = arith.constant 8 : i32
    %150 = arith.muli %arg0, %c8_i32_117 : i32
    %c3_i32_118 = arith.constant 3 : i32
    %151 = arith.addi %150, %c3_i32_118 : i32
    %152 = arith.index_cast %151 : i32 to index
    %c1_119 = arith.constant 1 : index
    %153 = memref.load %arg1[%152, %c1_119] : memref<8x8xi32, #tpu.memory_space<smem>>
    %c0_i32_120 = arith.constant 0 : i32
    %154 = tpu.memref_slice %arg2[%153, %c0_i32_120] : memref<10000x64xf32, #tpu.memory_space<any>> -> memref<1x64xf32, #tpu.memory_space<any>>
    %c25_i32 = arith.constant 25 : i32
    %c0_i32_121 = arith.constant 0 : i32
    %155 = tpu.memref_slice %arg8[%c25_i32, %c0_i32_121] : memref<64x64xf32, #tpu.memory_space<vmem>> -> memref<1x64xf32, #tpu.memory_space<vmem>>
    tpu.enqueue_dma source(%154 : memref<1x64xf32, #tpu.memory_space<any>>) target(%155 : memref<1x64xf32, #tpu.memory_space<vmem>>) target_semaphore(%arg9 : memref<!tpu.dma_semaphore, #tpu.memory_space<semaphore_mem>>)
    %c8_i32_122 = arith.constant 8 : i32
    %156 = arith.muli %arg0, %c8_i32_122 : i32
    %c3_i32_123 = arith.constant 3 : i32
    %157 = arith.addi %156, %c3_i32_123 : i32
    %158 = arith.index_cast %157 : i32 to index
    %c2_124 = arith.constant 2 : index
    %159 = memref.load %arg1[%158, %c2_124] : memref<8x8xi32, #tpu.memory_space<smem>>
    %c0_i32_125 = arith.constant 0 : i32
    %160 = tpu.memref_slice %arg2[%159, %c0_i32_125] : memref<10000x64xf32, #tpu.memory_space<any>> -> memref<1x64xf32, #tpu.memory_space<any>>
    %c26_i32 = arith.constant 26 : i32
    %c0_i32_126 = arith.constant 0 : i32
    %161 = tpu.memref_slice %arg8[%c26_i32, %c0_i32_126] : memref<64x64xf32, #tpu.memory_space<vmem>> -> memref<1x64xf32, #tpu.memory_space<vmem>>
    tpu.enqueue_dma source(%160 : memref<1x64xf32, #tpu.memory_space<any>>) target(%161 : memref<1x64xf32, #tpu.memory_space<vmem>>) target_semaphore(%arg9 : memref<!tpu.dma_semaphore, #tpu.memory_space<semaphore_mem>>)
    %c8_i32_127 = arith.constant 8 : i32
    %162 = arith.muli %arg0, %c8_i32_127 : i32
    %c3_i32_128 = arith.constant 3 : i32
    %163 = arith.addi %162, %c3_i32_128 : i32
    %164 = arith.index_cast %163 : i32 to index
    %c3_129 = arith.constant 3 : index
    %165 = memref.load %arg1[%164, %c3_129] : memref<8x8xi32, #tpu.memory_space<smem>>
    %c0_i32_130 = arith.constant 0 : i32
    %166 = tpu.memref_slice %arg2[%165, %c0_i32_130] : memref<10000x64xf32, #tpu.memory_space<any>> -> memref<1x64xf32, #tpu.memory_space<any>>
    %c27_i32 = arith.constant 27 : i32
    %c0_i32_131 = arith.constant 0 : i32
    %167 = tpu.memref_slice %arg8[%c27_i32, %c0_i32_131] : memref<64x64xf32, #tpu.memory_space<vmem>> -> memref<1x64xf32, #tpu.memory_space<vmem>>
    tpu.enqueue_dma source(%166 : memref<1x64xf32, #tpu.memory_space<any>>) target(%167 : memref<1x64xf32, #tpu.memory_space<vmem>>) target_semaphore(%arg9 : memref<!tpu.dma_semaphore, #tpu.memory_space<semaphore_mem>>)
    %c8_i32_132 = arith.constant 8 : i32
    %168 = arith.muli %arg0, %c8_i32_132 : i32
    %c3_i32_133 = arith.constant 3 : i32
    %169 = arith.addi %168, %c3_i32_133 : i32
    %170 = arith.index_cast %169 : i32 to index
    %c4_134 = arith.constant 4 : index
    %171 = memref.load %arg1[%170, %c4_134] : memref<8x8xi32, #tpu.memory_space<smem>>
    %c0_i32_135 = arith.constant 0 : i32
    %172 = tpu.memref_slice %arg2[%171, %c0_i32_135] : memref<10000x64xf32, #tpu.memory_space<any>> -> memref<1x64xf32, #tpu.memory_space<any>>
    %c28_i32 = arith.constant 28 : i32
    %c0_i32_136 = arith.constant 0 : i32
    %173 = tpu.memref_slice %arg8[%c28_i32, %c0_i32_136] : memref<64x64xf32, #tpu.memory_space<vmem>> -> memref<1x64xf32, #tpu.memory_space<vmem>>
    tpu.enqueue_dma source(%172 : memref<1x64xf32, #tpu.memory_space<any>>) target(%173 : memref<1x64xf32, #tpu.memory_space<vmem>>) target_semaphore(%arg9 : memref<!tpu.dma_semaphore, #tpu.memory_space<semaphore_mem>>)
    %c8_i32_137 = arith.constant 8 : i32
    %174 = arith.muli %arg0, %c8_i32_137 : i32
    %c3_i32_138 = arith.constant 3 : i32
    %175 = arith.addi %174, %c3_i32_138 : i32
    %176 = arith.index_cast %175 : i32 to index
    %c5_139 = arith.constant 5 : index
    %177 = memref.load %arg1[%176, %c5_139] : memref<8x8xi32, #tpu.memory_space<smem>>
    %c0_i32_140 = arith.constant 0 : i32
    %178 = tpu.memref_slice %arg2[%177, %c0_i32_140] : memref<10000x64xf32, #tpu.memory_space<any>> -> memref<1x64xf32, #tpu.memory_space<any>>
    %c29_i32 = arith.constant 29 : i32
    %c0_i32_141 = arith.constant 0 : i32
    %179 = tpu.memref_slice %arg8[%c29_i32, %c0_i32_141] : memref<64x64xf32, #tpu.memory_space<vmem>> -> memref<1x64xf32, #tpu.memory_space<vmem>>
    tpu.enqueue_dma source(%178 : memref<1x64xf32, #tpu.memory_space<any>>) target(%179 : memref<1x64xf32, #tpu.memory_space<vmem>>) target_semaphore(%arg9 : memref<!tpu.dma_semaphore, #tpu.memory_space<semaphore_mem>>)
    %c8_i32_142 = arith.constant 8 : i32
    %180 = arith.muli %arg0, %c8_i32_142 : i32
    %c3_i32_143 = arith.constant 3 : i32
    %181 = arith.addi %180, %c3_i32_143 : i32
    %182 = arith.index_cast %181 : i32 to index
    %c6_144 = arith.constant 6 : index
    %183 = memref.load %arg1[%182, %c6_144] : memref<8x8xi32, #tpu.memory_space<smem>>
    %c0_i32_145 = arith.constant 0 : i32
    %184 = tpu.memref_slice %arg2[%183, %c0_i32_145] : memref<10000x64xf32, #tpu.memory_space<any>> -> memref<1x64xf32, #tpu.memory_space<any>>
    %c30_i32 = arith.constant 30 : i32
    %c0_i32_146 = arith.constant 0 : i32
    %185 = tpu.memref_slice %arg8[%c30_i32, %c0_i32_146] : memref<64x64xf32, #tpu.memory_space<vmem>> -> memref<1x64xf32, #tpu.memory_space<vmem>>
    tpu.enqueue_dma source(%184 : memref<1x64xf32, #tpu.memory_space<any>>) target(%185 : memref<1x64xf32, #tpu.memory_space<vmem>>) target_semaphore(%arg9 : memref<!tpu.dma_semaphore, #tpu.memory_space<semaphore_mem>>)
    %c8_i32_147 = arith.constant 8 : i32
    %186 = arith.muli %arg0, %c8_i32_147 : i32
    %c3_i32_148 = arith.constant 3 : i32
    %187 = arith.addi %186, %c3_i32_148 : i32
    %188 = arith.index_cast %187 : i32 to index
    %c7_149 = arith.constant 7 : index
    %189 = memref.load %arg1[%188, %c7_149] : memref<8x8xi32, #tpu.memory_space<smem>>
    %c0_i32_150 = arith.constant 0 : i32
    %190 = tpu.memref_slice %arg2[%189, %c0_i32_150] : memref<10000x64xf32, #tpu.memory_space<any>> -> memref<1x64xf32, #tpu.memory_space<any>>
    %c31_i32 = arith.constant 31 : i32
    %c0_i32_151 = arith.constant 0 : i32
    %191 = tpu.memref_slice %arg8[%c31_i32, %c0_i32_151] : memref<64x64xf32, #tpu.memory_space<vmem>> -> memref<1x64xf32, #tpu.memory_space<vmem>>
    tpu.enqueue_dma source(%190 : memref<1x64xf32, #tpu.memory_space<any>>) target(%191 : memref<1x64xf32, #tpu.memory_space<vmem>>) target_semaphore(%arg9 : memref<!tpu.dma_semaphore, #tpu.memory_space<semaphore_mem>>)
    %c8_i32_152 = arith.constant 8 : i32
    %192 = arith.muli %arg0, %c8_i32_152 : i32
    %c4_i32_153 = arith.constant 4 : i32
    %193 = arith.addi %192, %c4_i32_153 : i32
    %194 = arith.index_cast %193 : i32 to index
    %c0_154 = arith.constant 0 : index
    %195 = memref.load %arg1[%194, %c0_154] : memref<8x8xi32, #tpu.memory_space<smem>>
    %c0_i32_155 = arith.constant 0 : i32
    %196 = tpu.memref_slice %arg2[%195, %c0_i32_155] : memref<10000x64xf32, #tpu.memory_space<any>> -> memref<1x64xf32, #tpu.memory_space<any>>
    %c32_i32 = arith.constant 32 : i32
    %c0_i32_156 = arith.constant 0 : i32
    %197 = tpu.memref_slice %arg8[%c32_i32, %c0_i32_156] : memref<64x64xf32, #tpu.memory_space<vmem>> -> memref<1x64xf32, #tpu.memory_space<vmem>>
    tpu.enqueue_dma source(%196 : memref<1x64xf32, #tpu.memory_space<any>>) target(%197 : memref<1x64xf32, #tpu.memory_space<vmem>>) target_semaphore(%arg9 : memref<!tpu.dma_semaphore, #tpu.memory_space<semaphore_mem>>)
    %c8_i32_157 = arith.constant 8 : i32
    %198 = arith.muli %arg0, %c8_i32_157 : i32
    %c4_i32_158 = arith.constant 4 : i32
    %199 = arith.addi %198, %c4_i32_158 : i32
    %200 = arith.index_cast %199 : i32 to index
    %c1_159 = arith.constant 1 : index
    %201 = memref.load %arg1[%200, %c1_159] : memref<8x8xi32, #tpu.memory_space<smem>>
    %c0_i32_160 = arith.constant 0 : i32
    %202 = tpu.memref_slice %arg2[%201, %c0_i32_160] : memref<10000x64xf32, #tpu.memory_space<any>> -> memref<1x64xf32, #tpu.memory_space<any>>
    %c33_i32 = arith.constant 33 : i32
    %c0_i32_161 = arith.constant 0 : i32
    %203 = tpu.memref_slice %arg8[%c33_i32, %c0_i32_161] : memref<64x64xf32, #tpu.memory_space<vmem>> -> memref<1x64xf32, #tpu.memory_space<vmem>>
    tpu.enqueue_dma source(%202 : memref<1x64xf32, #tpu.memory_space<any>>) target(%203 : memref<1x64xf32, #tpu.memory_space<vmem>>) target_semaphore(%arg9 : memref<!tpu.dma_semaphore, #tpu.memory_space<semaphore_mem>>)
    %c8_i32_162 = arith.constant 8 : i32
    %204 = arith.muli %arg0, %c8_i32_162 : i32
    %c4_i32_163 = arith.constant 4 : i32
    %205 = arith.addi %204, %c4_i32_163 : i32
    %206 = arith.index_cast %205 : i32 to index
    %c2_164 = arith.constant 2 : index
    %207 = memref.load %arg1[%206, %c2_164] : memref<8x8xi32, #tpu.memory_space<smem>>
    %c0_i32_165 = arith.constant 0 : i32
    %208 = tpu.memref_slice %arg2[%207, %c0_i32_165] : memref<10000x64xf32, #tpu.memory_space<any>> -> memref<1x64xf32, #tpu.memory_space<any>>
    %c34_i32 = arith.constant 34 : i32
    %c0_i32_166 = arith.constant 0 : i32
    %209 = tpu.memref_slice %arg8[%c34_i32, %c0_i32_166] : memref<64x64xf32, #tpu.memory_space<vmem>> -> memref<1x64xf32, #tpu.memory_space<vmem>>
    tpu.enqueue_dma source(%208 : memref<1x64xf32, #tpu.memory_space<any>>) target(%209 : memref<1x64xf32, #tpu.memory_space<vmem>>) target_semaphore(%arg9 : memref<!tpu.dma_semaphore, #tpu.memory_space<semaphore_mem>>)
    %c8_i32_167 = arith.constant 8 : i32
    %210 = arith.muli %arg0, %c8_i32_167 : i32
    %c4_i32_168 = arith.constant 4 : i32
    %211 = arith.addi %210, %c4_i32_168 : i32
    %212 = arith.index_cast %211 : i32 to index
    %c3_169 = arith.constant 3 : index
    %213 = memref.load %arg1[%212, %c3_169] : memref<8x8xi32, #tpu.memory_space<smem>>
    %c0_i32_170 = arith.constant 0 : i32
    %214 = tpu.memref_slice %arg2[%213, %c0_i32_170] : memref<10000x64xf32, #tpu.memory_space<any>> -> memref<1x64xf32, #tpu.memory_space<any>>
    %c35_i32 = arith.constant 35 : i32
    %c0_i32_171 = arith.constant 0 : i32
    %215 = tpu.memref_slice %arg8[%c35_i32, %c0_i32_171] : memref<64x64xf32, #tpu.memory_space<vmem>> -> memref<1x64xf32, #tpu.memory_space<vmem>>
    tpu.enqueue_dma source(%214 : memref<1x64xf32, #tpu.memory_space<any>>) target(%215 : memref<1x64xf32, #tpu.memory_space<vmem>>) target_semaphore(%arg9 : memref<!tpu.dma_semaphore, #tpu.memory_space<semaphore_mem>>)
    %c8_i32_172 = arith.constant 8 : i32
    %216 = arith.muli %arg0, %c8_i32_172 : i32
    %c4_i32_173 = arith.constant 4 : i32
    %217 = arith.addi %216, %c4_i32_173 : i32
    %218 = arith.index_cast %217 : i32 to index
    %c4_174 = arith.constant 4 : index
    %219 = memref.load %arg1[%218, %c4_174] : memref<8x8xi32, #tpu.memory_space<smem>>
    %c0_i32_175 = arith.constant 0 : i32
    %220 = tpu.memref_slice %arg2[%219, %c0_i32_175] : memref<10000x64xf32, #tpu.memory_space<any>> -> memref<1x64xf32, #tpu.memory_space<any>>
    %c36_i32 = arith.constant 36 : i32
    %c0_i32_176 = arith.constant 0 : i32
    %221 = tpu.memref_slice %arg8[%c36_i32, %c0_i32_176] : memref<64x64xf32, #tpu.memory_space<vmem>> -> memref<1x64xf32, #tpu.memory_space<vmem>>
    tpu.enqueue_dma source(%220 : memref<1x64xf32, #tpu.memory_space<any>>) target(%221 : memref<1x64xf32, #tpu.memory_space<vmem>>) target_semaphore(%arg9 : memref<!tpu.dma_semaphore, #tpu.memory_space<semaphore_mem>>)
    %c8_i32_177 = arith.constant 8 : i32
    %222 = arith.muli %arg0, %c8_i32_177 : i32
    %c4_i32_178 = arith.constant 4 : i32
    %223 = arith.addi %222, %c4_i32_178 : i32
    %224 = arith.index_cast %223 : i32 to index
    %c5_179 = arith.constant 5 : index
    %225 = memref.load %arg1[%224, %c5_179] : memref<8x8xi32, #tpu.memory_space<smem>>
    %c0_i32_180 = arith.constant 0 : i32
    %226 = tpu.memref_slice %arg2[%225, %c0_i32_180] : memref<10000x64xf32, #tpu.memory_space<any>> -> memref<1x64xf32, #tpu.memory_space<any>>
    %c37_i32 = arith.constant 37 : i32
    %c0_i32_181 = arith.constant 0 : i32
    %227 = tpu.memref_slice %arg8[%c37_i32, %c0_i32_181] : memref<64x64xf32, #tpu.memory_space<vmem>> -> memref<1x64xf32, #tpu.memory_space<vmem>>
    tpu.enqueue_dma source(%226 : memref<1x64xf32, #tpu.memory_space<any>>) target(%227 : memref<1x64xf32, #tpu.memory_space<vmem>>) target_semaphore(%arg9 : memref<!tpu.dma_semaphore, #tpu.memory_space<semaphore_mem>>)
    %c8_i32_182 = arith.constant 8 : i32
    %228 = arith.muli %arg0, %c8_i32_182 : i32
    %c4_i32_183 = arith.constant 4 : i32
    %229 = arith.addi %228, %c4_i32_183 : i32
    %230 = arith.index_cast %229 : i32 to index
    %c6_184 = arith.constant 6 : index
    %231 = memref.load %arg1[%230, %c6_184] : memref<8x8xi32, #tpu.memory_space<smem>>
    %c0_i32_185 = arith.constant 0 : i32
    %232 = tpu.memref_slice %arg2[%231, %c0_i32_185] : memref<10000x64xf32, #tpu.memory_space<any>> -> memref<1x64xf32, #tpu.memory_space<any>>
    %c38_i32 = arith.constant 38 : i32
    %c0_i32_186 = arith.constant 0 : i32
    %233 = tpu.memref_slice %arg8[%c38_i32, %c0_i32_186] : memref<64x64xf32, #tpu.memory_space<vmem>> -> memref<1x64xf32, #tpu.memory_space<vmem>>
    tpu.enqueue_dma source(%232 : memref<1x64xf32, #tpu.memory_space<any>>) target(%233 : memref<1x64xf32, #tpu.memory_space<vmem>>) target_semaphore(%arg9 : memref<!tpu.dma_semaphore, #tpu.memory_space<semaphore_mem>>)
    %c8_i32_187 = arith.constant 8 : i32
    %234 = arith.muli %arg0, %c8_i32_187 : i32
    %c4_i32_188 = arith.constant 4 : i32
    %235 = arith.addi %234, %c4_i32_188 : i32
    %236 = arith.index_cast %235 : i32 to index
    %c7_189 = arith.constant 7 : index
    %237 = memref.load %arg1[%236, %c7_189] : memref<8x8xi32, #tpu.memory_space<smem>>
    %c0_i32_190 = arith.constant 0 : i32
    %238 = tpu.memref_slice %arg2[%237, %c0_i32_190] : memref<10000x64xf32, #tpu.memory_space<any>> -> memref<1x64xf32, #tpu.memory_space<any>>
    %c39_i32 = arith.constant 39 : i32
    %c0_i32_191 = arith.constant 0 : i32
    %239 = tpu.memref_slice %arg8[%c39_i32, %c0_i32_191] : memref<64x64xf32, #tpu.memory_space<vmem>> -> memref<1x64xf32, #tpu.memory_space<vmem>>
    tpu.enqueue_dma source(%238 : memref<1x64xf32, #tpu.memory_space<any>>) target(%239 : memref<1x64xf32, #tpu.memory_space<vmem>>) target_semaphore(%arg9 : memref<!tpu.dma_semaphore, #tpu.memory_space<semaphore_mem>>)
    %c8_i32_192 = arith.constant 8 : i32
    %240 = arith.muli %arg0, %c8_i32_192 : i32
    %c5_i32_193 = arith.constant 5 : i32
    %241 = arith.addi %240, %c5_i32_193 : i32
    %242 = arith.index_cast %241 : i32 to index
    %c0_194 = arith.constant 0 : index
    %243 = memref.load %arg1[%242, %c0_194] : memref<8x8xi32, #tpu.memory_space<smem>>
    %c0_i32_195 = arith.constant 0 : i32
    %244 = tpu.memref_slice %arg2[%243, %c0_i32_195] : memref<10000x64xf32, #tpu.memory_space<any>> -> memref<1x64xf32, #tpu.memory_space<any>>
    %c40_i32 = arith.constant 40 : i32
    %c0_i32_196 = arith.constant 0 : i32
    %245 = tpu.memref_slice %arg8[%c40_i32, %c0_i32_196] : memref<64x64xf32, #tpu.memory_space<vmem>> -> memref<1x64xf32, #tpu.memory_space<vmem>>
    tpu.enqueue_dma source(%244 : memref<1x64xf32, #tpu.memory_space<any>>) target(%245 : memref<1x64xf32, #tpu.memory_space<vmem>>) target_semaphore(%arg9 : memref<!tpu.dma_semaphore, #tpu.memory_space<semaphore_mem>>)
    %c8_i32_197 = arith.constant 8 : i32
    %246 = arith.muli %arg0, %c8_i32_197 : i32
    %c5_i32_198 = arith.constant 5 : i32
    %247 = arith.addi %246, %c5_i32_198 : i32
    %248 = arith.index_cast %247 : i32 to index
    %c1_199 = arith.constant 1 : index
    %249 = memref.load %arg1[%248, %c1_199] : memref<8x8xi32, #tpu.memory_space<smem>>
    %c0_i32_200 = arith.constant 0 : i32
    %250 = tpu.memref_slice %arg2[%249, %c0_i32_200] : memref<10000x64xf32, #tpu.memory_space<any>> -> memref<1x64xf32, #tpu.memory_space<any>>
    %c41_i32 = arith.constant 41 : i32
    %c0_i32_201 = arith.constant 0 : i32
    %251 = tpu.memref_slice %arg8[%c41_i32, %c0_i32_201] : memref<64x64xf32, #tpu.memory_space<vmem>> -> memref<1x64xf32, #tpu.memory_space<vmem>>
    tpu.enqueue_dma source(%250 : memref<1x64xf32, #tpu.memory_space<any>>) target(%251 : memref<1x64xf32, #tpu.memory_space<vmem>>) target_semaphore(%arg9 : memref<!tpu.dma_semaphore, #tpu.memory_space<semaphore_mem>>)
    %c8_i32_202 = arith.constant 8 : i32
    %252 = arith.muli %arg0, %c8_i32_202 : i32
    %c5_i32_203 = arith.constant 5 : i32
    %253 = arith.addi %252, %c5_i32_203 : i32
    %254 = arith.index_cast %253 : i32 to index
    %c2_204 = arith.constant 2 : index
    %255 = memref.load %arg1[%254, %c2_204] : memref<8x8xi32, #tpu.memory_space<smem>>
    %c0_i32_205 = arith.constant 0 : i32
    %256 = tpu.memref_slice %arg2[%255, %c0_i32_205] : memref<10000x64xf32, #tpu.memory_space<any>> -> memref<1x64xf32, #tpu.memory_space<any>>
    %c42_i32 = arith.constant 42 : i32
    %c0_i32_206 = arith.constant 0 : i32
    %257 = tpu.memref_slice %arg8[%c42_i32, %c0_i32_206] : memref<64x64xf32, #tpu.memory_space<vmem>> -> memref<1x64xf32, #tpu.memory_space<vmem>>
    tpu.enqueue_dma source(%256 : memref<1x64xf32, #tpu.memory_space<any>>) target(%257 : memref<1x64xf32, #tpu.memory_space<vmem>>) target_semaphore(%arg9 : memref<!tpu.dma_semaphore, #tpu.memory_space<semaphore_mem>>)
    %c8_i32_207 = arith.constant 8 : i32
    %258 = arith.muli %arg0, %c8_i32_207 : i32
    %c5_i32_208 = arith.constant 5 : i32
    %259 = arith.addi %258, %c5_i32_208 : i32
    %260 = arith.index_cast %259 : i32 to index
    %c3_209 = arith.constant 3 : index
    %261 = memref.load %arg1[%260, %c3_209] : memref<8x8xi32, #tpu.memory_space<smem>>
    %c0_i32_210 = arith.constant 0 : i32
    %262 = tpu.memref_slice %arg2[%261, %c0_i32_210] : memref<10000x64xf32, #tpu.memory_space<any>> -> memref<1x64xf32, #tpu.memory_space<any>>
    %c43_i32 = arith.constant 43 : i32
    %c0_i32_211 = arith.constant 0 : i32
    %263 = tpu.memref_slice %arg8[%c43_i32, %c0_i32_211] : memref<64x64xf32, #tpu.memory_space<vmem>> -> memref<1x64xf32, #tpu.memory_space<vmem>>
    tpu.enqueue_dma source(%262 : memref<1x64xf32, #tpu.memory_space<any>>) target(%263 : memref<1x64xf32, #tpu.memory_space<vmem>>) target_semaphore(%arg9 : memref<!tpu.dma_semaphore, #tpu.memory_space<semaphore_mem>>)
    %c8_i32_212 = arith.constant 8 : i32
    %264 = arith.muli %arg0, %c8_i32_212 : i32
    %c5_i32_213 = arith.constant 5 : i32
    %265 = arith.addi %264, %c5_i32_213 : i32
    %266 = arith.index_cast %265 : i32 to index
    %c4_214 = arith.constant 4 : index
    %267 = memref.load %arg1[%266, %c4_214] : memref<8x8xi32, #tpu.memory_space<smem>>
    %c0_i32_215 = arith.constant 0 : i32
    %268 = tpu.memref_slice %arg2[%267, %c0_i32_215] : memref<10000x64xf32, #tpu.memory_space<any>> -> memref<1x64xf32, #tpu.memory_space<any>>
    %c44_i32 = arith.constant 44 : i32
    %c0_i32_216 = arith.constant 0 : i32
    %269 = tpu.memref_slice %arg8[%c44_i32, %c0_i32_216] : memref<64x64xf32, #tpu.memory_space<vmem>> -> memref<1x64xf32, #tpu.memory_space<vmem>>
    tpu.enqueue_dma source(%268 : memref<1x64xf32, #tpu.memory_space<any>>) target(%269 : memref<1x64xf32, #tpu.memory_space<vmem>>) target_semaphore(%arg9 : memref<!tpu.dma_semaphore, #tpu.memory_space<semaphore_mem>>)
    %c8_i32_217 = arith.constant 8 : i32
    %270 = arith.muli %arg0, %c8_i32_217 : i32
    %c5_i32_218 = arith.constant 5 : i32
    %271 = arith.addi %270, %c5_i32_218 : i32
    %272 = arith.index_cast %271 : i32 to index
    %c5_219 = arith.constant 5 : index
    %273 = memref.load %arg1[%272, %c5_219] : memref<8x8xi32, #tpu.memory_space<smem>>
    %c0_i32_220 = arith.constant 0 : i32
    %274 = tpu.memref_slice %arg2[%273, %c0_i32_220] : memref<10000x64xf32, #tpu.memory_space<any>> -> memref<1x64xf32, #tpu.memory_space<any>>
    %c45_i32 = arith.constant 45 : i32
    %c0_i32_221 = arith.constant 0 : i32
    %275 = tpu.memref_slice %arg8[%c45_i32, %c0_i32_221] : memref<64x64xf32, #tpu.memory_space<vmem>> -> memref<1x64xf32, #tpu.memory_space<vmem>>
    tpu.enqueue_dma source(%274 : memref<1x64xf32, #tpu.memory_space<any>>) target(%275 : memref<1x64xf32, #tpu.memory_space<vmem>>) target_semaphore(%arg9 : memref<!tpu.dma_semaphore, #tpu.memory_space<semaphore_mem>>)
    %c8_i32_222 = arith.constant 8 : i32
    %276 = arith.muli %arg0, %c8_i32_222 : i32
    %c5_i32_223 = arith.constant 5 : i32
    %277 = arith.addi %276, %c5_i32_223 : i32
    %278 = arith.index_cast %277 : i32 to index
    %c6_224 = arith.constant 6 : index
    %279 = memref.load %arg1[%278, %c6_224] : memref<8x8xi32, #tpu.memory_space<smem>>
    %c0_i32_225 = arith.constant 0 : i32
    %280 = tpu.memref_slice %arg2[%279, %c0_i32_225] : memref<10000x64xf32, #tpu.memory_space<any>> -> memref<1x64xf32, #tpu.memory_space<any>>
    %c46_i32 = arith.constant 46 : i32
    %c0_i32_226 = arith.constant 0 : i32
    %281 = tpu.memref_slice %arg8[%c46_i32, %c0_i32_226] : memref<64x64xf32, #tpu.memory_space<vmem>> -> memref<1x64xf32, #tpu.memory_space<vmem>>
    tpu.enqueue_dma source(%280 : memref<1x64xf32, #tpu.memory_space<any>>) target(%281 : memref<1x64xf32, #tpu.memory_space<vmem>>) target_semaphore(%arg9 : memref<!tpu.dma_semaphore, #tpu.memory_space<semaphore_mem>>)
    %c8_i32_227 = arith.constant 8 : i32
    %282 = arith.muli %arg0, %c8_i32_227 : i32
    %c5_i32_228 = arith.constant 5 : i32
    %283 = arith.addi %282, %c5_i32_228 : i32
    %284 = arith.index_cast %283 : i32 to index
    %c7_229 = arith.constant 7 : index
    %285 = memref.load %arg1[%284, %c7_229] : memref<8x8xi32, #tpu.memory_space<smem>>
    %c0_i32_230 = arith.constant 0 : i32
    %286 = tpu.memref_slice %arg2[%285, %c0_i32_230] : memref<10000x64xf32, #tpu.memory_space<any>> -> memref<1x64xf32, #tpu.memory_space<any>>
    %c47_i32 = arith.constant 47 : i32
    %c0_i32_231 = arith.constant 0 : i32
    %287 = tpu.memref_slice %arg8[%c47_i32, %c0_i32_231] : memref<64x64xf32, #tpu.memory_space<vmem>> -> memref<1x64xf32, #tpu.memory_space<vmem>>
    tpu.enqueue_dma source(%286 : memref<1x64xf32, #tpu.memory_space<any>>) target(%287 : memref<1x64xf32, #tpu.memory_space<vmem>>) target_semaphore(%arg9 : memref<!tpu.dma_semaphore, #tpu.memory_space<semaphore_mem>>)
    %c8_i32_232 = arith.constant 8 : i32
    %288 = arith.muli %arg0, %c8_i32_232 : i32
    %c6_i32_233 = arith.constant 6 : i32
    %289 = arith.addi %288, %c6_i32_233 : i32
    %290 = arith.index_cast %289 : i32 to index
    %c0_234 = arith.constant 0 : index
    %291 = memref.load %arg1[%290, %c0_234] : memref<8x8xi32, #tpu.memory_space<smem>>
    %c0_i32_235 = arith.constant 0 : i32
    %292 = tpu.memref_slice %arg2[%291, %c0_i32_235] : memref<10000x64xf32, #tpu.memory_space<any>> -> memref<1x64xf32, #tpu.memory_space<any>>
    %c48_i32 = arith.constant 48 : i32
    %c0_i32_236 = arith.constant 0 : i32
    %293 = tpu.memref_slice %arg8[%c48_i32, %c0_i32_236] : memref<64x64xf32, #tpu.memory_space<vmem>> -> memref<1x64xf32, #tpu.memory_space<vmem>>
    tpu.enqueue_dma source(%292 : memref<1x64xf32, #tpu.memory_space<any>>) target(%293 : memref<1x64xf32, #tpu.memory_space<vmem>>) target_semaphore(%arg9 : memref<!tpu.dma_semaphore, #tpu.memory_space<semaphore_mem>>)
    %c8_i32_237 = arith.constant 8 : i32
    %294 = arith.muli %arg0, %c8_i32_237 : i32
    %c6_i32_238 = arith.constant 6 : i32
    %295 = arith.addi %294, %c6_i32_238 : i32
    %296 = arith.index_cast %295 : i32 to index
    %c1_239 = arith.constant 1 : index
    %297 = memref.load %arg1[%296, %c1_239] : memref<8x8xi32, #tpu.memory_space<smem>>
    %c0_i32_240 = arith.constant 0 : i32
    %298 = tpu.memref_slice %arg2[%297, %c0_i32_240] : memref<10000x64xf32, #tpu.memory_space<any>> -> memref<1x64xf32, #tpu.memory_space<any>>
    %c49_i32 = arith.constant 49 : i32
    %c0_i32_241 = arith.constant 0 : i32
    %299 = tpu.memref_slice %arg8[%c49_i32, %c0_i32_241] : memref<64x64xf32, #tpu.memory_space<vmem>> -> memref<1x64xf32, #tpu.memory_space<vmem>>
    tpu.enqueue_dma source(%298 : memref<1x64xf32, #tpu.memory_space<any>>) target(%299 : memref<1x64xf32, #tpu.memory_space<vmem>>) target_semaphore(%arg9 : memref<!tpu.dma_semaphore, #tpu.memory_space<semaphore_mem>>)
    %c8_i32_242 = arith.constant 8 : i32
    %300 = arith.muli %arg0, %c8_i32_242 : i32
    %c6_i32_243 = arith.constant 6 : i32
    %301 = arith.addi %300, %c6_i32_243 : i32
    %302 = arith.index_cast %301 : i32 to index
    %c2_244 = arith.constant 2 : index
    %303 = memref.load %arg1[%302, %c2_244] : memref<8x8xi32, #tpu.memory_space<smem>>
    %c0_i32_245 = arith.constant 0 : i32
    %304 = tpu.memref_slice %arg2[%303, %c0_i32_245] : memref<10000x64xf32, #tpu.memory_space<any>> -> memref<1x64xf32, #tpu.memory_space<any>>
    %c50_i32 = arith.constant 50 : i32
    %c0_i32_246 = arith.constant 0 : i32
    %305 = tpu.memref_slice %arg8[%c50_i32, %c0_i32_246] : memref<64x64xf32, #tpu.memory_space<vmem>> -> memref<1x64xf32, #tpu.memory_space<vmem>>
    tpu.enqueue_dma source(%304 : memref<1x64xf32, #tpu.memory_space<any>>) target(%305 : memref<1x64xf32, #tpu.memory_space<vmem>>) target_semaphore(%arg9 : memref<!tpu.dma_semaphore, #tpu.memory_space<semaphore_mem>>)
    %c8_i32_247 = arith.constant 8 : i32
    %306 = arith.muli %arg0, %c8_i32_247 : i32
    %c6_i32_248 = arith.constant 6 : i32
    %307 = arith.addi %306, %c6_i32_248 : i32
    %308 = arith.index_cast %307 : i32 to index
    %c3_249 = arith.constant 3 : index
    %309 = memref.load %arg1[%308, %c3_249] : memref<8x8xi32, #tpu.memory_space<smem>>
    %c0_i32_250 = arith.constant 0 : i32
    %310 = tpu.memref_slice %arg2[%309, %c0_i32_250] : memref<10000x64xf32, #tpu.memory_space<any>> -> memref<1x64xf32, #tpu.memory_space<any>>
    %c51_i32 = arith.constant 51 : i32
    %c0_i32_251 = arith.constant 0 : i32
    %311 = tpu.memref_slice %arg8[%c51_i32, %c0_i32_251] : memref<64x64xf32, #tpu.memory_space<vmem>> -> memref<1x64xf32, #tpu.memory_space<vmem>>
    tpu.enqueue_dma source(%310 : memref<1x64xf32, #tpu.memory_space<any>>) target(%311 : memref<1x64xf32, #tpu.memory_space<vmem>>) target_semaphore(%arg9 : memref<!tpu.dma_semaphore, #tpu.memory_space<semaphore_mem>>)
    %c8_i32_252 = arith.constant 8 : i32
    %312 = arith.muli %arg0, %c8_i32_252 : i32
    %c6_i32_253 = arith.constant 6 : i32
    %313 = arith.addi %312, %c6_i32_253 : i32
    %314 = arith.index_cast %313 : i32 to index
    %c4_254 = arith.constant 4 : index
    %315 = memref.load %arg1[%314, %c4_254] : memref<8x8xi32, #tpu.memory_space<smem>>
    %c0_i32_255 = arith.constant 0 : i32
    %316 = tpu.memref_slice %arg2[%315, %c0_i32_255] : memref<10000x64xf32, #tpu.memory_space<any>> -> memref<1x64xf32, #tpu.memory_space<any>>
    %c52_i32 = arith.constant 52 : i32
    %c0_i32_256 = arith.constant 0 : i32
    %317 = tpu.memref_slice %arg8[%c52_i32, %c0_i32_256] : memref<64x64xf32, #tpu.memory_space<vmem>> -> memref<1x64xf32, #tpu.memory_space<vmem>>
    tpu.enqueue_dma source(%316 : memref<1x64xf32, #tpu.memory_space<any>>) target(%317 : memref<1x64xf32, #tpu.memory_space<vmem>>) target_semaphore(%arg9 : memref<!tpu.dma_semaphore, #tpu.memory_space<semaphore_mem>>)
    %c8_i32_257 = arith.constant 8 : i32
    %318 = arith.muli %arg0, %c8_i32_257 : i32
    %c6_i32_258 = arith.constant 6 : i32
    %319 = arith.addi %318, %c6_i32_258 : i32
    %320 = arith.index_cast %319 : i32 to index
    %c5_259 = arith.constant 5 : index
    %321 = memref.load %arg1[%320, %c5_259] : memref<8x8xi32, #tpu.memory_space<smem>>
    %c0_i32_260 = arith.constant 0 : i32
    %322 = tpu.memref_slice %arg2[%321, %c0_i32_260] : memref<10000x64xf32, #tpu.memory_space<any>> -> memref<1x64xf32, #tpu.memory_space<any>>
    %c53_i32 = arith.constant 53 : i32
    %c0_i32_261 = arith.constant 0 : i32
    %323 = tpu.memref_slice %arg8[%c53_i32, %c0_i32_261] : memref<64x64xf32, #tpu.memory_space<vmem>> -> memref<1x64xf32, #tpu.memory_space<vmem>>
    tpu.enqueue_dma source(%322 : memref<1x64xf32, #tpu.memory_space<any>>) target(%323 : memref<1x64xf32, #tpu.memory_space<vmem>>) target_semaphore(%arg9 : memref<!tpu.dma_semaphore, #tpu.memory_space<semaphore_mem>>)
    %c8_i32_262 = arith.constant 8 : i32
    %324 = arith.muli %arg0, %c8_i32_262 : i32
    %c6_i32_263 = arith.constant 6 : i32
    %325 = arith.addi %324, %c6_i32_263 : i32
    %326 = arith.index_cast %325 : i32 to index
    %c6_264 = arith.constant 6 : index
    %327 = memref.load %arg1[%326, %c6_264] : memref<8x8xi32, #tpu.memory_space<smem>>
    %c0_i32_265 = arith.constant 0 : i32
    %328 = tpu.memref_slice %arg2[%327, %c0_i32_265] : memref<10000x64xf32, #tpu.memory_space<any>> -> memref<1x64xf32, #tpu.memory_space<any>>
    %c54_i32 = arith.constant 54 : i32
    %c0_i32_266 = arith.constant 0 : i32
    %329 = tpu.memref_slice %arg8[%c54_i32, %c0_i32_266] : memref<64x64xf32, #tpu.memory_space<vmem>> -> memref<1x64xf32, #tpu.memory_space<vmem>>
    tpu.enqueue_dma source(%328 : memref<1x64xf32, #tpu.memory_space<any>>) target(%329 : memref<1x64xf32, #tpu.memory_space<vmem>>) target_semaphore(%arg9 : memref<!tpu.dma_semaphore, #tpu.memory_space<semaphore_mem>>)
    %c8_i32_267 = arith.constant 8 : i32
    %330 = arith.muli %arg0, %c8_i32_267 : i32
    %c6_i32_268 = arith.constant 6 : i32
    %331 = arith.addi %330, %c6_i32_268 : i32
    %332 = arith.index_cast %331 : i32 to index
    %c7_269 = arith.constant 7 : index
    %333 = memref.load %arg1[%332, %c7_269] : memref<8x8xi32, #tpu.memory_space<smem>>
    %c0_i32_270 = arith.constant 0 : i32
    %334 = tpu.memref_slice %arg2[%333, %c0_i32_270] : memref<10000x64xf32, #tpu.memory_space<any>> -> memref<1x64xf32, #tpu.memory_space<any>>
    %c55_i32 = arith.constant 55 : i32
    %c0_i32_271 = arith.constant 0 : i32
    %335 = tpu.memref_slice %arg8[%c55_i32, %c0_i32_271] : memref<64x64xf32, #tpu.memory_space<vmem>> -> memref<1x64xf32, #tpu.memory_space<vmem>>
    tpu.enqueue_dma source(%334 : memref<1x64xf32, #tpu.memory_space<any>>) target(%335 : memref<1x64xf32, #tpu.memory_space<vmem>>) target_semaphore(%arg9 : memref<!tpu.dma_semaphore, #tpu.memory_space<semaphore_mem>>)
    %c8_i32_272 = arith.constant 8 : i32
    %336 = arith.muli %arg0, %c8_i32_272 : i32
    %c7_i32_273 = arith.constant 7 : i32
    %337 = arith.addi %336, %c7_i32_273 : i32
    %338 = arith.index_cast %337 : i32 to index
    %c0_274 = arith.constant 0 : index
    %339 = memref.load %arg1[%338, %c0_274] : memref<8x8xi32, #tpu.memory_space<smem>>
    %c0_i32_275 = arith.constant 0 : i32
    %340 = tpu.memref_slice %arg2[%339, %c0_i32_275] : memref<10000x64xf32, #tpu.memory_space<any>> -> memref<1x64xf32, #tpu.memory_space<any>>
    %c56_i32 = arith.constant 56 : i32
    %c0_i32_276 = arith.constant 0 : i32
    %341 = tpu.memref_slice %arg8[%c56_i32, %c0_i32_276] : memref<64x64xf32, #tpu.memory_space<vmem>> -> memref<1x64xf32, #tpu.memory_space<vmem>>
    tpu.enqueue_dma source(%340 : memref<1x64xf32, #tpu.memory_space<any>>) target(%341 : memref<1x64xf32, #tpu.memory_space<vmem>>) target_semaphore(%arg9 : memref<!tpu.dma_semaphore, #tpu.memory_space<semaphore_mem>>)
    %c8_i32_277 = arith.constant 8 : i32
    %342 = arith.muli %arg0, %c8_i32_277 : i32
    %c7_i32_278 = arith.constant 7 : i32
    %343 = arith.addi %342, %c7_i32_278 : i32
    %344 = arith.index_cast %343 : i32 to index
    %c1_279 = arith.constant 1 : index
    %345 = memref.load %arg1[%344, %c1_279] : memref<8x8xi32, #tpu.memory_space<smem>>
    %c0_i32_280 = arith.constant 0 : i32
    %346 = tpu.memref_slice %arg2[%345, %c0_i32_280] : memref<10000x64xf32, #tpu.memory_space<any>> -> memref<1x64xf32, #tpu.memory_space<any>>
    %c57_i32 = arith.constant 57 : i32
    %c0_i32_281 = arith.constant 0 : i32
    %347 = tpu.memref_slice %arg8[%c57_i32, %c0_i32_281] : memref<64x64xf32, #tpu.memory_space<vmem>> -> memref<1x64xf32, #tpu.memory_space<vmem>>
    tpu.enqueue_dma source(%346 : memref<1x64xf32, #tpu.memory_space<any>>) target(%347 : memref<1x64xf32, #tpu.memory_space<vmem>>) target_semaphore(%arg9 : memref<!tpu.dma_semaphore, #tpu.memory_space<semaphore_mem>>)
    %c8_i32_282 = arith.constant 8 : i32
    %348 = arith.muli %arg0, %c8_i32_282 : i32
    %c7_i32_283 = arith.constant 7 : i32
    %349 = arith.addi %348, %c7_i32_283 : i32
    %350 = arith.index_cast %349 : i32 to index
    %c2_284 = arith.constant 2 : index
    %351 = memref.load %arg1[%350, %c2_284] : memref<8x8xi32, #tpu.memory_space<smem>>
    %c0_i32_285 = arith.constant 0 : i32
    %352 = tpu.memref_slice %arg2[%351, %c0_i32_285] : memref<10000x64xf32, #tpu.memory_space<any>> -> memref<1x64xf32, #tpu.memory_space<any>>
    %c58_i32 = arith.constant 58 : i32
    %c0_i32_286 = arith.constant 0 : i32
    %353 = tpu.memref_slice %arg8[%c58_i32, %c0_i32_286] : memref<64x64xf32, #tpu.memory_space<vmem>> -> memref<1x64xf32, #tpu.memory_space<vmem>>
    tpu.enqueue_dma source(%352 : memref<1x64xf32, #tpu.memory_space<any>>) target(%353 : memref<1x64xf32, #tpu.memory_space<vmem>>) target_semaphore(%arg9 : memref<!tpu.dma_semaphore, #tpu.memory_space<semaphore_mem>>)
    %c8_i32_287 = arith.constant 8 : i32
    %354 = arith.muli %arg0, %c8_i32_287 : i32
    %c7_i32_288 = arith.constant 7 : i32
    %355 = arith.addi %354, %c7_i32_288 : i32
    %356 = arith.index_cast %355 : i32 to index
    %c3_289 = arith.constant 3 : index
    %357 = memref.load %arg1[%356, %c3_289] : memref<8x8xi32, #tpu.memory_space<smem>>
    %c0_i32_290 = arith.constant 0 : i32
    %358 = tpu.memref_slice %arg2[%357, %c0_i32_290] : memref<10000x64xf32, #tpu.memory_space<any>> -> memref<1x64xf32, #tpu.memory_space<any>>
    %c59_i32 = arith.constant 59 : i32
    %c0_i32_291 = arith.constant 0 : i32
    %359 = tpu.memref_slice %arg8[%c59_i32, %c0_i32_291] : memref<64x64xf32, #tpu.memory_space<vmem>> -> memref<1x64xf32, #tpu.memory_space<vmem>>
    tpu.enqueue_dma source(%358 : memref<1x64xf32, #tpu.memory_space<any>>) target(%359 : memref<1x64xf32, #tpu.memory_space<vmem>>) target_semaphore(%arg9 : memref<!tpu.dma_semaphore, #tpu.memory_space<semaphore_mem>>)
    %c8_i32_292 = arith.constant 8 : i32
    %360 = arith.muli %arg0, %c8_i32_292 : i32
    %c7_i32_293 = arith.constant 7 : i32
    %361 = arith.addi %360, %c7_i32_293 : i32
    %362 = arith.index_cast %361 : i32 to index
    %c4_294 = arith.constant 4 : index
    %363 = memref.load %arg1[%362, %c4_294] : memref<8x8xi32, #tpu.memory_space<smem>>
    %c0_i32_295 = arith.constant 0 : i32
    %364 = tpu.memref_slice %arg2[%363, %c0_i32_295] : memref<10000x64xf32, #tpu.memory_space<any>> -> memref<1x64xf32, #tpu.memory_space<any>>
    %c60_i32 = arith.constant 60 : i32
    %c0_i32_296 = arith.constant 0 : i32
    %365 = tpu.memref_slice %arg8[%c60_i32, %c0_i32_296] : memref<64x64xf32, #tpu.memory_space<vmem>> -> memref<1x64xf32, #tpu.memory_space<vmem>>
    tpu.enqueue_dma source(%364 : memref<1x64xf32, #tpu.memory_space<any>>) target(%365 : memref<1x64xf32, #tpu.memory_space<vmem>>) target_semaphore(%arg9 : memref<!tpu.dma_semaphore, #tpu.memory_space<semaphore_mem>>)
    %c8_i32_297 = arith.constant 8 : i32
    %366 = arith.muli %arg0, %c8_i32_297 : i32
    %c7_i32_298 = arith.constant 7 : i32
    %367 = arith.addi %366, %c7_i32_298 : i32
    %368 = arith.index_cast %367 : i32 to index
    %c5_299 = arith.constant 5 : index
    %369 = memref.load %arg1[%368, %c5_299] : memref<8x8xi32, #tpu.memory_space<smem>>
    %c0_i32_300 = arith.constant 0 : i32
    %370 = tpu.memref_slice %arg2[%369, %c0_i32_300] : memref<10000x64xf32, #tpu.memory_space<any>> -> memref<1x64xf32, #tpu.memory_space<any>>
    %c61_i32 = arith.constant 61 : i32
    %c0_i32_301 = arith.constant 0 : i32
    %371 = tpu.memref_slice %arg8[%c61_i32, %c0_i32_301] : memref<64x64xf32, #tpu.memory_space<vmem>> -> memref<1x64xf32, #tpu.memory_space<vmem>>
    tpu.enqueue_dma source(%370 : memref<1x64xf32, #tpu.memory_space<any>>) target(%371 : memref<1x64xf32, #tpu.memory_space<vmem>>) target_semaphore(%arg9 : memref<!tpu.dma_semaphore, #tpu.memory_space<semaphore_mem>>)
    %c8_i32_302 = arith.constant 8 : i32
    %372 = arith.muli %arg0, %c8_i32_302 : i32
    %c7_i32_303 = arith.constant 7 : i32
    %373 = arith.addi %372, %c7_i32_303 : i32
    %374 = arith.index_cast %373 : i32 to index
    %c6_304 = arith.constant 6 : index
    %375 = memref.load %arg1[%374, %c6_304] : memref<8x8xi32, #tpu.memory_space<smem>>
    %c0_i32_305 = arith.constant 0 : i32
    %376 = tpu.memref_slice %arg2[%375, %c0_i32_305] : memref<10000x64xf32, #tpu.memory_space<any>> -> memref<1x64xf32, #tpu.memory_space<any>>
    %c62_i32 = arith.constant 62 : i32
    %c0_i32_306 = arith.constant 0 : i32
    %377 = tpu.memref_slice %arg8[%c62_i32, %c0_i32_306] : memref<64x64xf32, #tpu.memory_space<vmem>> -> memref<1x64xf32, #tpu.memory_space<vmem>>
    tpu.enqueue_dma source(%376 : memref<1x64xf32, #tpu.memory_space<any>>) target(%377 : memref<1x64xf32, #tpu.memory_space<vmem>>) target_semaphore(%arg9 : memref<!tpu.dma_semaphore, #tpu.memory_space<semaphore_mem>>)
    %c8_i32_307 = arith.constant 8 : i32
    %378 = arith.muli %arg0, %c8_i32_307 : i32
    %c7_i32_308 = arith.constant 7 : i32
    %379 = arith.addi %378, %c7_i32_308 : i32
    %380 = arith.index_cast %379 : i32 to index
    %c7_309 = arith.constant 7 : index
    %381 = memref.load %arg1[%380, %c7_309] : memref<8x8xi32, #tpu.memory_space<smem>>
    %c0_i32_310 = arith.constant 0 : i32
    %382 = tpu.memref_slice %arg2[%381, %c0_i32_310] : memref<10000x64xf32, #tpu.memory_space<any>> -> memref<1x64xf32, #tpu.memory_space<any>>
    %c63_i32 = arith.constant 63 : i32
    %c0_i32_311 = arith.constant 0 : i32
    %383 = tpu.memref_slice %arg8[%c63_i32, %c0_i32_311] : memref<64x64xf32, #tpu.memory_space<vmem>> -> memref<1x64xf32, #tpu.memory_space<vmem>>
    tpu.enqueue_dma source(%382 : memref<1x64xf32, #tpu.memory_space<any>>) target(%383 : memref<1x64xf32, #tpu.memory_space<vmem>>) target_semaphore(%arg9 : memref<!tpu.dma_semaphore, #tpu.memory_space<semaphore_mem>>)
    %c0_i32_312 = arith.constant 0 : i32
    %384 = tpu.memref_slice %arg2[%3, %c0_i32_312] : memref<10000x64xf32, #tpu.memory_space<any>> -> memref<1x64xf32, #tpu.memory_space<any>>
    %c0_i32_313 = arith.constant 0 : i32
    %c0_i32_314 = arith.constant 0 : i32
    %385 = tpu.memref_slice %arg8[%c0_i32_313, %c0_i32_314] : memref<64x64xf32, #tpu.memory_space<vmem>> -> memref<1x64xf32, #tpu.memory_space<vmem>>
    tpu.wait_dma2 semaphore(%arg9 : memref<!tpu.dma_semaphore, #tpu.memory_space<semaphore_mem>>) src(%384 : memref<1x64xf32, #tpu.memory_space<any>>) dst(%385 : memref<1x64xf32, #tpu.memory_space<vmem>>)
    %c0_i32_315 = arith.constant 0 : i32
    %386 = tpu.memref_slice %arg2[%9, %c0_i32_315] : memref<10000x64xf32, #tpu.memory_space<any>> -> memref<1x64xf32, #tpu.memory_space<any>>
    %c1_i32_316 = arith.constant 1 : i32
    %c0_i32_317 = arith.constant 0 : i32
    %387 = tpu.memref_slice %arg8[%c1_i32_316, %c0_i32_317] : memref<64x64xf32, #tpu.memory_space<vmem>> -> memref<1x64xf32, #tpu.memory_space<vmem>>
    tpu.wait_dma2 semaphore(%arg9 : memref<!tpu.dma_semaphore, #tpu.memory_space<semaphore_mem>>) src(%386 : memref<1x64xf32, #tpu.memory_space<any>>) dst(%387 : memref<1x64xf32, #tpu.memory_space<vmem>>)
    %c0_i32_318 = arith.constant 0 : i32
    %388 = tpu.memref_slice %arg2[%15, %c0_i32_318] : memref<10000x64xf32, #tpu.memory_space<any>> -> memref<1x64xf32, #tpu.memory_space<any>>
    %c2_i32_319 = arith.constant 2 : i32
    %c0_i32_320 = arith.constant 0 : i32
    %389 = tpu.memref_slice %arg8[%c2_i32_319, %c0_i32_320] : memref<64x64xf32, #tpu.memory_space<vmem>> -> memref<1x64xf32, #tpu.memory_space<vmem>>
    tpu.wait_dma2 semaphore(%arg9 : memref<!tpu.dma_semaphore, #tpu.memory_space<semaphore_mem>>) src(%388 : memref<1x64xf32, #tpu.memory_space<any>>) dst(%389 : memref<1x64xf32, #tpu.memory_space<vmem>>)
    %c0_i32_321 = arith.constant 0 : i32
    %390 = tpu.memref_slice %arg2[%21, %c0_i32_321] : memref<10000x64xf32, #tpu.memory_space<any>> -> memref<1x64xf32, #tpu.memory_space<any>>
    %c3_i32_322 = arith.constant 3 : i32
    %c0_i32_323 = arith.constant 0 : i32
    %391 = tpu.memref_slice %arg8[%c3_i32_322, %c0_i32_323] : memref<64x64xf32, #tpu.memory_space<vmem>> -> memref<1x64xf32, #tpu.memory_space<vmem>>
    tpu.wait_dma2 semaphore(%arg9 : memref<!tpu.dma_semaphore, #tpu.memory_space<semaphore_mem>>) src(%390 : memref<1x64xf32, #tpu.memory_space<any>>) dst(%391 : memref<1x64xf32, #tpu.memory_space<vmem>>)
    %c0_i32_324 = arith.constant 0 : i32
    %392 = tpu.memref_slice %arg2[%27, %c0_i32_324] : memref<10000x64xf32, #tpu.memory_space<any>> -> memref<1x64xf32, #tpu.memory_space<any>>
    %c4_i32_325 = arith.constant 4 : i32
    %c0_i32_326 = arith.constant 0 : i32
    %393 = tpu.memref_slice %arg8[%c4_i32_325, %c0_i32_326] : memref<64x64xf32, #tpu.memory_space<vmem>> -> memref<1x64xf32, #tpu.memory_space<vmem>>
    tpu.wait_dma2 semaphore(%arg9 : memref<!tpu.dma_semaphore, #tpu.memory_space<semaphore_mem>>) src(%392 : memref<1x64xf32, #tpu.memory_space<any>>) dst(%393 : memref<1x64xf32, #tpu.memory_space<vmem>>)
    %c0_i32_327 = arith.constant 0 : i32
    %394 = tpu.memref_slice %arg2[%33, %c0_i32_327] : memref<10000x64xf32, #tpu.memory_space<any>> -> memref<1x64xf32, #tpu.memory_space<any>>
    %c5_i32_328 = arith.constant 5 : i32
    %c0_i32_329 = arith.constant 0 : i32
    %395 = tpu.memref_slice %arg8[%c5_i32_328, %c0_i32_329] : memref<64x64xf32, #tpu.memory_space<vmem>> -> memref<1x64xf32, #tpu.memory_space<vmem>>
    tpu.wait_dma2 semaphore(%arg9 : memref<!tpu.dma_semaphore, #tpu.memory_space<semaphore_mem>>) src(%394 : memref<1x64xf32, #tpu.memory_space<any>>) dst(%395 : memref<1x64xf32, #tpu.memory_space<vmem>>)
    %c0_i32_330 = arith.constant 0 : i32
    %396 = tpu.memref_slice %arg2[%39, %c0_i32_330] : memref<10000x64xf32, #tpu.memory_space<any>> -> memref<1x64xf32, #tpu.memory_space<any>>
    %c6_i32_331 = arith.constant 6 : i32
    %c0_i32_332 = arith.constant 0 : i32
    %397 = tpu.memref_slice %arg8[%c6_i32_331, %c0_i32_332] : memref<64x64xf32, #tpu.memory_space<vmem>> -> memref<1x64xf32, #tpu.memory_space<vmem>>
    tpu.wait_dma2 semaphore(%arg9 : memref<!tpu.dma_semaphore, #tpu.memory_space<semaphore_mem>>) src(%396 : memref<1x64xf32, #tpu.memory_space<any>>) dst(%397 : memref<1x64xf32, #tpu.memory_space<vmem>>)
    %c0_i32_333 = arith.constant 0 : i32
    %398 = tpu.memref_slice %arg2[%45, %c0_i32_333] : memref<10000x64xf32, #tpu.memory_space<any>> -> memref<1x64xf32, #tpu.memory_space<any>>
    %c7_i32_334 = arith.constant 7 : i32
    %c0_i32_335 = arith.constant 0 : i32
    %399 = tpu.memref_slice %arg8[%c7_i32_334, %c0_i32_335] : memref<64x64xf32, #tpu.memory_space<vmem>> -> memref<1x64xf32, #tpu.memory_space<vmem>>
    tpu.wait_dma2 semaphore(%arg9 : memref<!tpu.dma_semaphore, #tpu.memory_space<semaphore_mem>>) src(%398 : memref<1x64xf32, #tpu.memory_space<any>>) dst(%399 : memref<1x64xf32, #tpu.memory_space<vmem>>)
    %c0_i32_336 = arith.constant 0 : i32
    %400 = tpu.memref_slice %arg2[%51, %c0_i32_336] : memref<10000x64xf32, #tpu.memory_space<any>> -> memref<1x64xf32, #tpu.memory_space<any>>
    %c8_i32_337 = arith.constant 8 : i32
    %c0_i32_338 = arith.constant 0 : i32
    %401 = tpu.memref_slice %arg8[%c8_i32_337, %c0_i32_338] : memref<64x64xf32, #tpu.memory_space<vmem>> -> memref<1x64xf32, #tpu.memory_space<vmem>>
    tpu.wait_dma2 semaphore(%arg9 : memref<!tpu.dma_semaphore, #tpu.memory_space<semaphore_mem>>) src(%400 : memref<1x64xf32, #tpu.memory_space<any>>) dst(%401 : memref<1x64xf32, #tpu.memory_space<vmem>>)
    %c0_i32_339 = arith.constant 0 : i32
    %402 = tpu.memref_slice %arg2[%57, %c0_i32_339] : memref<10000x64xf32, #tpu.memory_space<any>> -> memref<1x64xf32, #tpu.memory_space<any>>
    %c9_i32_340 = arith.constant 9 : i32
    %c0_i32_341 = arith.constant 0 : i32
    %403 = tpu.memref_slice %arg8[%c9_i32_340, %c0_i32_341] : memref<64x64xf32, #tpu.memory_space<vmem>> -> memref<1x64xf32, #tpu.memory_space<vmem>>
    tpu.wait_dma2 semaphore(%arg9 : memref<!tpu.dma_semaphore, #tpu.memory_space<semaphore_mem>>) src(%402 : memref<1x64xf32, #tpu.memory_space<any>>) dst(%403 : memref<1x64xf32, #tpu.memory_space<vmem>>)
    %c0_i32_342 = arith.constant 0 : i32
    %404 = tpu.memref_slice %arg2[%63, %c0_i32_342] : memref<10000x64xf32, #tpu.memory_space<any>> -> memref<1x64xf32, #tpu.memory_space<any>>
    %c10_i32_343 = arith.constant 10 : i32
    %c0_i32_344 = arith.constant 0 : i32
    %405 = tpu.memref_slice %arg8[%c10_i32_343, %c0_i32_344] : memref<64x64xf32, #tpu.memory_space<vmem>> -> memref<1x64xf32, #tpu.memory_space<vmem>>
    tpu.wait_dma2 semaphore(%arg9 : memref<!tpu.dma_semaphore, #tpu.memory_space<semaphore_mem>>) src(%404 : memref<1x64xf32, #tpu.memory_space<any>>) dst(%405 : memref<1x64xf32, #tpu.memory_space<vmem>>)
    %c0_i32_345 = arith.constant 0 : i32
    %406 = tpu.memref_slice %arg2[%69, %c0_i32_345] : memref<10000x64xf32, #tpu.memory_space<any>> -> memref<1x64xf32, #tpu.memory_space<any>>
    %c11_i32_346 = arith.constant 11 : i32
    %c0_i32_347 = arith.constant 0 : i32
    %407 = tpu.memref_slice %arg8[%c11_i32_346, %c0_i32_347] : memref<64x64xf32, #tpu.memory_space<vmem>> -> memref<1x64xf32, #tpu.memory_space<vmem>>
    tpu.wait_dma2 semaphore(%arg9 : memref<!tpu.dma_semaphore, #tpu.memory_space<semaphore_mem>>) src(%406 : memref<1x64xf32, #tpu.memory_space<any>>) dst(%407 : memref<1x64xf32, #tpu.memory_space<vmem>>)
    %c0_i32_348 = arith.constant 0 : i32
    %408 = tpu.memref_slice %arg2[%75, %c0_i32_348] : memref<10000x64xf32, #tpu.memory_space<any>> -> memref<1x64xf32, #tpu.memory_space<any>>
    %c12_i32_349 = arith.constant 12 : i32
    %c0_i32_350 = arith.constant 0 : i32
    %409 = tpu.memref_slice %arg8[%c12_i32_349, %c0_i32_350] : memref<64x64xf32, #tpu.memory_space<vmem>> -> memref<1x64xf32, #tpu.memory_space<vmem>>
    tpu.wait_dma2 semaphore(%arg9 : memref<!tpu.dma_semaphore, #tpu.memory_space<semaphore_mem>>) src(%408 : memref<1x64xf32, #tpu.memory_space<any>>) dst(%409 : memref<1x64xf32, #tpu.memory_space<vmem>>)
    %c0_i32_351 = arith.constant 0 : i32
    %410 = tpu.memref_slice %arg2[%81, %c0_i32_351] : memref<10000x64xf32, #tpu.memory_space<any>> -> memref<1x64xf32, #tpu.memory_space<any>>
    %c13_i32_352 = arith.constant 13 : i32
    %c0_i32_353 = arith.constant 0 : i32
    %411 = tpu.memref_slice %arg8[%c13_i32_352, %c0_i32_353] : memref<64x64xf32, #tpu.memory_space<vmem>> -> memref<1x64xf32, #tpu.memory_space<vmem>>
    tpu.wait_dma2 semaphore(%arg9 : memref<!tpu.dma_semaphore, #tpu.memory_space<semaphore_mem>>) src(%410 : memref<1x64xf32, #tpu.memory_space<any>>) dst(%411 : memref<1x64xf32, #tpu.memory_space<vmem>>)
    %c0_i32_354 = arith.constant 0 : i32
    %412 = tpu.memref_slice %arg2[%87, %c0_i32_354] : memref<10000x64xf32, #tpu.memory_space<any>> -> memref<1x64xf32, #tpu.memory_space<any>>
    %c14_i32_355 = arith.constant 14 : i32
    %c0_i32_356 = arith.constant 0 : i32
    %413 = tpu.memref_slice %arg8[%c14_i32_355, %c0_i32_356] : memref<64x64xf32, #tpu.memory_space<vmem>> -> memref<1x64xf32, #tpu.memory_space<vmem>>
    tpu.wait_dma2 semaphore(%arg9 : memref<!tpu.dma_semaphore, #tpu.memory_space<semaphore_mem>>) src(%412 : memref<1x64xf32, #tpu.memory_space<any>>) dst(%413 : memref<1x64xf32, #tpu.memory_space<vmem>>)
    %c0_i32_357 = arith.constant 0 : i32
    %414 = tpu.memref_slice %arg2[%93, %c0_i32_357] : memref<10000x64xf32, #tpu.memory_space<any>> -> memref<1x64xf32, #tpu.memory_space<any>>
    %c15_i32_358 = arith.constant 15 : i32
    %c0_i32_359 = arith.constant 0 : i32
    %415 = tpu.memref_slice %arg8[%c15_i32_358, %c0_i32_359] : memref<64x64xf32, #tpu.memory_space<vmem>> -> memref<1x64xf32, #tpu.memory_space<vmem>>
    tpu.wait_dma2 semaphore(%arg9 : memref<!tpu.dma_semaphore, #tpu.memory_space<semaphore_mem>>) src(%414 : memref<1x64xf32, #tpu.memory_space<any>>) dst(%415 : memref<1x64xf32, #tpu.memory_space<vmem>>)
    %c0_i32_360 = arith.constant 0 : i32
    %416 = tpu.memref_slice %arg2[%99, %c0_i32_360] : memref<10000x64xf32, #tpu.memory_space<any>> -> memref<1x64xf32, #tpu.memory_space<any>>
    %c16_i32_361 = arith.constant 16 : i32
    %c0_i32_362 = arith.constant 0 : i32
    %417 = tpu.memref_slice %arg8[%c16_i32_361, %c0_i32_362] : memref<64x64xf32, #tpu.memory_space<vmem>> -> memref<1x64xf32, #tpu.memory_space<vmem>>
    tpu.wait_dma2 semaphore(%arg9 : memref<!tpu.dma_semaphore, #tpu.memory_space<semaphore_mem>>) src(%416 : memref<1x64xf32, #tpu.memory_space<any>>) dst(%417 : memref<1x64xf32, #tpu.memory_space<vmem>>)
    %c0_i32_363 = arith.constant 0 : i32
    %418 = tpu.memref_slice %arg2[%105, %c0_i32_363] : memref<10000x64xf32, #tpu.memory_space<any>> -> memref<1x64xf32, #tpu.memory_space<any>>
    %c17_i32_364 = arith.constant 17 : i32
    %c0_i32_365 = arith.constant 0 : i32
    %419 = tpu.memref_slice %arg8[%c17_i32_364, %c0_i32_365] : memref<64x64xf32, #tpu.memory_space<vmem>> -> memref<1x64xf32, #tpu.memory_space<vmem>>
    tpu.wait_dma2 semaphore(%arg9 : memref<!tpu.dma_semaphore, #tpu.memory_space<semaphore_mem>>) src(%418 : memref<1x64xf32, #tpu.memory_space<any>>) dst(%419 : memref<1x64xf32, #tpu.memory_space<vmem>>)
    %c0_i32_366 = arith.constant 0 : i32
    %420 = tpu.memref_slice %arg2[%111, %c0_i32_366] : memref<10000x64xf32, #tpu.memory_space<any>> -> memref<1x64xf32, #tpu.memory_space<any>>
    %c18_i32_367 = arith.constant 18 : i32
    %c0_i32_368 = arith.constant 0 : i32
    %421 = tpu.memref_slice %arg8[%c18_i32_367, %c0_i32_368] : memref<64x64xf32, #tpu.memory_space<vmem>> -> memref<1x64xf32, #tpu.memory_space<vmem>>
    tpu.wait_dma2 semaphore(%arg9 : memref<!tpu.dma_semaphore, #tpu.memory_space<semaphore_mem>>) src(%420 : memref<1x64xf32, #tpu.memory_space<any>>) dst(%421 : memref<1x64xf32, #tpu.memory_space<vmem>>)
    %c0_i32_369 = arith.constant 0 : i32
    %422 = tpu.memref_slice %arg2[%117, %c0_i32_369] : memref<10000x64xf32, #tpu.memory_space<any>> -> memref<1x64xf32, #tpu.memory_space<any>>
    %c19_i32_370 = arith.constant 19 : i32
    %c0_i32_371 = arith.constant 0 : i32
    %423 = tpu.memref_slice %arg8[%c19_i32_370, %c0_i32_371] : memref<64x64xf32, #tpu.memory_space<vmem>> -> memref<1x64xf32, #tpu.memory_space<vmem>>
    tpu.wait_dma2 semaphore(%arg9 : memref<!tpu.dma_semaphore, #tpu.memory_space<semaphore_mem>>) src(%422 : memref<1x64xf32, #tpu.memory_space<any>>) dst(%423 : memref<1x64xf32, #tpu.memory_space<vmem>>)
    %c0_i32_372 = arith.constant 0 : i32
    %424 = tpu.memref_slice %arg2[%123, %c0_i32_372] : memref<10000x64xf32, #tpu.memory_space<any>> -> memref<1x64xf32, #tpu.memory_space<any>>
    %c20_i32_373 = arith.constant 20 : i32
    %c0_i32_374 = arith.constant 0 : i32
    %425 = tpu.memref_slice %arg8[%c20_i32_373, %c0_i32_374] : memref<64x64xf32, #tpu.memory_space<vmem>> -> memref<1x64xf32, #tpu.memory_space<vmem>>
    tpu.wait_dma2 semaphore(%arg9 : memref<!tpu.dma_semaphore, #tpu.memory_space<semaphore_mem>>) src(%424 : memref<1x64xf32, #tpu.memory_space<any>>) dst(%425 : memref<1x64xf32, #tpu.memory_space<vmem>>)
    %c0_i32_375 = arith.constant 0 : i32
    %426 = tpu.memref_slice %arg2[%129, %c0_i32_375] : memref<10000x64xf32, #tpu.memory_space<any>> -> memref<1x64xf32, #tpu.memory_space<any>>
    %c21_i32_376 = arith.constant 21 : i32
    %c0_i32_377 = arith.constant 0 : i32
    %427 = tpu.memref_slice %arg8[%c21_i32_376, %c0_i32_377] : memref<64x64xf32, #tpu.memory_space<vmem>> -> memref<1x64xf32, #tpu.memory_space<vmem>>
    tpu.wait_dma2 semaphore(%arg9 : memref<!tpu.dma_semaphore, #tpu.memory_space<semaphore_mem>>) src(%426 : memref<1x64xf32, #tpu.memory_space<any>>) dst(%427 : memref<1x64xf32, #tpu.memory_space<vmem>>)
    %c0_i32_378 = arith.constant 0 : i32
    %428 = tpu.memref_slice %arg2[%135, %c0_i32_378] : memref<10000x64xf32, #tpu.memory_space<any>> -> memref<1x64xf32, #tpu.memory_space<any>>
    %c22_i32_379 = arith.constant 22 : i32
    %c0_i32_380 = arith.constant 0 : i32
    %429 = tpu.memref_slice %arg8[%c22_i32_379, %c0_i32_380] : memref<64x64xf32, #tpu.memory_space<vmem>> -> memref<1x64xf32, #tpu.memory_space<vmem>>
    tpu.wait_dma2 semaphore(%arg9 : memref<!tpu.dma_semaphore, #tpu.memory_space<semaphore_mem>>) src(%428 : memref<1x64xf32, #tpu.memory_space<any>>) dst(%429 : memref<1x64xf32, #tpu.memory_space<vmem>>)
    %c0_i32_381 = arith.constant 0 : i32
    %430 = tpu.memref_slice %arg2[%141, %c0_i32_381] : memref<10000x64xf32, #tpu.memory_space<any>> -> memref<1x64xf32, #tpu.memory_space<any>>
    %c23_i32_382 = arith.constant 23 : i32
    %c0_i32_383 = arith.constant 0 : i32
    %431 = tpu.memref_slice %arg8[%c23_i32_382, %c0_i32_383] : memref<64x64xf32, #tpu.memory_space<vmem>> -> memref<1x64xf32, #tpu.memory_space<vmem>>
    tpu.wait_dma2 semaphore(%arg9 : memref<!tpu.dma_semaphore, #tpu.memory_space<semaphore_mem>>) src(%430 : memref<1x64xf32, #tpu.memory_space<any>>) dst(%431 : memref<1x64xf32, #tpu.memory_space<vmem>>)
    %c0_i32_384 = arith.constant 0 : i32
    %432 = tpu.memref_slice %arg2[%147, %c0_i32_384] : memref<10000x64xf32, #tpu.memory_space<any>> -> memref<1x64xf32, #tpu.memory_space<any>>
    %c24_i32_385 = arith.constant 24 : i32
    %c0_i32_386 = arith.constant 0 : i32
    %433 = tpu.memref_slice %arg8[%c24_i32_385, %c0_i32_386] : memref<64x64xf32, #tpu.memory_space<vmem>> -> memref<1x64xf32, #tpu.memory_space<vmem>>
    tpu.wait_dma2 semaphore(%arg9 : memref<!tpu.dma_semaphore, #tpu.memory_space<semaphore_mem>>) src(%432 : memref<1x64xf32, #tpu.memory_space<any>>) dst(%433 : memref<1x64xf32, #tpu.memory_space<vmem>>)
    %c0_i32_387 = arith.constant 0 : i32
    %434 = tpu.memref_slice %arg2[%153, %c0_i32_387] : memref<10000x64xf32, #tpu.memory_space<any>> -> memref<1x64xf32, #tpu.memory_space<any>>
    %c25_i32_388 = arith.constant 25 : i32
    %c0_i32_389 = arith.constant 0 : i32
    %435 = tpu.memref_slice %arg8[%c25_i32_388, %c0_i32_389] : memref<64x64xf32, #tpu.memory_space<vmem>> -> memref<1x64xf32, #tpu.memory_space<vmem>>
    tpu.wait_dma2 semaphore(%arg9 : memref<!tpu.dma_semaphore, #tpu.memory_space<semaphore_mem>>) src(%434 : memref<1x64xf32, #tpu.memory_space<any>>) dst(%435 : memref<1x64xf32, #tpu.memory_space<vmem>>)
    %c0_i32_390 = arith.constant 0 : i32
    %436 = tpu.memref_slice %arg2[%159, %c0_i32_390] : memref<10000x64xf32, #tpu.memory_space<any>> -> memref<1x64xf32, #tpu.memory_space<any>>
    %c26_i32_391 = arith.constant 26 : i32
    %c0_i32_392 = arith.constant 0 : i32
    %437 = tpu.memref_slice %arg8[%c26_i32_391, %c0_i32_392] : memref<64x64xf32, #tpu.memory_space<vmem>> -> memref<1x64xf32, #tpu.memory_space<vmem>>
    tpu.wait_dma2 semaphore(%arg9 : memref<!tpu.dma_semaphore, #tpu.memory_space<semaphore_mem>>) src(%436 : memref<1x64xf32, #tpu.memory_space<any>>) dst(%437 : memref<1x64xf32, #tpu.memory_space<vmem>>)
    %c0_i32_393 = arith.constant 0 : i32
    %438 = tpu.memref_slice %arg2[%165, %c0_i32_393] : memref<10000x64xf32, #tpu.memory_space<any>> -> memref<1x64xf32, #tpu.memory_space<any>>
    %c27_i32_394 = arith.constant 27 : i32
    %c0_i32_395 = arith.constant 0 : i32
    %439 = tpu.memref_slice %arg8[%c27_i32_394, %c0_i32_395] : memref<64x64xf32, #tpu.memory_space<vmem>> -> memref<1x64xf32, #tpu.memory_space<vmem>>
    tpu.wait_dma2 semaphore(%arg9 : memref<!tpu.dma_semaphore, #tpu.memory_space<semaphore_mem>>) src(%438 : memref<1x64xf32, #tpu.memory_space<any>>) dst(%439 : memref<1x64xf32, #tpu.memory_space<vmem>>)
    %c0_i32_396 = arith.constant 0 : i32
    %440 = tpu.memref_slice %arg2[%171, %c0_i32_396] : memref<10000x64xf32, #tpu.memory_space<any>> -> memref<1x64xf32, #tpu.memory_space<any>>
    %c28_i32_397 = arith.constant 28 : i32
    %c0_i32_398 = arith.constant 0 : i32
    %441 = tpu.memref_slice %arg8[%c28_i32_397, %c0_i32_398] : memref<64x64xf32, #tpu.memory_space<vmem>> -> memref<1x64xf32, #tpu.memory_space<vmem>>
    tpu.wait_dma2 semaphore(%arg9 : memref<!tpu.dma_semaphore, #tpu.memory_space<semaphore_mem>>) src(%440 : memref<1x64xf32, #tpu.memory_space<any>>) dst(%441 : memref<1x64xf32, #tpu.memory_space<vmem>>)
    %c0_i32_399 = arith.constant 0 : i32
    %442 = tpu.memref_slice %arg2[%177, %c0_i32_399] : memref<10000x64xf32, #tpu.memory_space<any>> -> memref<1x64xf32, #tpu.memory_space<any>>
    %c29_i32_400 = arith.constant 29 : i32
    %c0_i32_401 = arith.constant 0 : i32
    %443 = tpu.memref_slice %arg8[%c29_i32_400, %c0_i32_401] : memref<64x64xf32, #tpu.memory_space<vmem>> -> memref<1x64xf32, #tpu.memory_space<vmem>>
    tpu.wait_dma2 semaphore(%arg9 : memref<!tpu.dma_semaphore, #tpu.memory_space<semaphore_mem>>) src(%442 : memref<1x64xf32, #tpu.memory_space<any>>) dst(%443 : memref<1x64xf32, #tpu.memory_space<vmem>>)
    %c0_i32_402 = arith.constant 0 : i32
    %444 = tpu.memref_slice %arg2[%183, %c0_i32_402] : memref<10000x64xf32, #tpu.memory_space<any>> -> memref<1x64xf32, #tpu.memory_space<any>>
    %c30_i32_403 = arith.constant 30 : i32
    %c0_i32_404 = arith.constant 0 : i32
    %445 = tpu.memref_slice %arg8[%c30_i32_403, %c0_i32_404] : memref<64x64xf32, #tpu.memory_space<vmem>> -> memref<1x64xf32, #tpu.memory_space<vmem>>
    tpu.wait_dma2 semaphore(%arg9 : memref<!tpu.dma_semaphore, #tpu.memory_space<semaphore_mem>>) src(%444 : memref<1x64xf32, #tpu.memory_space<any>>) dst(%445 : memref<1x64xf32, #tpu.memory_space<vmem>>)
    %c0_i32_405 = arith.constant 0 : i32
    %446 = tpu.memref_slice %arg2[%189, %c0_i32_405] : memref<10000x64xf32, #tpu.memory_space<any>> -> memref<1x64xf32, #tpu.memory_space<any>>
    %c31_i32_406 = arith.constant 31 : i32
    %c0_i32_407 = arith.constant 0 : i32
    %447 = tpu.memref_slice %arg8[%c31_i32_406, %c0_i32_407] : memref<64x64xf32, #tpu.memory_space<vmem>> -> memref<1x64xf32, #tpu.memory_space<vmem>>
    tpu.wait_dma2 semaphore(%arg9 : memref<!tpu.dma_semaphore, #tpu.memory_space<semaphore_mem>>) src(%446 : memref<1x64xf32, #tpu.memory_space<any>>) dst(%447 : memref<1x64xf32, #tpu.memory_space<vmem>>)
    %c0_i32_408 = arith.constant 0 : i32
    %448 = tpu.memref_slice %arg2[%195, %c0_i32_408] : memref<10000x64xf32, #tpu.memory_space<any>> -> memref<1x64xf32, #tpu.memory_space<any>>
    %c32_i32_409 = arith.constant 32 : i32
    %c0_i32_410 = arith.constant 0 : i32
    %449 = tpu.memref_slice %arg8[%c32_i32_409, %c0_i32_410] : memref<64x64xf32, #tpu.memory_space<vmem>> -> memref<1x64xf32, #tpu.memory_space<vmem>>
    tpu.wait_dma2 semaphore(%arg9 : memref<!tpu.dma_semaphore, #tpu.memory_space<semaphore_mem>>) src(%448 : memref<1x64xf32, #tpu.memory_space<any>>) dst(%449 : memref<1x64xf32, #tpu.memory_space<vmem>>)
    %c0_i32_411 = arith.constant 0 : i32
    %450 = tpu.memref_slice %arg2[%201, %c0_i32_411] : memref<10000x64xf32, #tpu.memory_space<any>> -> memref<1x64xf32, #tpu.memory_space<any>>
    %c33_i32_412 = arith.constant 33 : i32
    %c0_i32_413 = arith.constant 0 : i32
    %451 = tpu.memref_slice %arg8[%c33_i32_412, %c0_i32_413] : memref<64x64xf32, #tpu.memory_space<vmem>> -> memref<1x64xf32, #tpu.memory_space<vmem>>
    tpu.wait_dma2 semaphore(%arg9 : memref<!tpu.dma_semaphore, #tpu.memory_space<semaphore_mem>>) src(%450 : memref<1x64xf32, #tpu.memory_space<any>>) dst(%451 : memref<1x64xf32, #tpu.memory_space<vmem>>)
    %c0_i32_414 = arith.constant 0 : i32
    %452 = tpu.memref_slice %arg2[%207, %c0_i32_414] : memref<10000x64xf32, #tpu.memory_space<any>> -> memref<1x64xf32, #tpu.memory_space<any>>
    %c34_i32_415 = arith.constant 34 : i32
    %c0_i32_416 = arith.constant 0 : i32
    %453 = tpu.memref_slice %arg8[%c34_i32_415, %c0_i32_416] : memref<64x64xf32, #tpu.memory_space<vmem>> -> memref<1x64xf32, #tpu.memory_space<vmem>>
    tpu.wait_dma2 semaphore(%arg9 : memref<!tpu.dma_semaphore, #tpu.memory_space<semaphore_mem>>) src(%452 : memref<1x64xf32, #tpu.memory_space<any>>) dst(%453 : memref<1x64xf32, #tpu.memory_space<vmem>>)
    %c0_i32_417 = arith.constant 0 : i32
    %454 = tpu.memref_slice %arg2[%213, %c0_i32_417] : memref<10000x64xf32, #tpu.memory_space<any>> -> memref<1x64xf32, #tpu.memory_space<any>>
    %c35_i32_418 = arith.constant 35 : i32
    %c0_i32_419 = arith.constant 0 : i32
    %455 = tpu.memref_slice %arg8[%c35_i32_418, %c0_i32_419] : memref<64x64xf32, #tpu.memory_space<vmem>> -> memref<1x64xf32, #tpu.memory_space<vmem>>
    tpu.wait_dma2 semaphore(%arg9 : memref<!tpu.dma_semaphore, #tpu.memory_space<semaphore_mem>>) src(%454 : memref<1x64xf32, #tpu.memory_space<any>>) dst(%455 : memref<1x64xf32, #tpu.memory_space<vmem>>)
    %c0_i32_420 = arith.constant 0 : i32
    %456 = tpu.memref_slice %arg2[%219, %c0_i32_420] : memref<10000x64xf32, #tpu.memory_space<any>> -> memref<1x64xf32, #tpu.memory_space<any>>
    %c36_i32_421 = arith.constant 36 : i32
    %c0_i32_422 = arith.constant 0 : i32
    %457 = tpu.memref_slice %arg8[%c36_i32_421, %c0_i32_422] : memref<64x64xf32, #tpu.memory_space<vmem>> -> memref<1x64xf32, #tpu.memory_space<vmem>>
    tpu.wait_dma2 semaphore(%arg9 : memref<!tpu.dma_semaphore, #tpu.memory_space<semaphore_mem>>) src(%456 : memref<1x64xf32, #tpu.memory_space<any>>) dst(%457 : memref<1x64xf32, #tpu.memory_space<vmem>>)
    %c0_i32_423 = arith.constant 0 : i32
    %458 = tpu.memref_slice %arg2[%225, %c0_i32_423] : memref<10000x64xf32, #tpu.memory_space<any>> -> memref<1x64xf32, #tpu.memory_space<any>>
    %c37_i32_424 = arith.constant 37 : i32
    %c0_i32_425 = arith.constant 0 : i32
    %459 = tpu.memref_slice %arg8[%c37_i32_424, %c0_i32_425] : memref<64x64xf32, #tpu.memory_space<vmem>> -> memref<1x64xf32, #tpu.memory_space<vmem>>
    tpu.wait_dma2 semaphore(%arg9 : memref<!tpu.dma_semaphore, #tpu.memory_space<semaphore_mem>>) src(%458 : memref<1x64xf32, #tpu.memory_space<any>>) dst(%459 : memref<1x64xf32, #tpu.memory_space<vmem>>)
    %c0_i32_426 = arith.constant 0 : i32
    %460 = tpu.memref_slice %arg2[%231, %c0_i32_426] : memref<10000x64xf32, #tpu.memory_space<any>> -> memref<1x64xf32, #tpu.memory_space<any>>
    %c38_i32_427 = arith.constant 38 : i32
    %c0_i32_428 = arith.constant 0 : i32
    %461 = tpu.memref_slice %arg8[%c38_i32_427, %c0_i32_428] : memref<64x64xf32, #tpu.memory_space<vmem>> -> memref<1x64xf32, #tpu.memory_space<vmem>>
    tpu.wait_dma2 semaphore(%arg9 : memref<!tpu.dma_semaphore, #tpu.memory_space<semaphore_mem>>) src(%460 : memref<1x64xf32, #tpu.memory_space<any>>) dst(%461 : memref<1x64xf32, #tpu.memory_space<vmem>>)
    %c0_i32_429 = arith.constant 0 : i32
    %462 = tpu.memref_slice %arg2[%237, %c0_i32_429] : memref<10000x64xf32, #tpu.memory_space<any>> -> memref<1x64xf32, #tpu.memory_space<any>>
    %c39_i32_430 = arith.constant 39 : i32
    %c0_i32_431 = arith.constant 0 : i32
    %463 = tpu.memref_slice %arg8[%c39_i32_430, %c0_i32_431] : memref<64x64xf32, #tpu.memory_space<vmem>> -> memref<1x64xf32, #tpu.memory_space<vmem>>
    tpu.wait_dma2 semaphore(%arg9 : memref<!tpu.dma_semaphore, #tpu.memory_space<semaphore_mem>>) src(%462 : memref<1x64xf32, #tpu.memory_space<any>>) dst(%463 : memref<1x64xf32, #tpu.memory_space<vmem>>)
    %c0_i32_432 = arith.constant 0 : i32
    %464 = tpu.memref_slice %arg2[%243, %c0_i32_432] : memref<10000x64xf32, #tpu.memory_space<any>> -> memref<1x64xf32, #tpu.memory_space<any>>
    %c40_i32_433 = arith.constant 40 : i32
    %c0_i32_434 = arith.constant 0 : i32
    %465 = tpu.memref_slice %arg8[%c40_i32_433, %c0_i32_434] : memref<64x64xf32, #tpu.memory_space<vmem>> -> memref<1x64xf32, #tpu.memory_space<vmem>>
    tpu.wait_dma2 semaphore(%arg9 : memref<!tpu.dma_semaphore, #tpu.memory_space<semaphore_mem>>) src(%464 : memref<1x64xf32, #tpu.memory_space<any>>) dst(%465 : memref<1x64xf32, #tpu.memory_space<vmem>>)
    %c0_i32_435 = arith.constant 0 : i32
    %466 = tpu.memref_slice %arg2[%249, %c0_i32_435] : memref<10000x64xf32, #tpu.memory_space<any>> -> memref<1x64xf32, #tpu.memory_space<any>>
    %c41_i32_436 = arith.constant 41 : i32
    %c0_i32_437 = arith.constant 0 : i32
    %467 = tpu.memref_slice %arg8[%c41_i32_436, %c0_i32_437] : memref<64x64xf32, #tpu.memory_space<vmem>> -> memref<1x64xf32, #tpu.memory_space<vmem>>
    tpu.wait_dma2 semaphore(%arg9 : memref<!tpu.dma_semaphore, #tpu.memory_space<semaphore_mem>>) src(%466 : memref<1x64xf32, #tpu.memory_space<any>>) dst(%467 : memref<1x64xf32, #tpu.memory_space<vmem>>)
    %c0_i32_438 = arith.constant 0 : i32
    %468 = tpu.memref_slice %arg2[%255, %c0_i32_438] : memref<10000x64xf32, #tpu.memory_space<any>> -> memref<1x64xf32, #tpu.memory_space<any>>
    %c42_i32_439 = arith.constant 42 : i32
    %c0_i32_440 = arith.constant 0 : i32
    %469 = tpu.memref_slice %arg8[%c42_i32_439, %c0_i32_440] : memref<64x64xf32, #tpu.memory_space<vmem>> -> memref<1x64xf32, #tpu.memory_space<vmem>>
    tpu.wait_dma2 semaphore(%arg9 : memref<!tpu.dma_semaphore, #tpu.memory_space<semaphore_mem>>) src(%468 : memref<1x64xf32, #tpu.memory_space<any>>) dst(%469 : memref<1x64xf32, #tpu.memory_space<vmem>>)
    %c0_i32_441 = arith.constant 0 : i32
    %470 = tpu.memref_slice %arg2[%261, %c0_i32_441] : memref<10000x64xf32, #tpu.memory_space<any>> -> memref<1x64xf32, #tpu.memory_space<any>>
    %c43_i32_442 = arith.constant 43 : i32
    %c0_i32_443 = arith.constant 0 : i32
    %471 = tpu.memref_slice %arg8[%c43_i32_442, %c0_i32_443] : memref<64x64xf32, #tpu.memory_space<vmem>> -> memref<1x64xf32, #tpu.memory_space<vmem>>
    tpu.wait_dma2 semaphore(%arg9 : memref<!tpu.dma_semaphore, #tpu.memory_space<semaphore_mem>>) src(%470 : memref<1x64xf32, #tpu.memory_space<any>>) dst(%471 : memref<1x64xf32, #tpu.memory_space<vmem>>)
    %c0_i32_444 = arith.constant 0 : i32
    %472 = tpu.memref_slice %arg2[%267, %c0_i32_444] : memref<10000x64xf32, #tpu.memory_space<any>> -> memref<1x64xf32, #tpu.memory_space<any>>
    %c44_i32_445 = arith.constant 44 : i32
    %c0_i32_446 = arith.constant 0 : i32
    %473 = tpu.memref_slice %arg8[%c44_i32_445, %c0_i32_446] : memref<64x64xf32, #tpu.memory_space<vmem>> -> memref<1x64xf32, #tpu.memory_space<vmem>>
    tpu.wait_dma2 semaphore(%arg9 : memref<!tpu.dma_semaphore, #tpu.memory_space<semaphore_mem>>) src(%472 : memref<1x64xf32, #tpu.memory_space<any>>) dst(%473 : memref<1x64xf32, #tpu.memory_space<vmem>>)
    %c0_i32_447 = arith.constant 0 : i32
    %474 = tpu.memref_slice %arg2[%273, %c0_i32_447] : memref<10000x64xf32, #tpu.memory_space<any>> -> memref<1x64xf32, #tpu.memory_space<any>>
    %c45_i32_448 = arith.constant 45 : i32
    %c0_i32_449 = arith.constant 0 : i32
    %475 = tpu.memref_slice %arg8[%c45_i32_448, %c0_i32_449] : memref<64x64xf32, #tpu.memory_space<vmem>> -> memref<1x64xf32, #tpu.memory_space<vmem>>
    tpu.wait_dma2 semaphore(%arg9 : memref<!tpu.dma_semaphore, #tpu.memory_space<semaphore_mem>>) src(%474 : memref<1x64xf32, #tpu.memory_space<any>>) dst(%475 : memref<1x64xf32, #tpu.memory_space<vmem>>)
    %c0_i32_450 = arith.constant 0 : i32
    %476 = tpu.memref_slice %arg2[%279, %c0_i32_450] : memref<10000x64xf32, #tpu.memory_space<any>> -> memref<1x64xf32, #tpu.memory_space<any>>
    %c46_i32_451 = arith.constant 46 : i32
    %c0_i32_452 = arith.constant 0 : i32
    %477 = tpu.memref_slice %arg8[%c46_i32_451, %c0_i32_452] : memref<64x64xf32, #tpu.memory_space<vmem>> -> memref<1x64xf32, #tpu.memory_space<vmem>>
    tpu.wait_dma2 semaphore(%arg9 : memref<!tpu.dma_semaphore, #tpu.memory_space<semaphore_mem>>) src(%476 : memref<1x64xf32, #tpu.memory_space<any>>) dst(%477 : memref<1x64xf32, #tpu.memory_space<vmem>>)
    %c0_i32_453 = arith.constant 0 : i32
    %478 = tpu.memref_slice %arg2[%285, %c0_i32_453] : memref<10000x64xf32, #tpu.memory_space<any>> -> memref<1x64xf32, #tpu.memory_space<any>>
    %c47_i32_454 = arith.constant 47 : i32
    %c0_i32_455 = arith.constant 0 : i32
    %479 = tpu.memref_slice %arg8[%c47_i32_454, %c0_i32_455] : memref<64x64xf32, #tpu.memory_space<vmem>> -> memref<1x64xf32, #tpu.memory_space<vmem>>
    tpu.wait_dma2 semaphore(%arg9 : memref<!tpu.dma_semaphore, #tpu.memory_space<semaphore_mem>>) src(%478 : memref<1x64xf32, #tpu.memory_space<any>>) dst(%479 : memref<1x64xf32, #tpu.memory_space<vmem>>)
    %c0_i32_456 = arith.constant 0 : i32
    %480 = tpu.memref_slice %arg2[%291, %c0_i32_456] : memref<10000x64xf32, #tpu.memory_space<any>> -> memref<1x64xf32, #tpu.memory_space<any>>
    %c48_i32_457 = arith.constant 48 : i32
    %c0_i32_458 = arith.constant 0 : i32
    %481 = tpu.memref_slice %arg8[%c48_i32_457, %c0_i32_458] : memref<64x64xf32, #tpu.memory_space<vmem>> -> memref<1x64xf32, #tpu.memory_space<vmem>>
    tpu.wait_dma2 semaphore(%arg9 : memref<!tpu.dma_semaphore, #tpu.memory_space<semaphore_mem>>) src(%480 : memref<1x64xf32, #tpu.memory_space<any>>) dst(%481 : memref<1x64xf32, #tpu.memory_space<vmem>>)
    %c0_i32_459 = arith.constant 0 : i32
    %482 = tpu.memref_slice %arg2[%297, %c0_i32_459] : memref<10000x64xf32, #tpu.memory_space<any>> -> memref<1x64xf32, #tpu.memory_space<any>>
    %c49_i32_460 = arith.constant 49 : i32
    %c0_i32_461 = arith.constant 0 : i32
    %483 = tpu.memref_slice %arg8[%c49_i32_460, %c0_i32_461] : memref<64x64xf32, #tpu.memory_space<vmem>> -> memref<1x64xf32, #tpu.memory_space<vmem>>
    tpu.wait_dma2 semaphore(%arg9 : memref<!tpu.dma_semaphore, #tpu.memory_space<semaphore_mem>>) src(%482 : memref<1x64xf32, #tpu.memory_space<any>>) dst(%483 : memref<1x64xf32, #tpu.memory_space<vmem>>)
    %c0_i32_462 = arith.constant 0 : i32
    %484 = tpu.memref_slice %arg2[%303, %c0_i32_462] : memref<10000x64xf32, #tpu.memory_space<any>> -> memref<1x64xf32, #tpu.memory_space<any>>
    %c50_i32_463 = arith.constant 50 : i32
    %c0_i32_464 = arith.constant 0 : i32
    %485 = tpu.memref_slice %arg8[%c50_i32_463, %c0_i32_464] : memref<64x64xf32, #tpu.memory_space<vmem>> -> memref<1x64xf32, #tpu.memory_space<vmem>>
    tpu.wait_dma2 semaphore(%arg9 : memref<!tpu.dma_semaphore, #tpu.memory_space<semaphore_mem>>) src(%484 : memref<1x64xf32, #tpu.memory_space<any>>) dst(%485 : memref<1x64xf32, #tpu.memory_space<vmem>>)
    %c0_i32_465 = arith.constant 0 : i32
    %486 = tpu.memref_slice %arg2[%309, %c0_i32_465] : memref<10000x64xf32, #tpu.memory_space<any>> -> memref<1x64xf32, #tpu.memory_space<any>>
    %c51_i32_466 = arith.constant 51 : i32
    %c0_i32_467 = arith.constant 0 : i32
    %487 = tpu.memref_slice %arg8[%c51_i32_466, %c0_i32_467] : memref<64x64xf32, #tpu.memory_space<vmem>> -> memref<1x64xf32, #tpu.memory_space<vmem>>
    tpu.wait_dma2 semaphore(%arg9 : memref<!tpu.dma_semaphore, #tpu.memory_space<semaphore_mem>>) src(%486 : memref<1x64xf32, #tpu.memory_space<any>>) dst(%487 : memref<1x64xf32, #tpu.memory_space<vmem>>)
    %c0_i32_468 = arith.constant 0 : i32
    %488 = tpu.memref_slice %arg2[%315, %c0_i32_468] : memref<10000x64xf32, #tpu.memory_space<any>> -> memref<1x64xf32, #tpu.memory_space<any>>
    %c52_i32_469 = arith.constant 52 : i32
    %c0_i32_470 = arith.constant 0 : i32
    %489 = tpu.memref_slice %arg8[%c52_i32_469, %c0_i32_470] : memref<64x64xf32, #tpu.memory_space<vmem>> -> memref<1x64xf32, #tpu.memory_space<vmem>>
    tpu.wait_dma2 semaphore(%arg9 : memref<!tpu.dma_semaphore, #tpu.memory_space<semaphore_mem>>) src(%488 : memref<1x64xf32, #tpu.memory_space<any>>) dst(%489 : memref<1x64xf32, #tpu.memory_space<vmem>>)
    %c0_i32_471 = arith.constant 0 : i32
    %490 = tpu.memref_slice %arg2[%321, %c0_i32_471] : memref<10000x64xf32, #tpu.memory_space<any>> -> memref<1x64xf32, #tpu.memory_space<any>>
    %c53_i32_472 = arith.constant 53 : i32
    %c0_i32_473 = arith.constant 0 : i32
    %491 = tpu.memref_slice %arg8[%c53_i32_472, %c0_i32_473] : memref<64x64xf32, #tpu.memory_space<vmem>> -> memref<1x64xf32, #tpu.memory_space<vmem>>
    tpu.wait_dma2 semaphore(%arg9 : memref<!tpu.dma_semaphore, #tpu.memory_space<semaphore_mem>>) src(%490 : memref<1x64xf32, #tpu.memory_space<any>>) dst(%491 : memref<1x64xf32, #tpu.memory_space<vmem>>)
    %c0_i32_474 = arith.constant 0 : i32
    %492 = tpu.memref_slice %arg2[%327, %c0_i32_474] : memref<10000x64xf32, #tpu.memory_space<any>> -> memref<1x64xf32, #tpu.memory_space<any>>
    %c54_i32_475 = arith.constant 54 : i32
    %c0_i32_476 = arith.constant 0 : i32
    %493 = tpu.memref_slice %arg8[%c54_i32_475, %c0_i32_476] : memref<64x64xf32, #tpu.memory_space<vmem>> -> memref<1x64xf32, #tpu.memory_space<vmem>>
    tpu.wait_dma2 semaphore(%arg9 : memref<!tpu.dma_semaphore, #tpu.memory_space<semaphore_mem>>) src(%492 : memref<1x64xf32, #tpu.memory_space<any>>) dst(%493 : memref<1x64xf32, #tpu.memory_space<vmem>>)
    %c0_i32_477 = arith.constant 0 : i32
    %494 = tpu.memref_slice %arg2[%333, %c0_i32_477] : memref<10000x64xf32, #tpu.memory_space<any>> -> memref<1x64xf32, #tpu.memory_space<any>>
    %c55_i32_478 = arith.constant 55 : i32
    %c0_i32_479 = arith.constant 0 : i32
    %495 = tpu.memref_slice %arg8[%c55_i32_478, %c0_i32_479] : memref<64x64xf32, #tpu.memory_space<vmem>> -> memref<1x64xf32, #tpu.memory_space<vmem>>
    tpu.wait_dma2 semaphore(%arg9 : memref<!tpu.dma_semaphore, #tpu.memory_space<semaphore_mem>>) src(%494 : memref<1x64xf32, #tpu.memory_space<any>>) dst(%495 : memref<1x64xf32, #tpu.memory_space<vmem>>)
    %c0_i32_480 = arith.constant 0 : i32
    %496 = tpu.memref_slice %arg2[%339, %c0_i32_480] : memref<10000x64xf32, #tpu.memory_space<any>> -> memref<1x64xf32, #tpu.memory_space<any>>
    %c56_i32_481 = arith.constant 56 : i32
    %c0_i32_482 = arith.constant 0 : i32
    %497 = tpu.memref_slice %arg8[%c56_i32_481, %c0_i32_482] : memref<64x64xf32, #tpu.memory_space<vmem>> -> memref<1x64xf32, #tpu.memory_space<vmem>>
    tpu.wait_dma2 semaphore(%arg9 : memref<!tpu.dma_semaphore, #tpu.memory_space<semaphore_mem>>) src(%496 : memref<1x64xf32, #tpu.memory_space<any>>) dst(%497 : memref<1x64xf32, #tpu.memory_space<vmem>>)
    %c0_i32_483 = arith.constant 0 : i32
    %498 = tpu.memref_slice %arg2[%345, %c0_i32_483] : memref<10000x64xf32, #tpu.memory_space<any>> -> memref<1x64xf32, #tpu.memory_space<any>>
    %c57_i32_484 = arith.constant 57 : i32
    %c0_i32_485 = arith.constant 0 : i32
    %499 = tpu.memref_slice %arg8[%c57_i32_484, %c0_i32_485] : memref<64x64xf32, #tpu.memory_space<vmem>> -> memref<1x64xf32, #tpu.memory_space<vmem>>
    tpu.wait_dma2 semaphore(%arg9 : memref<!tpu.dma_semaphore, #tpu.memory_space<semaphore_mem>>) src(%498 : memref<1x64xf32, #tpu.memory_space<any>>) dst(%499 : memref<1x64xf32, #tpu.memory_space<vmem>>)
    %c0_i32_486 = arith.constant 0 : i32
    %500 = tpu.memref_slice %arg2[%351, %c0_i32_486] : memref<10000x64xf32, #tpu.memory_space<any>> -> memref<1x64xf32, #tpu.memory_space<any>>
    %c58_i32_487 = arith.constant 58 : i32
    %c0_i32_488 = arith.constant 0 : i32
    %501 = tpu.memref_slice %arg8[%c58_i32_487, %c0_i32_488] : memref<64x64xf32, #tpu.memory_space<vmem>> -> memref<1x64xf32, #tpu.memory_space<vmem>>
    tpu.wait_dma2 semaphore(%arg9 : memref<!tpu.dma_semaphore, #tpu.memory_space<semaphore_mem>>) src(%500 : memref<1x64xf32, #tpu.memory_space<any>>) dst(%501 : memref<1x64xf32, #tpu.memory_space<vmem>>)
    %c0_i32_489 = arith.constant 0 : i32
    %502 = tpu.memref_slice %arg2[%357, %c0_i32_489] : memref<10000x64xf32, #tpu.memory_space<any>> -> memref<1x64xf32, #tpu.memory_space<any>>
    %c59_i32_490 = arith.constant 59 : i32
    %c0_i32_491 = arith.constant 0 : i32
    %503 = tpu.memref_slice %arg8[%c59_i32_490, %c0_i32_491] : memref<64x64xf32, #tpu.memory_space<vmem>> -> memref<1x64xf32, #tpu.memory_space<vmem>>
    tpu.wait_dma2 semaphore(%arg9 : memref<!tpu.dma_semaphore, #tpu.memory_space<semaphore_mem>>) src(%502 : memref<1x64xf32, #tpu.memory_space<any>>) dst(%503 : memref<1x64xf32, #tpu.memory_space<vmem>>)
    %c0_i32_492 = arith.constant 0 : i32
    %504 = tpu.memref_slice %arg2[%363, %c0_i32_492] : memref<10000x64xf32, #tpu.memory_space<any>> -> memref<1x64xf32, #tpu.memory_space<any>>
    %c60_i32_493 = arith.constant 60 : i32
    %c0_i32_494 = arith.constant 0 : i32
    %505 = tpu.memref_slice %arg8[%c60_i32_493, %c0_i32_494] : memref<64x64xf32, #tpu.memory_space<vmem>> -> memref<1x64xf32, #tpu.memory_space<vmem>>
    tpu.wait_dma2 semaphore(%arg9 : memref<!tpu.dma_semaphore, #tpu.memory_space<semaphore_mem>>) src(%504 : memref<1x64xf32, #tpu.memory_space<any>>) dst(%505 : memref<1x64xf32, #tpu.memory_space<vmem>>)
    %c0_i32_495 = arith.constant 0 : i32
    %506 = tpu.memref_slice %arg2[%369, %c0_i32_495] : memref<10000x64xf32, #tpu.memory_space<any>> -> memref<1x64xf32, #tpu.memory_space<any>>
    %c61_i32_496 = arith.constant 61 : i32
    %c0_i32_497 = arith.constant 0 : i32
    %507 = tpu.memref_slice %arg8[%c61_i32_496, %c0_i32_497] : memref<64x64xf32, #tpu.memory_space<vmem>> -> memref<1x64xf32, #tpu.memory_space<vmem>>
    tpu.wait_dma2 semaphore(%arg9 : memref<!tpu.dma_semaphore, #tpu.memory_space<semaphore_mem>>) src(%506 : memref<1x64xf32, #tpu.memory_space<any>>) dst(%507 : memref<1x64xf32, #tpu.memory_space<vmem>>)
    %c0_i32_498 = arith.constant 0 : i32
    %508 = tpu.memref_slice %arg2[%375, %c0_i32_498] : memref<10000x64xf32, #tpu.memory_space<any>> -> memref<1x64xf32, #tpu.memory_space<any>>
    %c62_i32_499 = arith.constant 62 : i32
    %c0_i32_500 = arith.constant 0 : i32
    %509 = tpu.memref_slice %arg8[%c62_i32_499, %c0_i32_500] : memref<64x64xf32, #tpu.memory_space<vmem>> -> memref<1x64xf32, #tpu.memory_space<vmem>>
    tpu.wait_dma2 semaphore(%arg9 : memref<!tpu.dma_semaphore, #tpu.memory_space<semaphore_mem>>) src(%508 : memref<1x64xf32, #tpu.memory_space<any>>) dst(%509 : memref<1x64xf32, #tpu.memory_space<vmem>>)
    %c0_i32_501 = arith.constant 0 : i32
    %510 = tpu.memref_slice %arg2[%381, %c0_i32_501] : memref<10000x64xf32, #tpu.memory_space<any>> -> memref<1x64xf32, #tpu.memory_space<any>>
    %c63_i32_502 = arith.constant 63 : i32
    %c0_i32_503 = arith.constant 0 : i32
    %511 = tpu.memref_slice %arg8[%c63_i32_502, %c0_i32_503] : memref<64x64xf32, #tpu.memory_space<vmem>> -> memref<1x64xf32, #tpu.memory_space<vmem>>
    tpu.wait_dma2 semaphore(%arg9 : memref<!tpu.dma_semaphore, #tpu.memory_space<semaphore_mem>>) src(%510 : memref<1x64xf32, #tpu.memory_space<any>>) dst(%511 : memref<1x64xf32, #tpu.memory_space<vmem>>)
    %c0_504 = arith.constant 0 : index
    %c0_505 = arith.constant 0 : index
    %512 = vector.load %arg8[%c0_504, %c0_505] : memref<64x64xf32, #tpu.memory_space<vmem>>, vector<64x64xf32>
    %513 = vector.shape_cast %512 : vector<64x64xf32> to vector<8x8x64xf32>
    %cst = arith.constant dense<0.000000e+00> : vector<8x64xf32>
    %514 = vector.multi_reduction <add>, %513, %cst [1] : vector<8x8x64xf32> to vector<8x64xf32>
    %515 = arith.truncf %514 : vector<8x64xf32> to vector<8x64xbf16>
    %c0_506 = arith.constant 0 : index
    %c0_507 = arith.constant 0 : index
    %516 = vector.load %arg3[%c0_506, %c0_507] : memref<64x128xbf16, #tpu.memory_space<vmem>>, vector<64x128xbf16>
    %cst_508 = arith.constant dense<0.000000e+00> : vector<8x128xf32>
    %517 = tpu.matmul %515, %516, %cst_508 {dimension_numbers = #tpu.dot_dimension_numbers<[1], [0], [0], [1], [0, 0, 1, 1], [], []>} : vector<8x64xbf16>, vector<64x128xbf16>, vector<8x128xf32> -> vector<8x128xf32>
    %c0_509 = arith.constant 0 : index
    %c0_510 = arith.constant 0 : index
    %518 = vector.load %arg4[%c0_509, %c0_510] : memref<1x128xf32, #tpu.memory_space<vmem>>, vector<1x128xf32>
    %519 = vector.broadcast %518 : vector<1x128xf32> to vector<8x128xf32>
    %520 = arith.addf %517, %519 : vector<8x128xf32>
    %cst_511 = arith.constant 0.000000e+00 : f32
    %521 = vector.broadcast %cst_511 : f32 to vector<8x128xf32>
    %522 = arith.maximumf %520, %521 : vector<8x128xf32>
    %523 = arith.truncf %522 : vector<8x128xf32> to vector<8x128xbf16>
    %c0_512 = arith.constant 0 : index
    %c0_513 = arith.constant 0 : index
    %524 = vector.load %arg5[%c0_512, %c0_513] : memref<128x128xbf16, #tpu.memory_space<vmem>>, vector<128x128xbf16>
    %cst_514 = arith.constant dense<0.000000e+00> : vector<8x128xf32>
    %525 = tpu.matmul %523, %524, %cst_514 {dimension_numbers = #tpu.dot_dimension_numbers<[1], [0], [0], [1], [0, 0, 1, 1], [], []>} : vector<8x128xbf16>, vector<128x128xbf16>, vector<8x128xf32> -> vector<8x128xf32>
    %c0_515 = arith.constant 0 : index
    %c0_516 = arith.constant 0 : index
    %526 = vector.load %arg6[%c0_515, %c0_516] : memref<1x128xf32, #tpu.memory_space<vmem>>, vector<1x128xf32>
    %527 = vector.broadcast %526 : vector<1x128xf32> to vector<8x128xf32>
    %528 = arith.addf %525, %527 : vector<8x128xf32>
    %cst_517 = arith.constant dense<0xFF800000> : vector<8xf32>
    %529 = vector.multi_reduction <maximumf>, %528, %cst_517 [1] : vector<8x128xf32> to vector<8xf32>
    %530 = vector.shape_cast %529 : vector<8xf32> to vector<8x1xf32>
    %531 = vector.broadcast %530 : vector<8x1xf32> to vector<8x128xf32>
    %532 = arith.subf %528, %531 : vector<8x128xf32>
    %533 = math.exp %532 : vector<8x128xf32>
    %cst_518 = arith.constant dense<0.000000e+00> : vector<8xf32>
    %534 = vector.multi_reduction <add>, %533, %cst_518 [1] : vector<8x128xf32> to vector<8xf32>
    %535 = vector.shape_cast %534 : vector<8xf32> to vector<8x1xf32>
    %536 = math.log %535 : vector<8x1xf32>
    %537 = vector.broadcast %536 : vector<8x1xf32> to vector<8x128xf32>
    %538 = arith.subf %532, %537 : vector<8x128xf32>
    %c0_519 = arith.constant 0 : index
    %c0_520 = arith.constant 0 : index
    %539 = vector.load %arg7[%c0_519, %c0_520] : memref<8x128xf32, #tpu.memory_space<vmem>>, vector<8x128xf32>
    tpu.vector_store %arg7[%c0_519, %c0_520], %538 {strides = array<i32>} : memref<8x128xf32, #tpu.memory_space<vmem>>, vector<8x128xf32>,
    return
  }
  func.func @transform_1(%arg0: i32, %arg1: memref<8x8xi32, #tpu.memory_space<smem>>) -> (i32, i32) {
    %c0_i32 = arith.constant 0 : i32
    %c0_i32_0 = arith.constant 0 : i32
    %c0_i32_1 = arith.constant 0 : i32
    return %c0_i32, %c0_i32_0 : i32, i32
  }
  func.func @transform_2(%arg0: i32, %arg1: memref<8x8xi32, #tpu.memory_space<smem>>) -> (i32, i32) {
    %c0_i32 = arith.constant 0 : i32
    %c0_i32_0 = arith.constant 0 : i32
    %c0_i32_1 = arith.constant 0 : i32
    return %c0_i32, %c0_i32_0 : i32, i32
  }
  func.func @transform_3(%arg0: i32, %arg1: memref<8x8xi32, #tpu.memory_space<smem>>) -> (i32, i32) {
    %c0_i32 = arith.constant 0 : i32
    %c0_i32_0 = arith.constant 0 : i32
    %c0_i32_1 = arith.constant 0 : i32
    return %c0_i32, %c0_i32_0 : i32, i32
  }
  func.func @transform_4(%arg0: i32, %arg1: memref<8x8xi32, #tpu.memory_space<smem>>) -> (i32, i32) {
    %c0_i32 = arith.constant 0 : i32
    %c0_i32_0 = arith.constant 0 : i32
    %c0_i32_1 = arith.constant 0 : i32
    return %c0_i32, %c0_i32_0 : i32, i32
  }
  func.func @transform_5(%arg0: i32, %arg1: memref<8x8xi32, #tpu.memory_space<smem>>) -> (i32, i32) {
    %c0_i32 = arith.constant 0 : i32
    %c0_i32_0 = arith.constant 0 : i32
    return %arg0, %c0_i32 : i32, i32
  }
}

</mosaic_0001>

<llo_original>
// kernel: tpu_custom_call.1
$region0: #{tpu_custom_call.1}
  #allocation0 [shape = 'u32[]', space=smem, size = 0x4, offset = 0x4, fixed_abs, tag = 'smem constant byte address 0x4 - core index']
  #allocation1 [shape = 'u32[72,128]{1,0:T(1,128)}', space=vmem, size = 0x9000, scoped, tag = 'internal scratch']
  #allocation2 [shape = 'f32[64,64]{1,0:T(8,128)}', space=vmem, size = 0x8000, scoped, tag = 'scratch operand']
  #allocation3 [shape = 's32[1]{0}', space=sflag, size = 0x4, scoped, tag = 'scratch operand']
  #allocation4 [shape = 's32[1]{0}', space=sflag, size = 0x4, scoped, tag = 'scoped memory for tpu_custom_call.1']
  #allocation5 [shape = 'u8[4096]{0}', space=smem, size = 0x1000, scoped, tag = 'prefetched SMEM operand 0']
  #allocation8 [shape = 's32[]', space=sflag, size = 0x4, offset = 0, fixed_abs, tag = 'sflag constant byte address 0x0 - dummy sync flag']
  #allocation9 [shape = 's32[]', space=sflag, size = 0x4, offset = 0, fixed_abs, tag = 'sflag constant byte address 0x0 - dummy sync flag']
  #allocation10 [shape = 's32[]', space=sflag, size = 0x4, offset = 0, fixed_abs, tag = 'sflag constant byte address 0x0 - dummy sync flag']
  #allocation11 [shape = 's32[]', space=sflag, size = 0x4, offset = 0, fixed_abs, tag = 'sflag constant byte address 0x0 - dummy sync flag']
  #allocation12 [shape = 's32[]', space=sflag, size = 0x4, offset = 0, fixed_abs, tag = 'sflag constant byte address 0x0 - dummy sync flag']
  #allocation13 [shape = 's32[]', space=sflag, size = 0x4, offset = 0, fixed_abs, tag = 'sflag constant byte address 0x0 - dummy sync flag']
  #allocation14 [shape = 's32[]', space=sflag, size = 0x4, offset = 0, fixed_abs, tag = 'sflag constant byte address 0x0 - dummy sync flag']
  #allocation15 [shape = 's32[]', space=sflag, size = 0x4, offset = 0, fixed_abs, tag = 'sflag constant byte address 0x0 - dummy sync flag']
  #allocation16 [shape = 's32[]', space=sflag, size = 0x4, offset = 0, fixed_abs, tag = 'sflag constant byte address 0x0 - dummy sync flag']
  #allocation17 [shape = 's32[]', space=sflag, size = 0x4, offset = 0, fixed_abs, tag = 'sflag constant byte address 0x0 - dummy sync flag']
  #allocation18 [shape = 's32[]', space=sflag, size = 0x4, offset = 0, fixed_abs, tag = 'sflag constant byte address 0x0 - dummy sync flag']
  #allocation19 [shape = 's32[]', space=sflag, size = 0x4, offset = 0, fixed_abs, tag = 'sflag constant byte address 0x0 - dummy sync flag']
  #allocation20 [shape = 's32[]', space=sflag, size = 0x4, offset = 0, fixed_abs, tag = 'sflag constant byte address 0x0 - dummy sync flag']
  #allocation21 [shape = 's32[]', space=sflag, size = 0x4, offset = 0, fixed_abs, tag = 'sflag constant byte address 0x0 - dummy sync flag']
  #allocation22 [shape = 's32[]', space=sflag, size = 0x4, offset = 0, fixed_abs, tag = 'sflag constant byte address 0x0 - dummy sync flag']
  #allocation23 [shape = 's32[]', space=sflag, size = 0x4, offset = 0, fixed_abs, tag = 'sflag constant byte address 0x0 - dummy sync flag']
  #allocation24 [shape = 's32[]', space=sflag, size = 0x4, offset = 0, fixed_abs, tag = 'sflag constant byte address 0x0 - dummy sync flag']
  #allocation25 [shape = 's32[]', space=sflag, size = 0x4, offset = 0, fixed_abs, tag = 'sflag constant byte address 0x0 - dummy sync flag']
  #allocation26 [shape = 's32[]', space=sflag, size = 0x4, offset = 0, fixed_abs, tag = 'sflag constant byte address 0x0 - dummy sync flag']
  #allocation27 [shape = 's32[]', space=sflag, size = 0x4, offset = 0, fixed_abs, tag = 'sflag constant byte address 0x0 - dummy sync flag']
  #allocation28 [shape = 's32[]', space=sflag, size = 0x4, offset = 0, fixed_abs, tag = 'sflag constant byte address 0x0 - dummy sync flag']
  #allocation29 [shape = 's32[]', space=sflag, size = 0x4, offset = 0, fixed_abs, tag = 'sflag constant byte address 0x0 - dummy sync flag']
  #allocation30 [shape = 's32[]', space=sflag, size = 0x4, offset = 0, fixed_abs, tag = 'sflag constant byte address 0x0 - dummy sync flag']
  #allocation31 [shape = 's32[]', space=sflag, size = 0x4, offset = 0, fixed_abs, tag = 'sflag constant byte address 0x0 - dummy sync flag']
  #allocation32 [shape = 's32[]', space=sflag, size = 0x4, offset = 0, fixed_abs, tag = 'sflag constant byte address 0x0 - dummy sync flag']
  #allocation33 [shape = 's32[]', space=sflag, size = 0x4, offset = 0, fixed_abs, tag = 'sflag constant byte address 0x0 - dummy sync flag']
  #allocation34 [shape = 's32[]', space=sflag, size = 0x4, offset = 0, fixed_abs, tag = 'sflag constant byte address 0x0 - dummy sync flag']
  #allocation35 [shape = 's32[]', space=sflag, size = 0x4, offset = 0, fixed_abs, tag = 'sflag constant byte address 0x0 - dummy sync flag']
  #allocation36 [shape = 's32[]', space=sflag, size = 0x4, offset = 0, fixed_abs, tag = 'sflag constant byte address 0x0 - dummy sync flag']
  #allocation37 [shape = 's32[]', space=sflag, size = 0x4, offset = 0, fixed_abs, tag = 'sflag constant byte address 0x0 - dummy sync flag']
  #allocation38 [shape = 's32[]', space=sflag, size = 0x4, offset = 0, fixed_abs, tag = 'sflag constant byte address 0x0 - dummy sync flag']
  #allocation39 [shape = 's32[]', space=sflag, size = 0x4, offset = 0, fixed_abs, tag = 'sflag constant byte address 0x0 - dummy sync flag']
  #allocation40 [shape = 's32[]', space=sflag, size = 0x4, offset = 0, fixed_abs, tag = 'sflag constant byte address 0x0 - dummy sync flag']
  #allocation41 [shape = 's32[]', space=sflag, size = 0x4, offset = 0, fixed_abs, tag = 'sflag constant byte address 0x0 - dummy sync flag']
  #allocation42 [shape = 's32[]', space=sflag, size = 0x4, offset = 0, fixed_abs, tag = 'sflag constant byte address 0x0 - dummy sync flag']
  #allocation43 [shape = 's32[]', space=sflag, size = 0x4, offset = 0, fixed_abs, tag = 'sflag constant byte address 0x0 - dummy sync flag']
  #allocation44 [shape = 's32[]', space=sflag, size = 0x4, offset = 0, fixed_abs, tag = 'sflag constant byte address 0x0 - dummy sync flag']
  #allocation45 [shape = 's32[]', space=sflag, size = 0x4, offset = 0, fixed_abs, tag = 'sflag constant byte address 0x0 - dummy sync flag']
  #allocation46 [shape = 's32[]', space=sflag, size = 0x4, offset = 0, fixed_abs, tag = 'sflag constant byte address 0x0 - dummy sync flag']
  #allocation47 [shape = 's32[]', space=sflag, size = 0x4, offset = 0, fixed_abs, tag = 'sflag constant byte address 0x0 - dummy sync flag']
  #allocation48 [shape = 's32[]', space=sflag, size = 0x4, offset = 0, fixed_abs, tag = 'sflag constant byte address 0x0 - dummy sync flag']
  #allocation49 [shape = 's32[]', space=sflag, size = 0x4, offset = 0, fixed_abs, tag = 'sflag constant byte address 0x0 - dummy sync flag']
  #allocation50 [shape = 's32[]', space=sflag, size = 0x4, offset = 0, fixed_abs, tag = 'sflag constant byte address 0x0 - dummy sync flag']
  #allocation51 [shape = 's32[]', space=sflag, size = 0x4, offset = 0, fixed_abs, tag = 'sflag constant byte address 0x0 - dummy sync flag']
  #allocation52 [shape = 's32[]', space=sflag, size = 0x4, offset = 0, fixed_abs, tag = 'sflag constant byte address 0x0 - dummy sync flag']
  #allocation53 [shape = 's32[]', space=sflag, size = 0x4, offset = 0, fixed_abs, tag = 'sflag constant byte address 0x0 - dummy sync flag']
  #allocation54 [shape = 's32[]', space=sflag, size = 0x4, offset = 0, fixed_abs, tag = 'sflag constant byte address 0x0 - dummy sync flag']
  #allocation55 [shape = 's32[]', space=sflag, size = 0x4, offset = 0, fixed_abs, tag = 'sflag constant byte address 0x0 - dummy sync flag']
  #allocation56 [shape = 's32[]', space=sflag, size = 0x4, offset = 0, fixed_abs, tag = 'sflag constant byte address 0x0 - dummy sync flag']
  #allocation57 [shape = 's32[]', space=sflag, size = 0x4, offset = 0, fixed_abs, tag = 'sflag constant byte address 0x0 - dummy sync flag']
  #allocation58 [shape = 's32[]', space=sflag, size = 0x4, offset = 0, fixed_abs, tag = 'sflag constant byte address 0x0 - dummy sync flag']
  #allocation59 [shape = 's32[]', space=sflag, size = 0x4, offset = 0, fixed_abs, tag = 'sflag constant byte address 0x0 - dummy sync flag']
  #allocation60 [shape = 's32[]', space=sflag, size = 0x4, offset = 0, fixed_abs, tag = 'sflag constant byte address 0x0 - dummy sync flag']
  #allocation61 [shape = 's32[]', space=sflag, size = 0x4, offset = 0, fixed_abs, tag = 'sflag constant byte address 0x0 - dummy sync flag']
  #allocation62 [shape = 's32[]', space=sflag, size = 0x4, offset = 0, fixed_abs, tag = 'sflag constant byte address 0x0 - dummy sync flag']
  #allocation63 [shape = 's32[]', space=sflag, size = 0x4, offset = 0, fixed_abs, tag = 'sflag constant byte address 0x0 - dummy sync flag']
  #allocation64 [shape = 's32[]', space=sflag, size = 0x4, offset = 0, fixed_abs, tag = 'sflag constant byte address 0x0 - dummy sync flag']
  #allocation65 [shape = 's32[]', space=sflag, size = 0x4, offset = 0, fixed_abs, tag = 'sflag constant byte address 0x0 - dummy sync flag']
  #allocation66 [shape = 's32[]', space=sflag, size = 0x4, offset = 0, fixed_abs, tag = 'sflag constant byte address 0x0 - dummy sync flag']
  #allocation67 [shape = 's32[]', space=sflag, size = 0x4, offset = 0, fixed_abs, tag = 'sflag constant byte address 0x0 - dummy sync flag']
  #allocation68 [shape = 's32[]', space=sflag, size = 0x4, offset = 0, fixed_abs, tag = 'sflag constant byte address 0x0 - dummy sync flag']
  #allocation69 [shape = 's32[]', space=sflag, size = 0x4, offset = 0, fixed_abs, tag = 'sflag constant byte address 0x0 - dummy sync flag']
  #allocation70 [shape = 's32[]', space=sflag, size = 0x4, offset = 0, fixed_abs, tag = 'sflag constant byte address 0x0 - dummy sync flag']
  #allocation71 [shape = 's32[]', space=sflag, size = 0x4, offset = 0, fixed_abs, tag = 'sflag constant byte address 0x0 - dummy sync flag']
  %s0 = inlined_call_operand.vmem [shape: s32[8,8], index: 0, kind: input, shape index: {}]
  %s1 = inlined_call_operand.vmem [shape: f32[10000,64], index: 1, kind: input, shape index: {}]
  %s2 = inlined_call_operand.vmem [shape: bf16[64,128], index: 2, kind: input, shape index: {}]
  %s3 = inlined_call_operand.vmem [shape: f32[1,128], index: 3, kind: input, shape index: {}]
  %s4 = inlined_call_operand.vmem [shape: bf16[128,128], index: 4, kind: input, shape index: {}]
  %s5 = inlined_call_operand.vmem [shape: f32[1,128], index: 5, kind: input, shape index: {}]
  %s6 = inlined_call_operand.hbm [shape: f32[8,128], index: 6, kind: output, shape index: {}]
  %s7 = sld [smem:[#allocation0]]
  $region1946: #{tpu_custom_call.1} parent=0
    _
  %s9 = ssub.s32 1, %s7
  %s10 = scalar_select 0, %s9, %s7
  %s12 = sshll.u32 %s0, 4
  %s13 = int_to_ptr.vmem [resolvable:$true] %s12
  %15 = dma.vmem_to_smem %s13, 128, [#allocation5], [#allocation4]
  %17 = dma.done [#allocation4], 128
  %18 = sfence
  $region1: #{tpu_custom_call.1} parent=0
    #allocation6 [shape = 'u8[4096]{0}', space=vmem, size = 0x1000, scoped, tag = 'output window, operand 0, single buffered']
    #allocation7 [shape = 's32[1]{0}', space=sflag, size = 0x4, scoped, tag = 'scoped memory for tpu_custom_call.1']
    %19 = vsyncpa [#allocation7], 0
    // Predicated region
    $region2: #{tpu_custom_call.1} parent=1 // pred_check
      _
    $region3: #{tpu_custom_call.1} parent=1 // pred_check_branch
      %21 = sbr.rel (0) target = $region5
    $region4: #{tpu_custom_call.1} parent=1 // pred_region
      _
    $region5: #{tpu_custom_call.1} parent=1 // pred_fallthru
      _
    // Predicated region
    $region6: #{tpu_custom_call.1} parent=1 // pred_check
      _
    $region7: #{tpu_custom_call.1} parent=1 // pred_check_branch
      %23 = sbr.rel (0) target = $region9
    $region8: #{tpu_custom_call.1} parent=1 // pred_region
      _
    $region9: #{tpu_custom_call.1} parent=1 // pred_fallthru
      _
    // Predicated region
    $region10: #{tpu_custom_call.1} parent=1 // pred_check
      _
    $region11: #{tpu_custom_call.1} parent=1 // pred_check_branch
      %25 = sbr.rel (0) target = $region13
    $region12: #{tpu_custom_call.1} parent=1 // pred_region
      _
    $region13: #{tpu_custom_call.1} parent=1 // pred_fallthru
      _
    // Predicated region
    $region14: #{tpu_custom_call.1} parent=1 // pred_check
      _
    $region15: #{tpu_custom_call.1} parent=1 // pred_check_branch
      %27 = sbr.rel (0) target = $region17
    $region16: #{tpu_custom_call.1} parent=1 // pred_region
      _
    $region17: #{tpu_custom_call.1} parent=1 // pred_fallthru
      _
    %s29 = smul.u32 0, 8
    %s30 = smul.u32 %s29, 128
    %s31 = sld [smem:[#allocation5 + %s30]]
    %s32 = scalar_lea.vmem %s1, %s31
    // Predicated region
    $region18: #{tpu_custom_call.1} parent=1 // pred_check
      _
    $region19: #{tpu_custom_call.1} parent=1 // pred_check_branch
      %34 = sbr.rel target = $region21
    $region20: #{tpu_custom_call.1} parent=1 // pred_region
      // Predicated region
      $region33: #{tpu_custom_call.1} parent=20 // pred_check
        _
      $region34: #{tpu_custom_call.1} parent=20 // pred_check_branch
        %50 = sbr.rel (0) target = $region36
      $region35: #{tpu_custom_call.1} parent=20 // pred_region
        %s52 = ssub.s32 2, 1
        loop: start=0, step=1, limit=1
        $region37: #{tpu_custom_call.1} parent=35 // loop_pre_header
          _
        $region38: #{tpu_custom_call.1} parent=35 // loop_header
          %s54 = sphi 0, %s58
          %p55 = scmp.ge.s32.totalorder %s54, 1
          %s59 = sphi %s32, %s32
          %s60 = sphi [#allocation2], [#allocation2]
        $region39: #{tpu_custom_call.1} parent=35 // loop_header_branch
          %57 = sbr.rel (%p55) target = $region43
        $region40: #{tpu_custom_call.1} parent=35 // loop_body
          %v61 = vld [vmem:[%s59] sm:%s52]
          %62 = vst [vmem:[%s60] sm:%s52] %v61
        $region41: #{tpu_custom_call.1} parent=35 // loop_footer
          %s58 = sadd.s32 1, %s54
        $region42: #{tpu_custom_call.1} parent=35 // loop_footer_branch
          %53 = sbr.rel target = $region38
        $region43: #{tpu_custom_call.1} parent=35 // loop_exit
          _
      $region36: #{tpu_custom_call.1} parent=20 // pred_fallthru
        _
    $region21: #{tpu_custom_call.1} parent=1 // pred_fallthru
      _
    // Predicated region
    $region22: #{tpu_custom_call.1} parent=1 // pred_check
      _
    $region23: #{tpu_custom_call.1} parent=1 // pred_check_branch
      %36 = sbr.rel (0) target = $region25
    $region24: #{tpu_custom_call.1} parent=1 // pred_region
      %s38 = ssub.s32 2, 1
      loop: start=0, step=1, limit=1
      $region26: #{tpu_custom_call.1} parent=24 // loop_pre_header
        _
      $region27: #{tpu_custom_call.1} parent=24 // loop_header
        %s40 = sphi 0, %s44
        %p41 = scmp.ge.s32.totalorder %s40, 1
        %s45 = sphi %s32, %s32
        %s46 = sphi [#allocation2], [#allocation2]
      $region28: #{tpu_custom_call.1} parent=24 // loop_header_branch
        %43 = sbr.rel (%p41) target = $region32
      $region29: #{tpu_custom_call.1} parent=24 // loop_body
        %v47 = vld [vmem:[%s45] sm:%s38]
        %48 = vst [vmem:[%s46] sm:%s38] %v47
      $region30: #{tpu_custom_call.1} parent=24 // loop_footer
        %s44 = sadd.s32 1, %s40
      $region31: #{tpu_custom_call.1} parent=24 // loop_footer_branch
        %39 = sbr.rel target = $region27
      $region32: #{tpu_custom_call.1} parent=24 // loop_exit
        _
    $region25: #{tpu_custom_call.1} parent=1 // pred_fallthru
      _
    // Predicated region
    $region44: #{tpu_custom_call.1} parent=1 // pred_check
      _
    $region45: #{tpu_custom_call.1} parent=1 // pred_check_branch
      %65 = sbr.rel (0) target = $region47
    $region46: #{tpu_custom_call.1} parent=1 // pred_region
      %66 = vsyncadd [#allocation3], 16
    $region47: #{tpu_custom_call.1} parent=1 // pred_fallthru
      _
    %s67 = sadd.s32 %s30, 1
    %s68 = sld [smem:[#allocation5 + %s67]]
    %s69 = scalar_lea.vmem %s1, %s68
    %s70 = scalar_lea.vmem [#allocation2], 1
    // Predicated region
    $region48: #{tpu_custom_call.1} parent=1 // pred_check
      _
    $region49: #{tpu_custom_call.1} parent=1 // pred_check_branch
      %72 = sbr.rel target = $region51
    $region50: #{tpu_custom_call.1} parent=1 // pred_region
      // Predicated region
      $region63: #{tpu_custom_call.1} parent=50 // pred_check
        _
      $region64: #{tpu_custom_call.1} parent=50 // pred_check_branch
        %88 = sbr.rel (0) target = $region66
      $region65: #{tpu_custom_call.1} parent=50 // pred_region
        %s90 = ssub.s32 2, 1
        loop: start=0, step=1, limit=1
        $region67: #{tpu_custom_call.1} parent=65 // loop_pre_header
          _
        $region68: #{tpu_custom_call.1} parent=65 // loop_header
          %s92 = sphi 0, %s96
          %p93 = scmp.ge.s32.totalorder %s92, 1
          %s97 = sphi %s69, %s69
          %s98 = sphi %s70, %s70
        $region69: #{tpu_custom_call.1} parent=65 // loop_header_branch
          %95 = sbr.rel (%p93) target = $region73
        $region70: #{tpu_custom_call.1} parent=65 // loop_body
          %v99 = vld [vmem:[%s97] sm:%s90]
          %100 = vst [vmem:[%s98] sm:%s90] %v99
        $region71: #{tpu_custom_call.1} parent=65 // loop_footer
          %s96 = sadd.s32 1, %s92
        $region72: #{tpu_custom_call.1} parent=65 // loop_footer_branch
          %91 = sbr.rel target = $region68
        $region73: #{tpu_custom_call.1} parent=65 // loop_exit
          _
      $region66: #{tpu_custom_call.1} parent=50 // pred_fallthru
        _
    $region51: #{tpu_custom_call.1} parent=1 // pred_fallthru
      _
    // Predicated region
    $region52: #{tpu_custom_call.1} parent=1 // pred_check
      _
    $region53: #{tpu_custom_call.1} parent=1 // pred_check_branch
      %74 = sbr.rel (0) target = $region55
    $region54: #{tpu_custom_call.1} parent=1 // pred_region
      %s76 = ssub.s32 2, 1
      loop: start=0, step=1, limit=1
      $region56: #{tpu_custom_call.1} parent=54 // loop_pre_header
        _
      $region57: #{tpu_custom_call.1} parent=54 // loop_header
        %s78 = sphi 0, %s82
        %p79 = scmp.ge.s32.totalorder %s78, 1
        %s83 = sphi %s69, %s69
        %s84 = sphi %s70, %s70
      $region58: #{tpu_custom_call.1} parent=54 // loop_header_branch
        %81 = sbr.rel (%p79) target = $region62
      $region59: #{tpu_custom_call.1} parent=54 // loop_body
        %v85 = vld [vmem:[%s83] sm:%s76]
        %86 = vst [vmem:[%s84] sm:%s76] %v85
      $region60: #{tpu_custom_call.1} parent=54 // loop_footer
        %s82 = sadd.s32 1, %s78
      $region61: #{tpu_custom_call.1} parent=54 // loop_footer_branch
        %77 = sbr.rel target = $region57
      $region62: #{tpu_custom_call.1} parent=54 // loop_exit
        _
    $region55: #{tpu_custom_call.1} parent=1 // pred_fallthru
      _
    // Predicated region
    $region74: #{tpu_custom_call.1} parent=1 // pred_check
      _
    $region75: #{tpu_custom_call.1} parent=1 // pred_check_branch
      %103 = sbr.rel (0) target = $region77
    $region76: #{tpu_custom_call.1} parent=1 // pred_region
      %104 = vsyncadd [#allocation3], 16
    $region77: #{tpu_custom_call.1} parent=1 // pred_fallthru
      _
    %s105 = sadd.s32 %s30, 2
    %s106 = sld [smem:[#allocation5 + %s105]]
    %s107 = scalar_lea.vmem %s1, %s106
    %s108 = scalar_lea.vmem [#allocation2], 2
    // Predicated region
    $region78: #{tpu_custom_call.1} parent=1 // pred_check
      _
    $region79: #{tpu_custom_call.1} parent=1 // pred_check_branch
      %110 = sbr.rel target = $region81
    $region80: #{tpu_custom_call.1} parent=1 // pred_region
      // Predicated region
      $region93: #{tpu_custom_call.1} parent=80 // pred_check
        _
      $region94: #{tpu_custom_call.1} parent=80 // pred_check_branch
        %126 = sbr.rel (0) target = $region96
      $region95: #{tpu_custom_call.1} parent=80 // pred_region
        %s128 = ssub.s32 2, 1
        loop: start=0, step=1, limit=1
        $region97: #{tpu_custom_call.1} parent=95 // loop_pre_header
          _
        $region98: #{tpu_custom_call.1} parent=95 // loop_header
          %s130 = sphi 0, %s134
          %p131 = scmp.ge.s32.totalorder %s130, 1
          %s135 = sphi %s107, %s107
          %s136 = sphi %s108, %s108
        $region99: #{tpu_custom_call.1} parent=95 // loop_header_branch
          %133 = sbr.rel (%p131) target = $region103
        $region100: #{tpu_custom_call.1} parent=95 // loop_body
          %v137 = vld [vmem:[%s135] sm:%s128]
          %138 = vst [vmem:[%s136] sm:%s128] %v137
        $region101: #{tpu_custom_call.1} parent=95 // loop_footer
          %s134 = sadd.s32 1, %s130
        $region102: #{tpu_custom_call.1} parent=95 // loop_footer_branch
          %129 = sbr.rel target = $region98
        $region103: #{tpu_custom_call.1} parent=95 // loop_exit
          _
      $region96: #{tpu_custom_call.1} parent=80 // pred_fallthru
        _
    $region81: #{tpu_custom_call.1} parent=1 // pred_fallthru
      _
    // Predicated region
    $region82: #{tpu_custom_call.1} parent=1 // pred_check
      _
    $region83: #{tpu_custom_call.1} parent=1 // pred_check_branch
      %112 = sbr.rel (0) target = $region85
    $region84: #{tpu_custom_call.1} parent=1 // pred_region
      %s114 = ssub.s32 2, 1
      loop: start=0, step=1, limit=1
      $region86: #{tpu_custom_call.1} parent=84 // loop_pre_header
        _
      $region87: #{tpu_custom_call.1} parent=84 // loop_header
        %s116 = sphi 0, %s120
        %p117 = scmp.ge.s32.totalorder %s116, 1
        %s121 = sphi %s107, %s107
        %s122 = sphi %s108, %s108
      $region88: #{tpu_custom_call.1} parent=84 // loop_header_branch
        %119 = sbr.rel (%p117) target = $region92
      $region89: #{tpu_custom_call.1} parent=84 // loop_body
        %v123 = vld [vmem:[%s121] sm:%s114]
        %124 = vst [vmem:[%s122] sm:%s114] %v123
      $region90: #{tpu_custom_call.1} parent=84 // loop_footer
        %s120 = sadd.s32 1, %s116
      $region91: #{tpu_custom_call.1} parent=84 // loop_footer_branch
        %115 = sbr.rel target = $region87
      $region92: #{tpu_custom_call.1} parent=84 // loop_exit
        _
    $region85: #{tpu_custom_call.1} parent=1 // pred_fallthru
      _
    // Predicated region
    $region104: #{tpu_custom_call.1} parent=1 // pred_check
      _
    $region105: #{tpu_custom_call.1} parent=1 // pred_check_branch
      %141 = sbr.rel (0) target = $region107
    $region106: #{tpu_custom_call.1} parent=1 // pred_region
      %142 = vsyncadd [#allocation3], 16
    $region107: #{tpu_custom_call.1} parent=1 // pred_fallthru
      _
    %s143 = sadd.s32 %s30, 3
    %s144 = sld [smem:[#allocation5 + %s143]]
    %s145 = scalar_lea.vmem %s1, %s144
    %s146 = scalar_lea.vmem [#allocation2], 3
    // Predicated region
    $region108: #{tpu_custom_call.1} parent=1 // pred_check
      _
    $region109: #{tpu_custom_call.1} parent=1 // pred_check_branch
      %148 = sbr.rel target = $region111
    $region110: #{tpu_custom_call.1} parent=1 // pred_region
      // Predicated region
      $region123: #{tpu_custom_call.1} parent=110 // pred_check
        _
      $region124: #{tpu_custom_call.1} parent=110 // pred_check_branch
        %164 = sbr.rel (0) target = $region126
      $region125: #{tpu_custom_call.1} parent=110 // pred_region
        %s166 = ssub.s32 2, 1
        loop: start=0, step=1, limit=1
        $region127: #{tpu_custom_call.1} parent=125 // loop_pre_header
          _
        $region128: #{tpu_custom_call.1} parent=125 // loop_header
          %s168 = sphi 0, %s172
          %p169 = scmp.ge.s32.totalorder %s168, 1
          %s173 = sphi %s145, %s145
          %s174 = sphi %s146, %s146
        $region129: #{tpu_custom_call.1} parent=125 // loop_header_branch
          %171 = sbr.rel (%p169) target = $region133
        $region130: #{tpu_custom_call.1} parent=125 // loop_body
          %v175 = vld [vmem:[%s173] sm:%s166]
          %176 = vst [vmem:[%s174] sm:%s166] %v175
        $region131: #{tpu_custom_call.1} parent=125 // loop_footer
          %s172 = sadd.s32 1, %s168
        $region132: #{tpu_custom_call.1} parent=125 // loop_footer_branch
          %167 = sbr.rel target = $region128
        $region133: #{tpu_custom_call.1} parent=125 // loop_exit
          _
      $region126: #{tpu_custom_call.1} parent=110 // pred_fallthru
        _
    $region111: #{tpu_custom_call.1} parent=1 // pred_fallthru
      _
    // Predicated region
    $region112: #{tpu_custom_call.1} parent=1 // pred_check
      _
    $region113: #{tpu_custom_call.1} parent=1 // pred_check_branch
      %150 = sbr.rel (0) target = $region115
    $region114: #{tpu_custom_call.1} parent=1 // pred_region
      %s152 = ssub.s32 2, 1
      loop: start=0, step=1, limit=1
      $region116: #{tpu_custom_call.1} parent=114 // loop_pre_header
        _
      $region117: #{tpu_custom_call.1} parent=114 // loop_header
        %s154 = sphi 0, %s158
        %p155 = scmp.ge.s32.totalorder %s154, 1
        %s159 = sphi %s145, %s145
        %s160 = sphi %s146, %s146
      $region118: #{tpu_custom_call.1} parent=114 // loop_header_branch
        %157 = sbr.rel (%p155) target = $region122
      $region119: #{tpu_custom_call.1} parent=114 // loop_body
        %v161 = vld [vmem:[%s159] sm:%s152]
        %162 = vst [vmem:[%s160] sm:%s152] %v161
      $region120: #{tpu_custom_call.1} parent=114 // loop_footer
        %s158 = sadd.s32 1, %s154
      $region121: #{tpu_custom_call.1} parent=114 // loop_footer_branch
        %153 = sbr.rel target = $region117
      $region122: #{tpu_custom_call.1} parent=114 // loop_exit
        _
    $region115: #{tpu_custom_call.1} parent=1 // pred_fallthru
      _
    // Predicated region
    $region134: #{tpu_custom_call.1} parent=1 // pred_check
      _
    $region135: #{tpu_custom_call.1} parent=1 // pred_check_branch
      %179 = sbr.rel (0) target = $region137
    $region136: #{tpu_custom_call.1} parent=1 // pred_region
      %180 = vsyncadd [#allocation3], 16
    $region137: #{tpu_custom_call.1} parent=1 // pred_fallthru
      _
    %s181 = sadd.s32 %s30, 4
    %s182 = sld [smem:[#allocation5 + %s181]]
    %s183 = scalar_lea.vmem %s1, %s182
    %s184 = scalar_lea.vmem [#allocation2], 4
    // Predicated region
    $region138: #{tpu_custom_call.1} parent=1 // pred_check
      _
    $region139: #{tpu_custom_call.1} parent=1 // pred_check_branch
      %186 = sbr.rel target = $region141
    $region140: #{tpu_custom_call.1} parent=1 // pred_region
      // Predicated region
      $region153: #{tpu_custom_call.1} parent=140 // pred_check
        _
      $region154: #{tpu_custom_call.1} parent=140 // pred_check_branch
        %202 = sbr.rel (0) target = $region156
      $region155: #{tpu_custom_call.1} parent=140 // pred_region
        %s204 = ssub.s32 2, 1
        loop: start=0, step=1, limit=1
        $region157: #{tpu_custom_call.1} parent=155 // loop_pre_header
          _
        $region158: #{tpu_custom_call.1} parent=155 // loop_header
          %s206 = sphi 0, %s210
          %p207 = scmp.ge.s32.totalorder %s206, 1
          %s211 = sphi %s183, %s183
          %s212 = sphi %s184, %s184
        $region159: #{tpu_custom_call.1} parent=155 // loop_header_branch
          %209 = sbr.rel (%p207) target = $region163
        $region160: #{tpu_custom_call.1} parent=155 // loop_body
          %v213 = vld [vmem:[%s211] sm:%s204]
          %214 = vst [vmem:[%s212] sm:%s204] %v213
        $region161: #{tpu_custom_call.1} parent=155 // loop_footer
          %s210 = sadd.s32 1, %s206
        $region162: #{tpu_custom_call.1} parent=155 // loop_footer_branch
          %205 = sbr.rel target = $region158
        $region163: #{tpu_custom_call.1} parent=155 // loop_exit
          _
      $region156: #{tpu_custom_call.1} parent=140 // pred_fallthru
        _
    $region141: #{tpu_custom_call.1} parent=1 // pred_fallthru
      _
    // Predicated region
    $region142: #{tpu_custom_call.1} parent=1 // pred_check
      _
    $region143: #{tpu_custom_call.1} parent=1 // pred_check_branch
      %188 = sbr.rel (0) target = $region145
    $region144: #{tpu_custom_call.1} parent=1 // pred_region
      %s190 = ssub.s32 2, 1
      loop: start=0, step=1, limit=1
      $region146: #{tpu_custom_call.1} parent=144 // loop_pre_header
        _
      $region147: #{tpu_custom_call.1} parent=144 // loop_header
        %s192 = sphi 0, %s196
        %p193 = scmp.ge.s32.totalorder %s192, 1
        %s197 = sphi %s183, %s183
        %s198 = sphi %s184, %s184
      $region148: #{tpu_custom_call.1} parent=144 // loop_header_branch
        %195 = sbr.rel (%p193) target = $region152
      $region149: #{tpu_custom_call.1} parent=144 // loop_body
        %v199 = vld [vmem:[%s197] sm:%s190]
        %200 = vst [vmem:[%s198] sm:%s190] %v199
      $region150: #{tpu_custom_call.1} parent=144 // loop_footer
        %s196 = sadd.s32 1, %s192
      $region151: #{tpu_custom_call.1} parent=144 // loop_footer_branch
        %191 = sbr.rel target = $region147
      $region152: #{tpu_custom_call.1} parent=144 // loop_exit
        _
    $region145: #{tpu_custom_call.1} parent=1 // pred_fallthru
      _
    // Predicated region
    $region164: #{tpu_custom_call.1} parent=1 // pred_check
      _
    $region165: #{tpu_custom_call.1} parent=1 // pred_check_branch
      %217 = sbr.rel (0) target = $region167
    $region166: #{tpu_custom_call.1} parent=1 // pred_region
      %218 = vsyncadd [#allocation3], 16
    $region167: #{tpu_custom_call.1} parent=1 // pred_fallthru
      _
    %s219 = sadd.s32 %s30, 5
    %s220 = sld [smem:[#allocation5 + %s219]]
    %s221 = scalar_lea.vmem %s1, %s220
    %s222 = scalar_lea.vmem [#allocation2], 5
    // Predicated region
    $region168: #{tpu_custom_call.1} parent=1 // pred_check
      _
    $region169: #{tpu_custom_call.1} parent=1 // pred_check_branch
      %224 = sbr.rel target = $region171
    $region170: #{tpu_custom_call.1} parent=1 // pred_region
      // Predicated region
      $region183: #{tpu_custom_call.1} parent=170 // pred_check
        _
      $region184: #{tpu_custom_call.1} parent=170 // pred_check_branch
        %240 = sbr.rel (0) target = $region186
      $region185: #{tpu_custom_call.1} parent=170 // pred_region
        %s242 = ssub.s32 2, 1
        loop: start=0, step=1, limit=1
        $region187: #{tpu_custom_call.1} parent=185 // loop_pre_header
          _
        $region188: #{tpu_custom_call.1} parent=185 // loop_header
          %s244 = sphi 0, %s248
          %p245 = scmp.ge.s32.totalorder %s244, 1
          %s249 = sphi %s221, %s221
          %s250 = sphi %s222, %s222
        $region189: #{tpu_custom_call.1} parent=185 // loop_header_branch
          %247 = sbr.rel (%p245) target = $region193
        $region190: #{tpu_custom_call.1} parent=185 // loop_body
          %v251 = vld [vmem:[%s249] sm:%s242]
          %252 = vst [vmem:[%s250] sm:%s242] %v251
        $region191: #{tpu_custom_call.1} parent=185 // loop_footer
          %s248 = sadd.s32 1, %s244
        $region192: #{tpu_custom_call.1} parent=185 // loop_footer_branch
          %243 = sbr.rel target = $region188
        $region193: #{tpu_custom_call.1} parent=185 // loop_exit
          _
      $region186: #{tpu_custom_call.1} parent=170 // pred_fallthru
        _
    $region171: #{tpu_custom_call.1} parent=1 // pred_fallthru
      _
    // Predicated region
    $region172: #{tpu_custom_call.1} parent=1 // pred_check
      _
    $region173: #{tpu_custom_call.1} parent=1 // pred_check_branch
      %226 = sbr.rel (0) target = $region175
    $region174: #{tpu_custom_call.1} parent=1 // pred_region
      %s228 = ssub.s32 2, 1
      loop: start=0, step=1, limit=1
      $region176: #{tpu_custom_call.1} parent=174 // loop_pre_header
        _
      $region177: #{tpu_custom_call.1} parent=174 // loop_header
        %s230 = sphi 0, %s234
        %p231 = scmp.ge.s32.totalorder %s230, 1
        %s235 = sphi %s221, %s221
        %s236 = sphi %s222, %s222
      $region178: #{tpu_custom_call.1} parent=174 // loop_header_branch
        %233 = sbr.rel (%p231) target = $region182
      $region179: #{tpu_custom_call.1} parent=174 // loop_body
        %v237 = vld [vmem:[%s235] sm:%s228]
        %238 = vst [vmem:[%s236] sm:%s228] %v237
      $region180: #{tpu_custom_call.1} parent=174 // loop_footer
        %s234 = sadd.s32 1, %s230
      $region181: #{tpu_custom_call.1} parent=174 // loop_footer_branch
        %229 = sbr.rel target = $region177
      $region182: #{tpu_custom_call.1} parent=174 // loop_exit
        _
    $region175: #{tpu_custom_call.1} parent=1 // pred_fallthru
      _
    // Predicated region
    $region194: #{tpu_custom_call.1} parent=1 // pred_check
      _
    $region195: #{tpu_custom_call.1} parent=1 // pred_check_branch
      %255 = sbr.rel (0) target = $region197
    $region196: #{tpu_custom_call.1} parent=1 // pred_region
      %256 = vsyncadd [#allocation3], 16
    $region197: #{tpu_custom_call.1} parent=1 // pred_fallthru
      _
    %s257 = sadd.s32 %s30, 6
    %s258 = sld [smem:[#allocation5 + %s257]]
    %s259 = scalar_lea.vmem %s1, %s258
    %s260 = scalar_lea.vmem [#allocation2], 6
    // Predicated region
    $region198: #{tpu_custom_call.1} parent=1 // pred_check
      _
    $region199: #{tpu_custom_call.1} parent=1 // pred_check_branch
      %262 = sbr.rel target = $region201
    $region200: #{tpu_custom_call.1} parent=1 // pred_region
      // Predicated region
      $region213: #{tpu_custom_call.1} parent=200 // pred_check
        _
      $region214: #{tpu_custom_call.1} parent=200 // pred_check_branch
        %278 = sbr.rel (0) target = $region216
      $region215: #{tpu_custom_call.1} parent=200 // pred_region
        %s280 = ssub.s32 2, 1
        loop: start=0, step=1, limit=1
        $region217: #{tpu_custom_call.1} parent=215 // loop_pre_header
          _
        $region218: #{tpu_custom_call.1} parent=215 // loop_header
          %s282 = sphi 0, %s286
          %p283 = scmp.ge.s32.totalorder %s282, 1
          %s287 = sphi %s259, %s259
          %s288 = sphi %s260, %s260
        $region219: #{tpu_custom_call.1} parent=215 // loop_header_branch
          %285 = sbr.rel (%p283) target = $region223
        $region220: #{tpu_custom_call.1} parent=215 // loop_body
          %v289 = vld [vmem:[%s287] sm:%s280]
          %290 = vst [vmem:[%s288] sm:%s280] %v289
        $region221: #{tpu_custom_call.1} parent=215 // loop_footer
          %s286 = sadd.s32 1, %s282
        $region222: #{tpu_custom_call.1} parent=215 // loop_footer_branch
          %281 = sbr.rel target = $region218
        $region223: #{tpu_custom_call.1} parent=215 // loop_exit
          _
      $region216: #{tpu_custom_call.1} parent=200 // pred_fallthru
        _
    $region201: #{tpu_custom_call.1} parent=1 // pred_fallthru
      _
    // Predicated region
    $region202: #{tpu_custom_call.1} parent=1 // pred_check
      _
    $region203: #{tpu_custom_call.1} parent=1 // pred_check_branch
      %264 = sbr.rel (0) target = $region205
    $region204: #{tpu_custom_call.1} parent=1 // pred_region
      %s266 = ssub.s32 2, 1
      loop: start=0, step=1, limit=1
      $region206: #{tpu_custom_call.1} parent=204 // loop_pre_header
        _
      $region207: #{tpu_custom_call.1} parent=204 // loop_header
        %s268 = sphi 0, %s272
        %p269 = scmp.ge.s32.totalorder %s268, 1
        %s273 = sphi %s259, %s259
        %s274 = sphi %s260, %s260
      $region208: #{tpu_custom_call.1} parent=204 // loop_header_branch
        %271 = sbr.rel (%p269) target = $region212
      $region209: #{tpu_custom_call.1} parent=204 // loop_body
        %v275 = vld [vmem:[%s273] sm:%s266]
        %276 = vst [vmem:[%s274] sm:%s266] %v275
      $region210: #{tpu_custom_call.1} parent=204 // loop_footer
        %s272 = sadd.s32 1, %s268
      $region211: #{tpu_custom_call.1} parent=204 // loop_footer_branch
        %267 = sbr.rel target = $region207
      $region212: #{tpu_custom_call.1} parent=204 // loop_exit
        _
    $region205: #{tpu_custom_call.1} parent=1 // pred_fallthru
      _
    // Predicated region
    $region224: #{tpu_custom_call.1} parent=1 // pred_check
      _
    $region225: #{tpu_custom_call.1} parent=1 // pred_check_branch
      %293 = sbr.rel (0) target = $region227
    $region226: #{tpu_custom_call.1} parent=1 // pred_region
      %294 = vsyncadd [#allocation3], 16
    $region227: #{tpu_custom_call.1} parent=1 // pred_fallthru
      _
    %s295 = sadd.s32 %s30, 7
    %s296 = sld [smem:[#allocation5 + %s295]]
    %s297 = scalar_lea.vmem %s1, %s296
    %s298 = scalar_lea.vmem [#allocation2], 7
    // Predicated region
    $region228: #{tpu_custom_call.1} parent=1 // pred_check
      _
    $region229: #{tpu_custom_call.1} parent=1 // pred_check_branch
      %300 = sbr.rel target = $region231
    $region230: #{tpu_custom_call.1} parent=1 // pred_region
      // Predicated region
      $region243: #{tpu_custom_call.1} parent=230 // pred_check
        _
      $region244: #{tpu_custom_call.1} parent=230 // pred_check_branch
        %316 = sbr.rel (0) target = $region246
      $region245: #{tpu_custom_call.1} parent=230 // pred_region
        %s318 = ssub.s32 2, 1
        loop: start=0, step=1, limit=1
        $region247: #{tpu_custom_call.1} parent=245 // loop_pre_header
          _
        $region248: #{tpu_custom_call.1} parent=245 // loop_header
          %s320 = sphi 0, %s324
          %p321 = scmp.ge.s32.totalorder %s320, 1
          %s325 = sphi %s297, %s297
          %s326 = sphi %s298, %s298
        $region249: #{tpu_custom_call.1} parent=245 // loop_header_branch
          %323 = sbr.rel (%p321) target = $region253
        $region250: #{tpu_custom_call.1} parent=245 // loop_body
          %v327 = vld [vmem:[%s325] sm:%s318]
          %328 = vst [vmem:[%s326] sm:%s318] %v327
        $region251: #{tpu_custom_call.1} parent=245 // loop_footer
          %s324 = sadd.s32 1, %s320
        $region252: #{tpu_custom_call.1} parent=245 // loop_footer_branch
          %319 = sbr.rel target = $region248
        $region253: #{tpu_custom_call.1} parent=245 // loop_exit
          _
      $region246: #{tpu_custom_call.1} parent=230 // pred_fallthru
        _
    $region231: #{tpu_custom_call.1} parent=1 // pred_fallthru
      _
    // Predicated region
    $region232: #{tpu_custom_call.1} parent=1 // pred_check
      _
    $region233: #{tpu_custom_call.1} parent=1 // pred_check_branch
      %302 = sbr.rel (0) target = $region235
    $region234: #{tpu_custom_call.1} parent=1 // pred_region
      %s304 = ssub.s32 2, 1
      loop: start=0, step=1, limit=1
      $region236: #{tpu_custom_call.1} parent=234 // loop_pre_header
        _
      $region237: #{tpu_custom_call.1} parent=234 // loop_header
        %s306 = sphi 0, %s310
        %p307 = scmp.ge.s32.totalorder %s306, 1
        %s311 = sphi %s297, %s297
        %s312 = sphi %s298, %s298
      $region238: #{tpu_custom_call.1} parent=234 // loop_header_branch
        %309 = sbr.rel (%p307) target = $region242
      $region239: #{tpu_custom_call.1} parent=234 // loop_body
        %v313 = vld [vmem:[%s311] sm:%s304]
        %314 = vst [vmem:[%s312] sm:%s304] %v313
      $region240: #{tpu_custom_call.1} parent=234 // loop_footer
        %s310 = sadd.s32 1, %s306
      $region241: #{tpu_custom_call.1} parent=234 // loop_footer_branch
        %305 = sbr.rel target = $region237
      $region242: #{tpu_custom_call.1} parent=234 // loop_exit
        _
    $region235: #{tpu_custom_call.1} parent=1 // pred_fallthru
      _
    // Predicated region
    $region254: #{tpu_custom_call.1} parent=1 // pred_check
      _
    $region255: #{tpu_custom_call.1} parent=1 // pred_check_branch
      %331 = sbr.rel (0) target = $region257
    $region256: #{tpu_custom_call.1} parent=1 // pred_region
      %332 = vsyncadd [#allocation3], 16
    $region257: #{tpu_custom_call.1} parent=1 // pred_fallthru
      _
    %s333 = sadd.s32 %s29, 1
    %s334 = smul.u32 %s333, 128
    %s335 = sld [smem:[#allocation5 + %s334]]
    %s336 = scalar_lea.vmem %s1, %s335
    %s337 = scalar_lea.vmem [#allocation2], 8
    // Predicated region
    $region258: #{tpu_custom_call.1} parent=1 // pred_check
      _
    $region259: #{tpu_custom_call.1} parent=1 // pred_check_branch
      %339 = sbr.rel target = $region261
    $region260: #{tpu_custom_call.1} parent=1 // pred_region
      // Predicated region
      $region273: #{tpu_custom_call.1} parent=260 // pred_check
        _
      $region274: #{tpu_custom_call.1} parent=260 // pred_check_branch
        %355 = sbr.rel (0) target = $region276
      $region275: #{tpu_custom_call.1} parent=260 // pred_region
        %s357 = ssub.s32 2, 1
        loop: start=0, step=1, limit=1
        $region277: #{tpu_custom_call.1} parent=275 // loop_pre_header
          _
        $region278: #{tpu_custom_call.1} parent=275 // loop_header
          %s359 = sphi 0, %s363
          %p360 = scmp.ge.s32.totalorder %s359, 1
          %s364 = sphi %s336, %s336
          %s365 = sphi %s337, %s337
        $region279: #{tpu_custom_call.1} parent=275 // loop_header_branch
          %362 = sbr.rel (%p360) target = $region283
        $region280: #{tpu_custom_call.1} parent=275 // loop_body
          %v366 = vld [vmem:[%s364] sm:%s357]
          %367 = vst [vmem:[%s365] sm:%s357] %v366
        $region281: #{tpu_custom_call.1} parent=275 // loop_footer
          %s363 = sadd.s32 1, %s359
        $region282: #{tpu_custom_call.1} parent=275 // loop_footer_branch
          %358 = sbr.rel target = $region278
        $region283: #{tpu_custom_call.1} parent=275 // loop_exit
          _
      $region276: #{tpu_custom_call.1} parent=260 // pred_fallthru
        _
    $region261: #{tpu_custom_call.1} parent=1 // pred_fallthru
      _
    // Predicated region
    $region262: #{tpu_custom_call.1} parent=1 // pred_check
      _
    $region263: #{tpu_custom_call.1} parent=1 // pred_check_branch
      %341 = sbr.rel (0) target = $region265
    $region264: #{tpu_custom_call.1} parent=1 // pred_region
      %s343 = ssub.s32 2, 1
      loop: start=0, step=1, limit=1
      $region266: #{tpu_custom_call.1} parent=264 // loop_pre_header
        _
      $region267: #{tpu_custom_call.1} parent=264 // loop_header
        %s345 = sphi 0, %s349
        %p346 = scmp.ge.s32.totalorder %s345, 1
        %s350 = sphi %s336, %s336
        %s351 = sphi %s337, %s337
      $region268: #{tpu_custom_call.1} parent=264 // loop_header_branch
        %348 = sbr.rel (%p346) target = $region272
      $region269: #{tpu_custom_call.1} parent=264 // loop_body
        %v352 = vld [vmem:[%s350] sm:%s343]
        %353 = vst [vmem:[%s351] sm:%s343] %v352
      $region270: #{tpu_custom_call.1} parent=264 // loop_footer
        %s349 = sadd.s32 1, %s345
      $region271: #{tpu_custom_call.1} parent=264 // loop_footer_branch
        %344 = sbr.rel target = $region267
      $region272: #{tpu_custom_call.1} parent=264 // loop_exit
        _
    $region265: #{tpu_custom_call.1} parent=1 // pred_fallthru
      _
    // Predicated region
    $region284: #{tpu_custom_call.1} parent=1 // pred_check
      _
    $region285: #{tpu_custom_call.1} parent=1 // pred_check_branch
      %370 = sbr.rel (0) target = $region287
    $region286: #{tpu_custom_call.1} parent=1 // pred_region
      %371 = vsyncadd [#allocation3], 16
    $region287: #{tpu_custom_call.1} parent=1 // pred_fallthru
      _
    %s372 = sadd.s32 %s334, 1
    %s373 = sld [smem:[#allocation5 + %s372]]
    %s374 = scalar_lea.vmem %s1, %s373
    %s375 = scalar_lea.vmem [#allocation2], 9
    // Predicated region
    $region288: #{tpu_custom_call.1} parent=1 // pred_check
      _
    $region289: #{tpu_custom_call.1} parent=1 // pred_check_branch
      %377 = sbr.rel target = $region291
    $region290: #{tpu_custom_call.1} parent=1 // pred_region
      // Predicated region
      $region303: #{tpu_custom_call.1} parent=290 // pred_check
        _
      $region304: #{tpu_custom_call.1} parent=290 // pred_check_branch
        %393 = sbr.rel (0) target = $region306
      $region305: #{tpu_custom_call.1} parent=290 // pred_region
        %s395 = ssub.s32 2, 1
        loop: start=0, step=1, limit=1
        $region307: #{tpu_custom_call.1} parent=305 // loop_pre_header
          _
        $region308: #{tpu_custom_call.1} parent=305 // loop_header
          %s397 = sphi 0, %s401
          %p398 = scmp.ge.s32.totalorder %s397, 1
          %s402 = sphi %s374, %s374
          %s403 = sphi %s375, %s375
        $region309: #{tpu_custom_call.1} parent=305 // loop_header_branch
          %400 = sbr.rel (%p398) target = $region313
        $region310: #{tpu_custom_call.1} parent=305 // loop_body
          %v404 = vld [vmem:[%s402] sm:%s395]
          %405 = vst [vmem:[%s403] sm:%s395] %v404
        $region311: #{tpu_custom_call.1} parent=305 // loop_footer
          %s401 = sadd.s32 1, %s397
        $region312: #{tpu_custom_call.1} parent=305 // loop_footer_branch
          %396 = sbr.rel target = $region308
        $region313: #{tpu_custom_call.1} parent=305 // loop_exit
          _
      $region306: #{tpu_custom_call.1} parent=290 // pred_fallthru
        _
    $region291: #{tpu_custom_call.1} parent=1 // pred_fallthru
      _
    // Predicated region
    $region292: #{tpu_custom_call.1} parent=1 // pred_check
      _
    $region293: #{tpu_custom_call.1} parent=1 // pred_check_branch
      %379 = sbr.rel (0) target = $region295
    $region294: #{tpu_custom_call.1} parent=1 // pred_region
      %s381 = ssub.s32 2, 1
      loop: start=0, step=1, limit=1
      $region296: #{tpu_custom_call.1} parent=294 // loop_pre_header
        _
      $region297: #{tpu_custom_call.1} parent=294 // loop_header
        %s383 = sphi 0, %s387
        %p384 = scmp.ge.s32.totalorder %s383, 1
        %s388 = sphi %s374, %s374
        %s389 = sphi %s375, %s375
      $region298: #{tpu_custom_call.1} parent=294 // loop_header_branch
        %386 = sbr.rel (%p384) target = $region302
      $region299: #{tpu_custom_call.1} parent=294 // loop_body
        %v390 = vld [vmem:[%s388] sm:%s381]
        %391 = vst [vmem:[%s389] sm:%s381] %v390
      $region300: #{tpu_custom_call.1} parent=294 // loop_footer
        %s387 = sadd.s32 1, %s383
      $region301: #{tpu_custom_call.1} parent=294 // loop_footer_branch
        %382 = sbr.rel target = $region297
      $region302: #{tpu_custom_call.1} parent=294 // loop_exit
        _
    $region295: #{tpu_custom_call.1} parent=1 // pred_fallthru
      _
    // Predicated region
    $region314: #{tpu_custom_call.1} parent=1 // pred_check
      _
    $region315: #{tpu_custom_call.1} parent=1 // pred_check_branch
      %408 = sbr.rel (0) target = $region317
    $region316: #{tpu_custom_call.1} parent=1 // pred_region
      %409 = vsyncadd [#allocation3], 16
    $region317: #{tpu_custom_call.1} parent=1 // pred_fallthru
      _
    %s410 = sadd.s32 %s334, 2
    %s411 = sld [smem:[#allocation5 + %s410]]
    %s412 = scalar_lea.vmem %s1, %s411
    %s413 = scalar_lea.vmem [#allocation2], 10
    // Predicated region
    $region318: #{tpu_custom_call.1} parent=1 // pred_check
      _
    $region319: #{tpu_custom_call.1} parent=1 // pred_check_branch
      %415 = sbr.rel target = $region321
    $region320: #{tpu_custom_call.1} parent=1 // pred_region
      // Predicated region
      $region333: #{tpu_custom_call.1} parent=320 // pred_check
        _
      $region334: #{tpu_custom_call.1} parent=320 // pred_check_branch
        %431 = sbr.rel (0) target = $region336
      $region335: #{tpu_custom_call.1} parent=320 // pred_region
        %s433 = ssub.s32 2, 1
        loop: start=0, step=1, limit=1
        $region337: #{tpu_custom_call.1} parent=335 // loop_pre_header
          _
        $region338: #{tpu_custom_call.1} parent=335 // loop_header
          %s435 = sphi 0, %s439
          %p436 = scmp.ge.s32.totalorder %s435, 1
          %s440 = sphi %s412, %s412
          %s441 = sphi %s413, %s413
        $region339: #{tpu_custom_call.1} parent=335 // loop_header_branch
          %438 = sbr.rel (%p436) target = $region343
        $region340: #{tpu_custom_call.1} parent=335 // loop_body
          %v442 = vld [vmem:[%s440] sm:%s433]
          %443 = vst [vmem:[%s441] sm:%s433] %v442
        $region341: #{tpu_custom_call.1} parent=335 // loop_footer
          %s439 = sadd.s32 1, %s435
        $region342: #{tpu_custom_call.1} parent=335 // loop_footer_branch
          %434 = sbr.rel target = $region338
        $region343: #{tpu_custom_call.1} parent=335 // loop_exit
          _
      $region336: #{tpu_custom_call.1} parent=320 // pred_fallthru
        _
    $region321: #{tpu_custom_call.1} parent=1 // pred_fallthru
      _
    // Predicated region
    $region322: #{tpu_custom_call.1} parent=1 // pred_check
      _
    $region323: #{tpu_custom_call.1} parent=1 // pred_check_branch
      %417 = sbr.rel (0) target = $region325
    $region324: #{tpu_custom_call.1} parent=1 // pred_region
      %s419 = ssub.s32 2, 1
      loop: start=0, step=1, limit=1
      $region326: #{tpu_custom_call.1} parent=324 // loop_pre_header
        _
      $region327: #{tpu_custom_call.1} parent=324 // loop_header
        %s421 = sphi 0, %s425
        %p422 = scmp.ge.s32.totalorder %s421, 1
        %s426 = sphi %s412, %s412
        %s427 = sphi %s413, %s413
      $region328: #{tpu_custom_call.1} parent=324 // loop_header_branch
        %424 = sbr.rel (%p422) target = $region332
      $region329: #{tpu_custom_call.1} parent=324 // loop_body
        %v428 = vld [vmem:[%s426] sm:%s419]
        %429 = vst [vmem:[%s427] sm:%s419] %v428
      $region330: #{tpu_custom_call.1} parent=324 // loop_footer
        %s425 = sadd.s32 1, %s421
      $region331: #{tpu_custom_call.1} parent=324 // loop_footer_branch
        %420 = sbr.rel target = $region327
      $region332: #{tpu_custom_call.1} parent=324 // loop_exit
        _
    $region325: #{tpu_custom_call.1} parent=1 // pred_fallthru
      _
    // Predicated region
    $region344: #{tpu_custom_call.1} parent=1 // pred_check
      _
    $region345: #{tpu_custom_call.1} parent=1 // pred_check_branch
      %446 = sbr.rel (0) target = $region347
    $region346: #{tpu_custom_call.1} parent=1 // pred_region
      %447 = vsyncadd [#allocation3], 16
    $region347: #{tpu_custom_call.1} parent=1 // pred_fallthru
      _
    %s448 = sadd.s32 %s334, 3
    %s449 = sld [smem:[#allocation5 + %s448]]
    %s450 = scalar_lea.vmem %s1, %s449
    %s451 = scalar_lea.vmem [#allocation2], 11
    // Predicated region
    $region348: #{tpu_custom_call.1} parent=1 // pred_check
      _
    $region349: #{tpu_custom_call.1} parent=1 // pred_check_branch
      %453 = sbr.rel target = $region351
    $region350: #{tpu_custom_call.1} parent=1 // pred_region
      // Predicated region
      $region363: #{tpu_custom_call.1} parent=350 // pred_check
        _
      $region364: #{tpu_custom_call.1} parent=350 // pred_check_branch
        %469 = sbr.rel (0) target = $region366
      $region365: #{tpu_custom_call.1} parent=350 // pred_region
        %s471 = ssub.s32 2, 1
        loop: start=0, step=1, limit=1
        $region367: #{tpu_custom_call.1} parent=365 // loop_pre_header
          _
        $region368: #{tpu_custom_call.1} parent=365 // loop_header
          %s473 = sphi 0, %s477
          %p474 = scmp.ge.s32.totalorder %s473, 1
          %s478 = sphi %s450, %s450
          %s479 = sphi %s451, %s451
        $region369: #{tpu_custom_call.1} parent=365 // loop_header_branch
          %476 = sbr.rel (%p474) target = $region373
        $region370: #{tpu_custom_call.1} parent=365 // loop_body
          %v480 = vld [vmem:[%s478] sm:%s471]
          %481 = vst [vmem:[%s479] sm:%s471] %v480
        $region371: #{tpu_custom_call.1} parent=365 // loop_footer
          %s477 = sadd.s32 1, %s473
        $region372: #{tpu_custom_call.1} parent=365 // loop_footer_branch
          %472 = sbr.rel target = $region368
        $region373: #{tpu_custom_call.1} parent=365 // loop_exit
          _
      $region366: #{tpu_custom_call.1} parent=350 // pred_fallthru
        _
    $region351: #{tpu_custom_call.1} parent=1 // pred_fallthru
      _
    // Predicated region
    $region352: #{tpu_custom_call.1} parent=1 // pred_check
      _
    $region353: #{tpu_custom_call.1} parent=1 // pred_check_branch
      %455 = sbr.rel (0) target = $region355
    $region354: #{tpu_custom_call.1} parent=1 // pred_region
      %s457 = ssub.s32 2, 1
      loop: start=0, step=1, limit=1
      $region356: #{tpu_custom_call.1} parent=354 // loop_pre_header
        _
      $region357: #{tpu_custom_call.1} parent=354 // loop_header
        %s459 = sphi 0, %s463
        %p460 = scmp.ge.s32.totalorder %s459, 1
        %s464 = sphi %s450, %s450
        %s465 = sphi %s451, %s451
      $region358: #{tpu_custom_call.1} parent=354 // loop_header_branch
        %462 = sbr.rel (%p460) target = $region362
      $region359: #{tpu_custom_call.1} parent=354 // loop_body
        %v466 = vld [vmem:[%s464] sm:%s457]
        %467 = vst [vmem:[%s465] sm:%s457] %v466
      $region360: #{tpu_custom_call.1} parent=354 // loop_footer
        %s463 = sadd.s32 1, %s459
      $region361: #{tpu_custom_call.1} parent=354 // loop_footer_branch
        %458 = sbr.rel target = $region357
      $region362: #{tpu_custom_call.1} parent=354 // loop_exit
        _
    $region355: #{tpu_custom_call.1} parent=1 // pred_fallthru
      _
    // Predicated region
    $region374: #{tpu_custom_call.1} parent=1 // pred_check
      _
    $region375: #{tpu_custom_call.1} parent=1 // pred_check_branch
      %484 = sbr.rel (0) target = $region377
    $region376: #{tpu_custom_call.1} parent=1 // pred_region
      %485 = vsyncadd [#allocation3], 16
    $region377: #{tpu_custom_call.1} parent=1 // pred_fallthru
      _
    %s486 = sadd.s32 %s334, 4
    %s487 = sld [smem:[#allocation5 + %s486]]
    %s488 = scalar_lea.vmem %s1, %s487
    %s489 = scalar_lea.vmem [#allocation2], 12
    // Predicated region
    $region378: #{tpu_custom_call.1} parent=1 // pred_check
      _
    $region379: #{tpu_custom_call.1} parent=1 // pred_check_branch
      %491 = sbr.rel target = $region381
    $region380: #{tpu_custom_call.1} parent=1 // pred_region
      // Predicated region
      $region393: #{tpu_custom_call.1} parent=380 // pred_check
        _
      $region394: #{tpu_custom_call.1} parent=380 // pred_check_branch
        %507 = sbr.rel (0) target = $region396
      $region395: #{tpu_custom_call.1} parent=380 // pred_region
        %s509 = ssub.s32 2, 1
        loop: start=0, step=1, limit=1
        $region397: #{tpu_custom_call.1} parent=395 // loop_pre_header
          _
        $region398: #{tpu_custom_call.1} parent=395 // loop_header
          %s511 = sphi 0, %s515
          %p512 = scmp.ge.s32.totalorder %s511, 1
          %s516 = sphi %s488, %s488
          %s517 = sphi %s489, %s489
        $region399: #{tpu_custom_call.1} parent=395 // loop_header_branch
          %514 = sbr.rel (%p512) target = $region403
        $region400: #{tpu_custom_call.1} parent=395 // loop_body
          %v518 = vld [vmem:[%s516] sm:%s509]
          %519 = vst [vmem:[%s517] sm:%s509] %v518
        $region401: #{tpu_custom_call.1} parent=395 // loop_footer
          %s515 = sadd.s32 1, %s511
        $region402: #{tpu_custom_call.1} parent=395 // loop_footer_branch
          %510 = sbr.rel target = $region398
        $region403: #{tpu_custom_call.1} parent=395 // loop_exit
          _
      $region396: #{tpu_custom_call.1} parent=380 // pred_fallthru
        _
    $region381: #{tpu_custom_call.1} parent=1 // pred_fallthru
      _
    // Predicated region
    $region382: #{tpu_custom_call.1} parent=1 // pred_check
      _
    $region383: #{tpu_custom_call.1} parent=1 // pred_check_branch
      %493 = sbr.rel (0) target = $region385
    $region384: #{tpu_custom_call.1} parent=1 // pred_region
      %s495 = ssub.s32 2, 1
      loop: start=0, step=1, limit=1
      $region386: #{tpu_custom_call.1} parent=384 // loop_pre_header
        _
      $region387: #{tpu_custom_call.1} parent=384 // loop_header
        %s497 = sphi 0, %s501
        %p498 = scmp.ge.s32.totalorder %s497, 1
        %s502 = sphi %s488, %s488
        %s503 = sphi %s489, %s489
      $region388: #{tpu_custom_call.1} parent=384 // loop_header_branch
        %500 = sbr.rel (%p498) target = $region392
      $region389: #{tpu_custom_call.1} parent=384 // loop_body
        %v504 = vld [vmem:[%s502] sm:%s495]
        %505 = vst [vmem:[%s503] sm:%s495] %v504
      $region390: #{tpu_custom_call.1} parent=384 // loop_footer
        %s501 = sadd.s32 1, %s497
      $region391: #{tpu_custom_call.1} parent=384 // loop_footer_branch
        %496 = sbr.rel target = $region387
      $region392: #{tpu_custom_call.1} parent=384 // loop_exit
        _
    $region385: #{tpu_custom_call.1} parent=1 // pred_fallthru
      _
    // Predicated region
    $region404: #{tpu_custom_call.1} parent=1 // pred_check
      _
    $region405: #{tpu_custom_call.1} parent=1 // pred_check_branch
      %522 = sbr.rel (0) target = $region407
    $region406: #{tpu_custom_call.1} parent=1 // pred_region
      %523 = vsyncadd [#allocation3], 16
    $region407: #{tpu_custom_call.1} parent=1 // pred_fallthru
      _
    %s524 = sadd.s32 %s334, 5
    %s525 = sld [smem:[#allocation5 + %s524]]
    %s526 = scalar_lea.vmem %s1, %s525
    %s527 = scalar_lea.vmem [#allocation2], 13
    // Predicated region
    $region408: #{tpu_custom_call.1} parent=1 // pred_check
      _
    $region409: #{tpu_custom_call.1} parent=1 // pred_check_branch
      %529 = sbr.rel target = $region411
    $region410: #{tpu_custom_call.1} parent=1 // pred_region
      // Predicated region
      $region423: #{tpu_custom_call.1} parent=410 // pred_check
        _
      $region424: #{tpu_custom_call.1} parent=410 // pred_check_branch
        %545 = sbr.rel (0) target = $region426
      $region425: #{tpu_custom_call.1} parent=410 // pred_region
        %s547 = ssub.s32 2, 1
        loop: start=0, step=1, limit=1
        $region427: #{tpu_custom_call.1} parent=425 // loop_pre_header
          _
        $region428: #{tpu_custom_call.1} parent=425 // loop_header
          %s549 = sphi 0, %s553
          %p550 = scmp.ge.s32.totalorder %s549, 1
          %s554 = sphi %s526, %s526
          %s555 = sphi %s527, %s527
        $region429: #{tpu_custom_call.1} parent=425 // loop_header_branch
          %552 = sbr.rel (%p550) target = $region433
        $region430: #{tpu_custom_call.1} parent=425 // loop_body
          %v556 = vld [vmem:[%s554] sm:%s547]
          %557 = vst [vmem:[%s555] sm:%s547] %v556
        $region431: #{tpu_custom_call.1} parent=425 // loop_footer
          %s553 = sadd.s32 1, %s549
        $region432: #{tpu_custom_call.1} parent=425 // loop_footer_branch
          %548 = sbr.rel target = $region428
        $region433: #{tpu_custom_call.1} parent=425 // loop_exit
          _
      $region426: #{tpu_custom_call.1} parent=410 // pred_fallthru
        _
    $region411: #{tpu_custom_call.1} parent=1 // pred_fallthru
      _
    // Predicated region
    $region412: #{tpu_custom_call.1} parent=1 // pred_check
      _
    $region413: #{tpu_custom_call.1} parent=1 // pred_check_branch
      %531 = sbr.rel (0) target = $region415
    $region414: #{tpu_custom_call.1} parent=1 // pred_region
      %s533 = ssub.s32 2, 1
      loop: start=0, step=1, limit=1
      $region416: #{tpu_custom_call.1} parent=414 // loop_pre_header
        _
      $region417: #{tpu_custom_call.1} parent=414 // loop_header
        %s535 = sphi 0, %s539
        %p536 = scmp.ge.s32.totalorder %s535, 1
        %s540 = sphi %s526, %s526
        %s541 = sphi %s527, %s527
      $region418: #{tpu_custom_call.1} parent=414 // loop_header_branch
        %538 = sbr.rel (%p536) target = $region422
      $region419: #{tpu_custom_call.1} parent=414 // loop_body
        %v542 = vld [vmem:[%s540] sm:%s533]
        %543 = vst [vmem:[%s541] sm:%s533] %v542
      $region420: #{tpu_custom_call.1} parent=414 // loop_footer
        %s539 = sadd.s32 1, %s535
      $region421: #{tpu_custom_call.1} parent=414 // loop_footer_branch
        %534 = sbr.rel target = $region417
      $region422: #{tpu_custom_call.1} parent=414 // loop_exit
        _
    $region415: #{tpu_custom_call.1} parent=1 // pred_fallthru
      _
    // Predicated region
    $region434: #{tpu_custom_call.1} parent=1 // pred_check
      _
    $region435: #{tpu_custom_call.1} parent=1 // pred_check_branch
      %560 = sbr.rel (0) target = $region437
    $region436: #{tpu_custom_call.1} parent=1 // pred_region
      %561 = vsyncadd [#allocation3], 16
    $region437: #{tpu_custom_call.1} parent=1 // pred_fallthru
      _
    %s562 = sadd.s32 %s334, 6
    %s563 = sld [smem:[#allocation5 + %s562]]
    %s564 = scalar_lea.vmem %s1, %s563
    %s565 = scalar_lea.vmem [#allocation2], 14
    // Predicated region
    $region438: #{tpu_custom_call.1} parent=1 // pred_check
      _
    $region439: #{tpu_custom_call.1} parent=1 // pred_check_branch
      %567 = sbr.rel target = $region441
    $region440: #{tpu_custom_call.1} parent=1 // pred_region
      // Predicated region
      $region453: #{tpu_custom_call.1} parent=440 // pred_check
        _
      $region454: #{tpu_custom_call.1} parent=440 // pred_check_branch
        %583 = sbr.rel (0) target = $region456
      $region455: #{tpu_custom_call.1} parent=440 // pred_region
        %s585 = ssub.s32 2, 1
        loop: start=0, step=1, limit=1
        $region457: #{tpu_custom_call.1} parent=455 // loop_pre_header
          _
        $region458: #{tpu_custom_call.1} parent=455 // loop_header
          %s587 = sphi 0, %s591
          %p588 = scmp.ge.s32.totalorder %s587, 1
          %s592 = sphi %s564, %s564
          %s593 = sphi %s565, %s565
        $region459: #{tpu_custom_call.1} parent=455 // loop_header_branch
          %590 = sbr.rel (%p588) target = $region463
        $region460: #{tpu_custom_call.1} parent=455 // loop_body
          %v594 = vld [vmem:[%s592] sm:%s585]
          %595 = vst [vmem:[%s593] sm:%s585] %v594
        $region461: #{tpu_custom_call.1} parent=455 // loop_footer
          %s591 = sadd.s32 1, %s587
        $region462: #{tpu_custom_call.1} parent=455 // loop_footer_branch
          %586 = sbr.rel target = $region458
        $region463: #{tpu_custom_call.1} parent=455 // loop_exit
          _
      $region456: #{tpu_custom_call.1} parent=440 // pred_fallthru
        _
    $region441: #{tpu_custom_call.1} parent=1 // pred_fallthru
      _
    // Predicated region
    $region442: #{tpu_custom_call.1} parent=1 // pred_check
      _
    $region443: #{tpu_custom_call.1} parent=1 // pred_check_branch
      %569 = sbr.rel (0) target = $region445
    $region444: #{tpu_custom_call.1} parent=1 // pred_region
      %s571 = ssub.s32 2, 1
      loop: start=0, step=1, limit=1
      $region446: #{tpu_custom_call.1} parent=444 // loop_pre_header
        _
      $region447: #{tpu_custom_call.1} parent=444 // loop_header
        %s573 = sphi 0, %s577
        %p574 = scmp.ge.s32.totalorder %s573, 1
        %s578 = sphi %s564, %s564
        %s579 = sphi %s565, %s565
      $region448: #{tpu_custom_call.1} parent=444 // loop_header_branch
        %576 = sbr.rel (%p574) target = $region452
      $region449: #{tpu_custom_call.1} parent=444 // loop_body
        %v580 = vld [vmem:[%s578] sm:%s571]
        %581 = vst [vmem:[%s579] sm:%s571] %v580
      $region450: #{tpu_custom_call.1} parent=444 // loop_footer
        %s577 = sadd.s32 1, %s573
      $region451: #{tpu_custom_call.1} parent=444 // loop_footer_branch
        %572 = sbr.rel target = $region447
      $region452: #{tpu_custom_call.1} parent=444 // loop_exit
        _
    $region445: #{tpu_custom_call.1} parent=1 // pred_fallthru
      _
    // Predicated region
    $region464: #{tpu_custom_call.1} parent=1 // pred_check
      _
    $region465: #{tpu_custom_call.1} parent=1 // pred_check_branch
      %598 = sbr.rel (0) target = $region467
    $region466: #{tpu_custom_call.1} parent=1 // pred_region
      %599 = vsyncadd [#allocation3], 16
    $region467: #{tpu_custom_call.1} parent=1 // pred_fallthru
      _
    %s600 = sadd.s32 %s334, 7
    %s601 = sld [smem:[#allocation5 + %s600]]
    %s602 = scalar_lea.vmem %s1, %s601
    %s603 = scalar_lea.vmem [#allocation2], 15
    // Predicated region
    $region468: #{tpu_custom_call.1} parent=1 // pred_check
      _
    $region469: #{tpu_custom_call.1} parent=1 // pred_check_branch
      %605 = sbr.rel target = $region471
    $region470: #{tpu_custom_call.1} parent=1 // pred_region
      // Predicated region
      $region483: #{tpu_custom_call.1} parent=470 // pred_check
        _
      $region484: #{tpu_custom_call.1} parent=470 // pred_check_branch
        %621 = sbr.rel (0) target = $region486
      $region485: #{tpu_custom_call.1} parent=470 // pred_region
        %s623 = ssub.s32 2, 1
        loop: start=0, step=1, limit=1
        $region487: #{tpu_custom_call.1} parent=485 // loop_pre_header
          _
        $region488: #{tpu_custom_call.1} parent=485 // loop_header
          %s625 = sphi 0, %s629
          %p626 = scmp.ge.s32.totalorder %s625, 1
          %s630 = sphi %s602, %s602
          %s631 = sphi %s603, %s603
        $region489: #{tpu_custom_call.1} parent=485 // loop_header_branch
          %628 = sbr.rel (%p626) target = $region493
        $region490: #{tpu_custom_call.1} parent=485 // loop_body
          %v632 = vld [vmem:[%s630] sm:%s623]
          %633 = vst [vmem:[%s631] sm:%s623] %v632
        $region491: #{tpu_custom_call.1} parent=485 // loop_footer
          %s629 = sadd.s32 1, %s625
        $region492: #{tpu_custom_call.1} parent=485 // loop_footer_branch
          %624 = sbr.rel target = $region488
        $region493: #{tpu_custom_call.1} parent=485 // loop_exit
          _
      $region486: #{tpu_custom_call.1} parent=470 // pred_fallthru
        _
    $region471: #{tpu_custom_call.1} parent=1 // pred_fallthru
      _
    // Predicated region
    $region472: #{tpu_custom_call.1} parent=1 // pred_check
      _
    $region473: #{tpu_custom_call.1} parent=1 // pred_check_branch
      %607 = sbr.rel (0) target = $region475
    $region474: #{tpu_custom_call.1} parent=1 // pred_region
      %s609 = ssub.s32 2, 1
      loop: start=0, step=1, limit=1
      $region476: #{tpu_custom_call.1} parent=474 // loop_pre_header
        _
      $region477: #{tpu_custom_call.1} parent=474 // loop_header
        %s611 = sphi 0, %s615
        %p612 = scmp.ge.s32.totalorder %s611, 1
        %s616 = sphi %s602, %s602
        %s617 = sphi %s603, %s603
      $region478: #{tpu_custom_call.1} parent=474 // loop_header_branch
        %614 = sbr.rel (%p612) target = $region482
      $region479: #{tpu_custom_call.1} parent=474 // loop_body
        %v618 = vld [vmem:[%s616] sm:%s609]
        %619 = vst [vmem:[%s617] sm:%s609] %v618
      $region480: #{tpu_custom_call.1} parent=474 // loop_footer
        %s615 = sadd.s32 1, %s611
      $region481: #{tpu_custom_call.1} parent=474 // loop_footer_branch
        %610 = sbr.rel target = $region477
      $region482: #{tpu_custom_call.1} parent=474 // loop_exit
        _
    $region475: #{tpu_custom_call.1} parent=1 // pred_fallthru
      _
    // Predicated region
    $region494: #{tpu_custom_call.1} parent=1 // pred_check
      _
    $region495: #{tpu_custom_call.1} parent=1 // pred_check_branch
      %636 = sbr.rel (0) target = $region497
    $region496: #{tpu_custom_call.1} parent=1 // pred_region
      %637 = vsyncadd [#allocation3], 16
    $region497: #{tpu_custom_call.1} parent=1 // pred_fallthru
      _
    %s638 = sadd.s32 %s29, 2
    %s639 = smul.u32 %s638, 128
    %s640 = sld [smem:[#allocation5 + %s639]]
    %s641 = scalar_lea.vmem %s1, %s640
    %s642 = scalar_lea.vmem [#allocation2], 16
    // Predicated region
    $region498: #{tpu_custom_call.1} parent=1 // pred_check
      _
    $region499: #{tpu_custom_call.1} parent=1 // pred_check_branch
      %644 = sbr.rel target = $region501
    $region500: #{tpu_custom_call.1} parent=1 // pred_region
      // Predicated region
      $region513: #{tpu_custom_call.1} parent=500 // pred_check
        _
      $region514: #{tpu_custom_call.1} parent=500 // pred_check_branch
        %660 = sbr.rel (0) target = $region516
      $region515: #{tpu_custom_call.1} parent=500 // pred_region
        %s662 = ssub.s32 2, 1
        loop: start=0, step=1, limit=1
        $region517: #{tpu_custom_call.1} parent=515 // loop_pre_header
          _
        $region518: #{tpu_custom_call.1} parent=515 // loop_header
          %s664 = sphi 0, %s668
          %p665 = scmp.ge.s32.totalorder %s664, 1
          %s669 = sphi %s641, %s641
          %s670 = sphi %s642, %s642
        $region519: #{tpu_custom_call.1} parent=515 // loop_header_branch
          %667 = sbr.rel (%p665) target = $region523
        $region520: #{tpu_custom_call.1} parent=515 // loop_body
          %v671 = vld [vmem:[%s669] sm:%s662]
          %672 = vst [vmem:[%s670] sm:%s662] %v671
        $region521: #{tpu_custom_call.1} parent=515 // loop_footer
          %s668 = sadd.s32 1, %s664
        $region522: #{tpu_custom_call.1} parent=515 // loop_footer_branch
          %663 = sbr.rel target = $region518
        $region523: #{tpu_custom_call.1} parent=515 // loop_exit
          _
      $region516: #{tpu_custom_call.1} parent=500 // pred_fallthru
        _
    $region501: #{tpu_custom_call.1} parent=1 // pred_fallthru
      _
    // Predicated region
    $region502: #{tpu_custom_call.1} parent=1 // pred_check
      _
    $region503: #{tpu_custom_call.1} parent=1 // pred_check_branch
      %646 = sbr.rel (0) target = $region505
    $region504: #{tpu_custom_call.1} parent=1 // pred_region
      %s648 = ssub.s32 2, 1
      loop: start=0, step=1, limit=1
      $region506: #{tpu_custom_call.1} parent=504 // loop_pre_header
        _
      $region507: #{tpu_custom_call.1} parent=504 // loop_header
        %s650 = sphi 0, %s654
        %p651 = scmp.ge.s32.totalorder %s650, 1
        %s655 = sphi %s641, %s641
        %s656 = sphi %s642, %s642
      $region508: #{tpu_custom_call.1} parent=504 // loop_header_branch
        %653 = sbr.rel (%p651) target = $region512
      $region509: #{tpu_custom_call.1} parent=504 // loop_body
        %v657 = vld [vmem:[%s655] sm:%s648]
        %658 = vst [vmem:[%s656] sm:%s648] %v657
      $region510: #{tpu_custom_call.1} parent=504 // loop_footer
        %s654 = sadd.s32 1, %s650
      $region511: #{tpu_custom_call.1} parent=504 // loop_footer_branch
        %649 = sbr.rel target = $region507
      $region512: #{tpu_custom_call.1} parent=504 // loop_exit
        _
    $region505: #{tpu_custom_call.1} parent=1 // pred_fallthru
      _
    // Predicated region
    $region524: #{tpu_custom_call.1} parent=1 // pred_check
      _
    $region525: #{tpu_custom_call.1} parent=1 // pred_check_branch
      %675 = sbr.rel (0) target = $region527
    $region526: #{tpu_custom_call.1} parent=1 // pred_region
      %676 = vsyncadd [#allocation3], 16
    $region527: #{tpu_custom_call.1} parent=1 // pred_fallthru
      _
    %s677 = sadd.s32 %s639, 1
    %s678 = sld [smem:[#allocation5 + %s677]]
    %s679 = scalar_lea.vmem %s1, %s678
    %s680 = scalar_lea.vmem [#allocation2], 17
    // Predicated region
    $region528: #{tpu_custom_call.1} parent=1 // pred_check
      _
    $region529: #{tpu_custom_call.1} parent=1 // pred_check_branch
      %682 = sbr.rel target = $region531
    $region530: #{tpu_custom_call.1} parent=1 // pred_region
      // Predicated region
      $region543: #{tpu_custom_call.1} parent=530 // pred_check
        _
      $region544: #{tpu_custom_call.1} parent=530 // pred_check_branch
        %698 = sbr.rel (0) target = $region546
      $region545: #{tpu_custom_call.1} parent=530 // pred_region
        %s700 = ssub.s32 2, 1
        loop: start=0, step=1, limit=1
        $region547: #{tpu_custom_call.1} parent=545 // loop_pre_header
          _
        $region548: #{tpu_custom_call.1} parent=545 // loop_header
          %s702 = sphi 0, %s706
          %p703 = scmp.ge.s32.totalorder %s702, 1
          %s707 = sphi %s679, %s679
          %s708 = sphi %s680, %s680
        $region549: #{tpu_custom_call.1} parent=545 // loop_header_branch
          %705 = sbr.rel (%p703) target = $region553
        $region550: #{tpu_custom_call.1} parent=545 // loop_body
          %v709 = vld [vmem:[%s707] sm:%s700]
          %710 = vst [vmem:[%s708] sm:%s700] %v709
        $region551: #{tpu_custom_call.1} parent=545 // loop_footer
          %s706 = sadd.s32 1, %s702
        $region552: #{tpu_custom_call.1} parent=545 // loop_footer_branch
          %701 = sbr.rel target = $region548
        $region553: #{tpu_custom_call.1} parent=545 // loop_exit
          _
      $region546: #{tpu_custom_call.1} parent=530 // pred_fallthru
        _
    $region531: #{tpu_custom_call.1} parent=1 // pred_fallthru
      _
    // Predicated region
    $region532: #{tpu_custom_call.1} parent=1 // pred_check
      _
    $region533: #{tpu_custom_call.1} parent=1 // pred_check_branch
      %684 = sbr.rel (0) target = $region535
    $region534: #{tpu_custom_call.1} parent=1 // pred_region
      %s686 = ssub.s32 2, 1
      loop: start=0, step=1, limit=1
      $region536: #{tpu_custom_call.1} parent=534 // loop_pre_header
        _
      $region537: #{tpu_custom_call.1} parent=534 // loop_header
        %s688 = sphi 0, %s692
        %p689 = scmp.ge.s32.totalorder %s688, 1
        %s693 = sphi %s679, %s679
        %s694 = sphi %s680, %s680
      $region538: #{tpu_custom_call.1} parent=534 // loop_header_branch
        %691 = sbr.rel (%p689) target = $region542
      $region539: #{tpu_custom_call.1} parent=534 // loop_body
        %v695 = vld [vmem:[%s693] sm:%s686]
        %696 = vst [vmem:[%s694] sm:%s686] %v695
      $region540: #{tpu_custom_call.1} parent=534 // loop_footer
        %s692 = sadd.s32 1, %s688
      $region541: #{tpu_custom_call.1} parent=534 // loop_footer_branch
        %687 = sbr.rel target = $region537
      $region542: #{tpu_custom_call.1} parent=534 // loop_exit
        _
    $region535: #{tpu_custom_call.1} parent=1 // pred_fallthru
      _
    // Predicated region
    $region554: #{tpu_custom_call.1} parent=1 // pred_check
      _
    $region555: #{tpu_custom_call.1} parent=1 // pred_check_branch
      %713 = sbr.rel (0) target = $region557
    $region556: #{tpu_custom_call.1} parent=1 // pred_region
      %714 = vsyncadd [#allocation3], 16
    $region557: #{tpu_custom_call.1} parent=1 // pred_fallthru
      _
    %s715 = sadd.s32 %s639, 2
    %s716 = sld [smem:[#allocation5 + %s715]]
    %s717 = scalar_lea.vmem %s1, %s716
    %s718 = scalar_lea.vmem [#allocation2], 18
    // Predicated region
    $region558: #{tpu_custom_call.1} parent=1 // pred_check
      _
    $region559: #{tpu_custom_call.1} parent=1 // pred_check_branch
      %720 = sbr.rel target = $region561
    $region560: #{tpu_custom_call.1} parent=1 // pred_region
      // Predicated region
      $region573: #{tpu_custom_call.1} parent=560 // pred_check
        _
      $region574: #{tpu_custom_call.1} parent=560 // pred_check_branch
        %736 = sbr.rel (0) target = $region576
      $region575: #{tpu_custom_call.1} parent=560 // pred_region
        %s738 = ssub.s32 2, 1
        loop: start=0, step=1, limit=1
        $region577: #{tpu_custom_call.1} parent=575 // loop_pre_header
          _
        $region578: #{tpu_custom_call.1} parent=575 // loop_header
          %s740 = sphi 0, %s744
          %p741 = scmp.ge.s32.totalorder %s740, 1
          %s745 = sphi %s717, %s717
          %s746 = sphi %s718, %s718
        $region579: #{tpu_custom_call.1} parent=575 // loop_header_branch
          %743 = sbr.rel (%p741) target = $region583
        $region580: #{tpu_custom_call.1} parent=575 // loop_body
          %v747 = vld [vmem:[%s745] sm:%s738]
          %748 = vst [vmem:[%s746] sm:%s738] %v747
        $region581: #{tpu_custom_call.1} parent=575 // loop_footer
          %s744 = sadd.s32 1, %s740
        $region582: #{tpu_custom_call.1} parent=575 // loop_footer_branch
          %739 = sbr.rel target = $region578
        $region583: #{tpu_custom_call.1} parent=575 // loop_exit
          _
      $region576: #{tpu_custom_call.1} parent=560 // pred_fallthru
        _
    $region561: #{tpu_custom_call.1} parent=1 // pred_fallthru
      _
    // Predicated region
    $region562: #{tpu_custom_call.1} parent=1 // pred_check
      _
    $region563: #{tpu_custom_call.1} parent=1 // pred_check_branch
      %722 = sbr.rel (0) target = $region565
    $region564: #{tpu_custom_call.1} parent=1 // pred_region
      %s724 = ssub.s32 2, 1
      loop: start=0, step=1, limit=1
      $region566: #{tpu_custom_call.1} parent=564 // loop_pre_header
        _
      $region567: #{tpu_custom_call.1} parent=564 // loop_header
        %s726 = sphi 0, %s730
        %p727 = scmp.ge.s32.totalorder %s726, 1
        %s731 = sphi %s717, %s717
        %s732 = sphi %s718, %s718
      $region568: #{tpu_custom_call.1} parent=564 // loop_header_branch
        %729 = sbr.rel (%p727) target = $region572
      $region569: #{tpu_custom_call.1} parent=564 // loop_body
        %v733 = vld [vmem:[%s731] sm:%s724]
        %734 = vst [vmem:[%s732] sm:%s724] %v733
      $region570: #{tpu_custom_call.1} parent=564 // loop_footer
        %s730 = sadd.s32 1, %s726
      $region571: #{tpu_custom_call.1} parent=564 // loop_footer_branch
        %725 = sbr.rel target = $region567
      $region572: #{tpu_custom_call.1} parent=564 // loop_exit
        _
    $region565: #{tpu_custom_call.1} parent=1 // pred_fallthru
      _
    // Predicated region
    $region584: #{tpu_custom_call.1} parent=1 // pred_check
      _
    $region585: #{tpu_custom_call.1} parent=1 // pred_check_branch
      %751 = sbr.rel (0) target = $region587
    $region586: #{tpu_custom_call.1} parent=1 // pred_region
      %752 = vsyncadd [#allocation3], 16
    $region587: #{tpu_custom_call.1} parent=1 // pred_fallthru
      _
    %s753 = sadd.s32 %s639, 3
    %s754 = sld [smem:[#allocation5 + %s753]]
    %s755 = scalar_lea.vmem %s1, %s754
    %s756 = scalar_lea.vmem [#allocation2], 19
    // Predicated region
    $region588: #{tpu_custom_call.1} parent=1 // pred_check
      _
    $region589: #{tpu_custom_call.1} parent=1 // pred_check_branch
      %758 = sbr.rel target = $region591
    $region590: #{tpu_custom_call.1} parent=1 // pred_region
      // Predicated region
      $region603: #{tpu_custom_call.1} parent=590 // pred_check
        _
      $region604: #{tpu_custom_call.1} parent=590 // pred_check_branch
        %774 = sbr.rel (0) target = $region606
      $region605: #{tpu_custom_call.1} parent=590 // pred_region
        %s776 = ssub.s32 2, 1
        loop: start=0, step=1, limit=1
        $region607: #{tpu_custom_call.1} parent=605 // loop_pre_header
          _
        $region608: #{tpu_custom_call.1} parent=605 // loop_header
          %s778 = sphi 0, %s782
          %p779 = scmp.ge.s32.totalorder %s778, 1
          %s783 = sphi %s755, %s755
          %s784 = sphi %s756, %s756
        $region609: #{tpu_custom_call.1} parent=605 // loop_header_branch
          %781 = sbr.rel (%p779) target = $region613
        $region610: #{tpu_custom_call.1} parent=605 // loop_body
          %v785 = vld [vmem:[%s783] sm:%s776]
          %786 = vst [vmem:[%s784] sm:%s776] %v785
        $region611: #{tpu_custom_call.1} parent=605 // loop_footer
          %s782 = sadd.s32 1, %s778
        $region612: #{tpu_custom_call.1} parent=605 // loop_footer_branch
          %777 = sbr.rel target = $region608
        $region613: #{tpu_custom_call.1} parent=605 // loop_exit
          _
      $region606: #{tpu_custom_call.1} parent=590 // pred_fallthru
        _
    $region591: #{tpu_custom_call.1} parent=1 // pred_fallthru
      _
    // Predicated region
    $region592: #{tpu_custom_call.1} parent=1 // pred_check
      _
    $region593: #{tpu_custom_call.1} parent=1 // pred_check_branch
      %760 = sbr.rel (0) target = $region595
    $region594: #{tpu_custom_call.1} parent=1 // pred_region
      %s762 = ssub.s32 2, 1
      loop: start=0, step=1, limit=1
      $region596: #{tpu_custom_call.1} parent=594 // loop_pre_header
        _
      $region597: #{tpu_custom_call.1} parent=594 // loop_header
        %s764 = sphi 0, %s768
        %p765 = scmp.ge.s32.totalorder %s764, 1
        %s769 = sphi %s755, %s755
        %s770 = sphi %s756, %s756
      $region598: #{tpu_custom_call.1} parent=594 // loop_header_branch
        %767 = sbr.rel (%p765) target = $region602
      $region599: #{tpu_custom_call.1} parent=594 // loop_body
        %v771 = vld [vmem:[%s769] sm:%s762]
        %772 = vst [vmem:[%s770] sm:%s762] %v771
      $region600: #{tpu_custom_call.1} parent=594 // loop_footer
        %s768 = sadd.s32 1, %s764
      $region601: #{tpu_custom_call.1} parent=594 // loop_footer_branch
        %763 = sbr.rel target = $region597
      $region602: #{tpu_custom_call.1} parent=594 // loop_exit
        _
    $region595: #{tpu_custom_call.1} parent=1 // pred_fallthru
      _
    // Predicated region
    $region614: #{tpu_custom_call.1} parent=1 // pred_check
      _
    $region615: #{tpu_custom_call.1} parent=1 // pred_check_branch
      %789 = sbr.rel (0) target = $region617
    $region616: #{tpu_custom_call.1} parent=1 // pred_region
      %790 = vsyncadd [#allocation3], 16
    $region617: #{tpu_custom_call.1} parent=1 // pred_fallthru
      _
    %s791 = sadd.s32 %s639, 4
    %s792 = sld [smem:[#allocation5 + %s791]]
    %s793 = scalar_lea.vmem %s1, %s792
    %s794 = scalar_lea.vmem [#allocation2], 20
    // Predicated region
    $region618: #{tpu_custom_call.1} parent=1 // pred_check
      _
    $region619: #{tpu_custom_call.1} parent=1 // pred_check_branch
      %796 = sbr.rel target = $region621
    $region620: #{tpu_custom_call.1} parent=1 // pred_region
      // Predicated region
      $region633: #{tpu_custom_call.1} parent=620 // pred_check
        _
      $region634: #{tpu_custom_call.1} parent=620 // pred_check_branch
        %812 = sbr.rel (0) target = $region636
      $region635: #{tpu_custom_call.1} parent=620 // pred_region
        %s814 = ssub.s32 2, 1
        loop: start=0, step=1, limit=1
        $region637: #{tpu_custom_call.1} parent=635 // loop_pre_header
          _
        $region638: #{tpu_custom_call.1} parent=635 // loop_header
          %s816 = sphi 0, %s820
          %p817 = scmp.ge.s32.totalorder %s816, 1
          %s821 = sphi %s793, %s793
          %s822 = sphi %s794, %s794
        $region639: #{tpu_custom_call.1} parent=635 // loop_header_branch
          %819 = sbr.rel (%p817) target = $region643
        $region640: #{tpu_custom_call.1} parent=635 // loop_body
          %v823 = vld [vmem:[%s821] sm:%s814]
          %824 = vst [vmem:[%s822] sm:%s814] %v823
        $region641: #{tpu_custom_call.1} parent=635 // loop_footer
          %s820 = sadd.s32 1, %s816
        $region642: #{tpu_custom_call.1} parent=635 // loop_footer_branch
          %815 = sbr.rel target = $region638
        $region643: #{tpu_custom_call.1} parent=635 // loop_exit
          _
      $region636: #{tpu_custom_call.1} parent=620 // pred_fallthru
        _
    $region621: #{tpu_custom_call.1} parent=1 // pred_fallthru
      _
    // Predicated region
    $region622: #{tpu_custom_call.1} parent=1 // pred_check
      _
    $region623: #{tpu_custom_call.1} parent=1 // pred_check_branch
      %798 = sbr.rel (0) target = $region625
    $region624: #{tpu_custom_call.1} parent=1 // pred_region
      %s800 = ssub.s32 2, 1
      loop: start=0, step=1, limit=1
      $region626: #{tpu_custom_call.1} parent=624 // loop_pre_header
        _
      $region627: #{tpu_custom_call.1} parent=624 // loop_header
        %s802 = sphi 0, %s806
        %p803 = scmp.ge.s32.totalorder %s802, 1
        %s807 = sphi %s793, %s793
        %s808 = sphi %s794, %s794
      $region628: #{tpu_custom_call.1} parent=624 // loop_header_branch
        %805 = sbr.rel (%p803) target = $region632
      $region629: #{tpu_custom_call.1} parent=624 // loop_body
        %v809 = vld [vmem:[%s807] sm:%s800]
        %810 = vst [vmem:[%s808] sm:%s800] %v809
      $region630: #{tpu_custom_call.1} parent=624 // loop_footer
        %s806 = sadd.s32 1, %s802
      $region631: #{tpu_custom_call.1} parent=624 // loop_footer_branch
        %801 = sbr.rel target = $region627
      $region632: #{tpu_custom_call.1} parent=624 // loop_exit
        _
    $region625: #{tpu_custom_call.1} parent=1 // pred_fallthru
      _
    // Predicated region
    $region644: #{tpu_custom_call.1} parent=1 // pred_check
      _
    $region645: #{tpu_custom_call.1} parent=1 // pred_check_branch
      %827 = sbr.rel (0) target = $region647
    $region646: #{tpu_custom_call.1} parent=1 // pred_region
      %828 = vsyncadd [#allocation3], 16
    $region647: #{tpu_custom_call.1} parent=1 // pred_fallthru
      _
    %s829 = sadd.s32 %s639, 5
    %s830 = sld [smem:[#allocation5 + %s829]]
    %s831 = scalar_lea.vmem %s1, %s830
    %s832 = scalar_lea.vmem [#allocation2], 21
    // Predicated region
    $region648: #{tpu_custom_call.1} parent=1 // pred_check
      _
    $region649: #{tpu_custom_call.1} parent=1 // pred_check_branch
      %834 = sbr.rel target = $region651
    $region650: #{tpu_custom_call.1} parent=1 // pred_region
      // Predicated region
      $region663: #{tpu_custom_call.1} parent=650 // pred_check
        _
      $region664: #{tpu_custom_call.1} parent=650 // pred_check_branch
        %850 = sbr.rel (0) target = $region666
      $region665: #{tpu_custom_call.1} parent=650 // pred_region
        %s852 = ssub.s32 2, 1
        loop: start=0, step=1, limit=1
        $region667: #{tpu_custom_call.1} parent=665 // loop_pre_header
          _
        $region668: #{tpu_custom_call.1} parent=665 // loop_header
          %s854 = sphi 0, %s858
          %p855 = scmp.ge.s32.totalorder %s854, 1
          %s859 = sphi %s831, %s831
          %s860 = sphi %s832, %s832
        $region669: #{tpu_custom_call.1} parent=665 // loop_header_branch
          %857 = sbr.rel (%p855) target = $region673
        $region670: #{tpu_custom_call.1} parent=665 // loop_body
          %v861 = vld [vmem:[%s859] sm:%s852]
          %862 = vst [vmem:[%s860] sm:%s852] %v861
        $region671: #{tpu_custom_call.1} parent=665 // loop_footer
          %s858 = sadd.s32 1, %s854
        $region672: #{tpu_custom_call.1} parent=665 // loop_footer_branch
          %853 = sbr.rel target = $region668
        $region673: #{tpu_custom_call.1} parent=665 // loop_exit
          _
      $region666: #{tpu_custom_call.1} parent=650 // pred_fallthru
        _
    $region651: #{tpu_custom_call.1} parent=1 // pred_fallthru
      _
    // Predicated region
    $region652: #{tpu_custom_call.1} parent=1 // pred_check
      _
    $region653: #{tpu_custom_call.1} parent=1 // pred_check_branch
      %836 = sbr.rel (0) target = $region655
    $region654: #{tpu_custom_call.1} parent=1 // pred_region
      %s838 = ssub.s32 2, 1
      loop: start=0, step=1, limit=1
      $region656: #{tpu_custom_call.1} parent=654 // loop_pre_header
        _
      $region657: #{tpu_custom_call.1} parent=654 // loop_header
        %s840 = sphi 0, %s844
        %p841 = scmp.ge.s32.totalorder %s840, 1
        %s845 = sphi %s831, %s831
        %s846 = sphi %s832, %s832
      $region658: #{tpu_custom_call.1} parent=654 // loop_header_branch
        %843 = sbr.rel (%p841) target = $region662
      $region659: #{tpu_custom_call.1} parent=654 // loop_body
        %v847 = vld [vmem:[%s845] sm:%s838]
        %848 = vst [vmem:[%s846] sm:%s838] %v847
      $region660: #{tpu_custom_call.1} parent=654 // loop_footer
        %s844 = sadd.s32 1, %s840
      $region661: #{tpu_custom_call.1} parent=654 // loop_footer_branch
        %839 = sbr.rel target = $region657
      $region662: #{tpu_custom_call.1} parent=654 // loop_exit
        _
    $region655: #{tpu_custom_call.1} parent=1 // pred_fallthru
      _
    // Predicated region
    $region674: #{tpu_custom_call.1} parent=1 // pred_check
      _
    $region675: #{tpu_custom_call.1} parent=1 // pred_check_branch
      %865 = sbr.rel (0) target = $region677
    $region676: #{tpu_custom_call.1} parent=1 // pred_region
      %866 = vsyncadd [#allocation3], 16
    $region677: #{tpu_custom_call.1} parent=1 // pred_fallthru
      _
    %s867 = sadd.s32 %s639, 6
    %s868 = sld [smem:[#allocation5 + %s867]]
    %s869 = scalar_lea.vmem %s1, %s868
    %s870 = scalar_lea.vmem [#allocation2], 22
    // Predicated region
    $region678: #{tpu_custom_call.1} parent=1 // pred_check
      _
    $region679: #{tpu_custom_call.1} parent=1 // pred_check_branch
      %872 = sbr.rel target = $region681
    $region680: #{tpu_custom_call.1} parent=1 // pred_region
      // Predicated region
      $region693: #{tpu_custom_call.1} parent=680 // pred_check
        _
      $region694: #{tpu_custom_call.1} parent=680 // pred_check_branch
        %888 = sbr.rel (0) target = $region696
      $region695: #{tpu_custom_call.1} parent=680 // pred_region
        %s890 = ssub.s32 2, 1
        loop: start=0, step=1, limit=1
        $region697: #{tpu_custom_call.1} parent=695 // loop_pre_header
          _
        $region698: #{tpu_custom_call.1} parent=695 // loop_header
          %s892 = sphi 0, %s896
          %p893 = scmp.ge.s32.totalorder %s892, 1
          %s897 = sphi %s869, %s869
          %s898 = sphi %s870, %s870
        $region699: #{tpu_custom_call.1} parent=695 // loop_header_branch
          %895 = sbr.rel (%p893) target = $region703
        $region700: #{tpu_custom_call.1} parent=695 // loop_body
          %v899 = vld [vmem:[%s897] sm:%s890]
          %900 = vst [vmem:[%s898] sm:%s890] %v899
        $region701: #{tpu_custom_call.1} parent=695 // loop_footer
          %s896 = sadd.s32 1, %s892
        $region702: #{tpu_custom_call.1} parent=695 // loop_footer_branch
          %891 = sbr.rel target = $region698
        $region703: #{tpu_custom_call.1} parent=695 // loop_exit
          _
      $region696: #{tpu_custom_call.1} parent=680 // pred_fallthru
        _
    $region681: #{tpu_custom_call.1} parent=1 // pred_fallthru
      _
    // Predicated region
    $region682: #{tpu_custom_call.1} parent=1 // pred_check
      _
    $region683: #{tpu_custom_call.1} parent=1 // pred_check_branch
      %874 = sbr.rel (0) target = $region685
    $region684: #{tpu_custom_call.1} parent=1 // pred_region
      %s876 = ssub.s32 2, 1
      loop: start=0, step=1, limit=1
      $region686: #{tpu_custom_call.1} parent=684 // loop_pre_header
        _
      $region687: #{tpu_custom_call.1} parent=684 // loop_header
        %s878 = sphi 0, %s882
        %p879 = scmp.ge.s32.totalorder %s878, 1
        %s883 = sphi %s869, %s869
        %s884 = sphi %s870, %s870
      $region688: #{tpu_custom_call.1} parent=684 // loop_header_branch
        %881 = sbr.rel (%p879) target = $region692
      $region689: #{tpu_custom_call.1} parent=684 // loop_body
        %v885 = vld [vmem:[%s883] sm:%s876]
        %886 = vst [vmem:[%s884] sm:%s876] %v885
      $region690: #{tpu_custom_call.1} parent=684 // loop_footer
        %s882 = sadd.s32 1, %s878
      $region691: #{tpu_custom_call.1} parent=684 // loop_footer_branch
        %877 = sbr.rel target = $region687
      $region692: #{tpu_custom_call.1} parent=684 // loop_exit
        _
    $region685: #{tpu_custom_call.1} parent=1 // pred_fallthru
      _
    // Predicated region
    $region704: #{tpu_custom_call.1} parent=1 // pred_check
      _
    $region705: #{tpu_custom_call.1} parent=1 // pred_check_branch
      %903 = sbr.rel (0) target = $region707
    $region706: #{tpu_custom_call.1} parent=1 // pred_region
      %904 = vsyncadd [#allocation3], 16
    $region707: #{tpu_custom_call.1} parent=1 // pred_fallthru
      _
    %s905 = sadd.s32 %s639, 7
    %s906 = sld [smem:[#allocation5 + %s905]]
    %s907 = scalar_lea.vmem %s1, %s906
    %s908 = scalar_lea.vmem [#allocation2], 23
    // Predicated region
    $region708: #{tpu_custom_call.1} parent=1 // pred_check
      _
    $region709: #{tpu_custom_call.1} parent=1 // pred_check_branch
      %910 = sbr.rel target = $region711
    $region710: #{tpu_custom_call.1} parent=1 // pred_region
      // Predicated region
      $region723: #{tpu_custom_call.1} parent=710 // pred_check
        _
      $region724: #{tpu_custom_call.1} parent=710 // pred_check_branch
        %926 = sbr.rel (0) target = $region726
      $region725: #{tpu_custom_call.1} parent=710 // pred_region
        %s928 = ssub.s32 2, 1
        loop: start=0, step=1, limit=1
        $region727: #{tpu_custom_call.1} parent=725 // loop_pre_header
          _
        $region728: #{tpu_custom_call.1} parent=725 // loop_header
          %s930 = sphi 0, %s934
          %p931 = scmp.ge.s32.totalorder %s930, 1
          %s935 = sphi %s907, %s907
          %s936 = sphi %s908, %s908
        $region729: #{tpu_custom_call.1} parent=725 // loop_header_branch
          %933 = sbr.rel (%p931) target = $region733
        $region730: #{tpu_custom_call.1} parent=725 // loop_body
          %v937 = vld [vmem:[%s935] sm:%s928]
          %938 = vst [vmem:[%s936] sm:%s928] %v937
        $region731: #{tpu_custom_call.1} parent=725 // loop_footer
          %s934 = sadd.s32 1, %s930
        $region732: #{tpu_custom_call.1} parent=725 // loop_footer_branch
          %929 = sbr.rel target = $region728
        $region733: #{tpu_custom_call.1} parent=725 // loop_exit
          _
      $region726: #{tpu_custom_call.1} parent=710 // pred_fallthru
        _
    $region711: #{tpu_custom_call.1} parent=1 // pred_fallthru
      _
    // Predicated region
    $region712: #{tpu_custom_call.1} parent=1 // pred_check
      _
    $region713: #{tpu_custom_call.1} parent=1 // pred_check_branch
      %912 = sbr.rel (0) target = $region715
    $region714: #{tpu_custom_call.1} parent=1 // pred_region
      %s914 = ssub.s32 2, 1
      loop: start=0, step=1, limit=1
      $region716: #{tpu_custom_call.1} parent=714 // loop_pre_header
        _
      $region717: #{tpu_custom_call.1} parent=714 // loop_header
        %s916 = sphi 0, %s920
        %p917 = scmp.ge.s32.totalorder %s916, 1
        %s921 = sphi %s907, %s907
        %s922 = sphi %s908, %s908
      $region718: #{tpu_custom_call.1} parent=714 // loop_header_branch
        %919 = sbr.rel (%p917) target = $region722
      $region719: #{tpu_custom_call.1} parent=714 // loop_body
        %v923 = vld [vmem:[%s921] sm:%s914]
        %924 = vst [vmem:[%s922] sm:%s914] %v923
      $region720: #{tpu_custom_call.1} parent=714 // loop_footer
        %s920 = sadd.s32 1, %s916
      $region721: #{tpu_custom_call.1} parent=714 // loop_footer_branch
        %915 = sbr.rel target = $region717
      $region722: #{tpu_custom_call.1} parent=714 // loop_exit
        _
    $region715: #{tpu_custom_call.1} parent=1 // pred_fallthru
      _
    // Predicated region
    $region734: #{tpu_custom_call.1} parent=1 // pred_check
      _
    $region735: #{tpu_custom_call.1} parent=1 // pred_check_branch
      %941 = sbr.rel (0) target = $region737
    $region736: #{tpu_custom_call.1} parent=1 // pred_region
      %942 = vsyncadd [#allocation3], 16
    $region737: #{tpu_custom_call.1} parent=1 // pred_fallthru
      _
    %s943 = sadd.s32 %s29, 3
    %s944 = smul.u32 %s943, 128
    %s945 = sld [smem:[#allocation5 + %s944]]
    %s946 = scalar_lea.vmem %s1, %s945
    %s947 = scalar_lea.vmem [#allocation2], 24
    // Predicated region
    $region738: #{tpu_custom_call.1} parent=1 // pred_check
      _
    $region739: #{tpu_custom_call.1} parent=1 // pred_check_branch
      %949 = sbr.rel target = $region741
    $region740: #{tpu_custom_call.1} parent=1 // pred_region
      // Predicated region
      $region753: #{tpu_custom_call.1} parent=740 // pred_check
        _
      $region754: #{tpu_custom_call.1} parent=740 // pred_check_branch
        %965 = sbr.rel (0) target = $region756
      $region755: #{tpu_custom_call.1} parent=740 // pred_region
        %s967 = ssub.s32 2, 1
        loop: start=0, step=1, limit=1
        $region757: #{tpu_custom_call.1} parent=755 // loop_pre_header
          _
        $region758: #{tpu_custom_call.1} parent=755 // loop_header
          %s969 = sphi 0, %s973
          %p970 = scmp.ge.s32.totalorder %s969, 1
          %s974 = sphi %s946, %s946
          %s975 = sphi %s947, %s947
        $region759: #{tpu_custom_call.1} parent=755 // loop_header_branch
          %972 = sbr.rel (%p970) target = $region763
        $region760: #{tpu_custom_call.1} parent=755 // loop_body
          %v976 = vld [vmem:[%s974] sm:%s967]
          %977 = vst [vmem:[%s975] sm:%s967] %v976
        $region761: #{tpu_custom_call.1} parent=755 // loop_footer
          %s973 = sadd.s32 1, %s969
        $region762: #{tpu_custom_call.1} parent=755 // loop_footer_branch
          %968 = sbr.rel target = $region758
        $region763: #{tpu_custom_call.1} parent=755 // loop_exit
          _
      $region756: #{tpu_custom_call.1} parent=740 // pred_fallthru
        _
    $region741: #{tpu_custom_call.1} parent=1 // pred_fallthru
      _
    // Predicated region
    $region742: #{tpu_custom_call.1} parent=1 // pred_check
      _
    $region743: #{tpu_custom_call.1} parent=1 // pred_check_branch
      %951 = sbr.rel (0) target = $region745
    $region744: #{tpu_custom_call.1} parent=1 // pred_region
      %s953 = ssub.s32 2, 1
      loop: start=0, step=1, limit=1
      $region746: #{tpu_custom_call.1} parent=744 // loop_pre_header
        _
      $region747: #{tpu_custom_call.1} parent=744 // loop_header
        %s955 = sphi 0, %s959
        %p956 = scmp.ge.s32.totalorder %s955, 1
        %s960 = sphi %s946, %s946
        %s961 = sphi %s947, %s947
      $region748: #{tpu_custom_call.1} parent=744 // loop_header_branch
        %958 = sbr.rel (%p956) target = $region752
      $region749: #{tpu_custom_call.1} parent=744 // loop_body
        %v962 = vld [vmem:[%s960] sm:%s953]
        %963 = vst [vmem:[%s961] sm:%s953] %v962
      $region750: #{tpu_custom_call.1} parent=744 // loop_footer
        %s959 = sadd.s32 1, %s955
      $region751: #{tpu_custom_call.1} parent=744 // loop_footer_branch
        %954 = sbr.rel target = $region747
      $region752: #{tpu_custom_call.1} parent=744 // loop_exit
        _
    $region745: #{tpu_custom_call.1} parent=1 // pred_fallthru
      _
    // Predicated region
    $region764: #{tpu_custom_call.1} parent=1 // pred_check
      _
    $region765: #{tpu_custom_call.1} parent=1 // pred_check_branch
      %980 = sbr.rel (0) target = $region767
    $region766: #{tpu_custom_call.1} parent=1 // pred_region
      %981 = vsyncadd [#allocation3], 16
    $region767: #{tpu_custom_call.1} parent=1 // pred_fallthru
      _
    %s982 = sadd.s32 %s944, 1
    %s983 = sld [smem:[#allocation5 + %s982]]
    %s984 = scalar_lea.vmem %s1, %s983
    %s985 = scalar_lea.vmem [#allocation2], 25
    // Predicated region
    $region768: #{tpu_custom_call.1} parent=1 // pred_check
      _
    $region769: #{tpu_custom_call.1} parent=1 // pred_check_branch
      %987 = sbr.rel target = $region771
    $region770: #{tpu_custom_call.1} parent=1 // pred_region
      // Predicated region
      $region783: #{tpu_custom_call.1} parent=770 // pred_check
        _
      $region784: #{tpu_custom_call.1} parent=770 // pred_check_branch
        %1003 = sbr.rel (0) target = $region786
      $region785: #{tpu_custom_call.1} parent=770 // pred_region
        %s1005 = ssub.s32 2, 1
        loop: start=0, step=1, limit=1
        $region787: #{tpu_custom_call.1} parent=785 // loop_pre_header
          _
        $region788: #{tpu_custom_call.1} parent=785 // loop_header
          %s1007 = sphi 0, %s1011
          %p1008 = scmp.ge.s32.totalorder %s1007, 1
          %s1012 = sphi %s984, %s984
          %s1013 = sphi %s985, %s985
        $region789: #{tpu_custom_call.1} parent=785 // loop_header_branch
          %1010 = sbr.rel (%p1008) target = $region793
        $region790: #{tpu_custom_call.1} parent=785 // loop_body
          %v1014 = vld [vmem:[%s1012] sm:%s1005]
          %1015 = vst [vmem:[%s1013] sm:%s1005] %v1014
        $region791: #{tpu_custom_call.1} parent=785 // loop_footer
          %s1011 = sadd.s32 1, %s1007
        $region792: #{tpu_custom_call.1} parent=785 // loop_footer_branch
          %1006 = sbr.rel target = $region788
        $region793: #{tpu_custom_call.1} parent=785 // loop_exit
          _
      $region786: #{tpu_custom_call.1} parent=770 // pred_fallthru
        _
    $region771: #{tpu_custom_call.1} parent=1 // pred_fallthru
      _
    // Predicated region
    $region772: #{tpu_custom_call.1} parent=1 // pred_check
      _
    $region773: #{tpu_custom_call.1} parent=1 // pred_check_branch
      %989 = sbr.rel (0) target = $region775
    $region774: #{tpu_custom_call.1} parent=1 // pred_region
      %s991 = ssub.s32 2, 1
      loop: start=0, step=1, limit=1
      $region776: #{tpu_custom_call.1} parent=774 // loop_pre_header
        _
      $region777: #{tpu_custom_call.1} parent=774 // loop_header
        %s993 = sphi 0, %s997
        %p994 = scmp.ge.s32.totalorder %s993, 1
        %s998 = sphi %s984, %s984
        %s999 = sphi %s985, %s985
      $region778: #{tpu_custom_call.1} parent=774 // loop_header_branch
        %996 = sbr.rel (%p994) target = $region782
      $region779: #{tpu_custom_call.1} parent=774 // loop_body
        %v1000 = vld [vmem:[%s998] sm:%s991]
        %1001 = vst [vmem:[%s999] sm:%s991] %v1000
      $region780: #{tpu_custom_call.1} parent=774 // loop_footer
        %s997 = sadd.s32 1, %s993
      $region781: #{tpu_custom_call.1} parent=774 // loop_footer_branch
        %992 = sbr.rel target = $region777
      $region782: #{tpu_custom_call.1} parent=774 // loop_exit
        _
    $region775: #{tpu_custom_call.1} parent=1 // pred_fallthru
      _
    // Predicated region
    $region794: #{tpu_custom_call.1} parent=1 // pred_check
      _
    $region795: #{tpu_custom_call.1} parent=1 // pred_check_branch
      %1018 = sbr.rel (0) target = $region797
    $region796: #{tpu_custom_call.1} parent=1 // pred_region
      %1019 = vsyncadd [#allocation3], 16
    $region797: #{tpu_custom_call.1} parent=1 // pred_fallthru
      _
    %s1020 = sadd.s32 %s944, 2
    %s1021 = sld [smem:[#allocation5 + %s1020]]
    %s1022 = scalar_lea.vmem %s1, %s1021
    %s1023 = scalar_lea.vmem [#allocation2], 26
    // Predicated region
    $region798: #{tpu_custom_call.1} parent=1 // pred_check
      _
    $region799: #{tpu_custom_call.1} parent=1 // pred_check_branch
      %1025 = sbr.rel target = $region801
    $region800: #{tpu_custom_call.1} parent=1 // pred_region
      // Predicated region
      $region813: #{tpu_custom_call.1} parent=800 // pred_check
        _
      $region814: #{tpu_custom_call.1} parent=800 // pred_check_branch
        %1041 = sbr.rel (0) target = $region816
      $region815: #{tpu_custom_call.1} parent=800 // pred_region
        %s1043 = ssub.s32 2, 1
        loop: start=0, step=1, limit=1
        $region817: #{tpu_custom_call.1} parent=815 // loop_pre_header
          _
        $region818: #{tpu_custom_call.1} parent=815 // loop_header
          %s1045 = sphi 0, %s1049
          %p1046 = scmp.ge.s32.totalorder %s1045, 1
          %s1050 = sphi %s1022, %s1022
          %s1051 = sphi %s1023, %s1023
        $region819: #{tpu_custom_call.1} parent=815 // loop_header_branch
          %1048 = sbr.rel (%p1046) target = $region823
        $region820: #{tpu_custom_call.1} parent=815 // loop_body
          %v1052 = vld [vmem:[%s1050] sm:%s1043]
          %1053 = vst [vmem:[%s1051] sm:%s1043] %v1052
        $region821: #{tpu_custom_call.1} parent=815 // loop_footer
          %s1049 = sadd.s32 1, %s1045
        $region822: #{tpu_custom_call.1} parent=815 // loop_footer_branch
          %1044 = sbr.rel target = $region818
        $region823: #{tpu_custom_call.1} parent=815 // loop_exit
          _
      $region816: #{tpu_custom_call.1} parent=800 // pred_fallthru
        _
    $region801: #{tpu_custom_call.1} parent=1 // pred_fallthru
      _
    // Predicated region
    $region802: #{tpu_custom_call.1} parent=1 // pred_check
      _
    $region803: #{tpu_custom_call.1} parent=1 // pred_check_branch
      %1027 = sbr.rel (0) target = $region805
    $region804: #{tpu_custom_call.1} parent=1 // pred_region
      %s1029 = ssub.s32 2, 1
      loop: start=0, step=1, limit=1
      $region806: #{tpu_custom_call.1} parent=804 // loop_pre_header
        _
      $region807: #{tpu_custom_call.1} parent=804 // loop_header
        %s1031 = sphi 0, %s1035
        %p1032 = scmp.ge.s32.totalorder %s1031, 1
        %s1036 = sphi %s1022, %s1022
        %s1037 = sphi %s1023, %s1023
      $region808: #{tpu_custom_call.1} parent=804 // loop_header_branch
        %1034 = sbr.rel (%p1032) target = $region812
      $region809: #{tpu_custom_call.1} parent=804 // loop_body
        %v1038 = vld [vmem:[%s1036] sm:%s1029]
        %1039 = vst [vmem:[%s1037] sm:%s1029] %v1038
      $region810: #{tpu_custom_call.1} parent=804 // loop_footer
        %s1035 = sadd.s32 1, %s1031
      $region811: #{tpu_custom_call.1} parent=804 // loop_footer_branch
        %1030 = sbr.rel target = $region807
      $region812: #{tpu_custom_call.1} parent=804 // loop_exit
        _
    $region805: #{tpu_custom_call.1} parent=1 // pred_fallthru
      _
    // Predicated region
    $region824: #{tpu_custom_call.1} parent=1 // pred_check
      _
    $region825: #{tpu_custom_call.1} parent=1 // pred_check_branch
      %1056 = sbr.rel (0) target = $region827
    $region826: #{tpu_custom_call.1} parent=1 // pred_region
      %1057 = vsyncadd [#allocation3], 16
    $region827: #{tpu_custom_call.1} parent=1 // pred_fallthru
      _
    %s1058 = sadd.s32 %s944, 3
    %s1059 = sld [smem:[#allocation5 + %s1058]]
    %s1060 = scalar_lea.vmem %s1, %s1059
    %s1061 = scalar_lea.vmem [#allocation2], 27
    // Predicated region
    $region828: #{tpu_custom_call.1} parent=1 // pred_check
      _
    $region829: #{tpu_custom_call.1} parent=1 // pred_check_branch
      %1063 = sbr.rel target = $region831
    $region830: #{tpu_custom_call.1} parent=1 // pred_region
      // Predicated region
      $region843: #{tpu_custom_call.1} parent=830 // pred_check
        _
      $region844: #{tpu_custom_call.1} parent=830 // pred_check_branch
        %1079 = sbr.rel (0) target = $region846
      $region845: #{tpu_custom_call.1} parent=830 // pred_region
        %s1081 = ssub.s32 2, 1
        loop: start=0, step=1, limit=1
        $region847: #{tpu_custom_call.1} parent=845 // loop_pre_header
          _
        $region848: #{tpu_custom_call.1} parent=845 // loop_header
          %s1083 = sphi 0, %s1087
          %p1084 = scmp.ge.s32.totalorder %s1083, 1
          %s1088 = sphi %s1060, %s1060
          %s1089 = sphi %s1061, %s1061
        $region849: #{tpu_custom_call.1} parent=845 // loop_header_branch
          %1086 = sbr.rel (%p1084) target = $region853
        $region850: #{tpu_custom_call.1} parent=845 // loop_body
          %v1090 = vld [vmem:[%s1088] sm:%s1081]
          %1091 = vst [vmem:[%s1089] sm:%s1081] %v1090
        $region851: #{tpu_custom_call.1} parent=845 // loop_footer
          %s1087 = sadd.s32 1, %s1083
        $region852: #{tpu_custom_call.1} parent=845 // loop_footer_branch
          %1082 = sbr.rel target = $region848
        $region853: #{tpu_custom_call.1} parent=845 // loop_exit
          _
      $region846: #{tpu_custom_call.1} parent=830 // pred_fallthru
        _
    $region831: #{tpu_custom_call.1} parent=1 // pred_fallthru
      _
    // Predicated region
    $region832: #{tpu_custom_call.1} parent=1 // pred_check
      _
    $region833: #{tpu_custom_call.1} parent=1 // pred_check_branch
      %1065 = sbr.rel (0) target = $region835
    $region834: #{tpu_custom_call.1} parent=1 // pred_region
      %s1067 = ssub.s32 2, 1
      loop: start=0, step=1, limit=1
      $region836: #{tpu_custom_call.1} parent=834 // loop_pre_header
        _
      $region837: #{tpu_custom_call.1} parent=834 // loop_header
        %s1069 = sphi 0, %s1073
        %p1070 = scmp.ge.s32.totalorder %s1069, 1
        %s1074 = sphi %s1060, %s1060
        %s1075 = sphi %s1061, %s1061
      $region838: #{tpu_custom_call.1} parent=834 // loop_header_branch
        %1072 = sbr.rel (%p1070) target = $region842
      $region839: #{tpu_custom_call.1} parent=834 // loop_body
        %v1076 = vld [vmem:[%s1074] sm:%s1067]
        %1077 = vst [vmem:[%s1075] sm:%s1067] %v1076
      $region840: #{tpu_custom_call.1} parent=834 // loop_footer
        %s1073 = sadd.s32 1, %s1069
      $region841: #{tpu_custom_call.1} parent=834 // loop_footer_branch
        %1068 = sbr.rel target = $region837
      $region842: #{tpu_custom_call.1} parent=834 // loop_exit
        _
    $region835: #{tpu_custom_call.1} parent=1 // pred_fallthru
      _
    // Predicated region
    $region854: #{tpu_custom_call.1} parent=1 // pred_check
      _
    $region855: #{tpu_custom_call.1} parent=1 // pred_check_branch
      %1094 = sbr.rel (0) target = $region857
    $region856: #{tpu_custom_call.1} parent=1 // pred_region
      %1095 = vsyncadd [#allocation3], 16
    $region857: #{tpu_custom_call.1} parent=1 // pred_fallthru
      _
    %s1096 = sadd.s32 %s944, 4
    %s1097 = sld [smem:[#allocation5 + %s1096]]
    %s1098 = scalar_lea.vmem %s1, %s1097
    %s1099 = scalar_lea.vmem [#allocation2], 28
    // Predicated region
    $region858: #{tpu_custom_call.1} parent=1 // pred_check
      _
    $region859: #{tpu_custom_call.1} parent=1 // pred_check_branch
      %1101 = sbr.rel target = $region861
    $region860: #{tpu_custom_call.1} parent=1 // pred_region
      // Predicated region
      $region873: #{tpu_custom_call.1} parent=860 // pred_check
        _
      $region874: #{tpu_custom_call.1} parent=860 // pred_check_branch
        %1117 = sbr.rel (0) target = $region876
      $region875: #{tpu_custom_call.1} parent=860 // pred_region
        %s1119 = ssub.s32 2, 1
        loop: start=0, step=1, limit=1
        $region877: #{tpu_custom_call.1} parent=875 // loop_pre_header
          _
        $region878: #{tpu_custom_call.1} parent=875 // loop_header
          %s1121 = sphi 0, %s1125
          %p1122 = scmp.ge.s32.totalorder %s1121, 1
          %s1126 = sphi %s1098, %s1098
          %s1127 = sphi %s1099, %s1099
        $region879: #{tpu_custom_call.1} parent=875 // loop_header_branch
          %1124 = sbr.rel (%p1122) target = $region883
        $region880: #{tpu_custom_call.1} parent=875 // loop_body
          %v1128 = vld [vmem:[%s1126] sm:%s1119]
          %1129 = vst [vmem:[%s1127] sm:%s1119] %v1128
        $region881: #{tpu_custom_call.1} parent=875 // loop_footer
          %s1125 = sadd.s32 1, %s1121
        $region882: #{tpu_custom_call.1} parent=875 // loop_footer_branch
          %1120 = sbr.rel target = $region878
        $region883: #{tpu_custom_call.1} parent=875 // loop_exit
          _
      $region876: #{tpu_custom_call.1} parent=860 // pred_fallthru
        _
    $region861: #{tpu_custom_call.1} parent=1 // pred_fallthru
      _
    // Predicated region
    $region862: #{tpu_custom_call.1} parent=1 // pred_check
      _
    $region863: #{tpu_custom_call.1} parent=1 // pred_check_branch
      %1103 = sbr.rel (0) target = $region865
    $region864: #{tpu_custom_call.1} parent=1 // pred_region
      %s1105 = ssub.s32 2, 1
      loop: start=0, step=1, limit=1
      $region866: #{tpu_custom_call.1} parent=864 // loop_pre_header
        _
      $region867: #{tpu_custom_call.1} parent=864 // loop_header
        %s1107 = sphi 0, %s1111
        %p1108 = scmp.ge.s32.totalorder %s1107, 1
        %s1112 = sphi %s1098, %s1098
        %s1113 = sphi %s1099, %s1099
      $region868: #{tpu_custom_call.1} parent=864 // loop_header_branch
        %1110 = sbr.rel (%p1108) target = $region872
      $region869: #{tpu_custom_call.1} parent=864 // loop_body
        %v1114 = vld [vmem:[%s1112] sm:%s1105]
        %1115 = vst [vmem:[%s1113] sm:%s1105] %v1114
      $region870: #{tpu_custom_call.1} parent=864 // loop_footer
        %s1111 = sadd.s32 1, %s1107
      $region871: #{tpu_custom_call.1} parent=864 // loop_footer_branch
        %1106 = sbr.rel target = $region867
      $region872: #{tpu_custom_call.1} parent=864 // loop_exit
        _
    $region865: #{tpu_custom_call.1} parent=1 // pred_fallthru
      _
    // Predicated region
    $region884: #{tpu_custom_call.1} parent=1 // pred_check
      _
    $region885: #{tpu_custom_call.1} parent=1 // pred_check_branch
      %1132 = sbr.rel (0) target = $region887
    $region886: #{tpu_custom_call.1} parent=1 // pred_region
      %1133 = vsyncadd [#allocation3], 16
    $region887: #{tpu_custom_call.1} parent=1 // pred_fallthru
      _
    %s1134 = sadd.s32 %s944, 5
    %s1135 = sld [smem:[#allocation5 + %s1134]]
    %s1136 = scalar_lea.vmem %s1, %s1135
    %s1137 = scalar_lea.vmem [#allocation2], 29
    // Predicated region
    $region888: #{tpu_custom_call.1} parent=1 // pred_check
      _
    $region889: #{tpu_custom_call.1} parent=1 // pred_check_branch
      %1139 = sbr.rel target = $region891
    $region890: #{tpu_custom_call.1} parent=1 // pred_region
      // Predicated region
      $region903: #{tpu_custom_call.1} parent=890 // pred_check
        _
      $region904: #{tpu_custom_call.1} parent=890 // pred_check_branch
        %1155 = sbr.rel (0) target = $region906
      $region905: #{tpu_custom_call.1} parent=890 // pred_region
        %s1157 = ssub.s32 2, 1
        loop: start=0, step=1, limit=1
        $region907: #{tpu_custom_call.1} parent=905 // loop_pre_header
          _
        $region908: #{tpu_custom_call.1} parent=905 // loop_header
          %s1159 = sphi 0, %s1163
          %p1160 = scmp.ge.s32.totalorder %s1159, 1
          %s1164 = sphi %s1136, %s1136
          %s1165 = sphi %s1137, %s1137
        $region909: #{tpu_custom_call.1} parent=905 // loop_header_branch
          %1162 = sbr.rel (%p1160) target = $region913
        $region910: #{tpu_custom_call.1} parent=905 // loop_body
          %v1166 = vld [vmem:[%s1164] sm:%s1157]
          %1167 = vst [vmem:[%s1165] sm:%s1157] %v1166
        $region911: #{tpu_custom_call.1} parent=905 // loop_footer
          %s1163 = sadd.s32 1, %s1159
        $region912: #{tpu_custom_call.1} parent=905 // loop_footer_branch
          %1158 = sbr.rel target = $region908
        $region913: #{tpu_custom_call.1} parent=905 // loop_exit
          _
      $region906: #{tpu_custom_call.1} parent=890 // pred_fallthru
        _
    $region891: #{tpu_custom_call.1} parent=1 // pred_fallthru
      _
    // Predicated region
    $region892: #{tpu_custom_call.1} parent=1 // pred_check
      _
    $region893: #{tpu_custom_call.1} parent=1 // pred_check_branch
      %1141 = sbr.rel (0) target = $region895
    $region894: #{tpu_custom_call.1} parent=1 // pred_region
      %s1143 = ssub.s32 2, 1
      loop: start=0, step=1, limit=1
      $region896: #{tpu_custom_call.1} parent=894 // loop_pre_header
        _
      $region897: #{tpu_custom_call.1} parent=894 // loop_header
        %s1145 = sphi 0, %s1149
        %p1146 = scmp.ge.s32.totalorder %s1145, 1
        %s1150 = sphi %s1136, %s1136
        %s1151 = sphi %s1137, %s1137
      $region898: #{tpu_custom_call.1} parent=894 // loop_header_branch
        %1148 = sbr.rel (%p1146) target = $region902
      $region899: #{tpu_custom_call.1} parent=894 // loop_body
        %v1152 = vld [vmem:[%s1150] sm:%s1143]
        %1153 = vst [vmem:[%s1151] sm:%s1143] %v1152
      $region900: #{tpu_custom_call.1} parent=894 // loop_footer
        %s1149 = sadd.s32 1, %s1145
      $region901: #{tpu_custom_call.1} parent=894 // loop_footer_branch
        %1144 = sbr.rel target = $region897
      $region902: #{tpu_custom_call.1} parent=894 // loop_exit
        _
    $region895: #{tpu_custom_call.1} parent=1 // pred_fallthru
      _
    // Predicated region
    $region914: #{tpu_custom_call.1} parent=1 // pred_check
      _
    $region915: #{tpu_custom_call.1} parent=1 // pred_check_branch
      %1170 = sbr.rel (0) target = $region917
    $region916: #{tpu_custom_call.1} parent=1 // pred_region
      %1171 = vsyncadd [#allocation3], 16
    $region917: #{tpu_custom_call.1} parent=1 // pred_fallthru
      _
    %s1172 = sadd.s32 %s944, 6
    %s1173 = sld [smem:[#allocation5 + %s1172]]
    %s1174 = scalar_lea.vmem %s1, %s1173
    %s1175 = scalar_lea.vmem [#allocation2], 30
    // Predicated region
    $region918: #{tpu_custom_call.1} parent=1 // pred_check
      _
    $region919: #{tpu_custom_call.1} parent=1 // pred_check_branch
      %1177 = sbr.rel target = $region921
    $region920: #{tpu_custom_call.1} parent=1 // pred_region
      // Predicated region
      $region933: #{tpu_custom_call.1} parent=920 // pred_check
        _
      $region934: #{tpu_custom_call.1} parent=920 // pred_check_branch
        %1193 = sbr.rel (0) target = $region936
      $region935: #{tpu_custom_call.1} parent=920 // pred_region
        %s1195 = ssub.s32 2, 1
        loop: start=0, step=1, limit=1
        $region937: #{tpu_custom_call.1} parent=935 // loop_pre_header
          _
        $region938: #{tpu_custom_call.1} parent=935 // loop_header
          %s1197 = sphi 0, %s1201
          %p1198 = scmp.ge.s32.totalorder %s1197, 1
          %s1202 = sphi %s1174, %s1174
          %s1203 = sphi %s1175, %s1175
        $region939: #{tpu_custom_call.1} parent=935 // loop_header_branch
          %1200 = sbr.rel (%p1198) target = $region943
        $region940: #{tpu_custom_call.1} parent=935 // loop_body
          %v1204 = vld [vmem:[%s1202] sm:%s1195]
          %1205 = vst [vmem:[%s1203] sm:%s1195] %v1204
        $region941: #{tpu_custom_call.1} parent=935 // loop_footer
          %s1201 = sadd.s32 1, %s1197
        $region942: #{tpu_custom_call.1} parent=935 // loop_footer_branch
          %1196 = sbr.rel target = $region938
        $region943: #{tpu_custom_call.1} parent=935 // loop_exit
          _
      $region936: #{tpu_custom_call.1} parent=920 // pred_fallthru
        _
    $region921: #{tpu_custom_call.1} parent=1 // pred_fallthru
      _
    // Predicated region
    $region922: #{tpu_custom_call.1} parent=1 // pred_check
      _
    $region923: #{tpu_custom_call.1} parent=1 // pred_check_branch
      %1179 = sbr.rel (0) target = $region925
    $region924: #{tpu_custom_call.1} parent=1 // pred_region
      %s1181 = ssub.s32 2, 1
      loop: start=0, step=1, limit=1
      $region926: #{tpu_custom_call.1} parent=924 // loop_pre_header
        _
      $region927: #{tpu_custom_call.1} parent=924 // loop_header
        %s1183 = sphi 0, %s1187
        %p1184 = scmp.ge.s32.totalorder %s1183, 1
        %s1188 = sphi %s1174, %s1174
        %s1189 = sphi %s1175, %s1175
      $region928: #{tpu_custom_call.1} parent=924 // loop_header_branch
        %1186 = sbr.rel (%p1184) target = $region932
      $region929: #{tpu_custom_call.1} parent=924 // loop_body
        %v1190 = vld [vmem:[%s1188] sm:%s1181]
        %1191 = vst [vmem:[%s1189] sm:%s1181] %v1190
      $region930: #{tpu_custom_call.1} parent=924 // loop_footer
        %s1187 = sadd.s32 1, %s1183
      $region931: #{tpu_custom_call.1} parent=924 // loop_footer_branch
        %1182 = sbr.rel target = $region927
      $region932: #{tpu_custom_call.1} parent=924 // loop_exit
        _
    $region925: #{tpu_custom_call.1} parent=1 // pred_fallthru
      _
    // Predicated region
    $region944: #{tpu_custom_call.1} parent=1 // pred_check
      _
    $region945: #{tpu_custom_call.1} parent=1 // pred_check_branch
      %1208 = sbr.rel (0) target = $region947
    $region946: #{tpu_custom_call.1} parent=1 // pred_region
      %1209 = vsyncadd [#allocation3], 16
    $region947: #{tpu_custom_call.1} parent=1 // pred_fallthru
      _
    %s1210 = sadd.s32 %s944, 7
    %s1211 = sld [smem:[#allocation5 + %s1210]]
    %s1212 = scalar_lea.vmem %s1, %s1211
    %s1213 = scalar_lea.vmem [#allocation2], 31
    // Predicated region
    $region948: #{tpu_custom_call.1} parent=1 // pred_check
      _
    $region949: #{tpu_custom_call.1} parent=1 // pred_check_branch
      %1215 = sbr.rel target = $region951
    $region950: #{tpu_custom_call.1} parent=1 // pred_region
      // Predicated region
      $region963: #{tpu_custom_call.1} parent=950 // pred_check
        _
      $region964: #{tpu_custom_call.1} parent=950 // pred_check_branch
        %1231 = sbr.rel (0) target = $region966
      $region965: #{tpu_custom_call.1} parent=950 // pred_region
        %s1233 = ssub.s32 2, 1
        loop: start=0, step=1, limit=1
        $region967: #{tpu_custom_call.1} parent=965 // loop_pre_header
          _
        $region968: #{tpu_custom_call.1} parent=965 // loop_header
          %s1235 = sphi 0, %s1239
          %p1236 = scmp.ge.s32.totalorder %s1235, 1
          %s1240 = sphi %s1212, %s1212
          %s1241 = sphi %s1213, %s1213
        $region969: #{tpu_custom_call.1} parent=965 // loop_header_branch
          %1238 = sbr.rel (%p1236) target = $region973
        $region970: #{tpu_custom_call.1} parent=965 // loop_body
          %v1242 = vld [vmem:[%s1240] sm:%s1233]
          %1243 = vst [vmem:[%s1241] sm:%s1233] %v1242
        $region971: #{tpu_custom_call.1} parent=965 // loop_footer
          %s1239 = sadd.s32 1, %s1235
        $region972: #{tpu_custom_call.1} parent=965 // loop_footer_branch
          %1234 = sbr.rel target = $region968
        $region973: #{tpu_custom_call.1} parent=965 // loop_exit
          _
      $region966: #{tpu_custom_call.1} parent=950 // pred_fallthru
        _
    $region951: #{tpu_custom_call.1} parent=1 // pred_fallthru
      _
    // Predicated region
    $region952: #{tpu_custom_call.1} parent=1 // pred_check
      _
    $region953: #{tpu_custom_call.1} parent=1 // pred_check_branch
      %1217 = sbr.rel (0) target = $region955
    $region954: #{tpu_custom_call.1} parent=1 // pred_region
      %s1219 = ssub.s32 2, 1
      loop: start=0, step=1, limit=1
      $region956: #{tpu_custom_call.1} parent=954 // loop_pre_header
        _
      $region957: #{tpu_custom_call.1} parent=954 // loop_header
        %s1221 = sphi 0, %s1225
        %p1222 = scmp.ge.s32.totalorder %s1221, 1
        %s1226 = sphi %s1212, %s1212
        %s1227 = sphi %s1213, %s1213
      $region958: #{tpu_custom_call.1} parent=954 // loop_header_branch
        %1224 = sbr.rel (%p1222) target = $region962
      $region959: #{tpu_custom_call.1} parent=954 // loop_body
        %v1228 = vld [vmem:[%s1226] sm:%s1219]
        %1229 = vst [vmem:[%s1227] sm:%s1219] %v1228
      $region960: #{tpu_custom_call.1} parent=954 // loop_footer
        %s1225 = sadd.s32 1, %s1221
      $region961: #{tpu_custom_call.1} parent=954 // loop_footer_branch
        %1220 = sbr.rel target = $region957
      $region962: #{tpu_custom_call.1} parent=954 // loop_exit
        _
    $region955: #{tpu_custom_call.1} parent=1 // pred_fallthru
      _
    // Predicated region
    $region974: #{tpu_custom_call.1} parent=1 // pred_check
      _
    $region975: #{tpu_custom_call.1} parent=1 // pred_check_branch
      %1246 = sbr.rel (0) target = $region977
    $region976: #{tpu_custom_call.1} parent=1 // pred_region
      %1247 = vsyncadd [#allocation3], 16
    $region977: #{tpu_custom_call.1} parent=1 // pred_fallthru
      _
    %s1248 = sadd.s32 %s29, 4
    %s1249 = smul.u32 %s1248, 128
    %s1250 = sld [smem:[#allocation5 + %s1249]]
    %s1251 = scalar_lea.vmem %s1, %s1250
    %s1252 = scalar_lea.vmem [#allocation2], 32
    // Predicated region
    $region978: #{tpu_custom_call.1} parent=1 // pred_check
      _
    $region979: #{tpu_custom_call.1} parent=1 // pred_check_branch
      %1254 = sbr.rel target = $region981
    $region980: #{tpu_custom_call.1} parent=1 // pred_region
      // Predicated region
      $region993: #{tpu_custom_call.1} parent=980 // pred_check
        _
      $region994: #{tpu_custom_call.1} parent=980 // pred_check_branch
        %1270 = sbr.rel (0) target = $region996
      $region995: #{tpu_custom_call.1} parent=980 // pred_region
        %s1272 = ssub.s32 2, 1
        loop: start=0, step=1, limit=1
        $region997: #{tpu_custom_call.1} parent=995 // loop_pre_header
          _
        $region998: #{tpu_custom_call.1} parent=995 // loop_header
          %s1274 = sphi 0, %s1278
          %p1275 = scmp.ge.s32.totalorder %s1274, 1
          %s1279 = sphi %s1251, %s1251
          %s1280 = sphi %s1252, %s1252
        $region999: #{tpu_custom_call.1} parent=995 // loop_header_branch
          %1277 = sbr.rel (%p1275) target = $region1003
        $region1000: #{tpu_custom_call.1} parent=995 // loop_body
          %v1281 = vld [vmem:[%s1279] sm:%s1272]
          %1282 = vst [vmem:[%s1280] sm:%s1272] %v1281
        $region1001: #{tpu_custom_call.1} parent=995 // loop_footer
          %s1278 = sadd.s32 1, %s1274
        $region1002: #{tpu_custom_call.1} parent=995 // loop_footer_branch
          %1273 = sbr.rel target = $region998
        $region1003: #{tpu_custom_call.1} parent=995 // loop_exit
          _
      $region996: #{tpu_custom_call.1} parent=980 // pred_fallthru
        _
    $region981: #{tpu_custom_call.1} parent=1 // pred_fallthru
      _
    // Predicated region
    $region982: #{tpu_custom_call.1} parent=1 // pred_check
      _
    $region983: #{tpu_custom_call.1} parent=1 // pred_check_branch
      %1256 = sbr.rel (0) target = $region985
    $region984: #{tpu_custom_call.1} parent=1 // pred_region
      %s1258 = ssub.s32 2, 1
      loop: start=0, step=1, limit=1
      $region986: #{tpu_custom_call.1} parent=984 // loop_pre_header
        _
      $region987: #{tpu_custom_call.1} parent=984 // loop_header
        %s1260 = sphi 0, %s1264
        %p1261 = scmp.ge.s32.totalorder %s1260, 1
        %s1265 = sphi %s1251, %s1251
        %s1266 = sphi %s1252, %s1252
      $region988: #{tpu_custom_call.1} parent=984 // loop_header_branch
        %1263 = sbr.rel (%p1261) target = $region992
      $region989: #{tpu_custom_call.1} parent=984 // loop_body
        %v1267 = vld [vmem:[%s1265] sm:%s1258]
        %1268 = vst [vmem:[%s1266] sm:%s1258] %v1267
      $region990: #{tpu_custom_call.1} parent=984 // loop_footer
        %s1264 = sadd.s32 1, %s1260
      $region991: #{tpu_custom_call.1} parent=984 // loop_footer_branch
        %1259 = sbr.rel target = $region987
      $region992: #{tpu_custom_call.1} parent=984 // loop_exit
        _
    $region985: #{tpu_custom_call.1} parent=1 // pred_fallthru
      _
    // Predicated region
    $region1004: #{tpu_custom_call.1} parent=1 // pred_check
      _
    $region1005: #{tpu_custom_call.1} parent=1 // pred_check_branch
      %1285 = sbr.rel (0) target = $region1007
    $region1006: #{tpu_custom_call.1} parent=1 // pred_region
      %1286 = vsyncadd [#allocation3], 16
    $region1007: #{tpu_custom_call.1} parent=1 // pred_fallthru
      _
    %s1287 = sadd.s32 %s1249, 1
    %s1288 = sld [smem:[#allocation5 + %s1287]]
    %s1289 = scalar_lea.vmem %s1, %s1288
    %s1290 = scalar_lea.vmem [#allocation2], 33
    // Predicated region
    $region1008: #{tpu_custom_call.1} parent=1 // pred_check
      _
    $region1009: #{tpu_custom_call.1} parent=1 // pred_check_branch
      %1292 = sbr.rel target = $region1011
    $region1010: #{tpu_custom_call.1} parent=1 // pred_region
      // Predicated region
      $region1023: #{tpu_custom_call.1} parent=1010 // pred_check
        _
      $region1024: #{tpu_custom_call.1} parent=1010 // pred_check_branch
        %1308 = sbr.rel (0) target = $region1026
      $region1025: #{tpu_custom_call.1} parent=1010 // pred_region
        %s1310 = ssub.s32 2, 1
        loop: start=0, step=1, limit=1
        $region1027: #{tpu_custom_call.1} parent=1025 // loop_pre_header
          _
        $region1028: #{tpu_custom_call.1} parent=1025 // loop_header
          %s1312 = sphi 0, %s1316
          %p1313 = scmp.ge.s32.totalorder %s1312, 1
          %s1317 = sphi %s1289, %s1289
          %s1318 = sphi %s1290, %s1290
        $region1029: #{tpu_custom_call.1} parent=1025 // loop_header_branch
          %1315 = sbr.rel (%p1313) target = $region1033
        $region1030: #{tpu_custom_call.1} parent=1025 // loop_body
          %v1319 = vld [vmem:[%s1317] sm:%s1310]
          %1320 = vst [vmem:[%s1318] sm:%s1310] %v1319
        $region1031: #{tpu_custom_call.1} parent=1025 // loop_footer
          %s1316 = sadd.s32 1, %s1312
        $region1032: #{tpu_custom_call.1} parent=1025 // loop_footer_branch
          %1311 = sbr.rel target = $region1028
        $region1033: #{tpu_custom_call.1} parent=1025 // loop_exit
          _
      $region1026: #{tpu_custom_call.1} parent=1010 // pred_fallthru
        _
    $region1011: #{tpu_custom_call.1} parent=1 // pred_fallthru
      _
    // Predicated region
    $region1012: #{tpu_custom_call.1} parent=1 // pred_check
      _
    $region1013: #{tpu_custom_call.1} parent=1 // pred_check_branch
      %1294 = sbr.rel (0) target = $region1015
    $region1014: #{tpu_custom_call.1} parent=1 // pred_region
      %s1296 = ssub.s32 2, 1
      loop: start=0, step=1, limit=1
      $region1016: #{tpu_custom_call.1} parent=1014 // loop_pre_header
        _
      $region1017: #{tpu_custom_call.1} parent=1014 // loop_header
        %s1298 = sphi 0, %s1302
        %p1299 = scmp.ge.s32.totalorder %s1298, 1
        %s1303 = sphi %s1289, %s1289
        %s1304 = sphi %s1290, %s1290
      $region1018: #{tpu_custom_call.1} parent=1014 // loop_header_branch
        %1301 = sbr.rel (%p1299) target = $region1022
      $region1019: #{tpu_custom_call.1} parent=1014 // loop_body
        %v1305 = vld [vmem:[%s1303] sm:%s1296]
        %1306 = vst [vmem:[%s1304] sm:%s1296] %v1305
      $region1020: #{tpu_custom_call.1} parent=1014 // loop_footer
        %s1302 = sadd.s32 1, %s1298
      $region1021: #{tpu_custom_call.1} parent=1014 // loop_footer_branch
        %1297 = sbr.rel target = $region1017
      $region1022: #{tpu_custom_call.1} parent=1014 // loop_exit
        _
    $region1015: #{tpu_custom_call.1} parent=1 // pred_fallthru
      _
    // Predicated region
    $region1034: #{tpu_custom_call.1} parent=1 // pred_check
      _
    $region1035: #{tpu_custom_call.1} parent=1 // pred_check_branch
      %1323 = sbr.rel (0) target = $region1037
    $region1036: #{tpu_custom_call.1} parent=1 // pred_region
      %1324 = vsyncadd [#allocation3], 16
    $region1037: #{tpu_custom_call.1} parent=1 // pred_fallthru
      _
    %s1325 = sadd.s32 %s1249, 2
    %s1326 = sld [smem:[#allocation5 + %s1325]]
    %s1327 = scalar_lea.vmem %s1, %s1326
    %s1328 = scalar_lea.vmem [#allocation2], 34
    // Predicated region
    $region1038: #{tpu_custom_call.1} parent=1 // pred_check
      _
    $region1039: #{tpu_custom_call.1} parent=1 // pred_check_branch
      %1330 = sbr.rel target = $region1041
    $region1040: #{tpu_custom_call.1} parent=1 // pred_region
      // Predicated region
      $region1053: #{tpu_custom_call.1} parent=1040 // pred_check
        _
      $region1054: #{tpu_custom_call.1} parent=1040 // pred_check_branch
        %1346 = sbr.rel (0) target = $region1056
      $region1055: #{tpu_custom_call.1} parent=1040 // pred_region
        %s1348 = ssub.s32 2, 1
        loop: start=0, step=1, limit=1
        $region1057: #{tpu_custom_call.1} parent=1055 // loop_pre_header
          _
        $region1058: #{tpu_custom_call.1} parent=1055 // loop_header
          %s1350 = sphi 0, %s1354
          %p1351 = scmp.ge.s32.totalorder %s1350, 1
          %s1355 = sphi %s1327, %s1327
          %s1356 = sphi %s1328, %s1328
        $region1059: #{tpu_custom_call.1} parent=1055 // loop_header_branch
          %1353 = sbr.rel (%p1351) target = $region1063
        $region1060: #{tpu_custom_call.1} parent=1055 // loop_body
          %v1357 = vld [vmem:[%s1355] sm:%s1348]
          %1358 = vst [vmem:[%s1356] sm:%s1348] %v1357
        $region1061: #{tpu_custom_call.1} parent=1055 // loop_footer
          %s1354 = sadd.s32 1, %s1350
        $region1062: #{tpu_custom_call.1} parent=1055 // loop_footer_branch
          %1349 = sbr.rel target = $region1058
        $region1063: #{tpu_custom_call.1} parent=1055 // loop_exit
          _
      $region1056: #{tpu_custom_call.1} parent=1040 // pred_fallthru
        _
    $region1041: #{tpu_custom_call.1} parent=1 // pred_fallthru
      _
    // Predicated region
    $region1042: #{tpu_custom_call.1} parent=1 // pred_check
      _
    $region1043: #{tpu_custom_call.1} parent=1 // pred_check_branch
      %1332 = sbr.rel (0) target = $region1045
    $region1044: #{tpu_custom_call.1} parent=1 // pred_region
      %s1334 = ssub.s32 2, 1
      loop: start=0, step=1, limit=1
      $region1046: #{tpu_custom_call.1} parent=1044 // loop_pre_header
        _
      $region1047: #{tpu_custom_call.1} parent=1044 // loop_header
        %s1336 = sphi 0, %s1340
        %p1337 = scmp.ge.s32.totalorder %s1336, 1
        %s1341 = sphi %s1327, %s1327
        %s1342 = sphi %s1328, %s1328
      $region1048: #{tpu_custom_call.1} parent=1044 // loop_header_branch
        %1339 = sbr.rel (%p1337) target = $region1052
      $region1049: #{tpu_custom_call.1} parent=1044 // loop_body
        %v1343 = vld [vmem:[%s1341] sm:%s1334]
        %1344 = vst [vmem:[%s1342] sm:%s1334] %v1343
      $region1050: #{tpu_custom_call.1} parent=1044 // loop_footer
        %s1340 = sadd.s32 1, %s1336
      $region1051: #{tpu_custom_call.1} parent=1044 // loop_footer_branch
        %1335 = sbr.rel target = $region1047
      $region1052: #{tpu_custom_call.1} parent=1044 // loop_exit
        _
    $region1045: #{tpu_custom_call.1} parent=1 // pred_fallthru
      _
    // Predicated region
    $region1064: #{tpu_custom_call.1} parent=1 // pred_check
      _
    $region1065: #{tpu_custom_call.1} parent=1 // pred_check_branch
      %1361 = sbr.rel (0) target = $region1067
    $region1066: #{tpu_custom_call.1} parent=1 // pred_region
      %1362 = vsyncadd [#allocation3], 16
    $region1067: #{tpu_custom_call.1} parent=1 // pred_fallthru
      _
    %s1363 = sadd.s32 %s1249, 3
    %s1364 = sld [smem:[#allocation5 + %s1363]]
    %s1365 = scalar_lea.vmem %s1, %s1364
    %s1366 = scalar_lea.vmem [#allocation2], 35
    // Predicated region
    $region1068: #{tpu_custom_call.1} parent=1 // pred_check
      _
    $region1069: #{tpu_custom_call.1} parent=1 // pred_check_branch
      %1368 = sbr.rel target = $region1071
    $region1070: #{tpu_custom_call.1} parent=1 // pred_region
      // Predicated region
      $region1083: #{tpu_custom_call.1} parent=1070 // pred_check
        _
      $region1084: #{tpu_custom_call.1} parent=1070 // pred_check_branch
        %1384 = sbr.rel (0) target = $region1086
      $region1085: #{tpu_custom_call.1} parent=1070 // pred_region
        %s1386 = ssub.s32 2, 1
        loop: start=0, step=1, limit=1
        $region1087: #{tpu_custom_call.1} parent=1085 // loop_pre_header
          _
        $region1088: #{tpu_custom_call.1} parent=1085 // loop_header
          %s1388 = sphi 0, %s1392
          %p1389 = scmp.ge.s32.totalorder %s1388, 1
          %s1393 = sphi %s1365, %s1365
          %s1394 = sphi %s1366, %s1366
        $region1089: #{tpu_custom_call.1} parent=1085 // loop_header_branch
          %1391 = sbr.rel (%p1389) target = $region1093
        $region1090: #{tpu_custom_call.1} parent=1085 // loop_body
          %v1395 = vld [vmem:[%s1393] sm:%s1386]
          %1396 = vst [vmem:[%s1394] sm:%s1386] %v1395
        $region1091: #{tpu_custom_call.1} parent=1085 // loop_footer
          %s1392 = sadd.s32 1, %s1388
        $region1092: #{tpu_custom_call.1} parent=1085 // loop_footer_branch
          %1387 = sbr.rel target = $region1088
        $region1093: #{tpu_custom_call.1} parent=1085 // loop_exit
          _
      $region1086: #{tpu_custom_call.1} parent=1070 // pred_fallthru
        _
    $region1071: #{tpu_custom_call.1} parent=1 // pred_fallthru
      _
    // Predicated region
    $region1072: #{tpu_custom_call.1} parent=1 // pred_check
      _
    $region1073: #{tpu_custom_call.1} parent=1 // pred_check_branch
      %1370 = sbr.rel (0) target = $region1075
    $region1074: #{tpu_custom_call.1} parent=1 // pred_region
      %s1372 = ssub.s32 2, 1
      loop: start=0, step=1, limit=1
      $region1076: #{tpu_custom_call.1} parent=1074 // loop_pre_header
        _
      $region1077: #{tpu_custom_call.1} parent=1074 // loop_header
        %s1374 = sphi 0, %s1378
        %p1375 = scmp.ge.s32.totalorder %s1374, 1
        %s1379 = sphi %s1365, %s1365
        %s1380 = sphi %s1366, %s1366
      $region1078: #{tpu_custom_call.1} parent=1074 // loop_header_branch
        %1377 = sbr.rel (%p1375) target = $region1082
      $region1079: #{tpu_custom_call.1} parent=1074 // loop_body
        %v1381 = vld [vmem:[%s1379] sm:%s1372]
        %1382 = vst [vmem:[%s1380] sm:%s1372] %v1381
      $region1080: #{tpu_custom_call.1} parent=1074 // loop_footer
        %s1378 = sadd.s32 1, %s1374
      $region1081: #{tpu_custom_call.1} parent=1074 // loop_footer_branch
        %1373 = sbr.rel target = $region1077
      $region1082: #{tpu_custom_call.1} parent=1074 // loop_exit
        _
    $region1075: #{tpu_custom_call.1} parent=1 // pred_fallthru
      _
    // Predicated region
    $region1094: #{tpu_custom_call.1} parent=1 // pred_check
      _
    $region1095: #{tpu_custom_call.1} parent=1 // pred_check_branch
      %1399 = sbr.rel (0) target = $region1097
    $region1096: #{tpu_custom_call.1} parent=1 // pred_region
      %1400 = vsyncadd [#allocation3], 16
    $region1097: #{tpu_custom_call.1} parent=1 // pred_fallthru
      _
    %s1401 = sadd.s32 %s1249, 4
    %s1402 = sld [smem:[#allocation5 + %s1401]]
    %s1403 = scalar_lea.vmem %s1, %s1402
    %s1404 = scalar_lea.vmem [#allocation2], 36
    // Predicated region
    $region1098: #{tpu_custom_call.1} parent=1 // pred_check
      _
    $region1099: #{tpu_custom_call.1} parent=1 // pred_check_branch
      %1406 = sbr.rel target = $region1101
    $region1100: #{tpu_custom_call.1} parent=1 // pred_region
      // Predicated region
      $region1113: #{tpu_custom_call.1} parent=1100 // pred_check
        _
      $region1114: #{tpu_custom_call.1} parent=1100 // pred_check_branch
        %1422 = sbr.rel (0) target = $region1116
      $region1115: #{tpu_custom_call.1} parent=1100 // pred_region
        %s1424 = ssub.s32 2, 1
        loop: start=0, step=1, limit=1
        $region1117: #{tpu_custom_call.1} parent=1115 // loop_pre_header
          _
        $region1118: #{tpu_custom_call.1} parent=1115 // loop_header
          %s1426 = sphi 0, %s1430
          %p1427 = scmp.ge.s32.totalorder %s1426, 1
          %s1431 = sphi %s1403, %s1403
          %s1432 = sphi %s1404, %s1404
        $region1119: #{tpu_custom_call.1} parent=1115 // loop_header_branch
          %1429 = sbr.rel (%p1427) target = $region1123
        $region1120: #{tpu_custom_call.1} parent=1115 // loop_body
          %v1433 = vld [vmem:[%s1431] sm:%s1424]
          %1434 = vst [vmem:[%s1432] sm:%s1424] %v1433
        $region1121: #{tpu_custom_call.1} parent=1115 // loop_footer
          %s1430 = sadd.s32 1, %s1426
        $region1122: #{tpu_custom_call.1} parent=1115 // loop_footer_branch
          %1425 = sbr.rel target = $region1118
        $region1123: #{tpu_custom_call.1} parent=1115 // loop_exit
          _
      $region1116: #{tpu_custom_call.1} parent=1100 // pred_fallthru
        _
    $region1101: #{tpu_custom_call.1} parent=1 // pred_fallthru
      _
    // Predicated region
    $region1102: #{tpu_custom_call.1} parent=1 // pred_check
      _
    $region1103: #{tpu_custom_call.1} parent=1 // pred_check_branch
      %1408 = sbr.rel (0) target = $region1105
    $region1104: #{tpu_custom_call.1} parent=1 // pred_region
      %s1410 = ssub.s32 2, 1
      loop: start=0, step=1, limit=1
      $region1106: #{tpu_custom_call.1} parent=1104 // loop_pre_header
        _
      $region1107: #{tpu_custom_call.1} parent=1104 // loop_header
        %s1412 = sphi 0, %s1416
        %p1413 = scmp.ge.s32.totalorder %s1412, 1
        %s1417 = sphi %s1403, %s1403
        %s1418 = sphi %s1404, %s1404
      $region1108: #{tpu_custom_call.1} parent=1104 // loop_header_branch
        %1415 = sbr.rel (%p1413) target = $region1112
      $region1109: #{tpu_custom_call.1} parent=1104 // loop_body
        %v1419 = vld [vmem:[%s1417] sm:%s1410]
        %1420 = vst [vmem:[%s1418] sm:%s1410] %v1419
      $region1110: #{tpu_custom_call.1} parent=1104 // loop_footer
        %s1416 = sadd.s32 1, %s1412
      $region1111: #{tpu_custom_call.1} parent=1104 // loop_footer_branch
        %1411 = sbr.rel target = $region1107
      $region1112: #{tpu_custom_call.1} parent=1104 // loop_exit
        _
    $region1105: #{tpu_custom_call.1} parent=1 // pred_fallthru
      _
    // Predicated region
    $region1124: #{tpu_custom_call.1} parent=1 // pred_check
      _
    $region1125: #{tpu_custom_call.1} parent=1 // pred_check_branch
      %1437 = sbr.rel (0) target = $region1127
    $region1126: #{tpu_custom_call.1} parent=1 // pred_region
      %1438 = vsyncadd [#allocation3], 16
    $region1127: #{tpu_custom_call.1} parent=1 // pred_fallthru
      _
    %s1439 = sadd.s32 %s1249, 5
    %s1440 = sld [smem:[#allocation5 + %s1439]]
    %s1441 = scalar_lea.vmem %s1, %s1440
    %s1442 = scalar_lea.vmem [#allocation2], 37
    // Predicated region
    $region1128: #{tpu_custom_call.1} parent=1 // pred_check
      _
    $region1129: #{tpu_custom_call.1} parent=1 // pred_check_branch
      %1444 = sbr.rel target = $region1131
    $region1130: #{tpu_custom_call.1} parent=1 // pred_region
      // Predicated region
      $region1143: #{tpu_custom_call.1} parent=1130 // pred_check
        _
      $region1144: #{tpu_custom_call.1} parent=1130 // pred_check_branch
        %1460 = sbr.rel (0) target = $region1146
      $region1145: #{tpu_custom_call.1} parent=1130 // pred_region
        %s1462 = ssub.s32 2, 1
        loop: start=0, step=1, limit=1
        $region1147: #{tpu_custom_call.1} parent=1145 // loop_pre_header
          _
        $region1148: #{tpu_custom_call.1} parent=1145 // loop_header
          %s1464 = sphi 0, %s1468
          %p1465 = scmp.ge.s32.totalorder %s1464, 1
          %s1469 = sphi %s1441, %s1441
          %s1470 = sphi %s1442, %s1442
        $region1149: #{tpu_custom_call.1} parent=1145 // loop_header_branch
          %1467 = sbr.rel (%p1465) target = $region1153
        $region1150: #{tpu_custom_call.1} parent=1145 // loop_body
          %v1471 = vld [vmem:[%s1469] sm:%s1462]
          %1472 = vst [vmem:[%s1470] sm:%s1462] %v1471
        $region1151: #{tpu_custom_call.1} parent=1145 // loop_footer
          %s1468 = sadd.s32 1, %s1464
        $region1152: #{tpu_custom_call.1} parent=1145 // loop_footer_branch
          %1463 = sbr.rel target = $region1148
        $region1153: #{tpu_custom_call.1} parent=1145 // loop_exit
          _
      $region1146: #{tpu_custom_call.1} parent=1130 // pred_fallthru
        _
    $region1131: #{tpu_custom_call.1} parent=1 // pred_fallthru
      _
    // Predicated region
    $region1132: #{tpu_custom_call.1} parent=1 // pred_check
      _
    $region1133: #{tpu_custom_call.1} parent=1 // pred_check_branch
      %1446 = sbr.rel (0) target = $region1135
    $region1134: #{tpu_custom_call.1} parent=1 // pred_region
      %s1448 = ssub.s32 2, 1
      loop: start=0, step=1, limit=1
      $region1136: #{tpu_custom_call.1} parent=1134 // loop_pre_header
        _
      $region1137: #{tpu_custom_call.1} parent=1134 // loop_header
        %s1450 = sphi 0, %s1454
        %p1451 = scmp.ge.s32.totalorder %s1450, 1
        %s1455 = sphi %s1441, %s1441
        %s1456 = sphi %s1442, %s1442
      $region1138: #{tpu_custom_call.1} parent=1134 // loop_header_branch
        %1453 = sbr.rel (%p1451) target = $region1142
      $region1139: #{tpu_custom_call.1} parent=1134 // loop_body
        %v1457 = vld [vmem:[%s1455] sm:%s1448]
        %1458 = vst [vmem:[%s1456] sm:%s1448] %v1457
      $region1140: #{tpu_custom_call.1} parent=1134 // loop_footer
        %s1454 = sadd.s32 1, %s1450
      $region1141: #{tpu_custom_call.1} parent=1134 // loop_footer_branch
        %1449 = sbr.rel target = $region1137
      $region1142: #{tpu_custom_call.1} parent=1134 // loop_exit
        _
    $region1135: #{tpu_custom_call.1} parent=1 // pred_fallthru
      _
    // Predicated region
    $region1154: #{tpu_custom_call.1} parent=1 // pred_check
      _
    $region1155: #{tpu_custom_call.1} parent=1 // pred_check_branch
      %1475 = sbr.rel (0) target = $region1157
    $region1156: #{tpu_custom_call.1} parent=1 // pred_region
      %1476 = vsyncadd [#allocation3], 16
    $region1157: #{tpu_custom_call.1} parent=1 // pred_fallthru
      _
    %s1477 = sadd.s32 %s1249, 6
    %s1478 = sld [smem:[#allocation5 + %s1477]]
    %s1479 = scalar_lea.vmem %s1, %s1478
    %s1480 = scalar_lea.vmem [#allocation2], 38
    // Predicated region
    $region1158: #{tpu_custom_call.1} parent=1 // pred_check
      _
    $region1159: #{tpu_custom_call.1} parent=1 // pred_check_branch
      %1482 = sbr.rel target = $region1161
    $region1160: #{tpu_custom_call.1} parent=1 // pred_region
      // Predicated region
      $region1173: #{tpu_custom_call.1} parent=1160 // pred_check
        _
      $region1174: #{tpu_custom_call.1} parent=1160 // pred_check_branch
        %1498 = sbr.rel (0) target = $region1176
      $region1175: #{tpu_custom_call.1} parent=1160 // pred_region
        %s1500 = ssub.s32 2, 1
        loop: start=0, step=1, limit=1
        $region1177: #{tpu_custom_call.1} parent=1175 // loop_pre_header
          _
        $region1178: #{tpu_custom_call.1} parent=1175 // loop_header
          %s1502 = sphi 0, %s1506
          %p1503 = scmp.ge.s32.totalorder %s1502, 1
          %s1507 = sphi %s1479, %s1479
          %s1508 = sphi %s1480, %s1480
        $region1179: #{tpu_custom_call.1} parent=1175 // loop_header_branch
          %1505 = sbr.rel (%p1503) target = $region1183
        $region1180: #{tpu_custom_call.1} parent=1175 // loop_body
          %v1509 = vld [vmem:[%s1507] sm:%s1500]
          %1510 = vst [vmem:[%s1508] sm:%s1500] %v1509
        $region1181: #{tpu_custom_call.1} parent=1175 // loop_footer
          %s1506 = sadd.s32 1, %s1502
        $region1182: #{tpu_custom_call.1} parent=1175 // loop_footer_branch
          %1501 = sbr.rel target = $region1178
        $region1183: #{tpu_custom_call.1} parent=1175 // loop_exit
          _
      $region1176: #{tpu_custom_call.1} parent=1160 // pred_fallthru
        _
    $region1161: #{tpu_custom_call.1} parent=1 // pred_fallthru
      _
    // Predicated region
    $region1162: #{tpu_custom_call.1} parent=1 // pred_check
      _
    $region1163: #{tpu_custom_call.1} parent=1 // pred_check_branch
      %1484 = sbr.rel (0) target = $region1165
    $region1164: #{tpu_custom_call.1} parent=1 // pred_region
      %s1486 = ssub.s32 2, 1
      loop: start=0, step=1, limit=1
      $region1166: #{tpu_custom_call.1} parent=1164 // loop_pre_header
        _
      $region1167: #{tpu_custom_call.1} parent=1164 // loop_header
        %s1488 = sphi 0, %s1492
        %p1489 = scmp.ge.s32.totalorder %s1488, 1
        %s1493 = sphi %s1479, %s1479
        %s1494 = sphi %s1480, %s1480
      $region1168: #{tpu_custom_call.1} parent=1164 // loop_header_branch
        %1491 = sbr.rel (%p1489) target = $region1172
      $region1169: #{tpu_custom_call.1} parent=1164 // loop_body
        %v1495 = vld [vmem:[%s1493] sm:%s1486]
        %1496 = vst [vmem:[%s1494] sm:%s1486] %v1495
      $region1170: #{tpu_custom_call.1} parent=1164 // loop_footer
        %s1492 = sadd.s32 1, %s1488
      $region1171: #{tpu_custom_call.1} parent=1164 // loop_footer_branch
        %1487 = sbr.rel target = $region1167
      $region1172: #{tpu_custom_call.1} parent=1164 // loop_exit
        _
    $region1165: #{tpu_custom_call.1} parent=1 // pred_fallthru
      _
    // Predicated region
    $region1184: #{tpu_custom_call.1} parent=1 // pred_check
      _
    $region1185: #{tpu_custom_call.1} parent=1 // pred_check_branch
      %1513 = sbr.rel (0) target = $region1187
    $region1186: #{tpu_custom_call.1} parent=1 // pred_region
      %1514 = vsyncadd [#allocation3], 16
    $region1187: #{tpu_custom_call.1} parent=1 // pred_fallthru
      _
    %s1515 = sadd.s32 %s1249, 7
    %s1516 = sld [smem:[#allocation5 + %s1515]]
    %s1517 = scalar_lea.vmem %s1, %s1516
    %s1518 = scalar_lea.vmem [#allocation2], 39
    // Predicated region
    $region1188: #{tpu_custom_call.1} parent=1 // pred_check
      _
    $region1189: #{tpu_custom_call.1} parent=1 // pred_check_branch
      %1520 = sbr.rel target = $region1191
    $region1190: #{tpu_custom_call.1} parent=1 // pred_region
      // Predicated region
      $region1203: #{tpu_custom_call.1} parent=1190 // pred_check
        _
      $region1204: #{tpu_custom_call.1} parent=1190 // pred_check_branch
        %1536 = sbr.rel (0) target = $region1206
      $region1205: #{tpu_custom_call.1} parent=1190 // pred_region
        %s1538 = ssub.s32 2, 1
        loop: start=0, step=1, limit=1
        $region1207: #{tpu_custom_call.1} parent=1205 // loop_pre_header
          _
        $region1208: #{tpu_custom_call.1} parent=1205 // loop_header
          %s1540 = sphi 0, %s1544
          %p1541 = scmp.ge.s32.totalorder %s1540, 1
          %s1545 = sphi %s1517, %s1517
          %s1546 = sphi %s1518, %s1518
        $region1209: #{tpu_custom_call.1} parent=1205 // loop_header_branch
          %1543 = sbr.rel (%p1541) target = $region1213
        $region1210: #{tpu_custom_call.1} parent=1205 // loop_body
          %v1547 = vld [vmem:[%s1545] sm:%s1538]
          %1548 = vst [vmem:[%s1546] sm:%s1538] %v1547
        $region1211: #{tpu_custom_call.1} parent=1205 // loop_footer
          %s1544 = sadd.s32 1, %s1540
        $region1212: #{tpu_custom_call.1} parent=1205 // loop_footer_branch
          %1539 = sbr.rel target = $region1208
        $region1213: #{tpu_custom_call.1} parent=1205 // loop_exit
          _
      $region1206: #{tpu_custom_call.1} parent=1190 // pred_fallthru
        _
    $region1191: #{tpu_custom_call.1} parent=1 // pred_fallthru
      _
    // Predicated region
    $region1192: #{tpu_custom_call.1} parent=1 // pred_check
      _
    $region1193: #{tpu_custom_call.1} parent=1 // pred_check_branch
      %1522 = sbr.rel (0) target = $region1195
    $region1194: #{tpu_custom_call.1} parent=1 // pred_region
      %s1524 = ssub.s32 2, 1
      loop: start=0, step=1, limit=1
      $region1196: #{tpu_custom_call.1} parent=1194 // loop_pre_header
        _
      $region1197: #{tpu_custom_call.1} parent=1194 // loop_header
        %s1526 = sphi 0, %s1530
        %p1527 = scmp.ge.s32.totalorder %s1526, 1
        %s1531 = sphi %s1517, %s1517
        %s1532 = sphi %s1518, %s1518
      $region1198: #{tpu_custom_call.1} parent=1194 // loop_header_branch
        %1529 = sbr.rel (%p1527) target = $region1202
      $region1199: #{tpu_custom_call.1} parent=1194 // loop_body
        %v1533 = vld [vmem:[%s1531] sm:%s1524]
        %1534 = vst [vmem:[%s1532] sm:%s1524] %v1533
      $region1200: #{tpu_custom_call.1} parent=1194 // loop_footer
        %s1530 = sadd.s32 1, %s1526
      $region1201: #{tpu_custom_call.1} parent=1194 // loop_footer_branch
        %1525 = sbr.rel target = $region1197
      $region1202: #{tpu_custom_call.1} parent=1194 // loop_exit
        _
    $region1195: #{tpu_custom_call.1} parent=1 // pred_fallthru
      _
    // Predicated region
    $region1214: #{tpu_custom_call.1} parent=1 // pred_check
      _
    $region1215: #{tpu_custom_call.1} parent=1 // pred_check_branch
      %1551 = sbr.rel (0) target = $region1217
    $region1216: #{tpu_custom_call.1} parent=1 // pred_region
      %1552 = vsyncadd [#allocation3], 16
    $region1217: #{tpu_custom_call.1} parent=1 // pred_fallthru
      _
    %s1553 = sadd.s32 %s29, 5
    %s1554 = smul.u32 %s1553, 128
    %s1555 = sld [smem:[#allocation5 + %s1554]]
    %s1556 = scalar_lea.vmem %s1, %s1555
    %s1557 = scalar_lea.vmem [#allocation2], 40
    // Predicated region
    $region1218: #{tpu_custom_call.1} parent=1 // pred_check
      _
    $region1219: #{tpu_custom_call.1} parent=1 // pred_check_branch
      %1559 = sbr.rel target = $region1221
    $region1220: #{tpu_custom_call.1} parent=1 // pred_region
      // Predicated region
      $region1233: #{tpu_custom_call.1} parent=1220 // pred_check
        _
      $region1234: #{tpu_custom_call.1} parent=1220 // pred_check_branch
        %1575 = sbr.rel (0) target = $region1236
      $region1235: #{tpu_custom_call.1} parent=1220 // pred_region
        %s1577 = ssub.s32 2, 1
        loop: start=0, step=1, limit=1
        $region1237: #{tpu_custom_call.1} parent=1235 // loop_pre_header
          _
        $region1238: #{tpu_custom_call.1} parent=1235 // loop_header
          %s1579 = sphi 0, %s1583
          %p1580 = scmp.ge.s32.totalorder %s1579, 1
          %s1584 = sphi %s1556, %s1556
          %s1585 = sphi %s1557, %s1557
        $region1239: #{tpu_custom_call.1} parent=1235 // loop_header_branch
          %1582 = sbr.rel (%p1580) target = $region1243
        $region1240: #{tpu_custom_call.1} parent=1235 // loop_body
          %v1586 = vld [vmem:[%s1584] sm:%s1577]
          %1587 = vst [vmem:[%s1585] sm:%s1577] %v1586
        $region1241: #{tpu_custom_call.1} parent=1235 // loop_footer
          %s1583 = sadd.s32 1, %s1579
        $region1242: #{tpu_custom_call.1} parent=1235 // loop_footer_branch
          %1578 = sbr.rel target = $region1238
        $region1243: #{tpu_custom_call.1} parent=1235 // loop_exit
          _
      $region1236: #{tpu_custom_call.1} parent=1220 // pred_fallthru
        _
    $region1221: #{tpu_custom_call.1} parent=1 // pred_fallthru
      _
    // Predicated region
    $region1222: #{tpu_custom_call.1} parent=1 // pred_check
      _
    $region1223: #{tpu_custom_call.1} parent=1 // pred_check_branch
      %1561 = sbr.rel (0) target = $region1225
    $region1224: #{tpu_custom_call.1} parent=1 // pred_region
      %s1563 = ssub.s32 2, 1
      loop: start=0, step=1, limit=1
      $region1226: #{tpu_custom_call.1} parent=1224 // loop_pre_header
        _
      $region1227: #{tpu_custom_call.1} parent=1224 // loop_header
        %s1565 = sphi 0, %s1569
        %p1566 = scmp.ge.s32.totalorder %s1565, 1
        %s1570 = sphi %s1556, %s1556
        %s1571 = sphi %s1557, %s1557
      $region1228: #{tpu_custom_call.1} parent=1224 // loop_header_branch
        %1568 = sbr.rel (%p1566) target = $region1232
      $region1229: #{tpu_custom_call.1} parent=1224 // loop_body
        %v1572 = vld [vmem:[%s1570] sm:%s1563]
        %1573 = vst [vmem:[%s1571] sm:%s1563] %v1572
      $region1230: #{tpu_custom_call.1} parent=1224 // loop_footer
        %s1569 = sadd.s32 1, %s1565
      $region1231: #{tpu_custom_call.1} parent=1224 // loop_footer_branch
        %1564 = sbr.rel target = $region1227
      $region1232: #{tpu_custom_call.1} parent=1224 // loop_exit
        _
    $region1225: #{tpu_custom_call.1} parent=1 // pred_fallthru
      _
    // Predicated region
    $region1244: #{tpu_custom_call.1} parent=1 // pred_check
      _
    $region1245: #{tpu_custom_call.1} parent=1 // pred_check_branch
      %1590 = sbr.rel (0) target = $region1247
    $region1246: #{tpu_custom_call.1} parent=1 // pred_region
      %1591 = vsyncadd [#allocation3], 16
    $region1247: #{tpu_custom_call.1} parent=1 // pred_fallthru
      _
    %s1592 = sadd.s32 %s1554, 1
    %s1593 = sld [smem:[#allocation5 + %s1592]]
    %s1594 = scalar_lea.vmem %s1, %s1593
    %s1595 = scalar_lea.vmem [#allocation2], 41
    // Predicated region
    $region1248: #{tpu_custom_call.1} parent=1 // pred_check
      _
    $region1249: #{tpu_custom_call.1} parent=1 // pred_check_branch
      %1597 = sbr.rel target = $region1251
    $region1250: #{tpu_custom_call.1} parent=1 // pred_region
      // Predicated region
      $region1263: #{tpu_custom_call.1} parent=1250 // pred_check
        _
      $region1264: #{tpu_custom_call.1} parent=1250 // pred_check_branch
        %1613 = sbr.rel (0) target = $region1266
      $region1265: #{tpu_custom_call.1} parent=1250 // pred_region
        %s1615 = ssub.s32 2, 1
        loop: start=0, step=1, limit=1
        $region1267: #{tpu_custom_call.1} parent=1265 // loop_pre_header
          _
        $region1268: #{tpu_custom_call.1} parent=1265 // loop_header
          %s1617 = sphi 0, %s1621
          %p1618 = scmp.ge.s32.totalorder %s1617, 1
          %s1622 = sphi %s1594, %s1594
          %s1623 = sphi %s1595, %s1595
        $region1269: #{tpu_custom_call.1} parent=1265 // loop_header_branch
          %1620 = sbr.rel (%p1618) target = $region1273
        $region1270: #{tpu_custom_call.1} parent=1265 // loop_body
          %v1624 = vld [vmem:[%s1622] sm:%s1615]
          %1625 = vst [vmem:[%s1623] sm:%s1615] %v1624
        $region1271: #{tpu_custom_call.1} parent=1265 // loop_footer
          %s1621 = sadd.s32 1, %s1617
        $region1272: #{tpu_custom_call.1} parent=1265 // loop_footer_branch
          %1616 = sbr.rel target = $region1268
        $region1273: #{tpu_custom_call.1} parent=1265 // loop_exit
          _
      $region1266: #{tpu_custom_call.1} parent=1250 // pred_fallthru
        _
    $region1251: #{tpu_custom_call.1} parent=1 // pred_fallthru
      _
    // Predicated region
    $region1252: #{tpu_custom_call.1} parent=1 // pred_check
      _
    $region1253: #{tpu_custom_call.1} parent=1 // pred_check_branch
      %1599 = sbr.rel (0) target = $region1255
    $region1254: #{tpu_custom_call.1} parent=1 // pred_region
      %s1601 = ssub.s32 2, 1
      loop: start=0, step=1, limit=1
      $region1256: #{tpu_custom_call.1} parent=1254 // loop_pre_header
        _
      $region1257: #{tpu_custom_call.1} parent=1254 // loop_header
        %s1603 = sphi 0, %s1607
        %p1604 = scmp.ge.s32.totalorder %s1603, 1
        %s1608 = sphi %s1594, %s1594
        %s1609 = sphi %s1595, %s1595
      $region1258: #{tpu_custom_call.1} parent=1254 // loop_header_branch
        %1606 = sbr.rel (%p1604) target = $region1262
      $region1259: #{tpu_custom_call.1} parent=1254 // loop_body
        %v1610 = vld [vmem:[%s1608] sm:%s1601]
        %1611 = vst [vmem:[%s1609] sm:%s1601] %v1610
      $region1260: #{tpu_custom_call.1} parent=1254 // loop_footer
        %s1607 = sadd.s32 1, %s1603
      $region1261: #{tpu_custom_call.1} parent=1254 // loop_footer_branch
        %1602 = sbr.rel target = $region1257
      $region1262: #{tpu_custom_call.1} parent=1254 // loop_exit
        _
    $region1255: #{tpu_custom_call.1} parent=1 // pred_fallthru
      _
    // Predicated region
    $region1274: #{tpu_custom_call.1} parent=1 // pred_check
      _
    $region1275: #{tpu_custom_call.1} parent=1 // pred_check_branch
      %1628 = sbr.rel (0) target = $region1277
    $region1276: #{tpu_custom_call.1} parent=1 // pred_region
      %1629 = vsyncadd [#allocation3], 16
    $region1277: #{tpu_custom_call.1} parent=1 // pred_fallthru
      _
    %s1630 = sadd.s32 %s1554, 2
    %s1631 = sld [smem:[#allocation5 + %s1630]]
    %s1632 = scalar_lea.vmem %s1, %s1631
    %s1633 = scalar_lea.vmem [#allocation2], 42
    // Predicated region
    $region1278: #{tpu_custom_call.1} parent=1 // pred_check
      _
    $region1279: #{tpu_custom_call.1} parent=1 // pred_check_branch
      %1635 = sbr.rel target = $region1281
    $region1280: #{tpu_custom_call.1} parent=1 // pred_region
      // Predicated region
      $region1293: #{tpu_custom_call.1} parent=1280 // pred_check
        _
      $region1294: #{tpu_custom_call.1} parent=1280 // pred_check_branch
        %1651 = sbr.rel (0) target = $region1296
      $region1295: #{tpu_custom_call.1} parent=1280 // pred_region
        %s1653 = ssub.s32 2, 1
        loop: start=0, step=1, limit=1
        $region1297: #{tpu_custom_call.1} parent=1295 // loop_pre_header
          _
        $region1298: #{tpu_custom_call.1} parent=1295 // loop_header
          %s1655 = sphi 0, %s1659
          %p1656 = scmp.ge.s32.totalorder %s1655, 1
          %s1660 = sphi %s1632, %s1632
          %s1661 = sphi %s1633, %s1633
        $region1299: #{tpu_custom_call.1} parent=1295 // loop_header_branch
          %1658 = sbr.rel (%p1656) target = $region1303
        $region1300: #{tpu_custom_call.1} parent=1295 // loop_body
          %v1662 = vld [vmem:[%s1660] sm:%s1653]
          %1663 = vst [vmem:[%s1661] sm:%s1653] %v1662
        $region1301: #{tpu_custom_call.1} parent=1295 // loop_footer
          %s1659 = sadd.s32 1, %s1655
        $region1302: #{tpu_custom_call.1} parent=1295 // loop_footer_branch
          %1654 = sbr.rel target = $region1298
        $region1303: #{tpu_custom_call.1} parent=1295 // loop_exit
          _
      $region1296: #{tpu_custom_call.1} parent=1280 // pred_fallthru
        _
    $region1281: #{tpu_custom_call.1} parent=1 // pred_fallthru
      _
    // Predicated region
    $region1282: #{tpu_custom_call.1} parent=1 // pred_check
      _
    $region1283: #{tpu_custom_call.1} parent=1 // pred_check_branch
      %1637 = sbr.rel (0) target = $region1285
    $region1284: #{tpu_custom_call.1} parent=1 // pred_region
      %s1639 = ssub.s32 2, 1
      loop: start=0, step=1, limit=1
      $region1286: #{tpu_custom_call.1} parent=1284 // loop_pre_header
        _
      $region1287: #{tpu_custom_call.1} parent=1284 // loop_header
        %s1641 = sphi 0, %s1645
        %p1642 = scmp.ge.s32.totalorder %s1641, 1
        %s1646 = sphi %s1632, %s1632
        %s1647 = sphi %s1633, %s1633
      $region1288: #{tpu_custom_call.1} parent=1284 // loop_header_branch
        %1644 = sbr.rel (%p1642) target = $region1292
      $region1289: #{tpu_custom_call.1} parent=1284 // loop_body
        %v1648 = vld [vmem:[%s1646] sm:%s1639]
        %1649 = vst [vmem:[%s1647] sm:%s1639] %v1648
      $region1290: #{tpu_custom_call.1} parent=1284 // loop_footer
        %s1645 = sadd.s32 1, %s1641
      $region1291: #{tpu_custom_call.1} parent=1284 // loop_footer_branch
        %1640 = sbr.rel target = $region1287
      $region1292: #{tpu_custom_call.1} parent=1284 // loop_exit
        _
    $region1285: #{tpu_custom_call.1} parent=1 // pred_fallthru
      _
    // Predicated region
    $region1304: #{tpu_custom_call.1} parent=1 // pred_check
      _
    $region1305: #{tpu_custom_call.1} parent=1 // pred_check_branch
      %1666 = sbr.rel (0) target = $region1307
    $region1306: #{tpu_custom_call.1} parent=1 // pred_region
      %1667 = vsyncadd [#allocation3], 16
    $region1307: #{tpu_custom_call.1} parent=1 // pred_fallthru
      _
    %s1668 = sadd.s32 %s1554, 3
    %s1669 = sld [smem:[#allocation5 + %s1668]]
    %s1670 = scalar_lea.vmem %s1, %s1669
    %s1671 = scalar_lea.vmem [#allocation2], 43
    // Predicated region
    $region1308: #{tpu_custom_call.1} parent=1 // pred_check
      _
    $region1309: #{tpu_custom_call.1} parent=1 // pred_check_branch
      %1673 = sbr.rel target = $region1311
    $region1310: #{tpu_custom_call.1} parent=1 // pred_region
      // Predicated region
      $region1323: #{tpu_custom_call.1} parent=1310 // pred_check
        _
      $region1324: #{tpu_custom_call.1} parent=1310 // pred_check_branch
        %1689 = sbr.rel (0) target = $region1326
      $region1325: #{tpu_custom_call.1} parent=1310 // pred_region
        %s1691 = ssub.s32 2, 1
        loop: start=0, step=1, limit=1
        $region1327: #{tpu_custom_call.1} parent=1325 // loop_pre_header
          _
        $region1328: #{tpu_custom_call.1} parent=1325 // loop_header
          %s1693 = sphi 0, %s1697
          %p1694 = scmp.ge.s32.totalorder %s1693, 1
          %s1698 = sphi %s1670, %s1670
          %s1699 = sphi %s1671, %s1671
        $region1329: #{tpu_custom_call.1} parent=1325 // loop_header_branch
          %1696 = sbr.rel (%p1694) target = $region1333
        $region1330: #{tpu_custom_call.1} parent=1325 // loop_body
          %v1700 = vld [vmem:[%s1698] sm:%s1691]
          %1701 = vst [vmem:[%s1699] sm:%s1691] %v1700
        $region1331: #{tpu_custom_call.1} parent=1325 // loop_footer
          %s1697 = sadd.s32 1, %s1693
        $region1332: #{tpu_custom_call.1} parent=1325 // loop_footer_branch
          %1692 = sbr.rel target = $region1328
        $region1333: #{tpu_custom_call.1} parent=1325 // loop_exit
          _
      $region1326: #{tpu_custom_call.1} parent=1310 // pred_fallthru
        _
    $region1311: #{tpu_custom_call.1} parent=1 // pred_fallthru
      _
    // Predicated region
    $region1312: #{tpu_custom_call.1} parent=1 // pred_check
      _
    $region1313: #{tpu_custom_call.1} parent=1 // pred_check_branch
      %1675 = sbr.rel (0) target = $region1315
    $region1314: #{tpu_custom_call.1} parent=1 // pred_region
      %s1677 = ssub.s32 2, 1
      loop: start=0, step=1, limit=1
      $region1316: #{tpu_custom_call.1} parent=1314 // loop_pre_header
        _
      $region1317: #{tpu_custom_call.1} parent=1314 // loop_header
        %s1679 = sphi 0, %s1683
        %p1680 = scmp.ge.s32.totalorder %s1679, 1
        %s1684 = sphi %s1670, %s1670
        %s1685 = sphi %s1671, %s1671
      $region1318: #{tpu_custom_call.1} parent=1314 // loop_header_branch
        %1682 = sbr.rel (%p1680) target = $region1322
      $region1319: #{tpu_custom_call.1} parent=1314 // loop_body
        %v1686 = vld [vmem:[%s1684] sm:%s1677]
        %1687 = vst [vmem:[%s1685] sm:%s1677] %v1686
      $region1320: #{tpu_custom_call.1} parent=1314 // loop_footer
        %s1683 = sadd.s32 1, %s1679
      $region1321: #{tpu_custom_call.1} parent=1314 // loop_footer_branch
        %1678 = sbr.rel target = $region1317
      $region1322: #{tpu_custom_call.1} parent=1314 // loop_exit
        _
    $region1315: #{tpu_custom_call.1} parent=1 // pred_fallthru
      _
    // Predicated region
    $region1334: #{tpu_custom_call.1} parent=1 // pred_check
      _
    $region1335: #{tpu_custom_call.1} parent=1 // pred_check_branch
      %1704 = sbr.rel (0) target = $region1337
    $region1336: #{tpu_custom_call.1} parent=1 // pred_region
      %1705 = vsyncadd [#allocation3], 16
    $region1337: #{tpu_custom_call.1} parent=1 // pred_fallthru
      _
    %s1706 = sadd.s32 %s1554, 4
    %s1707 = sld [smem:[#allocation5 + %s1706]]
    %s1708 = scalar_lea.vmem %s1, %s1707
    %s1709 = scalar_lea.vmem [#allocation2], 44
    // Predicated region
    $region1338: #{tpu_custom_call.1} parent=1 // pred_check
      _
    $region1339: #{tpu_custom_call.1} parent=1 // pred_check_branch
      %1711 = sbr.rel target = $region1341
    $region1340: #{tpu_custom_call.1} parent=1 // pred_region
      // Predicated region
      $region1353: #{tpu_custom_call.1} parent=1340 // pred_check
        _
      $region1354: #{tpu_custom_call.1} parent=1340 // pred_check_branch
        %1727 = sbr.rel (0) target = $region1356
      $region1355: #{tpu_custom_call.1} parent=1340 // pred_region
        %s1729 = ssub.s32 2, 1
        loop: start=0, step=1, limit=1
        $region1357: #{tpu_custom_call.1} parent=1355 // loop_pre_header
          _
        $region1358: #{tpu_custom_call.1} parent=1355 // loop_header
          %s1731 = sphi 0, %s1735
          %p1732 = scmp.ge.s32.totalorder %s1731, 1
          %s1736 = sphi %s1708, %s1708
          %s1737 = sphi %s1709, %s1709
        $region1359: #{tpu_custom_call.1} parent=1355 // loop_header_branch
          %1734 = sbr.rel (%p1732) target = $region1363
        $region1360: #{tpu_custom_call.1} parent=1355 // loop_body
          %v1738 = vld [vmem:[%s1736] sm:%s1729]
          %1739 = vst [vmem:[%s1737] sm:%s1729] %v1738
        $region1361: #{tpu_custom_call.1} parent=1355 // loop_footer
          %s1735 = sadd.s32 1, %s1731
        $region1362: #{tpu_custom_call.1} parent=1355 // loop_footer_branch
          %1730 = sbr.rel target = $region1358
        $region1363: #{tpu_custom_call.1} parent=1355 // loop_exit
          _
      $region1356: #{tpu_custom_call.1} parent=1340 // pred_fallthru
        _
    $region1341: #{tpu_custom_call.1} parent=1 // pred_fallthru
      _
    // Predicated region
    $region1342: #{tpu_custom_call.1} parent=1 // pred_check
      _
    $region1343: #{tpu_custom_call.1} parent=1 // pred_check_branch
      %1713 = sbr.rel (0) target = $region1345
    $region1344: #{tpu_custom_call.1} parent=1 // pred_region
      %s1715 = ssub.s32 2, 1
      loop: start=0, step=1, limit=1
      $region1346: #{tpu_custom_call.1} parent=1344 // loop_pre_header
        _
      $region1347: #{tpu_custom_call.1} parent=1344 // loop_header
        %s1717 = sphi 0, %s1721
        %p1718 = scmp.ge.s32.totalorder %s1717, 1
        %s1722 = sphi %s1708, %s1708
        %s1723 = sphi %s1709, %s1709
      $region1348: #{tpu_custom_call.1} parent=1344 // loop_header_branch
        %1720 = sbr.rel (%p1718) target = $region1352
      $region1349: #{tpu_custom_call.1} parent=1344 // loop_body
        %v1724 = vld [vmem:[%s1722] sm:%s1715]
        %1725 = vst [vmem:[%s1723] sm:%s1715] %v1724
      $region1350: #{tpu_custom_call.1} parent=1344 // loop_footer
        %s1721 = sadd.s32 1, %s1717
      $region1351: #{tpu_custom_call.1} parent=1344 // loop_footer_branch
        %1716 = sbr.rel target = $region1347
      $region1352: #{tpu_custom_call.1} parent=1344 // loop_exit
        _
    $region1345: #{tpu_custom_call.1} parent=1 // pred_fallthru
      _
    // Predicated region
    $region1364: #{tpu_custom_call.1} parent=1 // pred_check
      _
    $region1365: #{tpu_custom_call.1} parent=1 // pred_check_branch
      %1742 = sbr.rel (0) target = $region1367
    $region1366: #{tpu_custom_call.1} parent=1 // pred_region
      %1743 = vsyncadd [#allocation3], 16
    $region1367: #{tpu_custom_call.1} parent=1 // pred_fallthru
      _
    %s1744 = sadd.s32 %s1554, 5
    %s1745 = sld [smem:[#allocation5 + %s1744]]
    %s1746 = scalar_lea.vmem %s1, %s1745
    %s1747 = scalar_lea.vmem [#allocation2], 45
    // Predicated region
    $region1368: #{tpu_custom_call.1} parent=1 // pred_check
      _
    $region1369: #{tpu_custom_call.1} parent=1 // pred_check_branch
      %1749 = sbr.rel target = $region1371
    $region1370: #{tpu_custom_call.1} parent=1 // pred_region
      // Predicated region
      $region1383: #{tpu_custom_call.1} parent=1370 // pred_check
        _
      $region1384: #{tpu_custom_call.1} parent=1370 // pred_check_branch
        %1765 = sbr.rel (0) target = $region1386
      $region1385: #{tpu_custom_call.1} parent=1370 // pred_region
        %s1767 = ssub.s32 2, 1
        loop: start=0, step=1, limit=1
        $region1387: #{tpu_custom_call.1} parent=1385 // loop_pre_header
          _
        $region1388: #{tpu_custom_call.1} parent=1385 // loop_header
          %s1769 = sphi 0, %s1773
          %p1770 = scmp.ge.s32.totalorder %s1769, 1
          %s1774 = sphi %s1746, %s1746
          %s1775 = sphi %s1747, %s1747
        $region1389: #{tpu_custom_call.1} parent=1385 // loop_header_branch
          %1772 = sbr.rel (%p1770) target = $region1393
        $region1390: #{tpu_custom_call.1} parent=1385 // loop_body
          %v1776 = vld [vmem:[%s1774] sm:%s1767]
          %1777 = vst [vmem:[%s1775] sm:%s1767] %v1776
        $region1391: #{tpu_custom_call.1} parent=1385 // loop_footer
          %s1773 = sadd.s32 1, %s1769
        $region1392: #{tpu_custom_call.1} parent=1385 // loop_footer_branch
          %1768 = sbr.rel target = $region1388
        $region1393: #{tpu_custom_call.1} parent=1385 // loop_exit
          _
      $region1386: #{tpu_custom_call.1} parent=1370 // pred_fallthru
        _
    $region1371: #{tpu_custom_call.1} parent=1 // pred_fallthru
      _
    // Predicated region
    $region1372: #{tpu_custom_call.1} parent=1 // pred_check
      _
    $region1373: #{tpu_custom_call.1} parent=1 // pred_check_branch
      %1751 = sbr.rel (0) target = $region1375
    $region1374: #{tpu_custom_call.1} parent=1 // pred_region
      %s1753 = ssub.s32 2, 1
      loop: start=0, step=1, limit=1
      $region1376: #{tpu_custom_call.1} parent=1374 // loop_pre_header
        _
      $region1377: #{tpu_custom_call.1} parent=1374 // loop_header
        %s1755 = sphi 0, %s1759
        %p1756 = scmp.ge.s32.totalorder %s1755, 1
        %s1760 = sphi %s1746, %s1746
        %s1761 = sphi %s1747, %s1747
      $region1378: #{tpu_custom_call.1} parent=1374 // loop_header_branch
        %1758 = sbr.rel (%p1756) target = $region1382
      $region1379: #{tpu_custom_call.1} parent=1374 // loop_body
        %v1762 = vld [vmem:[%s1760] sm:%s1753]
        %1763 = vst [vmem:[%s1761] sm:%s1753] %v1762
      $region1380: #{tpu_custom_call.1} parent=1374 // loop_footer
        %s1759 = sadd.s32 1, %s1755
      $region1381: #{tpu_custom_call.1} parent=1374 // loop_footer_branch
        %1754 = sbr.rel target = $region1377
      $region1382: #{tpu_custom_call.1} parent=1374 // loop_exit
        _
    $region1375: #{tpu_custom_call.1} parent=1 // pred_fallthru
      _
    // Predicated region
    $region1394: #{tpu_custom_call.1} parent=1 // pred_check
      _
    $region1395: #{tpu_custom_call.1} parent=1 // pred_check_branch
      %1780 = sbr.rel (0) target = $region1397
    $region1396: #{tpu_custom_call.1} parent=1 // pred_region
      %1781 = vsyncadd [#allocation3], 16
    $region1397: #{tpu_custom_call.1} parent=1 // pred_fallthru
      _
    %s1782 = sadd.s32 %s1554, 6
    %s1783 = sld [smem:[#allocation5 + %s1782]]
    %s1784 = scalar_lea.vmem %s1, %s1783
    %s1785 = scalar_lea.vmem [#allocation2], 46
    // Predicated region
    $region1398: #{tpu_custom_call.1} parent=1 // pred_check
      _
    $region1399: #{tpu_custom_call.1} parent=1 // pred_check_branch
      %1787 = sbr.rel target = $region1401
    $region1400: #{tpu_custom_call.1} parent=1 // pred_region
      // Predicated region
      $region1413: #{tpu_custom_call.1} parent=1400 // pred_check
        _
      $region1414: #{tpu_custom_call.1} parent=1400 // pred_check_branch
        %1803 = sbr.rel (0) target = $region1416
      $region1415: #{tpu_custom_call.1} parent=1400 // pred_region
        %s1805 = ssub.s32 2, 1
        loop: start=0, step=1, limit=1
        $region1417: #{tpu_custom_call.1} parent=1415 // loop_pre_header
          _
        $region1418: #{tpu_custom_call.1} parent=1415 // loop_header
          %s1807 = sphi 0, %s1811
          %p1808 = scmp.ge.s32.totalorder %s1807, 1
          %s1812 = sphi %s1784, %s1784
          %s1813 = sphi %s1785, %s1785
        $region1419: #{tpu_custom_call.1} parent=1415 // loop_header_branch
          %1810 = sbr.rel (%p1808) target = $region1423
        $region1420: #{tpu_custom_call.1} parent=1415 // loop_body
          %v1814 = vld [vmem:[%s1812] sm:%s1805]
          %1815 = vst [vmem:[%s1813] sm:%s1805] %v1814
        $region1421: #{tpu_custom_call.1} parent=1415 // loop_footer
          %s1811 = sadd.s32 1, %s1807
        $region1422: #{tpu_custom_call.1} parent=1415 // loop_footer_branch
          %1806 = sbr.rel target = $region1418
        $region1423: #{tpu_custom_call.1} parent=1415 // loop_exit
          _
      $region1416: #{tpu_custom_call.1} parent=1400 // pred_fallthru
        _
    $region1401: #{tpu_custom_call.1} parent=1 // pred_fallthru
      _
    // Predicated region
    $region1402: #{tpu_custom_call.1} parent=1 // pred_check
      _
    $region1403: #{tpu_custom_call.1} parent=1 // pred_check_branch
      %1789 = sbr.rel (0) target = $region1405
    $region1404: #{tpu_custom_call.1} parent=1 // pred_region
      %s1791 = ssub.s32 2, 1
      loop: start=0, step=1, limit=1
      $region1406: #{tpu_custom_call.1} parent=1404 // loop_pre_header
        _
      $region1407: #{tpu_custom_call.1} parent=1404 // loop_header
        %s1793 = sphi 0, %s1797
        %p1794 = scmp.ge.s32.totalorder %s1793, 1
        %s1798 = sphi %s1784, %s1784
        %s1799 = sphi %s1785, %s1785
      $region1408: #{tpu_custom_call.1} parent=1404 // loop_header_branch
        %1796 = sbr.rel (%p1794) target = $region1412
      $region1409: #{tpu_custom_call.1} parent=1404 // loop_body
        %v1800 = vld [vmem:[%s1798] sm:%s1791]
        %1801 = vst [vmem:[%s1799] sm:%s1791] %v1800
      $region1410: #{tpu_custom_call.1} parent=1404 // loop_footer
        %s1797 = sadd.s32 1, %s1793
      $region1411: #{tpu_custom_call.1} parent=1404 // loop_footer_branch
        %1792 = sbr.rel target = $region1407
      $region1412: #{tpu_custom_call.1} parent=1404 // loop_exit
        _
    $region1405: #{tpu_custom_call.1} parent=1 // pred_fallthru
      _
    // Predicated region
    $region1424: #{tpu_custom_call.1} parent=1 // pred_check
      _
    $region1425: #{tpu_custom_call.1} parent=1 // pred_check_branch
      %1818 = sbr.rel (0) target = $region1427
    $region1426: #{tpu_custom_call.1} parent=1 // pred_region
      %1819 = vsyncadd [#allocation3], 16
    $region1427: #{tpu_custom_call.1} parent=1 // pred_fallthru
      _
    %s1820 = sadd.s32 %s1554, 7
    %s1821 = sld [smem:[#allocation5 + %s1820]]
    %s1822 = scalar_lea.vmem %s1, %s1821
    %s1823 = scalar_lea.vmem [#allocation2], 47
    // Predicated region
    $region1428: #{tpu_custom_call.1} parent=1 // pred_check
      _
    $region1429: #{tpu_custom_call.1} parent=1 // pred_check_branch
      %1825 = sbr.rel target = $region1431
    $region1430: #{tpu_custom_call.1} parent=1 // pred_region
      // Predicated region
      $region1443: #{tpu_custom_call.1} parent=1430 // pred_check
        _
      $region1444: #{tpu_custom_call.1} parent=1430 // pred_check_branch
        %1841 = sbr.rel (0) target = $region1446
      $region1445: #{tpu_custom_call.1} parent=1430 // pred_region
        %s1843 = ssub.s32 2, 1
        loop: start=0, step=1, limit=1
        $region1447: #{tpu_custom_call.1} parent=1445 // loop_pre_header
          _
        $region1448: #{tpu_custom_call.1} parent=1445 // loop_header
          %s1845 = sphi 0, %s1849
          %p1846 = scmp.ge.s32.totalorder %s1845, 1
          %s1850 = sphi %s1822, %s1822
          %s1851 = sphi %s1823, %s1823
        $region1449: #{tpu_custom_call.1} parent=1445 // loop_header_branch
          %1848 = sbr.rel (%p1846) target = $region1453
        $region1450: #{tpu_custom_call.1} parent=1445 // loop_body
          %v1852 = vld [vmem:[%s1850] sm:%s1843]
          %1853 = vst [vmem:[%s1851] sm:%s1843] %v1852
        $region1451: #{tpu_custom_call.1} parent=1445 // loop_footer
          %s1849 = sadd.s32 1, %s1845
        $region1452: #{tpu_custom_call.1} parent=1445 // loop_footer_branch
          %1844 = sbr.rel target = $region1448
        $region1453: #{tpu_custom_call.1} parent=1445 // loop_exit
          _
      $region1446: #{tpu_custom_call.1} parent=1430 // pred_fallthru
        _
    $region1431: #{tpu_custom_call.1} parent=1 // pred_fallthru
      _
    // Predicated region
    $region1432: #{tpu_custom_call.1} parent=1 // pred_check
      _
    $region1433: #{tpu_custom_call.1} parent=1 // pred_check_branch
      %1827 = sbr.rel (0) target = $region1435
    $region1434: #{tpu_custom_call.1} parent=1 // pred_region
      %s1829 = ssub.s32 2, 1
      loop: start=0, step=1, limit=1
      $region1436: #{tpu_custom_call.1} parent=1434 // loop_pre_header
        _
      $region1437: #{tpu_custom_call.1} parent=1434 // loop_header
        %s1831 = sphi 0, %s1835
        %p1832 = scmp.ge.s32.totalorder %s1831, 1
        %s1836 = sphi %s1822, %s1822
        %s1837 = sphi %s1823, %s1823
      $region1438: #{tpu_custom_call.1} parent=1434 // loop_header_branch
        %1834 = sbr.rel (%p1832) target = $region1442
      $region1439: #{tpu_custom_call.1} parent=1434 // loop_body
        %v1838 = vld [vmem:[%s1836] sm:%s1829]
        %1839 = vst [vmem:[%s1837] sm:%s1829] %v1838
      $region1440: #{tpu_custom_call.1} parent=1434 // loop_footer
        %s1835 = sadd.s32 1, %s1831
      $region1441: #{tpu_custom_call.1} parent=1434 // loop_footer_branch
        %1830 = sbr.rel target = $region1437
      $region1442: #{tpu_custom_call.1} parent=1434 // loop_exit
        _
    $region1435: #{tpu_custom_call.1} parent=1 // pred_fallthru
      _
    // Predicated region
    $region1454: #{tpu_custom_call.1} parent=1 // pred_check
      _
    $region1455: #{tpu_custom_call.1} parent=1 // pred_check_branch
      %1856 = sbr.rel (0) target = $region1457
    $region1456: #{tpu_custom_call.1} parent=1 // pred_region
      %1857 = vsyncadd [#allocation3], 16
    $region1457: #{tpu_custom_call.1} parent=1 // pred_fallthru
      _
    %s1858 = sadd.s32 %s29, 6
    %s1859 = smul.u32 %s1858, 128
    %s1860 = sld [smem:[#allocation5 + %s1859]]
    %s1861 = scalar_lea.vmem %s1, %s1860
    %s1862 = scalar_lea.vmem [#allocation2], 48
    // Predicated region
    $region1458: #{tpu_custom_call.1} parent=1 // pred_check
      _
    $region1459: #{tpu_custom_call.1} parent=1 // pred_check_branch
      %1864 = sbr.rel target = $region1461
    $region1460: #{tpu_custom_call.1} parent=1 // pred_region
      // Predicated region
      $region1473: #{tpu_custom_call.1} parent=1460 // pred_check
        _
      $region1474: #{tpu_custom_call.1} parent=1460 // pred_check_branch
        %1880 = sbr.rel (0) target = $region1476
      $region1475: #{tpu_custom_call.1} parent=1460 // pred_region
        %s1882 = ssub.s32 2, 1
        loop: start=0, step=1, limit=1
        $region1477: #{tpu_custom_call.1} parent=1475 // loop_pre_header
          _
        $region1478: #{tpu_custom_call.1} parent=1475 // loop_header
          %s1884 = sphi 0, %s1888
          %p1885 = scmp.ge.s32.totalorder %s1884, 1
          %s1889 = sphi %s1861, %s1861
          %s1890 = sphi %s1862, %s1862
        $region1479: #{tpu_custom_call.1} parent=1475 // loop_header_branch
          %1887 = sbr.rel (%p1885) target = $region1483
        $region1480: #{tpu_custom_call.1} parent=1475 // loop_body
          %v1891 = vld [vmem:[%s1889] sm:%s1882]
          %1892 = vst [vmem:[%s1890] sm:%s1882] %v1891
        $region1481: #{tpu_custom_call.1} parent=1475 // loop_footer
          %s1888 = sadd.s32 1, %s1884
        $region1482: #{tpu_custom_call.1} parent=1475 // loop_footer_branch
          %1883 = sbr.rel target = $region1478
        $region1483: #{tpu_custom_call.1} parent=1475 // loop_exit
          _
      $region1476: #{tpu_custom_call.1} parent=1460 // pred_fallthru
        _
    $region1461: #{tpu_custom_call.1} parent=1 // pred_fallthru
      _
    // Predicated region
    $region1462: #{tpu_custom_call.1} parent=1 // pred_check
      _
    $region1463: #{tpu_custom_call.1} parent=1 // pred_check_branch
      %1866 = sbr.rel (0) target = $region1465
    $region1464: #{tpu_custom_call.1} parent=1 // pred_region
      %s1868 = ssub.s32 2, 1
      loop: start=0, step=1, limit=1
      $region1466: #{tpu_custom_call.1} parent=1464 // loop_pre_header
        _
      $region1467: #{tpu_custom_call.1} parent=1464 // loop_header
        %s1870 = sphi 0, %s1874
        %p1871 = scmp.ge.s32.totalorder %s1870, 1
        %s1875 = sphi %s1861, %s1861
        %s1876 = sphi %s1862, %s1862
      $region1468: #{tpu_custom_call.1} parent=1464 // loop_header_branch
        %1873 = sbr.rel (%p1871) target = $region1472
      $region1469: #{tpu_custom_call.1} parent=1464 // loop_body
        %v1877 = vld [vmem:[%s1875] sm:%s1868]
        %1878 = vst [vmem:[%s1876] sm:%s1868] %v1877
      $region1470: #{tpu_custom_call.1} parent=1464 // loop_footer
        %s1874 = sadd.s32 1, %s1870
      $region1471: #{tpu_custom_call.1} parent=1464 // loop_footer_branch
        %1869 = sbr.rel target = $region1467
      $region1472: #{tpu_custom_call.1} parent=1464 // loop_exit
        _
    $region1465: #{tpu_custom_call.1} parent=1 // pred_fallthru
      _
    // Predicated region
    $region1484: #{tpu_custom_call.1} parent=1 // pred_check
      _
    $region1485: #{tpu_custom_call.1} parent=1 // pred_check_branch
      %1895 = sbr.rel (0) target = $region1487
    $region1486: #{tpu_custom_call.1} parent=1 // pred_region
      %1896 = vsyncadd [#allocation3], 16
    $region1487: #{tpu_custom_call.1} parent=1 // pred_fallthru
      _
    %s1897 = sadd.s32 %s1859, 1
    %s1898 = sld [smem:[#allocation5 + %s1897]]
    %s1899 = scalar_lea.vmem %s1, %s1898
    %s1900 = scalar_lea.vmem [#allocation2], 49
    // Predicated region
    $region1488: #{tpu_custom_call.1} parent=1 // pred_check
      _
    $region1489: #{tpu_custom_call.1} parent=1 // pred_check_branch
      %1902 = sbr.rel target = $region1491
    $region1490: #{tpu_custom_call.1} parent=1 // pred_region
      // Predicated region
      $region1503: #{tpu_custom_call.1} parent=1490 // pred_check
        _
      $region1504: #{tpu_custom_call.1} parent=1490 // pred_check_branch
        %1918 = sbr.rel (0) target = $region1506
      $region1505: #{tpu_custom_call.1} parent=1490 // pred_region
        %s1920 = ssub.s32 2, 1
        loop: start=0, step=1, limit=1
        $region1507: #{tpu_custom_call.1} parent=1505 // loop_pre_header
          _
        $region1508: #{tpu_custom_call.1} parent=1505 // loop_header
          %s1922 = sphi 0, %s1926
          %p1923 = scmp.ge.s32.totalorder %s1922, 1
          %s1927 = sphi %s1899, %s1899
          %s1928 = sphi %s1900, %s1900
        $region1509: #{tpu_custom_call.1} parent=1505 // loop_header_branch
          %1925 = sbr.rel (%p1923) target = $region1513
        $region1510: #{tpu_custom_call.1} parent=1505 // loop_body
          %v1929 = vld [vmem:[%s1927] sm:%s1920]
          %1930 = vst [vmem:[%s1928] sm:%s1920] %v1929
        $region1511: #{tpu_custom_call.1} parent=1505 // loop_footer
          %s1926 = sadd.s32 1, %s1922
        $region1512: #{tpu_custom_call.1} parent=1505 // loop_footer_branch
          %1921 = sbr.rel target = $region1508
        $region1513: #{tpu_custom_call.1} parent=1505 // loop_exit
          _
      $region1506: #{tpu_custom_call.1} parent=1490 // pred_fallthru
        _
    $region1491: #{tpu_custom_call.1} parent=1 // pred_fallthru
      _
    // Predicated region
    $region1492: #{tpu_custom_call.1} parent=1 // pred_check
      _
    $region1493: #{tpu_custom_call.1} parent=1 // pred_check_branch
      %1904 = sbr.rel (0) target = $region1495
    $region1494: #{tpu_custom_call.1} parent=1 // pred_region
      %s1906 = ssub.s32 2, 1
      loop: start=0, step=1, limit=1
      $region1496: #{tpu_custom_call.1} parent=1494 // loop_pre_header
        _
      $region1497: #{tpu_custom_call.1} parent=1494 // loop_header
        %s1908 = sphi 0, %s1912
        %p1909 = scmp.ge.s32.totalorder %s1908, 1
        %s1913 = sphi %s1899, %s1899
        %s1914 = sphi %s1900, %s1900
      $region1498: #{tpu_custom_call.1} parent=1494 // loop_header_branch
        %1911 = sbr.rel (%p1909) target = $region1502
      $region1499: #{tpu_custom_call.1} parent=1494 // loop_body
        %v1915 = vld [vmem:[%s1913] sm:%s1906]
        %1916 = vst [vmem:[%s1914] sm:%s1906] %v1915
      $region1500: #{tpu_custom_call.1} parent=1494 // loop_footer
        %s1912 = sadd.s32 1, %s1908
      $region1501: #{tpu_custom_call.1} parent=1494 // loop_footer_branch
        %1907 = sbr.rel target = $region1497
      $region1502: #{tpu_custom_call.1} parent=1494 // loop_exit
        _
    $region1495: #{tpu_custom_call.1} parent=1 // pred_fallthru
      _
    // Predicated region
    $region1514: #{tpu_custom_call.1} parent=1 // pred_check
      _
    $region1515: #{tpu_custom_call.1} parent=1 // pred_check_branch
      %1933 = sbr.rel (0) target = $region1517
    $region1516: #{tpu_custom_call.1} parent=1 // pred_region
      %1934 = vsyncadd [#allocation3], 16
    $region1517: #{tpu_custom_call.1} parent=1 // pred_fallthru
      _
    %s1935 = sadd.s32 %s1859, 2
    %s1936 = sld [smem:[#allocation5 + %s1935]]
    %s1937 = scalar_lea.vmem %s1, %s1936
    %s1938 = scalar_lea.vmem [#allocation2], 50
    // Predicated region
    $region1518: #{tpu_custom_call.1} parent=1 // pred_check
      _
    $region1519: #{tpu_custom_call.1} parent=1 // pred_check_branch
      %1940 = sbr.rel target = $region1521
    $region1520: #{tpu_custom_call.1} parent=1 // pred_region
      // Predicated region
      $region1533: #{tpu_custom_call.1} parent=1520 // pred_check
        _
      $region1534: #{tpu_custom_call.1} parent=1520 // pred_check_branch
        %1956 = sbr.rel (0) target = $region1536
      $region1535: #{tpu_custom_call.1} parent=1520 // pred_region
        %s1958 = ssub.s32 2, 1
        loop: start=0, step=1, limit=1
        $region1537: #{tpu_custom_call.1} parent=1535 // loop_pre_header
          _
        $region1538: #{tpu_custom_call.1} parent=1535 // loop_header
          %s1960 = sphi 0, %s1964
          %p1961 = scmp.ge.s32.totalorder %s1960, 1
          %s1965 = sphi %s1937, %s1937
          %s1966 = sphi %s1938, %s1938
        $region1539: #{tpu_custom_call.1} parent=1535 // loop_header_branch
          %1963 = sbr.rel (%p1961) target = $region1543
        $region1540: #{tpu_custom_call.1} parent=1535 // loop_body
          %v1967 = vld [vmem:[%s1965] sm:%s1958]
          %1968 = vst [vmem:[%s1966] sm:%s1958] %v1967
        $region1541: #{tpu_custom_call.1} parent=1535 // loop_footer
          %s1964 = sadd.s32 1, %s1960
        $region1542: #{tpu_custom_call.1} parent=1535 // loop_footer_branch
          %1959 = sbr.rel target = $region1538
        $region1543: #{tpu_custom_call.1} parent=1535 // loop_exit
          _
      $region1536: #{tpu_custom_call.1} parent=1520 // pred_fallthru
        _
    $region1521: #{tpu_custom_call.1} parent=1 // pred_fallthru
      _
    // Predicated region
    $region1522: #{tpu_custom_call.1} parent=1 // pred_check
      _
    $region1523: #{tpu_custom_call.1} parent=1 // pred_check_branch
      %1942 = sbr.rel (0) target = $region1525
    $region1524: #{tpu_custom_call.1} parent=1 // pred_region
      %s1944 = ssub.s32 2, 1
      loop: start=0, step=1, limit=1
      $region1526: #{tpu_custom_call.1} parent=1524 // loop_pre_header
        _
      $region1527: #{tpu_custom_call.1} parent=1524 // loop_header
        %s1946 = sphi 0, %s1950
        %p1947 = scmp.ge.s32.totalorder %s1946, 1
        %s1951 = sphi %s1937, %s1937
        %s1952 = sphi %s1938, %s1938
      $region1528: #{tpu_custom_call.1} parent=1524 // loop_header_branch
        %1949 = sbr.rel (%p1947) target = $region1532
      $region1529: #{tpu_custom_call.1} parent=1524 // loop_body
        %v1953 = vld [vmem:[%s1951] sm:%s1944]
        %1954 = vst [vmem:[%s1952] sm:%s1944] %v1953
      $region1530: #{tpu_custom_call.1} parent=1524 // loop_footer
        %s1950 = sadd.s32 1, %s1946
      $region1531: #{tpu_custom_call.1} parent=1524 // loop_footer_branch
        %1945 = sbr.rel target = $region1527
      $region1532: #{tpu_custom_call.1} parent=1524 // loop_exit
        _
    $region1525: #{tpu_custom_call.1} parent=1 // pred_fallthru
      _
    // Predicated region
    $region1544: #{tpu_custom_call.1} parent=1 // pred_check
      _
    $region1545: #{tpu_custom_call.1} parent=1 // pred_check_branch
      %1971 = sbr.rel (0) target = $region1547
    $region1546: #{tpu_custom_call.1} parent=1 // pred_region
      %1972 = vsyncadd [#allocation3], 16
    $region1547: #{tpu_custom_call.1} parent=1 // pred_fallthru
      _
    %s1973 = sadd.s32 %s1859, 3
    %s1974 = sld [smem:[#allocation5 + %s1973]]
    %s1975 = scalar_lea.vmem %s1, %s1974
    %s1976 = scalar_lea.vmem [#allocation2], 51
    // Predicated region
    $region1548: #{tpu_custom_call.1} parent=1 // pred_check
      _
    $region1549: #{tpu_custom_call.1} parent=1 // pred_check_branch
      %1978 = sbr.rel target = $region1551
    $region1550: #{tpu_custom_call.1} parent=1 // pred_region
      // Predicated region
      $region1563: #{tpu_custom_call.1} parent=1550 // pred_check
        _
      $region1564: #{tpu_custom_call.1} parent=1550 // pred_check_branch
        %1994 = sbr.rel (0) target = $region1566
      $region1565: #{tpu_custom_call.1} parent=1550 // pred_region
        %s1996 = ssub.s32 2, 1
        loop: start=0, step=1, limit=1
        $region1567: #{tpu_custom_call.1} parent=1565 // loop_pre_header
          _
        $region1568: #{tpu_custom_call.1} parent=1565 // loop_header
          %s1998 = sphi 0, %s2002
          %p1999 = scmp.ge.s32.totalorder %s1998, 1
          %s2003 = sphi %s1975, %s1975
          %s2004 = sphi %s1976, %s1976
        $region1569: #{tpu_custom_call.1} parent=1565 // loop_header_branch
          %2001 = sbr.rel (%p1999) target = $region1573
        $region1570: #{tpu_custom_call.1} parent=1565 // loop_body
          %v2005 = vld [vmem:[%s2003] sm:%s1996]
          %2006 = vst [vmem:[%s2004] sm:%s1996] %v2005
        $region1571: #{tpu_custom_call.1} parent=1565 // loop_footer
          %s2002 = sadd.s32 1, %s1998
        $region1572: #{tpu_custom_call.1} parent=1565 // loop_footer_branch
          %1997 = sbr.rel target = $region1568
        $region1573: #{tpu_custom_call.1} parent=1565 // loop_exit
          _
      $region1566: #{tpu_custom_call.1} parent=1550 // pred_fallthru
        _
    $region1551: #{tpu_custom_call.1} parent=1 // pred_fallthru
      _
    // Predicated region
    $region1552: #{tpu_custom_call.1} parent=1 // pred_check
      _
    $region1553: #{tpu_custom_call.1} parent=1 // pred_check_branch
      %1980 = sbr.rel (0) target = $region1555
    $region1554: #{tpu_custom_call.1} parent=1 // pred_region
      %s1982 = ssub.s32 2, 1
      loop: start=0, step=1, limit=1
      $region1556: #{tpu_custom_call.1} parent=1554 // loop_pre_header
        _
      $region1557: #{tpu_custom_call.1} parent=1554 // loop_header
        %s1984 = sphi 0, %s1988
        %p1985 = scmp.ge.s32.totalorder %s1984, 1
        %s1989 = sphi %s1975, %s1975
        %s1990 = sphi %s1976, %s1976
      $region1558: #{tpu_custom_call.1} parent=1554 // loop_header_branch
        %1987 = sbr.rel (%p1985) target = $region1562
      $region1559: #{tpu_custom_call.1} parent=1554 // loop_body
        %v1991 = vld [vmem:[%s1989] sm:%s1982]
        %1992 = vst [vmem:[%s1990] sm:%s1982] %v1991
      $region1560: #{tpu_custom_call.1} parent=1554 // loop_footer
        %s1988 = sadd.s32 1, %s1984
      $region1561: #{tpu_custom_call.1} parent=1554 // loop_footer_branch
        %1983 = sbr.rel target = $region1557
      $region1562: #{tpu_custom_call.1} parent=1554 // loop_exit
        _
    $region1555: #{tpu_custom_call.1} parent=1 // pred_fallthru
      _
    // Predicated region
    $region1574: #{tpu_custom_call.1} parent=1 // pred_check
      _
    $region1575: #{tpu_custom_call.1} parent=1 // pred_check_branch
      %2009 = sbr.rel (0) target = $region1577
    $region1576: #{tpu_custom_call.1} parent=1 // pred_region
      %2010 = vsyncadd [#allocation3], 16
    $region1577: #{tpu_custom_call.1} parent=1 // pred_fallthru
      _
    %s2011 = sadd.s32 %s1859, 4
    %s2012 = sld [smem:[#allocation5 + %s2011]]
    %s2013 = scalar_lea.vmem %s1, %s2012
    %s2014 = scalar_lea.vmem [#allocation2], 52
    // Predicated region
    $region1578: #{tpu_custom_call.1} parent=1 // pred_check
      _
    $region1579: #{tpu_custom_call.1} parent=1 // pred_check_branch
      %2016 = sbr.rel target = $region1581
    $region1580: #{tpu_custom_call.1} parent=1 // pred_region
      // Predicated region
      $region1593: #{tpu_custom_call.1} parent=1580 // pred_check
        _
      $region1594: #{tpu_custom_call.1} parent=1580 // pred_check_branch
        %2032 = sbr.rel (0) target = $region1596
      $region1595: #{tpu_custom_call.1} parent=1580 // pred_region
        %s2034 = ssub.s32 2, 1
        loop: start=0, step=1, limit=1
        $region1597: #{tpu_custom_call.1} parent=1595 // loop_pre_header
          _
        $region1598: #{tpu_custom_call.1} parent=1595 // loop_header
          %s2036 = sphi 0, %s2040
          %p2037 = scmp.ge.s32.totalorder %s2036, 1
          %s2041 = sphi %s2013, %s2013
          %s2042 = sphi %s2014, %s2014
        $region1599: #{tpu_custom_call.1} parent=1595 // loop_header_branch
          %2039 = sbr.rel (%p2037) target = $region1603
        $region1600: #{tpu_custom_call.1} parent=1595 // loop_body
          %v2043 = vld [vmem:[%s2041] sm:%s2034]
          %2044 = vst [vmem:[%s2042] sm:%s2034] %v2043
        $region1601: #{tpu_custom_call.1} parent=1595 // loop_footer
          %s2040 = sadd.s32 1, %s2036
        $region1602: #{tpu_custom_call.1} parent=1595 // loop_footer_branch
          %2035 = sbr.rel target = $region1598
        $region1603: #{tpu_custom_call.1} parent=1595 // loop_exit
          _
      $region1596: #{tpu_custom_call.1} parent=1580 // pred_fallthru
        _
    $region1581: #{tpu_custom_call.1} parent=1 // pred_fallthru
      _
    // Predicated region
    $region1582: #{tpu_custom_call.1} parent=1 // pred_check
      _
    $region1583: #{tpu_custom_call.1} parent=1 // pred_check_branch
      %2018 = sbr.rel (0) target = $region1585
    $region1584: #{tpu_custom_call.1} parent=1 // pred_region
      %s2020 = ssub.s32 2, 1
      loop: start=0, step=1, limit=1
      $region1586: #{tpu_custom_call.1} parent=1584 // loop_pre_header
        _
      $region1587: #{tpu_custom_call.1} parent=1584 // loop_header
        %s2022 = sphi 0, %s2026
        %p2023 = scmp.ge.s32.totalorder %s2022, 1
        %s2027 = sphi %s2013, %s2013
        %s2028 = sphi %s2014, %s2014
      $region1588: #{tpu_custom_call.1} parent=1584 // loop_header_branch
        %2025 = sbr.rel (%p2023) target = $region1592
      $region1589: #{tpu_custom_call.1} parent=1584 // loop_body
        %v2029 = vld [vmem:[%s2027] sm:%s2020]
        %2030 = vst [vmem:[%s2028] sm:%s2020] %v2029
      $region1590: #{tpu_custom_call.1} parent=1584 // loop_footer
        %s2026 = sadd.s32 1, %s2022
      $region1591: #{tpu_custom_call.1} parent=1584 // loop_footer_branch
        %2021 = sbr.rel target = $region1587
      $region1592: #{tpu_custom_call.1} parent=1584 // loop_exit
        _
    $region1585: #{tpu_custom_call.1} parent=1 // pred_fallthru
      _
    // Predicated region
    $region1604: #{tpu_custom_call.1} parent=1 // pred_check
      _
    $region1605: #{tpu_custom_call.1} parent=1 // pred_check_branch
      %2047 = sbr.rel (0) target = $region1607
    $region1606: #{tpu_custom_call.1} parent=1 // pred_region
      %2048 = vsyncadd [#allocation3], 16
    $region1607: #{tpu_custom_call.1} parent=1 // pred_fallthru
      _
    %s2049 = sadd.s32 %s1859, 5
    %s2050 = sld [smem:[#allocation5 + %s2049]]
    %s2051 = scalar_lea.vmem %s1, %s2050
    %s2052 = scalar_lea.vmem [#allocation2], 53
    // Predicated region
    $region1608: #{tpu_custom_call.1} parent=1 // pred_check
      _
    $region1609: #{tpu_custom_call.1} parent=1 // pred_check_branch
      %2054 = sbr.rel target = $region1611
    $region1610: #{tpu_custom_call.1} parent=1 // pred_region
      // Predicated region
      $region1623: #{tpu_custom_call.1} parent=1610 // pred_check
        _
      $region1624: #{tpu_custom_call.1} parent=1610 // pred_check_branch
        %2070 = sbr.rel (0) target = $region1626
      $region1625: #{tpu_custom_call.1} parent=1610 // pred_region
        %s2072 = ssub.s32 2, 1
        loop: start=0, step=1, limit=1
        $region1627: #{tpu_custom_call.1} parent=1625 // loop_pre_header
          _
        $region1628: #{tpu_custom_call.1} parent=1625 // loop_header
          %s2074 = sphi 0, %s2078
          %p2075 = scmp.ge.s32.totalorder %s2074, 1
          %s2079 = sphi %s2051, %s2051
          %s2080 = sphi %s2052, %s2052
        $region1629: #{tpu_custom_call.1} parent=1625 // loop_header_branch
          %2077 = sbr.rel (%p2075) target = $region1633
        $region1630: #{tpu_custom_call.1} parent=1625 // loop_body
          %v2081 = vld [vmem:[%s2079] sm:%s2072]
          %2082 = vst [vmem:[%s2080] sm:%s2072] %v2081
        $region1631: #{tpu_custom_call.1} parent=1625 // loop_footer
          %s2078 = sadd.s32 1, %s2074
        $region1632: #{tpu_custom_call.1} parent=1625 // loop_footer_branch
          %2073 = sbr.rel target = $region1628
        $region1633: #{tpu_custom_call.1} parent=1625 // loop_exit
          _
      $region1626: #{tpu_custom_call.1} parent=1610 // pred_fallthru
        _
    $region1611: #{tpu_custom_call.1} parent=1 // pred_fallthru
      _
    // Predicated region
    $region1612: #{tpu_custom_call.1} parent=1 // pred_check
      _
    $region1613: #{tpu_custom_call.1} parent=1 // pred_check_branch
      %2056 = sbr.rel (0) target = $region1615
    $region1614: #{tpu_custom_call.1} parent=1 // pred_region
      %s2058 = ssub.s32 2, 1
      loop: start=0, step=1, limit=1
      $region1616: #{tpu_custom_call.1} parent=1614 // loop_pre_header
        _
      $region1617: #{tpu_custom_call.1} parent=1614 // loop_header
        %s2060 = sphi 0, %s2064
        %p2061 = scmp.ge.s32.totalorder %s2060, 1
        %s2065 = sphi %s2051, %s2051
        %s2066 = sphi %s2052, %s2052
      $region1618: #{tpu_custom_call.1} parent=1614 // loop_header_branch
        %2063 = sbr.rel (%p2061) target = $region1622
      $region1619: #{tpu_custom_call.1} parent=1614 // loop_body
        %v2067 = vld [vmem:[%s2065] sm:%s2058]
        %2068 = vst [vmem:[%s2066] sm:%s2058] %v2067
      $region1620: #{tpu_custom_call.1} parent=1614 // loop_footer
        %s2064 = sadd.s32 1, %s2060
      $region1621: #{tpu_custom_call.1} parent=1614 // loop_footer_branch
        %2059 = sbr.rel target = $region1617
      $region1622: #{tpu_custom_call.1} parent=1614 // loop_exit
        _
    $region1615: #{tpu_custom_call.1} parent=1 // pred_fallthru
      _
    // Predicated region
    $region1634: #{tpu_custom_call.1} parent=1 // pred_check
      _
    $region1635: #{tpu_custom_call.1} parent=1 // pred_check_branch
      %2085 = sbr.rel (0) target = $region1637
    $region1636: #{tpu_custom_call.1} parent=1 // pred_region
      %2086 = vsyncadd [#allocation3], 16
    $region1637: #{tpu_custom_call.1} parent=1 // pred_fallthru
      _
    %s2087 = sadd.s32 %s1859, 6
    %s2088 = sld [smem:[#allocation5 + %s2087]]
    %s2089 = scalar_lea.vmem %s1, %s2088
    %s2090 = scalar_lea.vmem [#allocation2], 54
    // Predicated region
    $region1638: #{tpu_custom_call.1} parent=1 // pred_check
      _
    $region1639: #{tpu_custom_call.1} parent=1 // pred_check_branch
      %2092 = sbr.rel target = $region1641
    $region1640: #{tpu_custom_call.1} parent=1 // pred_region
      // Predicated region
      $region1653: #{tpu_custom_call.1} parent=1640 // pred_check
        _
      $region1654: #{tpu_custom_call.1} parent=1640 // pred_check_branch
        %2108 = sbr.rel (0) target = $region1656
      $region1655: #{tpu_custom_call.1} parent=1640 // pred_region
        %s2110 = ssub.s32 2, 1
        loop: start=0, step=1, limit=1
        $region1657: #{tpu_custom_call.1} parent=1655 // loop_pre_header
          _
        $region1658: #{tpu_custom_call.1} parent=1655 // loop_header
          %s2112 = sphi 0, %s2116
          %p2113 = scmp.ge.s32.totalorder %s2112, 1
          %s2117 = sphi %s2089, %s2089
          %s2118 = sphi %s2090, %s2090
        $region1659: #{tpu_custom_call.1} parent=1655 // loop_header_branch
          %2115 = sbr.rel (%p2113) target = $region1663
        $region1660: #{tpu_custom_call.1} parent=1655 // loop_body
          %v2119 = vld [vmem:[%s2117] sm:%s2110]
          %2120 = vst [vmem:[%s2118] sm:%s2110] %v2119
        $region1661: #{tpu_custom_call.1} parent=1655 // loop_footer
          %s2116 = sadd.s32 1, %s2112
        $region1662: #{tpu_custom_call.1} parent=1655 // loop_footer_branch
          %2111 = sbr.rel target = $region1658
        $region1663: #{tpu_custom_call.1} parent=1655 // loop_exit
          _
      $region1656: #{tpu_custom_call.1} parent=1640 // pred_fallthru
        _
    $region1641: #{tpu_custom_call.1} parent=1 // pred_fallthru
      _
    // Predicated region
    $region1642: #{tpu_custom_call.1} parent=1 // pred_check
      _
    $region1643: #{tpu_custom_call.1} parent=1 // pred_check_branch
      %2094 = sbr.rel (0) target = $region1645
    $region1644: #{tpu_custom_call.1} parent=1 // pred_region
      %s2096 = ssub.s32 2, 1
      loop: start=0, step=1, limit=1
      $region1646: #{tpu_custom_call.1} parent=1644 // loop_pre_header
        _
      $region1647: #{tpu_custom_call.1} parent=1644 // loop_header
        %s2098 = sphi 0, %s2102
        %p2099 = scmp.ge.s32.totalorder %s2098, 1
        %s2103 = sphi %s2089, %s2089
        %s2104 = sphi %s2090, %s2090
      $region1648: #{tpu_custom_call.1} parent=1644 // loop_header_branch
        %2101 = sbr.rel (%p2099) target = $region1652
      $region1649: #{tpu_custom_call.1} parent=1644 // loop_body
        %v2105 = vld [vmem:[%s2103] sm:%s2096]
        %2106 = vst [vmem:[%s2104] sm:%s2096] %v2105
      $region1650: #{tpu_custom_call.1} parent=1644 // loop_footer
        %s2102 = sadd.s32 1, %s2098
      $region1651: #{tpu_custom_call.1} parent=1644 // loop_footer_branch
        %2097 = sbr.rel target = $region1647
      $region1652: #{tpu_custom_call.1} parent=1644 // loop_exit
        _
    $region1645: #{tpu_custom_call.1} parent=1 // pred_fallthru
      _
    // Predicated region
    $region1664: #{tpu_custom_call.1} parent=1 // pred_check
      _
    $region1665: #{tpu_custom_call.1} parent=1 // pred_check_branch
      %2123 = sbr.rel (0) target = $region1667
    $region1666: #{tpu_custom_call.1} parent=1 // pred_region
      %2124 = vsyncadd [#allocation3], 16
    $region1667: #{tpu_custom_call.1} parent=1 // pred_fallthru
      _
    %s2125 = sadd.s32 %s1859, 7
    %s2126 = sld [smem:[#allocation5 + %s2125]]
    %s2127 = scalar_lea.vmem %s1, %s2126
    %s2128 = scalar_lea.vmem [#allocation2], 55
    // Predicated region
    $region1668: #{tpu_custom_call.1} parent=1 // pred_check
      _
    $region1669: #{tpu_custom_call.1} parent=1 // pred_check_branch
      %2130 = sbr.rel target = $region1671
    $region1670: #{tpu_custom_call.1} parent=1 // pred_region
      // Predicated region
      $region1683: #{tpu_custom_call.1} parent=1670 // pred_check
        _
      $region1684: #{tpu_custom_call.1} parent=1670 // pred_check_branch
        %2146 = sbr.rel (0) target = $region1686
      $region1685: #{tpu_custom_call.1} parent=1670 // pred_region
        %s2148 = ssub.s32 2, 1
        loop: start=0, step=1, limit=1
        $region1687: #{tpu_custom_call.1} parent=1685 // loop_pre_header
          _
        $region1688: #{tpu_custom_call.1} parent=1685 // loop_header
          %s2150 = sphi 0, %s2154
          %p2151 = scmp.ge.s32.totalorder %s2150, 1
          %s2155 = sphi %s2127, %s2127
          %s2156 = sphi %s2128, %s2128
        $region1689: #{tpu_custom_call.1} parent=1685 // loop_header_branch
          %2153 = sbr.rel (%p2151) target = $region1693
        $region1690: #{tpu_custom_call.1} parent=1685 // loop_body
          %v2157 = vld [vmem:[%s2155] sm:%s2148]
          %2158 = vst [vmem:[%s2156] sm:%s2148] %v2157
        $region1691: #{tpu_custom_call.1} parent=1685 // loop_footer
          %s2154 = sadd.s32 1, %s2150
        $region1692: #{tpu_custom_call.1} parent=1685 // loop_footer_branch
          %2149 = sbr.rel target = $region1688
        $region1693: #{tpu_custom_call.1} parent=1685 // loop_exit
          _
      $region1686: #{tpu_custom_call.1} parent=1670 // pred_fallthru
        _
    $region1671: #{tpu_custom_call.1} parent=1 // pred_fallthru
      _
    // Predicated region
    $region1672: #{tpu_custom_call.1} parent=1 // pred_check
      _
    $region1673: #{tpu_custom_call.1} parent=1 // pred_check_branch
      %2132 = sbr.rel (0) target = $region1675
    $region1674: #{tpu_custom_call.1} parent=1 // pred_region
      %s2134 = ssub.s32 2, 1
      loop: start=0, step=1, limit=1
      $region1676: #{tpu_custom_call.1} parent=1674 // loop_pre_header
        _
      $region1677: #{tpu_custom_call.1} parent=1674 // loop_header
        %s2136 = sphi 0, %s2140
        %p2137 = scmp.ge.s32.totalorder %s2136, 1
        %s2141 = sphi %s2127, %s2127
        %s2142 = sphi %s2128, %s2128
      $region1678: #{tpu_custom_call.1} parent=1674 // loop_header_branch
        %2139 = sbr.rel (%p2137) target = $region1682
      $region1679: #{tpu_custom_call.1} parent=1674 // loop_body
        %v2143 = vld [vmem:[%s2141] sm:%s2134]
        %2144 = vst [vmem:[%s2142] sm:%s2134] %v2143
      $region1680: #{tpu_custom_call.1} parent=1674 // loop_footer
        %s2140 = sadd.s32 1, %s2136
      $region1681: #{tpu_custom_call.1} parent=1674 // loop_footer_branch
        %2135 = sbr.rel target = $region1677
      $region1682: #{tpu_custom_call.1} parent=1674 // loop_exit
        _
    $region1675: #{tpu_custom_call.1} parent=1 // pred_fallthru
      _
    // Predicated region
    $region1694: #{tpu_custom_call.1} parent=1 // pred_check
      _
    $region1695: #{tpu_custom_call.1} parent=1 // pred_check_branch
      %2161 = sbr.rel (0) target = $region1697
    $region1696: #{tpu_custom_call.1} parent=1 // pred_region
      %2162 = vsyncadd [#allocation3], 16
    $region1697: #{tpu_custom_call.1} parent=1 // pred_fallthru
      _
    %s2163 = sadd.s32 %s29, 7
    %s2164 = smul.u32 %s2163, 128
    %s2165 = sld [smem:[#allocation5 + %s2164]]
    %s2166 = scalar_lea.vmem %s1, %s2165
    %s2167 = scalar_lea.vmem [#allocation2], 56
    // Predicated region
    $region1698: #{tpu_custom_call.1} parent=1 // pred_check
      _
    $region1699: #{tpu_custom_call.1} parent=1 // pred_check_branch
      %2169 = sbr.rel target = $region1701
    $region1700: #{tpu_custom_call.1} parent=1 // pred_region
      // Predicated region
      $region1713: #{tpu_custom_call.1} parent=1700 // pred_check
        _
      $region1714: #{tpu_custom_call.1} parent=1700 // pred_check_branch
        %2185 = sbr.rel (0) target = $region1716
      $region1715: #{tpu_custom_call.1} parent=1700 // pred_region
        %s2187 = ssub.s32 2, 1
        loop: start=0, step=1, limit=1
        $region1717: #{tpu_custom_call.1} parent=1715 // loop_pre_header
          _
        $region1718: #{tpu_custom_call.1} parent=1715 // loop_header
          %s2189 = sphi 0, %s2193
          %p2190 = scmp.ge.s32.totalorder %s2189, 1
          %s2194 = sphi %s2166, %s2166
          %s2195 = sphi %s2167, %s2167
        $region1719: #{tpu_custom_call.1} parent=1715 // loop_header_branch
          %2192 = sbr.rel (%p2190) target = $region1723
        $region1720: #{tpu_custom_call.1} parent=1715 // loop_body
          %v2196 = vld [vmem:[%s2194] sm:%s2187]
          %2197 = vst [vmem:[%s2195] sm:%s2187] %v2196
        $region1721: #{tpu_custom_call.1} parent=1715 // loop_footer
          %s2193 = sadd.s32 1, %s2189
        $region1722: #{tpu_custom_call.1} parent=1715 // loop_footer_branch
          %2188 = sbr.rel target = $region1718
        $region1723: #{tpu_custom_call.1} parent=1715 // loop_exit
          _
      $region1716: #{tpu_custom_call.1} parent=1700 // pred_fallthru
        _
    $region1701: #{tpu_custom_call.1} parent=1 // pred_fallthru
      _
    // Predicated region
    $region1702: #{tpu_custom_call.1} parent=1 // pred_check
      _
    $region1703: #{tpu_custom_call.1} parent=1 // pred_check_branch
      %2171 = sbr.rel (0) target = $region1705
    $region1704: #{tpu_custom_call.1} parent=1 // pred_region
      %s2173 = ssub.s32 2, 1
      loop: start=0, step=1, limit=1
      $region1706: #{tpu_custom_call.1} parent=1704 // loop_pre_header
        _
      $region1707: #{tpu_custom_call.1} parent=1704 // loop_header
        %s2175 = sphi 0, %s2179
        %p2176 = scmp.ge.s32.totalorder %s2175, 1
        %s2180 = sphi %s2166, %s2166
        %s2181 = sphi %s2167, %s2167
      $region1708: #{tpu_custom_call.1} parent=1704 // loop_header_branch
        %2178 = sbr.rel (%p2176) target = $region1712
      $region1709: #{tpu_custom_call.1} parent=1704 // loop_body
        %v2182 = vld [vmem:[%s2180] sm:%s2173]
        %2183 = vst [vmem:[%s2181] sm:%s2173] %v2182
      $region1710: #{tpu_custom_call.1} parent=1704 // loop_footer
        %s2179 = sadd.s32 1, %s2175
      $region1711: #{tpu_custom_call.1} parent=1704 // loop_footer_branch
        %2174 = sbr.rel target = $region1707
      $region1712: #{tpu_custom_call.1} parent=1704 // loop_exit
        _
    $region1705: #{tpu_custom_call.1} parent=1 // pred_fallthru
      _
    // Predicated region
    $region1724: #{tpu_custom_call.1} parent=1 // pred_check
      _
    $region1725: #{tpu_custom_call.1} parent=1 // pred_check_branch
      %2200 = sbr.rel (0) target = $region1727
    $region1726: #{tpu_custom_call.1} parent=1 // pred_region
      %2201 = vsyncadd [#allocation3], 16
    $region1727: #{tpu_custom_call.1} parent=1 // pred_fallthru
      _
    %s2202 = sadd.s32 %s2164, 1
    %s2203 = sld [smem:[#allocation5 + %s2202]]
    %s2204 = scalar_lea.vmem %s1, %s2203
    %s2205 = scalar_lea.vmem [#allocation2], 57
    // Predicated region
    $region1728: #{tpu_custom_call.1} parent=1 // pred_check
      _
    $region1729: #{tpu_custom_call.1} parent=1 // pred_check_branch
      %2207 = sbr.rel target = $region1731
    $region1730: #{tpu_custom_call.1} parent=1 // pred_region
      // Predicated region
      $region1743: #{tpu_custom_call.1} parent=1730 // pred_check
        _
      $region1744: #{tpu_custom_call.1} parent=1730 // pred_check_branch
        %2223 = sbr.rel (0) target = $region1746
      $region1745: #{tpu_custom_call.1} parent=1730 // pred_region
        %s2225 = ssub.s32 2, 1
        loop: start=0, step=1, limit=1
        $region1747: #{tpu_custom_call.1} parent=1745 // loop_pre_header
          _
        $region1748: #{tpu_custom_call.1} parent=1745 // loop_header
          %s2227 = sphi 0, %s2231
          %p2228 = scmp.ge.s32.totalorder %s2227, 1
          %s2232 = sphi %s2204, %s2204
          %s2233 = sphi %s2205, %s2205
        $region1749: #{tpu_custom_call.1} parent=1745 // loop_header_branch
          %2230 = sbr.rel (%p2228) target = $region1753
        $region1750: #{tpu_custom_call.1} parent=1745 // loop_body
          %v2234 = vld [vmem:[%s2232] sm:%s2225]
          %2235 = vst [vmem:[%s2233] sm:%s2225] %v2234
        $region1751: #{tpu_custom_call.1} parent=1745 // loop_footer
          %s2231 = sadd.s32 1, %s2227
        $region1752: #{tpu_custom_call.1} parent=1745 // loop_footer_branch
          %2226 = sbr.rel target = $region1748
        $region1753: #{tpu_custom_call.1} parent=1745 // loop_exit
          _
      $region1746: #{tpu_custom_call.1} parent=1730 // pred_fallthru
        _
    $region1731: #{tpu_custom_call.1} parent=1 // pred_fallthru
      _
    // Predicated region
    $region1732: #{tpu_custom_call.1} parent=1 // pred_check
      _
    $region1733: #{tpu_custom_call.1} parent=1 // pred_check_branch
      %2209 = sbr.rel (0) target = $region1735
    $region1734: #{tpu_custom_call.1} parent=1 // pred_region
      %s2211 = ssub.s32 2, 1
      loop: start=0, step=1, limit=1
      $region1736: #{tpu_custom_call.1} parent=1734 // loop_pre_header
        _
      $region1737: #{tpu_custom_call.1} parent=1734 // loop_header
        %s2213 = sphi 0, %s2217
        %p2214 = scmp.ge.s32.totalorder %s2213, 1
        %s2218 = sphi %s2204, %s2204
        %s2219 = sphi %s2205, %s2205
      $region1738: #{tpu_custom_call.1} parent=1734 // loop_header_branch
        %2216 = sbr.rel (%p2214) target = $region1742
      $region1739: #{tpu_custom_call.1} parent=1734 // loop_body
        %v2220 = vld [vmem:[%s2218] sm:%s2211]
        %2221 = vst [vmem:[%s2219] sm:%s2211] %v2220
      $region1740: #{tpu_custom_call.1} parent=1734 // loop_footer
        %s2217 = sadd.s32 1, %s2213
      $region1741: #{tpu_custom_call.1} parent=1734 // loop_footer_branch
        %2212 = sbr.rel target = $region1737
      $region1742: #{tpu_custom_call.1} parent=1734 // loop_exit
        _
    $region1735: #{tpu_custom_call.1} parent=1 // pred_fallthru
      _
    // Predicated region
    $region1754: #{tpu_custom_call.1} parent=1 // pred_check
      _
    $region1755: #{tpu_custom_call.1} parent=1 // pred_check_branch
      %2238 = sbr.rel (0) target = $region1757
    $region1756: #{tpu_custom_call.1} parent=1 // pred_region
      %2239 = vsyncadd [#allocation3], 16
    $region1757: #{tpu_custom_call.1} parent=1 // pred_fallthru
      _
    %s2240 = sadd.s32 %s2164, 2
    %s2241 = sld [smem:[#allocation5 + %s2240]]
    %s2242 = scalar_lea.vmem %s1, %s2241
    %s2243 = scalar_lea.vmem [#allocation2], 58
    // Predicated region
    $region1758: #{tpu_custom_call.1} parent=1 // pred_check
      _
    $region1759: #{tpu_custom_call.1} parent=1 // pred_check_branch
      %2245 = sbr.rel target = $region1761
    $region1760: #{tpu_custom_call.1} parent=1 // pred_region
      // Predicated region
      $region1773: #{tpu_custom_call.1} parent=1760 // pred_check
        _
      $region1774: #{tpu_custom_call.1} parent=1760 // pred_check_branch
        %2261 = sbr.rel (0) target = $region1776
      $region1775: #{tpu_custom_call.1} parent=1760 // pred_region
        %s2263 = ssub.s32 2, 1
        loop: start=0, step=1, limit=1
        $region1777: #{tpu_custom_call.1} parent=1775 // loop_pre_header
          _
        $region1778: #{tpu_custom_call.1} parent=1775 // loop_header
          %s2265 = sphi 0, %s2269
          %p2266 = scmp.ge.s32.totalorder %s2265, 1
          %s2270 = sphi %s2242, %s2242
          %s2271 = sphi %s2243, %s2243
        $region1779: #{tpu_custom_call.1} parent=1775 // loop_header_branch
          %2268 = sbr.rel (%p2266) target = $region1783
        $region1780: #{tpu_custom_call.1} parent=1775 // loop_body
          %v2272 = vld [vmem:[%s2270] sm:%s2263]
          %2273 = vst [vmem:[%s2271] sm:%s2263] %v2272
        $region1781: #{tpu_custom_call.1} parent=1775 // loop_footer
          %s2269 = sadd.s32 1, %s2265
        $region1782: #{tpu_custom_call.1} parent=1775 // loop_footer_branch
          %2264 = sbr.rel target = $region1778
        $region1783: #{tpu_custom_call.1} parent=1775 // loop_exit
          _
      $region1776: #{tpu_custom_call.1} parent=1760 // pred_fallthru
        _
    $region1761: #{tpu_custom_call.1} parent=1 // pred_fallthru
      _
    // Predicated region
    $region1762: #{tpu_custom_call.1} parent=1 // pred_check
      _
    $region1763: #{tpu_custom_call.1} parent=1 // pred_check_branch
      %2247 = sbr.rel (0) target = $region1765
    $region1764: #{tpu_custom_call.1} parent=1 // pred_region
      %s2249 = ssub.s32 2, 1
      loop: start=0, step=1, limit=1
      $region1766: #{tpu_custom_call.1} parent=1764 // loop_pre_header
        _
      $region1767: #{tpu_custom_call.1} parent=1764 // loop_header
        %s2251 = sphi 0, %s2255
        %p2252 = scmp.ge.s32.totalorder %s2251, 1
        %s2256 = sphi %s2242, %s2242
        %s2257 = sphi %s2243, %s2243
      $region1768: #{tpu_custom_call.1} parent=1764 // loop_header_branch
        %2254 = sbr.rel (%p2252) target = $region1772
      $region1769: #{tpu_custom_call.1} parent=1764 // loop_body
        %v2258 = vld [vmem:[%s2256] sm:%s2249]
        %2259 = vst [vmem:[%s2257] sm:%s2249] %v2258
      $region1770: #{tpu_custom_call.1} parent=1764 // loop_footer
        %s2255 = sadd.s32 1, %s2251
      $region1771: #{tpu_custom_call.1} parent=1764 // loop_footer_branch
        %2250 = sbr.rel target = $region1767
      $region1772: #{tpu_custom_call.1} parent=1764 // loop_exit
        _
    $region1765: #{tpu_custom_call.1} parent=1 // pred_fallthru
      _
    // Predicated region
    $region1784: #{tpu_custom_call.1} parent=1 // pred_check
      _
    $region1785: #{tpu_custom_call.1} parent=1 // pred_check_branch
      %2276 = sbr.rel (0) target = $region1787
    $region1786: #{tpu_custom_call.1} parent=1 // pred_region
      %2277 = vsyncadd [#allocation3], 16
    $region1787: #{tpu_custom_call.1} parent=1 // pred_fallthru
      _
    %s2278 = sadd.s32 %s2164, 3
    %s2279 = sld [smem:[#allocation5 + %s2278]]
    %s2280 = scalar_lea.vmem %s1, %s2279
    %s2281 = scalar_lea.vmem [#allocation2], 59
    // Predicated region
    $region1788: #{tpu_custom_call.1} parent=1 // pred_check
      _
    $region1789: #{tpu_custom_call.1} parent=1 // pred_check_branch
      %2283 = sbr.rel target = $region1791
    $region1790: #{tpu_custom_call.1} parent=1 // pred_region
      // Predicated region
      $region1803: #{tpu_custom_call.1} parent=1790 // pred_check
        _
      $region1804: #{tpu_custom_call.1} parent=1790 // pred_check_branch
        %2299 = sbr.rel (0) target = $region1806
      $region1805: #{tpu_custom_call.1} parent=1790 // pred_region
        %s2301 = ssub.s32 2, 1
        loop: start=0, step=1, limit=1
        $region1807: #{tpu_custom_call.1} parent=1805 // loop_pre_header
          _
        $region1808: #{tpu_custom_call.1} parent=1805 // loop_header
          %s2303 = sphi 0, %s2307
          %p2304 = scmp.ge.s32.totalorder %s2303, 1
          %s2308 = sphi %s2280, %s2280
          %s2309 = sphi %s2281, %s2281
        $region1809: #{tpu_custom_call.1} parent=1805 // loop_header_branch
          %2306 = sbr.rel (%p2304) target = $region1813
        $region1810: #{tpu_custom_call.1} parent=1805 // loop_body
          %v2310 = vld [vmem:[%s2308] sm:%s2301]
          %2311 = vst [vmem:[%s2309] sm:%s2301] %v2310
        $region1811: #{tpu_custom_call.1} parent=1805 // loop_footer
          %s2307 = sadd.s32 1, %s2303
        $region1812: #{tpu_custom_call.1} parent=1805 // loop_footer_branch
          %2302 = sbr.rel target = $region1808
        $region1813: #{tpu_custom_call.1} parent=1805 // loop_exit
          _
      $region1806: #{tpu_custom_call.1} parent=1790 // pred_fallthru
        _
    $region1791: #{tpu_custom_call.1} parent=1 // pred_fallthru
      _
    // Predicated region
    $region1792: #{tpu_custom_call.1} parent=1 // pred_check
      _
    $region1793: #{tpu_custom_call.1} parent=1 // pred_check_branch
      %2285 = sbr.rel (0) target = $region1795
    $region1794: #{tpu_custom_call.1} parent=1 // pred_region
      %s2287 = ssub.s32 2, 1
      loop: start=0, step=1, limit=1
      $region1796: #{tpu_custom_call.1} parent=1794 // loop_pre_header
        _
      $region1797: #{tpu_custom_call.1} parent=1794 // loop_header
        %s2289 = sphi 0, %s2293
        %p2290 = scmp.ge.s32.totalorder %s2289, 1
        %s2294 = sphi %s2280, %s2280
        %s2295 = sphi %s2281, %s2281
      $region1798: #{tpu_custom_call.1} parent=1794 // loop_header_branch
        %2292 = sbr.rel (%p2290) target = $region1802
      $region1799: #{tpu_custom_call.1} parent=1794 // loop_body
        %v2296 = vld [vmem:[%s2294] sm:%s2287]
        %2297 = vst [vmem:[%s2295] sm:%s2287] %v2296
      $region1800: #{tpu_custom_call.1} parent=1794 // loop_footer
        %s2293 = sadd.s32 1, %s2289
      $region1801: #{tpu_custom_call.1} parent=1794 // loop_footer_branch
        %2288 = sbr.rel target = $region1797
      $region1802: #{tpu_custom_call.1} parent=1794 // loop_exit
        _
    $region1795: #{tpu_custom_call.1} parent=1 // pred_fallthru
      _
    // Predicated region
    $region1814: #{tpu_custom_call.1} parent=1 // pred_check
      _
    $region1815: #{tpu_custom_call.1} parent=1 // pred_check_branch
      %2314 = sbr.rel (0) target = $region1817
    $region1816: #{tpu_custom_call.1} parent=1 // pred_region
      %2315 = vsyncadd [#allocation3], 16
    $region1817: #{tpu_custom_call.1} parent=1 // pred_fallthru
      _
    %s2316 = sadd.s32 %s2164, 4
    %s2317 = sld [smem:[#allocation5 + %s2316]]
    %s2318 = scalar_lea.vmem %s1, %s2317
    %s2319 = scalar_lea.vmem [#allocation2], 60
    // Predicated region
    $region1818: #{tpu_custom_call.1} parent=1 // pred_check
      _
    $region1819: #{tpu_custom_call.1} parent=1 // pred_check_branch
      %2321 = sbr.rel target = $region1821
    $region1820: #{tpu_custom_call.1} parent=1 // pred_region
      // Predicated region
      $region1833: #{tpu_custom_call.1} parent=1820 // pred_check
        _
      $region1834: #{tpu_custom_call.1} parent=1820 // pred_check_branch
        %2337 = sbr.rel (0) target = $region1836
      $region1835: #{tpu_custom_call.1} parent=1820 // pred_region
        %s2339 = ssub.s32 2, 1
        loop: start=0, step=1, limit=1
        $region1837: #{tpu_custom_call.1} parent=1835 // loop_pre_header
          _
        $region1838: #{tpu_custom_call.1} parent=1835 // loop_header
          %s2341 = sphi 0, %s2345
          %p2342 = scmp.ge.s32.totalorder %s2341, 1
          %s2346 = sphi %s2318, %s2318
          %s2347 = sphi %s2319, %s2319
        $region1839: #{tpu_custom_call.1} parent=1835 // loop_header_branch
          %2344 = sbr.rel (%p2342) target = $region1843
        $region1840: #{tpu_custom_call.1} parent=1835 // loop_body
          %v2348 = vld [vmem:[%s2346] sm:%s2339]
          %2349 = vst [vmem:[%s2347] sm:%s2339] %v2348
        $region1841: #{tpu_custom_call.1} parent=1835 // loop_footer
          %s2345 = sadd.s32 1, %s2341
        $region1842: #{tpu_custom_call.1} parent=1835 // loop_footer_branch
          %2340 = sbr.rel target = $region1838
        $region1843: #{tpu_custom_call.1} parent=1835 // loop_exit
          _
      $region1836: #{tpu_custom_call.1} parent=1820 // pred_fallthru
        _
    $region1821: #{tpu_custom_call.1} parent=1 // pred_fallthru
      _
    // Predicated region
    $region1822: #{tpu_custom_call.1} parent=1 // pred_check
      _
    $region1823: #{tpu_custom_call.1} parent=1 // pred_check_branch
      %2323 = sbr.rel (0) target = $region1825
    $region1824: #{tpu_custom_call.1} parent=1 // pred_region
      %s2325 = ssub.s32 2, 1
      loop: start=0, step=1, limit=1
      $region1826: #{tpu_custom_call.1} parent=1824 // loop_pre_header
        _
      $region1827: #{tpu_custom_call.1} parent=1824 // loop_header
        %s2327 = sphi 0, %s2331
        %p2328 = scmp.ge.s32.totalorder %s2327, 1
        %s2332 = sphi %s2318, %s2318
        %s2333 = sphi %s2319, %s2319
      $region1828: #{tpu_custom_call.1} parent=1824 // loop_header_branch
        %2330 = sbr.rel (%p2328) target = $region1832
      $region1829: #{tpu_custom_call.1} parent=1824 // loop_body
        %v2334 = vld [vmem:[%s2332] sm:%s2325]
        %2335 = vst [vmem:[%s2333] sm:%s2325] %v2334
      $region1830: #{tpu_custom_call.1} parent=1824 // loop_footer
        %s2331 = sadd.s32 1, %s2327
      $region1831: #{tpu_custom_call.1} parent=1824 // loop_footer_branch
        %2326 = sbr.rel target = $region1827
      $region1832: #{tpu_custom_call.1} parent=1824 // loop_exit
        _
    $region1825: #{tpu_custom_call.1} parent=1 // pred_fallthru
      _
    // Predicated region
    $region1844: #{tpu_custom_call.1} parent=1 // pred_check
      _
    $region1845: #{tpu_custom_call.1} parent=1 // pred_check_branch
      %2352 = sbr.rel (0) target = $region1847
    $region1846: #{tpu_custom_call.1} parent=1 // pred_region
      %2353 = vsyncadd [#allocation3], 16
    $region1847: #{tpu_custom_call.1} parent=1 // pred_fallthru
      _
    %s2354 = sadd.s32 %s2164, 5
    %s2355 = sld [smem:[#allocation5 + %s2354]]
    %s2356 = scalar_lea.vmem %s1, %s2355
    %s2357 = scalar_lea.vmem [#allocation2], 61
    // Predicated region
    $region1848: #{tpu_custom_call.1} parent=1 // pred_check
      _
    $region1849: #{tpu_custom_call.1} parent=1 // pred_check_branch
      %2359 = sbr.rel target = $region1851
    $region1850: #{tpu_custom_call.1} parent=1 // pred_region
      // Predicated region
      $region1863: #{tpu_custom_call.1} parent=1850 // pred_check
        _
      $region1864: #{tpu_custom_call.1} parent=1850 // pred_check_branch
        %2375 = sbr.rel (0) target = $region1866
      $region1865: #{tpu_custom_call.1} parent=1850 // pred_region
        %s2377 = ssub.s32 2, 1
        loop: start=0, step=1, limit=1
        $region1867: #{tpu_custom_call.1} parent=1865 // loop_pre_header
          _
        $region1868: #{tpu_custom_call.1} parent=1865 // loop_header
          %s2379 = sphi 0, %s2383
          %p2380 = scmp.ge.s32.totalorder %s2379, 1
          %s2384 = sphi %s2356, %s2356
          %s2385 = sphi %s2357, %s2357
        $region1869: #{tpu_custom_call.1} parent=1865 // loop_header_branch
          %2382 = sbr.rel (%p2380) target = $region1873
        $region1870: #{tpu_custom_call.1} parent=1865 // loop_body
          %v2386 = vld [vmem:[%s2384] sm:%s2377]
          %2387 = vst [vmem:[%s2385] sm:%s2377] %v2386
        $region1871: #{tpu_custom_call.1} parent=1865 // loop_footer
          %s2383 = sadd.s32 1, %s2379
        $region1872: #{tpu_custom_call.1} parent=1865 // loop_footer_branch
          %2378 = sbr.rel target = $region1868
        $region1873: #{tpu_custom_call.1} parent=1865 // loop_exit
          _
      $region1866: #{tpu_custom_call.1} parent=1850 // pred_fallthru
        _
    $region1851: #{tpu_custom_call.1} parent=1 // pred_fallthru
      _
    // Predicated region
    $region1852: #{tpu_custom_call.1} parent=1 // pred_check
      _
    $region1853: #{tpu_custom_call.1} parent=1 // pred_check_branch
      %2361 = sbr.rel (0) target = $region1855
    $region1854: #{tpu_custom_call.1} parent=1 // pred_region
      %s2363 = ssub.s32 2, 1
      loop: start=0, step=1, limit=1
      $region1856: #{tpu_custom_call.1} parent=1854 // loop_pre_header
        _
      $region1857: #{tpu_custom_call.1} parent=1854 // loop_header
        %s2365 = sphi 0, %s2369
        %p2366 = scmp.ge.s32.totalorder %s2365, 1
        %s2370 = sphi %s2356, %s2356
        %s2371 = sphi %s2357, %s2357
      $region1858: #{tpu_custom_call.1} parent=1854 // loop_header_branch
        %2368 = sbr.rel (%p2366) target = $region1862
      $region1859: #{tpu_custom_call.1} parent=1854 // loop_body
        %v2372 = vld [vmem:[%s2370] sm:%s2363]
        %2373 = vst [vmem:[%s2371] sm:%s2363] %v2372
      $region1860: #{tpu_custom_call.1} parent=1854 // loop_footer
        %s2369 = sadd.s32 1, %s2365
      $region1861: #{tpu_custom_call.1} parent=1854 // loop_footer_branch
        %2364 = sbr.rel target = $region1857
      $region1862: #{tpu_custom_call.1} parent=1854 // loop_exit
        _
    $region1855: #{tpu_custom_call.1} parent=1 // pred_fallthru
      _
    // Predicated region
    $region1874: #{tpu_custom_call.1} parent=1 // pred_check
      _
    $region1875: #{tpu_custom_call.1} parent=1 // pred_check_branch
      %2390 = sbr.rel (0) target = $region1877
    $region1876: #{tpu_custom_call.1} parent=1 // pred_region
      %2391 = vsyncadd [#allocation3], 16
    $region1877: #{tpu_custom_call.1} parent=1 // pred_fallthru
      _
    %s2392 = sadd.s32 %s2164, 6
    %s2393 = sld [smem:[#allocation5 + %s2392]]
    %s2394 = scalar_lea.vmem %s1, %s2393
    %s2395 = scalar_lea.vmem [#allocation2], 62
    // Predicated region
    $region1878: #{tpu_custom_call.1} parent=1 // pred_check
      _
    $region1879: #{tpu_custom_call.1} parent=1 // pred_check_branch
      %2397 = sbr.rel target = $region1881
    $region1880: #{tpu_custom_call.1} parent=1 // pred_region
      // Predicated region
      $region1893: #{tpu_custom_call.1} parent=1880 // pred_check
        _
      $region1894: #{tpu_custom_call.1} parent=1880 // pred_check_branch
        %2413 = sbr.rel (0) target = $region1896
      $region1895: #{tpu_custom_call.1} parent=1880 // pred_region
        %s2415 = ssub.s32 2, 1
        loop: start=0, step=1, limit=1
        $region1897: #{tpu_custom_call.1} parent=1895 // loop_pre_header
          _
        $region1898: #{tpu_custom_call.1} parent=1895 // loop_header
          %s2417 = sphi 0, %s2421
          %p2418 = scmp.ge.s32.totalorder %s2417, 1
          %s2422 = sphi %s2394, %s2394
          %s2423 = sphi %s2395, %s2395
        $region1899: #{tpu_custom_call.1} parent=1895 // loop_header_branch
          %2420 = sbr.rel (%p2418) target = $region1903
        $region1900: #{tpu_custom_call.1} parent=1895 // loop_body
          %v2424 = vld [vmem:[%s2422] sm:%s2415]
          %2425 = vst [vmem:[%s2423] sm:%s2415] %v2424
        $region1901: #{tpu_custom_call.1} parent=1895 // loop_footer
          %s2421 = sadd.s32 1, %s2417
        $region1902: #{tpu_custom_call.1} parent=1895 // loop_footer_branch
          %2416 = sbr.rel target = $region1898
        $region1903: #{tpu_custom_call.1} parent=1895 // loop_exit
          _
      $region1896: #{tpu_custom_call.1} parent=1880 // pred_fallthru
        _
    $region1881: #{tpu_custom_call.1} parent=1 // pred_fallthru
      _
    // Predicated region
    $region1882: #{tpu_custom_call.1} parent=1 // pred_check
      _
    $region1883: #{tpu_custom_call.1} parent=1 // pred_check_branch
      %2399 = sbr.rel (0) target = $region1885
    $region1884: #{tpu_custom_call.1} parent=1 // pred_region
      %s2401 = ssub.s32 2, 1
      loop: start=0, step=1, limit=1
      $region1886: #{tpu_custom_call.1} parent=1884 // loop_pre_header
        _
      $region1887: #{tpu_custom_call.1} parent=1884 // loop_header
        %s2403 = sphi 0, %s2407
        %p2404 = scmp.ge.s32.totalorder %s2403, 1
        %s2408 = sphi %s2394, %s2394
        %s2409 = sphi %s2395, %s2395
      $region1888: #{tpu_custom_call.1} parent=1884 // loop_header_branch
        %2406 = sbr.rel (%p2404) target = $region1892
      $region1889: #{tpu_custom_call.1} parent=1884 // loop_body
        %v2410 = vld [vmem:[%s2408] sm:%s2401]
        %2411 = vst [vmem:[%s2409] sm:%s2401] %v2410
      $region1890: #{tpu_custom_call.1} parent=1884 // loop_footer
        %s2407 = sadd.s32 1, %s2403
      $region1891: #{tpu_custom_call.1} parent=1884 // loop_footer_branch
        %2402 = sbr.rel target = $region1887
      $region1892: #{tpu_custom_call.1} parent=1884 // loop_exit
        _
    $region1885: #{tpu_custom_call.1} parent=1 // pred_fallthru
      _
    // Predicated region
    $region1904: #{tpu_custom_call.1} parent=1 // pred_check
      _
    $region1905: #{tpu_custom_call.1} parent=1 // pred_check_branch
      %2428 = sbr.rel (0) target = $region1907
    $region1906: #{tpu_custom_call.1} parent=1 // pred_region
      %2429 = vsyncadd [#allocation3], 16
    $region1907: #{tpu_custom_call.1} parent=1 // pred_fallthru
      _
    %s2430 = sadd.s32 %s2164, 7
    %s2431 = sld [smem:[#allocation5 + %s2430]]
    %s2432 = scalar_lea.vmem %s1, %s2431
    %s2433 = scalar_lea.vmem [#allocation2], 63
    // Predicated region
    $region1908: #{tpu_custom_call.1} parent=1 // pred_check
      _
    $region1909: #{tpu_custom_call.1} parent=1 // pred_check_branch
      %2435 = sbr.rel target = $region1911
    $region1910: #{tpu_custom_call.1} parent=1 // pred_region
      // Predicated region
      $region1923: #{tpu_custom_call.1} parent=1910 // pred_check
        _
      $region1924: #{tpu_custom_call.1} parent=1910 // pred_check_branch
        %2451 = sbr.rel (0) target = $region1926
      $region1925: #{tpu_custom_call.1} parent=1910 // pred_region
        %s2453 = ssub.s32 2, 1
        loop: start=0, step=1, limit=1
        $region1927: #{tpu_custom_call.1} parent=1925 // loop_pre_header
          _
        $region1928: #{tpu_custom_call.1} parent=1925 // loop_header
          %s2455 = sphi 0, %s2459
          %p2456 = scmp.ge.s32.totalorder %s2455, 1
          %s2460 = sphi %s2432, %s2432
          %s2461 = sphi %s2433, %s2433
        $region1929: #{tpu_custom_call.1} parent=1925 // loop_header_branch
          %2458 = sbr.rel (%p2456) target = $region1933
        $region1930: #{tpu_custom_call.1} parent=1925 // loop_body
          %v2462 = vld [vmem:[%s2460] sm:%s2453]
          %2463 = vst [vmem:[%s2461] sm:%s2453] %v2462
        $region1931: #{tpu_custom_call.1} parent=1925 // loop_footer
          %s2459 = sadd.s32 1, %s2455
        $region1932: #{tpu_custom_call.1} parent=1925 // loop_footer_branch
          %2454 = sbr.rel target = $region1928
        $region1933: #{tpu_custom_call.1} parent=1925 // loop_exit
          _
      $region1926: #{tpu_custom_call.1} parent=1910 // pred_fallthru
        _
    $region1911: #{tpu_custom_call.1} parent=1 // pred_fallthru
      _
    // Predicated region
    $region1912: #{tpu_custom_call.1} parent=1 // pred_check
      _
    $region1913: #{tpu_custom_call.1} parent=1 // pred_check_branch
      %2437 = sbr.rel (0) target = $region1915
    $region1914: #{tpu_custom_call.1} parent=1 // pred_region
      %s2439 = ssub.s32 2, 1
      loop: start=0, step=1, limit=1
      $region1916: #{tpu_custom_call.1} parent=1914 // loop_pre_header
        _
      $region1917: #{tpu_custom_call.1} parent=1914 // loop_header
        %s2441 = sphi 0, %s2445
        %p2442 = scmp.ge.s32.totalorder %s2441, 1
        %s2446 = sphi %s2432, %s2432
        %s2447 = sphi %s2433, %s2433
      $region1918: #{tpu_custom_call.1} parent=1914 // loop_header_branch
        %2444 = sbr.rel (%p2442) target = $region1922
      $region1919: #{tpu_custom_call.1} parent=1914 // loop_body
        %v2448 = vld [vmem:[%s2446] sm:%s2439]
        %2449 = vst [vmem:[%s2447] sm:%s2439] %v2448
      $region1920: #{tpu_custom_call.1} parent=1914 // loop_footer
        %s2445 = sadd.s32 1, %s2441
      $region1921: #{tpu_custom_call.1} parent=1914 // loop_footer_branch
        %2440 = sbr.rel target = $region1917
      $region1922: #{tpu_custom_call.1} parent=1914 // loop_exit
        _
    $region1915: #{tpu_custom_call.1} parent=1 // pred_fallthru
      _
    // Predicated region
    $region1934: #{tpu_custom_call.1} parent=1 // pred_check
      _
    $region1935: #{tpu_custom_call.1} parent=1 // pred_check_branch
      %2466 = sbr.rel (0) target = $region1937
    $region1936: #{tpu_custom_call.1} parent=1 // pred_region
      %2467 = vsyncadd [#allocation3], 16
    $region1937: #{tpu_custom_call.1} parent=1 // pred_fallthru
      _
    %s2468 = smul.u32 1, 1
    %s2469 = sshll.u32 %s2468, 4
    %2470 = dma.done [#allocation3], %s2469
    %s2471 = sshll.u32 %s2468, 4
    %2472 = dma.done [#allocation3], %s2471
    %s2473 = sshll.u32 %s2468, 4
    %2474 = dma.done [#allocation3], %s2473
    %s2475 = sshll.u32 %s2468, 4
    %2476 = dma.done [#allocation3], %s2475
    %s2477 = sshll.u32 %s2468, 4
    %2478 = dma.done [#allocation3], %s2477
    %s2479 = sshll.u32 %s2468, 4
    %2480 = dma.done [#allocation3], %s2479
    %s2481 = sshll.u32 %s2468, 4
    %2482 = dma.done [#allocation3], %s2481
    %s2483 = sshll.u32 %s2468, 4
    %2484 = dma.done [#allocation3], %s2483
    %s2485 = sshll.u32 %s2468, 4
    %2486 = dma.done [#allocation3], %s2485
    %s2487 = sshll.u32 %s2468, 4
    %2488 = dma.done [#allocation3], %s2487
    %s2489 = sshll.u32 %s2468, 4
    %2490 = dma.done [#allocation3], %s2489
    %s2491 = sshll.u32 %s2468, 4
    %2492 = dma.done [#allocation3], %s2491
    %s2493 = sshll.u32 %s2468, 4
    %2494 = dma.done [#allocation3], %s2493
    %s2495 = sshll.u32 %s2468, 4
    %2496 = dma.done [#allocation3], %s2495
    %s2497 = sshll.u32 %s2468, 4
    %2498 = dma.done [#allocation3], %s2497
    %s2499 = sshll.u32 %s2468, 4
    %2500 = dma.done [#allocation3], %s2499
    %s2501 = sshll.u32 %s2468, 4
    %2502 = dma.done [#allocation3], %s2501
    %s2503 = sshll.u32 %s2468, 4
    %2504 = dma.done [#allocation3], %s2503
    %s2505 = sshll.u32 %s2468, 4
    %2506 = dma.done [#allocation3], %s2505
    %s2507 = sshll.u32 %s2468, 4
    %2508 = dma.done [#allocation3], %s2507
    %s2509 = sshll.u32 %s2468, 4
    %2510 = dma.done [#allocation3], %s2509
    %s2511 = sshll.u32 %s2468, 4
    %2512 = dma.done [#allocation3], %s2511
    %s2513 = sshll.u32 %s2468, 4
    %2514 = dma.done [#allocation3], %s2513
    %s2515 = sshll.u32 %s2468, 4
    %2516 = dma.done [#allocation3], %s2515
    %s2517 = sshll.u32 %s2468, 4
    %2518 = dma.done [#allocation3], %s2517
    %s2519 = sshll.u32 %s2468, 4
    %2520 = dma.done [#allocation3], %s2519
    %s2521 = sshll.u32 %s2468, 4
    %2522 = dma.done [#allocation3], %s2521
    %s2523 = sshll.u32 %s2468, 4
    %2524 = dma.done [#allocation3], %s2523
    %s2525 = sshll.u32 %s2468, 4
    %2526 = dma.done [#allocation3], %s2525
    %s2527 = sshll.u32 %s2468, 4
    %2528 = dma.done [#allocation3], %s2527
    %s2529 = sshll.u32 %s2468, 4
    %2530 = dma.done [#allocation3], %s2529
    %s2531 = sshll.u32 %s2468, 4
    %2532 = dma.done [#allocation3], %s2531
    %s2533 = sshll.u32 %s2468, 4
    %2534 = dma.done [#allocation3], %s2533
    %s2535 = sshll.u32 %s2468, 4
    %2536 = dma.done [#allocation3], %s2535
    %s2537 = sshll.u32 %s2468, 4
    %2538 = dma.done [#allocation3], %s2537
    %s2539 = sshll.u32 %s2468, 4
    %2540 = dma.done [#allocation3], %s2539
    %s2541 = sshll.u32 %s2468, 4
    %2542 = dma.done [#allocation3], %s2541
    %s2543 = sshll.u32 %s2468, 4
    %2544 = dma.done [#allocation3], %s2543
    %s2545 = sshll.u32 %s2468, 4
    %2546 = dma.done [#allocation3], %s2545
    %s2547 = sshll.u32 %s2468, 4
    %2548 = dma.done [#allocation3], %s2547
    %s2549 = sshll.u32 %s2468, 4
    %2550 = dma.done [#allocation3], %s2549
    %s2551 = sshll.u32 %s2468, 4
    %2552 = dma.done [#allocation3], %s2551
    %s2553 = sshll.u32 %s2468, 4
    %2554 = dma.done [#allocation3], %s2553
    %s2555 = sshll.u32 %s2468, 4
    %2556 = dma.done [#allocation3], %s2555
    %s2557 = sshll.u32 %s2468, 4
    %2558 = dma.done [#allocation3], %s2557
    %s2559 = sshll.u32 %s2468, 4
    %2560 = dma.done [#allocation3], %s2559
    %s2561 = sshll.u32 %s2468, 4
    %2562 = dma.done [#allocation3], %s2561
    %s2563 = sshll.u32 %s2468, 4
    %2564 = dma.done [#allocation3], %s2563
    %s2565 = sshll.u32 %s2468, 4
    %2566 = dma.done [#allocation3], %s2565
    %s2567 = sshll.u32 %s2468, 4
    %2568 = dma.done [#allocation3], %s2567
    %s2569 = sshll.u32 %s2468, 4
    %2570 = dma.done [#allocation3], %s2569
    %s2571 = sshll.u32 %s2468, 4
    %2572 = dma.done [#allocation3], %s2571
    %s2573 = sshll.u32 %s2468, 4
    %2574 = dma.done [#allocation3], %s2573
    %s2575 = sshll.u32 %s2468, 4
    %2576 = dma.done [#allocation3], %s2575
    %s2577 = sshll.u32 %s2468, 4
    %2578 = dma.done [#allocation3], %s2577
    %s2579 = sshll.u32 %s2468, 4
    %2580 = dma.done [#allocation3], %s2579
    %s2581 = sshll.u32 %s2468, 4
    %2582 = dma.done [#allocation3], %s2581
    %s2583 = sshll.u32 %s2468, 4
    %2584 = dma.done [#allocation3], %s2583
    %s2585 = sshll.u32 %s2468, 4
    %2586 = dma.done [#allocation3], %s2585
    %s2587 = sshll.u32 %s2468, 4
    %2588 = dma.done [#allocation3], %s2587
    %s2589 = sshll.u32 %s2468, 4
    %2590 = dma.done [#allocation3], %s2589
    %s2591 = sshll.u32 %s2468, 4
    %2592 = dma.done [#allocation3], %s2591
    %s2593 = sshll.u32 %s2468, 4
    %2594 = dma.done [#allocation3], %s2593
    %s2595 = sshll.u32 %s2468, 4
    %2596 = dma.done [#allocation3], %s2595
    %v2597 = vld [vmem:[#allocation2] sm:$0xff]
    %v2598 = vld [vmem:[#allocation2 + $0x8] sm:$0xff]
    %v2599 = vld [vmem:[#allocation2 + $0x10] sm:$0xff]
    %v2600 = vld [vmem:[#allocation2 + $0x18] sm:$0xff]
    %v2601 = vld [vmem:[#allocation2 + $0x20] sm:$0xff]
    %v2602 = vld [vmem:[#allocation2 + $0x28] sm:$0xff]
    %v2603 = vld [vmem:[#allocation2 + $0x30] sm:$0xff]
    %v2604 = vld [vmem:[#allocation2 + $0x38] sm:$0xff]
    %vm2605 = vcmask 523264
    %v2606 = vsel %vm2605, %v2597, 0.0
    %v2607 = vrot.slane %v2606, 4
    %v2608 = vadd.f32 %v2606, %v2607
    %v2609 = vrot.slane %v2608, 2
    %v2610 = vadd.f32 %v2608, %v2609
    %v2611 = vrot.slane %v2610, 1
    %v2612 = vadd.f32 %v2610, %v2611
    %v2613 = vsel %vm2605, %v2598, 0.0
    %v2614 = vrot.slane %v2613, 4
    %v2615 = vadd.f32 %v2613, %v2614
    %v2616 = vrot.slane %v2615, 2
    %v2617 = vadd.f32 %v2615, %v2616
    %v2618 = vrot.slane %v2617, 1
    %v2619 = vadd.f32 %v2617, %v2618
    %v2620 = vsel %vm2605, %v2599, 0.0
    %v2621 = vrot.slane %v2620, 4
    %v2622 = vadd.f32 %v2620, %v2621
    %v2623 = vrot.slane %v2622, 2
    %v2624 = vadd.f32 %v2622, %v2623
    %v2625 = vrot.slane %v2624, 1
    %v2626 = vadd.f32 %v2624, %v2625
    %v2627 = vsel %vm2605, %v2600, 0.0
    %v2628 = vrot.slane %v2627, 4
    %v2629 = vadd.f32 %v2627, %v2628
    %v2630 = vrot.slane %v2629, 2
    %v2631 = vadd.f32 %v2629, %v2630
    %v2632 = vrot.slane %v2631, 1
    %v2633 = vadd.f32 %v2631, %v2632
    %v2634 = vsel %vm2605, %v2601, 0.0
    %v2635 = vrot.slane %v2634, 4
    %v2636 = vadd.f32 %v2634, %v2635
    %v2637 = vrot.slane %v2636, 2
    %v2638 = vadd.f32 %v2636, %v2637
    %v2639 = vrot.slane %v2638, 1
    %v2640 = vadd.f32 %v2638, %v2639
    %v2641 = vsel %vm2605, %v2602, 0.0
    %v2642 = vrot.slane %v2641, 4
    %v2643 = vadd.f32 %v2641, %v2642
    %v2644 = vrot.slane %v2643, 2
    %v2645 = vadd.f32 %v2643, %v2644
    %v2646 = vrot.slane %v2645, 1
    %v2647 = vadd.f32 %v2645, %v2646
    %v2648 = vsel %vm2605, %v2603, 0.0
    %v2649 = vrot.slane %v2648, 4
    %v2650 = vadd.f32 %v2648, %v2649
    %v2651 = vrot.slane %v2650, 2
    %v2652 = vadd.f32 %v2650, %v2651
    %v2653 = vrot.slane %v2652, 1
    %v2654 = vadd.f32 %v2652, %v2653
    %v2655 = vsel %vm2605, %v2604, 0.0
    %v2656 = vrot.slane %v2655, 4
    %v2657 = vadd.f32 %v2655, %v2656
    %v2658 = vrot.slane %v2657, 2
    %v2659 = vadd.f32 %v2657, %v2658
    %v2660 = vrot.slane %v2659, 1
    %v2661 = vadd.f32 %v2659, %v2660
    %v2662 = vpack.c.bf16 %v2612, %v2612
    %v2663 = vpack.c.bf16 %v2619, %v2619
    %v2664 = vpack.c.bf16 %v2626, %v2626
    %v2665 = vpack.c.bf16 %v2633, %v2633
    %v2666 = vpack.c.bf16 %v2640, %v2640
    %v2667 = vpack.c.bf16 %v2647, %v2647
    %v2668 = vpack.c.bf16 %v2654, %v2654
    %v2669 = vpack.c.bf16 %v2661, %v2661
    %v2670 = vld [vmem:[%s2] sm:$0xf]
    %v2671 = vld [vmem:[%s2 + $0x4] sm:$0xf]
    %v2672 = vld [vmem:[%s2 + $0x8] sm:$0xf]
    %v2673 = vld [vmem:[%s2 + $0xc] sm:$0xf]
    %v2674 = vld [vmem:[%s2 + $0x10] sm:$0xf]
    %v2675 = vld [vmem:[%s2 + $0x14] sm:$0xf]
    %v2676 = vld [vmem:[%s2 + $0x18] sm:$0xf]
    %v2677 = vld [vmem:[%s2 + $0x1c] sm:$0xf]
    %v2678 = vld [vmem:[%s3] sm:$0x1]
    %v2680 = vperm.slane %v2678, 0
    %v2690 = vunpack.c.l.b16 %v2662
    %v2691 = vunpack.c.l.b16 %v2663
    %v2692 = vunpack.c.l.b16 %v2664
    %v2693 = vunpack.c.l.b16 %v2665
    %v2694 = vunpack.c.l.b16 %v2666
    %v2695 = vunpack.c.l.b16 %v2667
    %v2696 = vunpack.c.l.b16 %v2668
    %v2697 = vunpack.c.l.b16 %v2669
    %vm2698 = vcmask 1041409
    %v2699 = vsel %vm2698, %v2691, %v2690
    %vm2700 = vcmask 1042434
    %v2701 = vsel %vm2700, %v2692, %v2699
    %vm2702 = vcmask 1043459
    %v2703 = vsel %vm2702, %v2693, %v2701
    %vm2704 = vcmask 1044484
    %v2705 = vsel %vm2704, %v2694, %v2703
    %vm2706 = vcmask 1045509
    %v2707 = vsel %vm2706, %v2695, %v2705
    %vm2708 = vcmask 1046534
    %v2709 = vsel %vm2708, %v2696, %v2707
    %vm2710 = vcmask 1047559
    %v2711 = vsel %vm2710, %v2697, %v2709
    %v2712 = vpack.c.b16 %v2711, %v2711
    %v2721 = vunpack.c.l.b16 %v2670
    %v2722 = vunpack.c.l.b16 %v2671
    %v2723 = vunpack.c.l.b16 %v2672
    %v2724 = vunpack.c.l.b16 %v2673
    %v2725 = vunpack.c.l.b16 %v2674
    %v2726 = vunpack.c.l.b16 %v2675
    %v2727 = vunpack.c.l.b16 %v2676
    %v2728 = vunpack.c.l.b16 %v2677
    %v2729 = vpack.c.b16 %v2722, %v2721
    %v2730 = vpack.c.b16 %v2724, %v2723
    %v2731 = vpack.c.b16 %v2726, %v2725
    %v2732 = vpack.c.b16 %v2728, %v2727
    %v2738 = vsel %vm2605, %v2712, 0
    %2740 = vmatpush.bf16.msra.mxu0 0
    %2741 = vmatpush.bf16.msra.mxu0 0
    %2742 = vmatpush.bf16.msra.mxu0 0
    %2743 = vmatpush.bf16.msra.mxu0 0
    %2744 = vmatpush.bf16.msra.mxu0 %v2732
    %2745 = vmatpush.bf16.msra.mxu0 %v2731
    %2746 = vmatpush.bf16.msra.mxu0 %v2730
    %2747 = vmatpush.bf16.msra.mxu0 %v2729
    %2748 = vmatmul.bf16.gmra.mxu0 %v2738
    %v2749 = vpop.f32.mrf.mxu0
    %v2750 = vadd.f32 %v2680, %v2749
    %v2751 = vpop.f32.mrf.mxu0
    %2752 = vdwg.mxu0
    %v2753 = vmax.f32 %v2750, 0.0
    %v2754 = vpack.c.bf16 %v2753, %v2753
    %v2755 = vld [vmem:[%s4] sm:$0xf]
    %v2756 = vld [vmem:[%s4 + $0x4] sm:$0xf]
    %v2757 = vld [vmem:[%s4 + $0x8] sm:$0xf]
    %v2758 = vld [vmem:[%s4 + $0xc] sm:$0xf]
    %v2759 = vld [vmem:[%s4 + $0x10] sm:$0xf]
    %v2760 = vld [vmem:[%s4 + $0x14] sm:$0xf]
    %v2761 = vld [vmem:[%s4 + $0x18] sm:$0xf]
    %v2762 = vld [vmem:[%s4 + $0x1c] sm:$0xf]
    %v2763 = vld [vmem:[%s4 + $0x20] sm:$0xf]
    %v2764 = vld [vmem:[%s4 + $0x24] sm:$0xf]
    %v2765 = vld [vmem:[%s4 + $0x28] sm:$0xf]
    %v2766 = vld [vmem:[%s4 + $0x2c] sm:$0xf]
    %v2767 = vld [vmem:[%s4 + $0x30] sm:$0xf]
    %v2768 = vld [vmem:[%s4 + $0x34] sm:$0xf]
    %v2769 = vld [vmem:[%s4 + $0x38] sm:$0xf]
    %v2770 = vld [vmem:[%s4 + $0x3c] sm:$0xf]
    %v2771 = vld [vmem:[%s5] sm:$0x1]
    %v2773 = vperm.slane %v2771, 0
    %v2791 = vunpack.c.l.b16 %v2755
    %v2792 = vunpack.c.l.b16 %v2756
    %v2793 = vunpack.c.l.b16 %v2757
    %v2794 = vunpack.c.l.b16 %v2758
    %v2795 = vunpack.c.l.b16 %v2759
    %v2796 = vunpack.c.l.b16 %v2760
    %v2797 = vunpack.c.l.b16 %v2761
    %v2798 = vunpack.c.l.b16 %v2762
    %v2799 = vunpack.c.l.b16 %v2763
    %v2800 = vunpack.c.l.b16 %v2764
    %v2801 = vunpack.c.l.b16 %v2765
    %v2802 = vunpack.c.l.b16 %v2766
    %v2803 = vunpack.c.l.b16 %v2767
    %v2804 = vunpack.c.l.b16 %v2768
    %v2805 = vunpack.c.l.b16 %v2769
    %v2806 = vunpack.c.l.b16 %v2770
    %v2807 = vpack.c.b16 %v2792, %v2791
    %v2808 = vpack.c.b16 %v2794, %v2793
    %v2809 = vpack.c.b16 %v2796, %v2795
    %v2810 = vpack.c.b16 %v2798, %v2797
    %v2811 = vpack.c.b16 %v2800, %v2799
    %v2812 = vpack.c.b16 %v2802, %v2801
    %v2813 = vpack.c.b16 %v2804, %v2803
    %v2814 = vpack.c.b16 %v2806, %v2805
    %2823 = vmatpush.bf16.msra.mxu0 %v2814
    %2824 = vmatpush.bf16.msra.mxu0 %v2813
    %2825 = vmatpush.bf16.msra.mxu0 %v2812
    %2826 = vmatpush.bf16.msra.mxu0 %v2811
    %2827 = vmatpush.bf16.msra.mxu0 %v2810
    %2828 = vmatpush.bf16.msra.mxu0 %v2809
    %2829 = vmatpush.bf16.msra.mxu0 %v2808
    %2830 = vmatpush.bf16.msra.mxu0 %v2807
    %2831 = vmatmul.bf16.gmra.mxu0 %v2754
    %v2832 = vpop.f32.mrf.mxu0
    %v2833 = vadd.f32 %v2773, %v2832
    %v2834 = vpop.f32.mrf.mxu0
    %2835 = vdwg.mxu0
    %2836 = vmax.xlane.f32.xlu0 %v2833
    %v2837 = vpop.xlane.xlu0 %2836
    %v2838 = vsub.f32 %v2833, %v2837
    %v2839 = vmul.f32 %v2838, 1.442695
    %v2840 = vpow.pop %v2839
    %2841 = vadd.xlane.f32.xlu0 %v2840
    %v2842 = vpop.xlane.xlu0 %2841
    %v2843 = vlog2.pop %v2842
    %v2844 = vmul.f32 %v2843, 0.6931472
    %v2845 = vsub.f32 %v2838, %v2844
    %2846 = vst [vmem:[#allocation6] sm:$0xff] %v2845
    // Predicated region
    $region1938: #{tpu_custom_call.1} parent=1 // pred_check
      _
    $region1939: #{tpu_custom_call.1} parent=1 // pred_check_branch
      %2848 = sbr.rel (0) target = $region1941
    $region1940: #{tpu_custom_call.1} parent=1 // pred_region
      %2850 = vsyncadd [#allocation7], 0
      %s2852 = sshll.u32 [#allocation6], 4
      %s2853 = int_to_ptr.vmem [resolvable:$true] %s2852
      %s2854 = sshll.u32 %s6, 4
      %s2855 = int_to_ptr.hbm [resolvable:$true] %s2854
      %2857 = dma.vmem_to_hbm [thread:$0]  %s2853, 128, %s2855, [#allocation7]
    $region1941: #{tpu_custom_call.1} parent=1 // pred_fallthru
      _
    // Predicated region
    $region1942: #{tpu_custom_call.1} parent=1 // pred_check
      _
    $region1943: #{tpu_custom_call.1} parent=1 // pred_check_branch
      %2859 = sbr.rel (0) target = $region1945
    $region1944: #{tpu_custom_call.1} parent=1 // pred_region
      %2861 = dma.done [#allocation7], 128
    $region1945: #{tpu_custom_call.1} parent=1 // pred_fallthru
      _
    %2862 = vsyncpa [#allocation7], 1
  %2863 = vsyncmov [#allocation3]
  %s2864 = vpop.sfrf %2863
  %p2865 = scmp.eq.s32.totalorder %s2864, 0
  %p2866 = pneg %p2865
  %2868 = shalt.err (%p2866)

</llo_original>
